<compile_context>
chip_gen: v7x
topology: tpu7x:2x2x1
jax: 0.10.0
libtpu: 0.0.40
codegen_flags: <defaults>
</compile_context>

<pallas_src>
import math
from functools import partial

import jax
import jax.numpy as jnp
from jax.experimental import pallas as pl
from jax.experimental.pallas import tpu as pltpu

# ---------------- model hyper-parameters (match the PyTorch module) ----------
VOCAB_SIZE = 50
EMB_DIM = 128
N_LAYERS = 3
N_HEADS = 4
FF_DIM = 256
HEAD_DIM = EMB_DIM // N_HEADS
LN_EPS = 1e-5                       # PyTorch LayerNorm default
ATTN_SCALE = 1.0 / math.sqrt(HEAD_DIM)

# ---------------- small example shapes ---------------------------------------
BATCH = 2
SEQ = 8
MAX_SEQ = 64                        # positional-encoding buffer length (>= S)

# packed bias / LayerNorm slab: one (8, 3*EMB_DIM) f32 block per layer
VEC_W = 3 * EMB_DIM
(ROW_BQKV, ROW_B1, ROW_BO, ROW_G1, ROW_BE1, ROW_B2, ROW_G2, ROW_BE2) = range(8)


def _layernorm(x, gamma, beta):
    mu = jnp.mean(x, axis=-1, keepdims=True)
    xc = x - mu
    var = jnp.mean(xc * xc, axis=-1, keepdims=True)
    return xc * jax.lax.rsqrt(var + LN_EPS) * gamma + beta


# =============================================================================
# Fused Pallas kernel: all 3 post-norm encoder layers in one call
# =============================================================================
def fused_encoder_kernel(x_ref, wqkv_ref, wo_ref, w1_ref, w2_ref, vec_ref,
                         o_ref, *, b_tile, seq):
    bs = b_tile * seq
    x = x_ref[...].reshape(bs, EMB_DIM)                         # (rows, D) f32

    for l in range(N_LAYERS):                                   # static unroll
        vec = vec_ref[l]                                        # (8, 3D) f32
        bqkv = vec[ROW_BQKV:ROW_BQKV + 1, :]
        b1 = vec[ROW_B1:ROW_B1 + 1, :FF_DIM]
        bo = vec[ROW_BO:ROW_BO + 1, :EMB_DIM]
        g1 = vec[ROW_G1:ROW_G1 + 1, :EMB_DIM]
        be1 = vec[ROW_BE1:ROW_BE1 + 1, :EMB_DIM]
        b2 = vec[ROW_B2:ROW_B2 + 1, :EMB_DIM]
        g2 = vec[ROW_G2:ROW_G2 + 1, :EMB_DIM]
        be2 = vec[ROW_BE2:ROW_BE2 + 1, :EMB_DIM]

        # Fused QKV projection on the flattened (rows, D) slab.  The query
        # 1/sqrt(head_dim) scale is already folded into wqkv / bqkv.
        qkv = jnp.dot(x.astype(jnp.bfloat16), wqkv_ref[l],
                      preferred_element_type=jnp.float32) + bqkv  # (rows, 3D)
        q = qkv[:, :EMB_DIM].reshape(b_tile, seq, EMB_DIM)
        k = qkv[:, EMB_DIM:2 * EMB_DIM].reshape(b_tile, seq, EMB_DIM)
        v = qkv[:, 2 * EMB_DIM:].reshape(b_tile, seq, EMB_DIM)

        # Stack heads along a new leading batch axis so all (batch, head)
        # pairs go through ONE batched score matmul, ONE softmax stream and
        # ONE batched context matmul per layer.
        def stack_heads(t):
            return jnp.concatenate(
                [t[:, :, h * HEAD_DIM:(h + 1) * HEAD_DIM]
                 for h in range(N_HEADS)], axis=0)              # (H*b, S, hd)

        qn, kn, vn = stack_heads(q), stack_heads(k), stack_heads(v)
        s = jnp.einsum("nqd,nkd->nqk", qn, kn,
                       preferred_element_type=jnp.float32)      # (H*b, S, S)
        s = s - jnp.max(s, axis=-1, keepdims=True)
        p = jnp.exp(s)
        p = p * pl.reciprocal(jnp.sum(p, axis=-1, keepdims=True), approx=True)
        ctxn = jnp.einsum("nqk,nkd->nqd", p, vn,
                          preferred_element_type=jnp.float32)   # (H*b, S, hd)
        ctx = jnp.concatenate(
            [ctxn[h * b_tile:(h + 1) * b_tile] for h in range(N_HEADS)],
            axis=-1).reshape(bs, EMB_DIM)

        attn = jnp.dot(ctx.astype(jnp.bfloat16), wo_ref[l],
                       preferred_element_type=jnp.float32) + bo
        y = _layernorm(x + attn, g1, be1)                        # post-norm 1

        h1 = jnp.dot(y.astype(jnp.bfloat16), w1_ref[l],
                     preferred_element_type=jnp.float32) + b1
        h1 = jnp.maximum(h1, 0.0)                                # ReLU
        ff = jnp.dot(h1.astype(jnp.bfloat16), w2_ref[l],
                     preferred_element_type=jnp.float32) + b2
        x = _layernorm(y + ff, g2, be2)                          # post-norm 2

    o_ref[...] = x.reshape(b_tile, seq, EMB_DIM).astype(o_ref.dtype)


def _pick_batch_tile(batch, seq, max_rows=1024):
    """Largest divisor of `batch` keeping <= max_rows tokens resident per step."""
    bt = max(1, min(batch, max_rows // max(seq, 1)))
    while batch % bt:
        bt -= 1
    return bt


def semantic_encoder_forward(src, fused):
    """src: (B, S) int32 token ids. fused: packed parameter dict."""
    B, S = src.shape
    # Embedding gather + positional-encoding add are layout plumbing: done in
    # the wrapper so the kernel never pays for an f32 one-hot MXU matmul.
    x = jnp.take(fused["emb"], src, axis=0) + fused["pe"][None, :S]

    b_tile = _pick_batch_tile(B, S)
    const3 = lambda i: (0, 0, 0)

    out = pl.pallas_call(
        partial(fused_encoder_kernel, b_tile=b_tile, seq=S),
        out_shape=jax.ShapeDtypeStruct((B, S, EMB_DIM), jnp.float32),
        grid_spec=pltpu.PrefetchScalarGridSpec(
            num_scalar_prefetch=0,
            grid=(B // b_tile,),
            in_specs=[
                pl.BlockSpec((b_tile, S, EMB_DIM), lambda i: (i, 0, 0)),
                pl.BlockSpec((N_LAYERS, EMB_DIM, 3 * EMB_DIM), const3),
                pl.BlockSpec((N_LAYERS, EMB_DIM, EMB_DIM), const3),
                pl.BlockSpec((N_LAYERS, EMB_DIM, FF_DIM), const3),
                pl.BlockSpec((N_LAYERS, FF_DIM, EMB_DIM), const3),
                pl.BlockSpec((N_LAYERS, 8, VEC_W), const3),
            ],
            out_specs=pl.BlockSpec((b_tile, S, EMB_DIM), lambda i: (i, 0, 0)),
        ),
        compiler_params=pltpu.CompilerParams(
            dimension_semantics=("parallel",)),
    )(x, fused["wqkv"], fused["wo"], fused["w1"], fused["w2"], fused["vecs"])
    return out


# =============================================================================
# Parameter construction (deterministic, synthetic) + packing for the kernel
# =============================================================================
def positional_encoding(max_len, dim):
    # Matches the PyTorch PositionalEncoding buffer construction.
    position = jnp.arange(max_len, dtype=jnp.float32)[:, None]
    div_term = jnp.exp(
        jnp.arange(0, dim, 2, dtype=jnp.float32) * (-math.log(10000.0) / dim))
    pe = jnp.zeros((max_len, dim), jnp.float32)
    pe = pe.at[:, 0::2].set(jnp.sin(position * div_term))
    pe = pe.at[:, 1::2].set(jnp.cos(position * div_term))
    return pe  # (max_len, D)


def make_params(key):
    params = {}
    k_emb, key = jax.random.split(key)
    params["embedding"] = 0.1 * jax.random.normal(
        k_emb, (VOCAB_SIZE, EMB_DIM), dtype=jnp.float32)

    def uni(k, shape, fan_in):
        bound = 1.0 / math.sqrt(fan_in)
        return jax.random.uniform(k, shape, minval=-bound, maxval=bound,
                                  dtype=jnp.float32)

    layers = []
    for _ in range(N_LAYERS):
        ks = jax.random.split(key, 9)
        key = ks[0]
        layers.append({
            # attention in/out projections (stored transposed: x @ W)
            "wqkv_t": uni(ks[1], (EMB_DIM, 3 * EMB_DIM), EMB_DIM),
            "bqkv": uni(ks[2], (1, 3 * EMB_DIM), EMB_DIM),
            "wo_t": uni(ks[3], (EMB_DIM, EMB_DIM), EMB_DIM),
            "bo": uni(ks[4], (1, EMB_DIM), EMB_DIM),
            # LayerNorms
            "ln1_g": jnp.ones((1, EMB_DIM), jnp.float32),
            "ln1_b": jnp.zeros((1, EMB_DIM), jnp.float32),
            "ln2_g": jnp.ones((1, EMB_DIM), jnp.float32),
            "ln2_b": jnp.zeros((1, EMB_DIM), jnp.float32),
            # feed-forward
            "w1_t": uni(ks[5], (EMB_DIM, FF_DIM), EMB_DIM),
            "b1": uni(ks[6], (1, FF_DIM), EMB_DIM),
            "w2_t": uni(ks[7], (FF_DIM, EMB_DIM), FF_DIM),
            "b2": uni(ks[8], (1, EMB_DIM), FF_DIM),
        })
    params["layers"] = layers
    return params


def prepare_fused_params(params, max_seq=MAX_SEQ):
    layers = params["layers"]

    def pad_row(v):
        v = v.reshape(-1)
        return jnp.pad(v, (0, VEC_W - v.shape[0]))

    wqkv, vec_rows = [], []
    for l in layers:
        # Fold the 1/sqrt(head_dim) query scale into the Q third of the fused
        # QKV weight/bias (offline weight transform -> free at run time).
        wq = l["wqkv_t"].at[:, :EMB_DIM].multiply(ATTN_SCALE)
        bq = l["bqkv"].at[:, :EMB_DIM].multiply(ATTN_SCALE)
        wqkv.append(wq.astype(jnp.bfloat16))
        vec_rows.append(jnp.stack([
            pad_row(bq), pad_row(l["b1"]), pad_row(l["bo"]),
            pad_row(l["ln1_g"]), pad_row(l["ln1_b"]), pad_row(l["b2"]),
            pad_row(l["ln2_g"]), pad_row(l["ln2_b"]),
        ]))

    def stack_bf16(name):
        return jnp.stack([l[name] for l in layers]).astype(jnp.bfloat16)

    return {
        "wqkv": jnp.stack(wqkv),                       # (L, D, 3D) bf16
        "wo": stack_bf16("wo_t"),                      # (L, D, D)  bf16
        "w1": stack_bf16("w1_t"),                      # (L, D, FF) bf16
        "w2": stack_bf16("w2_t"),                      # (L, FF, D) bf16
        "vecs": jnp.stack(vec_rows),                   # (L, 8, 3D) f32
        "emb": params["embedding"],                    # (V, D) f32
        "pe": positional_encoding(max_seq, EMB_DIM),   # (max_seq, D) f32
    }


# =============================================================================
# Pure-JAX reference (mirrors the kernel math; exact softmax division)
# =============================================================================
def reference_forward(src, params):
    B, S = src.shape
    x = jnp.take(params["embedding"], src, axis=0)                # (B, S, D)
    x = x + positional_encoding(S, EMB_DIM)[None]
    scale = 1.0 / math.sqrt(HEAD_DIM)
    for layer in params["layers"]:
        qkv = jnp.einsum("bsd,de->bse", x.astype(jnp.bfloat16),
                         layer["wqkv_t"].astype(jnp.bfloat16),
                         preferred_element_type=jnp.float32) + layer["bqkv"]
        q, k, v = jnp.split(qkv, 3, axis=-1)
        q = q * scale
        qh = q.reshape(B, S, N_HEADS, HEAD_DIM)
        kh = k.reshape(B, S, N_HEADS, HEAD_DIM)
        vh = v.reshape(B, S, N_HEADS, HEAD_DIM)
        s = jnp.einsum("bqhd,bkhd->bhqk", qh, kh)
        p = jax.nn.softmax(s, axis=-1)
        ctx = jnp.einsum("bhqk,bkhd->bqhd", p, vh).reshape(B, S, EMB_DIM)
        attn = jnp.einsum("bsd,de->bse", ctx.astype(jnp.bfloat16),
                          layer["wo_t"].astype(jnp.bfloat16),
                          preferred_element_type=jnp.float32) + layer["bo"]
        y = _layernorm(x + attn, layer["ln1_g"], layer["ln1_b"])
        h1 = jnp.maximum(
            jnp.einsum("bsd,df->bsf", y.astype(jnp.bfloat16),
                       layer["w1_t"].astype(jnp.bfloat16),
                       preferred_element_type=jnp.float32) + layer["b1"], 0.0)
        ff = jnp.einsum("bsf,fd->bsd", h1.astype(jnp.bfloat16),
                        layer["w2_t"].astype(jnp.bfloat16),
                        preferred_element_type=jnp.float32) + layer["b2"]
        x = _layernorm(y + ff, layer["ln2_g"], layer["ln2_b"])
    return x


if __name__ == "__main__":
    key = jax.random.PRNGKey(0)
    k_params, k_src = jax.random.split(key)

    params = make_params(k_params)
    fused = prepare_fused_params(params, max_seq=MAX_SEQ)
    src = jax.random.randint(k_src, (BATCH, SEQ), 0, VOCAB_SIZE, dtype=jnp.int32)

    out = semantic_encoder_forward(src, fused)
    out = jax.block_until_ready(out)

    assert out.shape == (BATCH, SEQ, EMB_DIM)
    assert bool(jnp.all(jnp.isfinite(out)))

    ref = reference_forward(src, params)
    max_err = float(jnp.max(jnp.abs(out - ref)))
    assert max_err < 0.1, f"kernel deviates from reference: max|diff|={max_err}"
    print("KERNEL_OK")
</pallas_src>

<mosaic_0001>
module attributes {stable_mosaic.version = 11 : i64} {
  func.func @fused_encoder_kernel(%arg0: i32, %arg1: memref<2x8x128xf32, #tpu.memory_space<vmem>>, %arg2: memref<3x128x384xbf16, #tpu.memory_space<vmem>>, %arg3: memref<3x128x128xbf16, #tpu.memory_space<vmem>>, %arg4: memref<3x128x256xbf16, #tpu.memory_space<vmem>>, %arg5: memref<3x256x128xbf16, #tpu.memory_space<vmem>>, %arg6: memref<3x8x384xf32, #tpu.memory_space<vmem>>, %arg7: memref<2x8x128xf32, #tpu.memory_space<vmem>>) attributes {dimension_semantics = [#tpu.dimension_semantics<parallel>], iteration_bounds = array<i64: 1>, scalar_prefetch = 0 : i64, scratch_operands = 0 : i64, tpu.core_type = #tpu.core_type<tc>, window_params = [{transform_indices = @transform_0, window_bounds = array<i64: 2, 8, 128>}, {pipeline_mode = #tpu.pipeline_mode<synchronous>, transform_indices = @transform_1, window_bounds = array<i64: 3, 128, 384>}, {pipeline_mode = #tpu.pipeline_mode<synchronous>, transform_indices = @transform_2, window_bounds = array<i64: 3, 128, 128>}, {pipeline_mode = #tpu.pipeline_mode<synchronous>, transform_indices = @transform_3, window_bounds = array<i64: 3, 128, 256>}, {pipeline_mode = #tpu.pipeline_mode<synchronous>, transform_indices = @transform_4, window_bounds = array<i64: 3, 256, 128>}, {pipeline_mode = #tpu.pipeline_mode<synchronous>, transform_indices = @transform_5, window_bounds = array<i64: 3, 8, 384>}, {transform_indices = @transform_6, window_bounds = array<i64: 2, 8, 128>}]} {
    %c0 = arith.constant 0 : index
    %c0_0 = arith.constant 0 : index
    %c0_1 = arith.constant 0 : index
    %0 = vector.load %arg1[%c0, %c0_0, %c0_1] : memref<2x8x128xf32, #tpu.memory_space<vmem>>, vector<2x8x128xf32>
    %1 = vector.shape_cast %0 : vector<2x8x128xf32> to vector<16x128xf32>
    %c0_2 = arith.constant 0 : index
    %c0_3 = arith.constant 0 : index
    %c0_4 = arith.constant 0 : index
    %2 = vector.load %arg6[%c0_2, %c0_3, %c0_4] : memref<3x8x384xf32, #tpu.memory_space<vmem>>, vector<1x8x384xf32>
    %3 = vector.shape_cast %2 : vector<1x8x384xf32> to vector<8x384xf32>
    %4 = vector.extract_strided_slice %3 {offsets = [0, 0], sizes = [1, 384], strides = [1, 1]} : vector<8x384xf32> to vector<1x384xf32>
    %5 = vector.extract_strided_slice %3 {offsets = [1, 0], sizes = [1, 256], strides = [1, 1]} : vector<8x384xf32> to vector<1x256xf32>
    %6 = vector.extract_strided_slice %3 {offsets = [2, 0], sizes = [1, 128], strides = [1, 1]} : vector<8x384xf32> to vector<1x128xf32>
    %7 = vector.extract_strided_slice %3 {offsets = [3, 0], sizes = [1, 128], strides = [1, 1]} : vector<8x384xf32> to vector<1x128xf32>
    %8 = vector.extract_strided_slice %3 {offsets = [4, 0], sizes = [1, 128], strides = [1, 1]} : vector<8x384xf32> to vector<1x128xf32>
    %9 = vector.extract_strided_slice %3 {offsets = [5, 0], sizes = [1, 128], strides = [1, 1]} : vector<8x384xf32> to vector<1x128xf32>
    %10 = vector.extract_strided_slice %3 {offsets = [6, 0], sizes = [1, 128], strides = [1, 1]} : vector<8x384xf32> to vector<1x128xf32>
    %11 = vector.extract_strided_slice %3 {offsets = [7, 0], sizes = [1, 128], strides = [1, 1]} : vector<8x384xf32> to vector<1x128xf32>
    %12 = arith.truncf %1 : vector<16x128xf32> to vector<16x128xbf16>
    %c0_5 = arith.constant 0 : index
    %c0_6 = arith.constant 0 : index
    %c0_7 = arith.constant 0 : index
    %13 = vector.load %arg2[%c0_5, %c0_6, %c0_7] : memref<3x128x384xbf16, #tpu.memory_space<vmem>>, vector<1x128x384xbf16>
    %14 = vector.shape_cast %13 : vector<1x128x384xbf16> to vector<128x384xbf16>
    %cst = arith.constant dense<0.000000e+00> : vector<16x384xf32>
    %15 = tpu.matmul %12, %14, %cst {dimension_numbers = #tpu.dot_dimension_numbers<[1], [0], [0], [1], [0, 0, 1, 1], [], []>} : vector<16x128xbf16>, vector<128x384xbf16>, vector<16x384xf32> -> vector<16x384xf32>
    %16 = vector.broadcast %4 : vector<1x384xf32> to vector<16x384xf32>
    %17 = arith.addf %15, %16 : vector<16x384xf32>
    %18 = vector.extract_strided_slice %17 {offsets = [0, 0], sizes = [16, 128], strides = [1, 1]} : vector<16x384xf32> to vector<16x128xf32>
    %19 = vector.shape_cast %18 : vector<16x128xf32> to vector<2x8x128xf32>
    %20 = vector.extract_strided_slice %17 {offsets = [0, 128], sizes = [16, 128], strides = [1, 1]} : vector<16x384xf32> to vector<16x128xf32>
    %21 = vector.shape_cast %20 : vector<16x128xf32> to vector<2x8x128xf32>
    %22 = vector.extract_strided_slice %17 {offsets = [0, 256], sizes = [16, 128], strides = [1, 1]} : vector<16x384xf32> to vector<16x128xf32>
    %23 = vector.shape_cast %22 : vector<16x128xf32> to vector<2x8x128xf32>
    %24 = vector.extract_strided_slice %19 {offsets = [0, 0, 0], sizes = [2, 8, 32], strides = [1, 1, 1]} : vector<2x8x128xf32> to vector<2x8x32xf32>
    %25 = vector.extract_strided_slice %19 {offsets = [0, 0, 32], sizes = [2, 8, 32], strides = [1, 1, 1]} : vector<2x8x128xf32> to vector<2x8x32xf32>
    %26 = vector.extract_strided_slice %19 {offsets = [0, 0, 64], sizes = [2, 8, 32], strides = [1, 1, 1]} : vector<2x8x128xf32> to vector<2x8x32xf32>
    %27 = vector.extract_strided_slice %19 {offsets = [0, 0, 96], sizes = [2, 8, 32], strides = [1, 1, 1]} : vector<2x8x128xf32> to vector<2x8x32xf32>
    %28 = tpu.concatenate %24, %25, %26, %27 in 0 : vector<2x8x32xf32>, vector<2x8x32xf32>, vector<2x8x32xf32>, vector<2x8x32xf32> -> vector<8x8x32xf32>
    %29 = vector.extract_strided_slice %21 {offsets = [0, 0, 0], sizes = [2, 8, 32], strides = [1, 1, 1]} : vector<2x8x128xf32> to vector<2x8x32xf32>
    %30 = vector.extract_strided_slice %21 {offsets = [0, 0, 32], sizes = [2, 8, 32], strides = [1, 1, 1]} : vector<2x8x128xf32> to vector<2x8x32xf32>
    %31 = vector.extract_strided_slice %21 {offsets = [0, 0, 64], sizes = [2, 8, 32], strides = [1, 1, 1]} : vector<2x8x128xf32> to vector<2x8x32xf32>
    %32 = vector.extract_strided_slice %21 {offsets = [0, 0, 96], sizes = [2, 8, 32], strides = [1, 1, 1]} : vector<2x8x128xf32> to vector<2x8x32xf32>
    %33 = tpu.concatenate %29, %30, %31, %32 in 0 : vector<2x8x32xf32>, vector<2x8x32xf32>, vector<2x8x32xf32>, vector<2x8x32xf32> -> vector<8x8x32xf32>
    %34 = vector.extract_strided_slice %23 {offsets = [0, 0, 0], sizes = [2, 8, 32], strides = [1, 1, 1]} : vector<2x8x128xf32> to vector<2x8x32xf32>
    %35 = vector.extract_strided_slice %23 {offsets = [0, 0, 32], sizes = [2, 8, 32], strides = [1, 1, 1]} : vector<2x8x128xf32> to vector<2x8x32xf32>
    %36 = vector.extract_strided_slice %23 {offsets = [0, 0, 64], sizes = [2, 8, 32], strides = [1, 1, 1]} : vector<2x8x128xf32> to vector<2x8x32xf32>
    %37 = vector.extract_strided_slice %23 {offsets = [0, 0, 96], sizes = [2, 8, 32], strides = [1, 1, 1]} : vector<2x8x128xf32> to vector<2x8x32xf32>
    %38 = tpu.concatenate %34, %35, %36, %37 in 0 : vector<2x8x32xf32>, vector<2x8x32xf32>, vector<2x8x32xf32>, vector<2x8x32xf32> -> vector<8x8x32xf32>
    "tpu.trace_start"() <{level = 10 : i32, message = "nqd,nkd->nqk"}> : () -> ()
    %cst_8 = arith.constant dense<0.000000e+00> : vector<8x8x8xf32>
    %39 = tpu.matmul %28, %33, %cst_8 {dimension_numbers = #tpu.dot_dimension_numbers<[2], [2], [1], [1], [0, 0, 0, 1, 1, 1], [0], [0]>} : vector<8x8x32xf32>, vector<8x8x32xf32>, vector<8x8x8xf32> -> vector<8x8x8xf32>
    "tpu.trace_stop"() : () -> ()
    %cst_9 = arith.constant dense<0xFF800000> : vector<8x8xf32>
    %40 = vector.multi_reduction <maximumf>, %39, %cst_9 [2] : vector<8x8x8xf32> to vector<8x8xf32>
    %41 = vector.shape_cast %40 : vector<8x8xf32> to vector<8x8x1xf32>
    %42 = vector.broadcast %41 : vector<8x8x1xf32> to vector<8x8x8xf32>
    %43 = arith.subf %39, %42 : vector<8x8x8xf32>
    %44 = math.exp %43 : vector<8x8x8xf32>
    %cst_10 = arith.constant dense<0.000000e+00> : vector<8x8xf32>
    %45 = vector.multi_reduction <add>, %44, %cst_10 [2] : vector<8x8x8xf32> to vector<8x8xf32>
    %46 = vector.shape_cast %45 : vector<8x8xf32> to vector<8x8x1xf32>
    %47 = tpu.reciprocal %46 {approx = true} : vector<8x8x1xf32> -> vector<8x8x1xf32>
    %48 = vector.broadcast %47 : vector<8x8x1xf32> to vector<8x8x8xf32>
    %49 = arith.mulf %44, %48 : vector<8x8x8xf32>
    "tpu.trace_start"() <{level = 10 : i32, message = "nqk,nkd->nqd"}> : () -> ()
    %cst_11 = arith.constant dense<0.000000e+00> : vector<8x8x32xf32>
    %50 = tpu.matmul %49, %38, %cst_11 {dimension_numbers = #tpu.dot_dimension_numbers<[2], [1], [1], [2], [0, 0, 0, 1, 1, 2], [0], [0]>} : vector<8x8x8xf32>, vector<8x8x32xf32>, vector<8x8x32xf32> -> vector<8x8x32xf32>
    "tpu.trace_stop"() : () -> ()
    %51 = vector.extract_strided_slice %50 {offsets = [0, 0, 0], sizes = [2, 8, 32], strides = [1, 1, 1]} : vector<8x8x32xf32> to vector<2x8x32xf32>
    %52 = vector.extract_strided_slice %50 {offsets = [2, 0, 0], sizes = [2, 8, 32], strides = [1, 1, 1]} : vector<8x8x32xf32> to vector<2x8x32xf32>
    %53 = vector.extract_strided_slice %50 {offsets = [4, 0, 0], sizes = [2, 8, 32], strides = [1, 1, 1]} : vector<8x8x32xf32> to vector<2x8x32xf32>
    %54 = vector.extract_strided_slice %50 {offsets = [6, 0, 0], sizes = [2, 8, 32], strides = [1, 1, 1]} : vector<8x8x32xf32> to vector<2x8x32xf32>
    %55 = tpu.concatenate %51, %52, %53, %54 in 2 : vector<2x8x32xf32>, vector<2x8x32xf32>, vector<2x8x32xf32>, vector<2x8x32xf32> -> vector<2x8x128xf32>
    %56 = vector.shape_cast %55 : vector<2x8x128xf32> to vector<16x128xf32>
    %57 = arith.truncf %56 : vector<16x128xf32> to vector<16x128xbf16>
    %c0_12 = arith.constant 0 : index
    %c0_13 = arith.constant 0 : index
    %c0_14 = arith.constant 0 : index
    %58 = vector.load %arg3[%c0_12, %c0_13, %c0_14] : memref<3x128x128xbf16, #tpu.memory_space<vmem>>, vector<1x128x128xbf16>
    %59 = vector.shape_cast %58 : vector<1x128x128xbf16> to vector<128x128xbf16>
    %cst_15 = arith.constant dense<0.000000e+00> : vector<16x128xf32>
    %60 = tpu.matmul %57, %59, %cst_15 {dimension_numbers = #tpu.dot_dimension_numbers<[1], [0], [0], [1], [0, 0, 1, 1], [], []>} : vector<16x128xbf16>, vector<128x128xbf16>, vector<16x128xf32> -> vector<16x128xf32>
    %61 = vector.broadcast %6 : vector<1x128xf32> to vector<16x128xf32>
    %62 = arith.addf %60, %61 : vector<16x128xf32>
    %63 = arith.addf %1, %62 : vector<16x128xf32>
    %cst_16 = arith.constant dense<0.000000e+00> : vector<16xf32>
    %64 = vector.multi_reduction <add>, %63, %cst_16 [1] : vector<16x128xf32> to vector<16xf32>
    %65 = vector.shape_cast %64 : vector<16xf32> to vector<16x1xf32>
    %cst_17 = arith.constant 1.280000e+02 : f32
    %66 = vector.broadcast %cst_17 : f32 to vector<16x1xf32>
    %67 = arith.divf %65, %66 : vector<16x1xf32>
    %68 = vector.broadcast %67 : vector<16x1xf32> to vector<16x128xf32>
    %69 = arith.subf %63, %68 : vector<16x128xf32>
    %70 = arith.mulf %69, %69 : vector<16x128xf32>
    %cst_18 = arith.constant dense<0.000000e+00> : vector<16xf32>
    %71 = vector.multi_reduction <add>, %70, %cst_18 [1] : vector<16x128xf32> to vector<16xf32>
    %72 = vector.shape_cast %71 : vector<16xf32> to vector<16x1xf32>
    %cst_19 = arith.constant 1.280000e+02 : f32
    %73 = vector.broadcast %cst_19 : f32 to vector<16x1xf32>
    %74 = arith.divf %72, %73 : vector<16x1xf32>
    %cst_20 = arith.constant 9.99999974E-6 : f32
    %75 = vector.broadcast %cst_20 : f32 to vector<16x1xf32>
    %76 = arith.addf %74, %75 : vector<16x1xf32>
    %77 = math.rsqrt %76 : vector<16x1xf32>
    %78 = vector.broadcast %77 : vector<16x1xf32> to vector<16x128xf32>
    %79 = arith.mulf %69, %78 : vector<16x128xf32>
    %80 = vector.broadcast %7 : vector<1x128xf32> to vector<16x128xf32>
    %81 = arith.mulf %79, %80 : vector<16x128xf32>
    %82 = vector.broadcast %8 : vector<1x128xf32> to vector<16x128xf32>
    %83 = arith.addf %81, %82 : vector<16x128xf32>
    %84 = arith.truncf %83 : vector<16x128xf32> to vector<16x128xbf16>
    %c0_21 = arith.constant 0 : index
    %c0_22 = arith.constant 0 : index
    %c0_23 = arith.constant 0 : index
    %85 = vector.load %arg4[%c0_21, %c0_22, %c0_23] : memref<3x128x256xbf16, #tpu.memory_space<vmem>>, vector<1x128x256xbf16>
    %86 = vector.shape_cast %85 : vector<1x128x256xbf16> to vector<128x256xbf16>
    %cst_24 = arith.constant dense<0.000000e+00> : vector<16x256xf32>
    %87 = tpu.matmul %84, %86, %cst_24 {dimension_numbers = #tpu.dot_dimension_numbers<[1], [0], [0], [1], [0, 0, 1, 1], [], []>} : vector<16x128xbf16>, vector<128x256xbf16>, vector<16x256xf32> -> vector<16x256xf32>
    %88 = vector.broadcast %5 : vector<1x256xf32> to vector<16x256xf32>
    %89 = arith.addf %87, %88 : vector<16x256xf32>
    %cst_25 = arith.constant 0.000000e+00 : f32
    %90 = vector.broadcast %cst_25 : f32 to vector<16x256xf32>
    %91 = arith.maximumf %89, %90 : vector<16x256xf32>
    %92 = arith.truncf %91 : vector<16x256xf32> to vector<16x256xbf16>
    %c0_26 = arith.constant 0 : index
    %c0_27 = arith.constant 0 : index
    %c0_28 = arith.constant 0 : index
    %93 = vector.load %arg5[%c0_26, %c0_27, %c0_28] : memref<3x256x128xbf16, #tpu.memory_space<vmem>>, vector<1x256x128xbf16>
    %94 = vector.shape_cast %93 : vector<1x256x128xbf16> to vector<256x128xbf16>
    %cst_29 = arith.constant dense<0.000000e+00> : vector<16x128xf32>
    %95 = tpu.matmul %92, %94, %cst_29 {dimension_numbers = #tpu.dot_dimension_numbers<[1], [0], [0], [1], [0, 0, 1, 1], [], []>} : vector<16x256xbf16>, vector<256x128xbf16>, vector<16x128xf32> -> vector<16x128xf32>
    %96 = vector.broadcast %9 : vector<1x128xf32> to vector<16x128xf32>
    %97 = arith.addf %95, %96 : vector<16x128xf32>
    %98 = arith.addf %83, %97 : vector<16x128xf32>
    %cst_30 = arith.constant dense<0.000000e+00> : vector<16xf32>
    %99 = vector.multi_reduction <add>, %98, %cst_30 [1] : vector<16x128xf32> to vector<16xf32>
    %100 = vector.shape_cast %99 : vector<16xf32> to vector<16x1xf32>
    %cst_31 = arith.constant 1.280000e+02 : f32
    %101 = vector.broadcast %cst_31 : f32 to vector<16x1xf32>
    %102 = arith.divf %100, %101 : vector<16x1xf32>
    %103 = vector.broadcast %102 : vector<16x1xf32> to vector<16x128xf32>
    %104 = arith.subf %98, %103 : vector<16x128xf32>
    %105 = arith.mulf %104, %104 : vector<16x128xf32>
    %cst_32 = arith.constant dense<0.000000e+00> : vector<16xf32>
    %106 = vector.multi_reduction <add>, %105, %cst_32 [1] : vector<16x128xf32> to vector<16xf32>
    %107 = vector.shape_cast %106 : vector<16xf32> to vector<16x1xf32>
    %cst_33 = arith.constant 1.280000e+02 : f32
    %108 = vector.broadcast %cst_33 : f32 to vector<16x1xf32>
    %109 = arith.divf %107, %108 : vector<16x1xf32>
    %cst_34 = arith.constant 9.99999974E-6 : f32
    %110 = vector.broadcast %cst_34 : f32 to vector<16x1xf32>
    %111 = arith.addf %109, %110 : vector<16x1xf32>
    %112 = math.rsqrt %111 : vector<16x1xf32>
    %113 = vector.broadcast %112 : vector<16x1xf32> to vector<16x128xf32>
    %114 = arith.mulf %104, %113 : vector<16x128xf32>
    %115 = vector.broadcast %10 : vector<1x128xf32> to vector<16x128xf32>
    %116 = arith.mulf %114, %115 : vector<16x128xf32>
    %117 = vector.broadcast %11 : vector<1x128xf32> to vector<16x128xf32>
    %118 = arith.addf %116, %117 : vector<16x128xf32>
    %c1 = arith.constant 1 : index
    %c0_35 = arith.constant 0 : index
    %c0_36 = arith.constant 0 : index
    %119 = vector.load %arg6[%c1, %c0_35, %c0_36] : memref<3x8x384xf32, #tpu.memory_space<vmem>>, vector<1x8x384xf32>
    %120 = vector.shape_cast %119 : vector<1x8x384xf32> to vector<8x384xf32>
    %121 = vector.extract_strided_slice %120 {offsets = [0, 0], sizes = [1, 384], strides = [1, 1]} : vector<8x384xf32> to vector<1x384xf32>
    %122 = vector.extract_strided_slice %120 {offsets = [1, 0], sizes = [1, 256], strides = [1, 1]} : vector<8x384xf32> to vector<1x256xf32>
    %123 = vector.extract_strided_slice %120 {offsets = [2, 0], sizes = [1, 128], strides = [1, 1]} : vector<8x384xf32> to vector<1x128xf32>
    %124 = vector.extract_strided_slice %120 {offsets = [3, 0], sizes = [1, 128], strides = [1, 1]} : vector<8x384xf32> to vector<1x128xf32>
    %125 = vector.extract_strided_slice %120 {offsets = [4, 0], sizes = [1, 128], strides = [1, 1]} : vector<8x384xf32> to vector<1x128xf32>
    %126 = vector.extract_strided_slice %120 {offsets = [5, 0], sizes = [1, 128], strides = [1, 1]} : vector<8x384xf32> to vector<1x128xf32>
    %127 = vector.extract_strided_slice %120 {offsets = [6, 0], sizes = [1, 128], strides = [1, 1]} : vector<8x384xf32> to vector<1x128xf32>
    %128 = vector.extract_strided_slice %120 {offsets = [7, 0], sizes = [1, 128], strides = [1, 1]} : vector<8x384xf32> to vector<1x128xf32>
    %129 = arith.truncf %118 : vector<16x128xf32> to vector<16x128xbf16>
    %c1_37 = arith.constant 1 : index
    %c0_38 = arith.constant 0 : index
    %c0_39 = arith.constant 0 : index
    %130 = vector.load %arg2[%c1_37, %c0_38, %c0_39] : memref<3x128x384xbf16, #tpu.memory_space<vmem>>, vector<1x128x384xbf16>
    %131 = vector.shape_cast %130 : vector<1x128x384xbf16> to vector<128x384xbf16>
    %cst_40 = arith.constant dense<0.000000e+00> : vector<16x384xf32>
    %132 = tpu.matmul %129, %131, %cst_40 {dimension_numbers = #tpu.dot_dimension_numbers<[1], [0], [0], [1], [0, 0, 1, 1], [], []>} : vector<16x128xbf16>, vector<128x384xbf16>, vector<16x384xf32> -> vector<16x384xf32>
    %133 = vector.broadcast %121 : vector<1x384xf32> to vector<16x384xf32>
    %134 = arith.addf %132, %133 : vector<16x384xf32>
    %135 = vector.extract_strided_slice %134 {offsets = [0, 0], sizes = [16, 128], strides = [1, 1]} : vector<16x384xf32> to vector<16x128xf32>
    %136 = vector.shape_cast %135 : vector<16x128xf32> to vector<2x8x128xf32>
    %137 = vector.extract_strided_slice %134 {offsets = [0, 128], sizes = [16, 128], strides = [1, 1]} : vector<16x384xf32> to vector<16x128xf32>
    %138 = vector.shape_cast %137 : vector<16x128xf32> to vector<2x8x128xf32>
    %139 = vector.extract_strided_slice %134 {offsets = [0, 256], sizes = [16, 128], strides = [1, 1]} : vector<16x384xf32> to vector<16x128xf32>
    %140 = vector.shape_cast %139 : vector<16x128xf32> to vector<2x8x128xf32>
    %141 = vector.extract_strided_slice %136 {offsets = [0, 0, 0], sizes = [2, 8, 32], strides = [1, 1, 1]} : vector<2x8x128xf32> to vector<2x8x32xf32>
    %142 = vector.extract_strided_slice %136 {offsets = [0, 0, 32], sizes = [2, 8, 32], strides = [1, 1, 1]} : vector<2x8x128xf32> to vector<2x8x32xf32>
    %143 = vector.extract_strided_slice %136 {offsets = [0, 0, 64], sizes = [2, 8, 32], strides = [1, 1, 1]} : vector<2x8x128xf32> to vector<2x8x32xf32>
    %144 = vector.extract_strided_slice %136 {offsets = [0, 0, 96], sizes = [2, 8, 32], strides = [1, 1, 1]} : vector<2x8x128xf32> to vector<2x8x32xf32>
    %145 = tpu.concatenate %141, %142, %143, %144 in 0 : vector<2x8x32xf32>, vector<2x8x32xf32>, vector<2x8x32xf32>, vector<2x8x32xf32> -> vector<8x8x32xf32>
    %146 = vector.extract_strided_slice %138 {offsets = [0, 0, 0], sizes = [2, 8, 32], strides = [1, 1, 1]} : vector<2x8x128xf32> to vector<2x8x32xf32>
    %147 = vector.extract_strided_slice %138 {offsets = [0, 0, 32], sizes = [2, 8, 32], strides = [1, 1, 1]} : vector<2x8x128xf32> to vector<2x8x32xf32>
    %148 = vector.extract_strided_slice %138 {offsets = [0, 0, 64], sizes = [2, 8, 32], strides = [1, 1, 1]} : vector<2x8x128xf32> to vector<2x8x32xf32>
    %149 = vector.extract_strided_slice %138 {offsets = [0, 0, 96], sizes = [2, 8, 32], strides = [1, 1, 1]} : vector<2x8x128xf32> to vector<2x8x32xf32>
    %150 = tpu.concatenate %146, %147, %148, %149 in 0 : vector<2x8x32xf32>, vector<2x8x32xf32>, vector<2x8x32xf32>, vector<2x8x32xf32> -> vector<8x8x32xf32>
    %151 = vector.extract_strided_slice %140 {offsets = [0, 0, 0], sizes = [2, 8, 32], strides = [1, 1, 1]} : vector<2x8x128xf32> to vector<2x8x32xf32>
    %152 = vector.extract_strided_slice %140 {offsets = [0, 0, 32], sizes = [2, 8, 32], strides = [1, 1, 1]} : vector<2x8x128xf32> to vector<2x8x32xf32>
    %153 = vector.extract_strided_slice %140 {offsets = [0, 0, 64], sizes = [2, 8, 32], strides = [1, 1, 1]} : vector<2x8x128xf32> to vector<2x8x32xf32>
    %154 = vector.extract_strided_slice %140 {offsets = [0, 0, 96], sizes = [2, 8, 32], strides = [1, 1, 1]} : vector<2x8x128xf32> to vector<2x8x32xf32>
    %155 = tpu.concatenate %151, %152, %153, %154 in 0 : vector<2x8x32xf32>, vector<2x8x32xf32>, vector<2x8x32xf32>, vector<2x8x32xf32> -> vector<8x8x32xf32>
    "tpu.trace_start"() <{level = 10 : i32, message = "nqd,nkd->nqk"}> : () -> ()
    %cst_41 = arith.constant dense<0.000000e+00> : vector<8x8x8xf32>
    %156 = tpu.matmul %145, %150, %cst_41 {dimension_numbers = #tpu.dot_dimension_numbers<[2], [2], [1], [1], [0, 0, 0, 1, 1, 1], [0], [0]>} : vector<8x8x32xf32>, vector<8x8x32xf32>, vector<8x8x8xf32> -> vector<8x8x8xf32>
    "tpu.trace_stop"() : () -> ()
    %cst_42 = arith.constant dense<0xFF800000> : vector<8x8xf32>
    %157 = vector.multi_reduction <maximumf>, %156, %cst_42 [2] : vector<8x8x8xf32> to vector<8x8xf32>
    %158 = vector.shape_cast %157 : vector<8x8xf32> to vector<8x8x1xf32>
    %159 = vector.broadcast %158 : vector<8x8x1xf32> to vector<8x8x8xf32>
    %160 = arith.subf %156, %159 : vector<8x8x8xf32>
    %161 = math.exp %160 : vector<8x8x8xf32>
    %cst_43 = arith.constant dense<0.000000e+00> : vector<8x8xf32>
    %162 = vector.multi_reduction <add>, %161, %cst_43 [2] : vector<8x8x8xf32> to vector<8x8xf32>
    %163 = vector.shape_cast %162 : vector<8x8xf32> to vector<8x8x1xf32>
    %164 = tpu.reciprocal %163 {approx = true} : vector<8x8x1xf32> -> vector<8x8x1xf32>
    %165 = vector.broadcast %164 : vector<8x8x1xf32> to vector<8x8x8xf32>
    %166 = arith.mulf %161, %165 : vector<8x8x8xf32>
    "tpu.trace_start"() <{level = 10 : i32, message = "nqk,nkd->nqd"}> : () -> ()
    %cst_44 = arith.constant dense<0.000000e+00> : vector<8x8x32xf32>
    %167 = tpu.matmul %166, %155, %cst_44 {dimension_numbers = #tpu.dot_dimension_numbers<[2], [1], [1], [2], [0, 0, 0, 1, 1, 2], [0], [0]>} : vector<8x8x8xf32>, vector<8x8x32xf32>, vector<8x8x32xf32> -> vector<8x8x32xf32>
    "tpu.trace_stop"() : () -> ()
    %168 = vector.extract_strided_slice %167 {offsets = [0, 0, 0], sizes = [2, 8, 32], strides = [1, 1, 1]} : vector<8x8x32xf32> to vector<2x8x32xf32>
    %169 = vector.extract_strided_slice %167 {offsets = [2, 0, 0], sizes = [2, 8, 32], strides = [1, 1, 1]} : vector<8x8x32xf32> to vector<2x8x32xf32>
    %170 = vector.extract_strided_slice %167 {offsets = [4, 0, 0], sizes = [2, 8, 32], strides = [1, 1, 1]} : vector<8x8x32xf32> to vector<2x8x32xf32>
    %171 = vector.extract_strided_slice %167 {offsets = [6, 0, 0], sizes = [2, 8, 32], strides = [1, 1, 1]} : vector<8x8x32xf32> to vector<2x8x32xf32>
    %172 = tpu.concatenate %168, %169, %170, %171 in 2 : vector<2x8x32xf32>, vector<2x8x32xf32>, vector<2x8x32xf32>, vector<2x8x32xf32> -> vector<2x8x128xf32>
    %173 = vector.shape_cast %172 : vector<2x8x128xf32> to vector<16x128xf32>
    %174 = arith.truncf %173 : vector<16x128xf32> to vector<16x128xbf16>
    %c1_45 = arith.constant 1 : index
    %c0_46 = arith.constant 0 : index
    %c0_47 = arith.constant 0 : index
    %175 = vector.load %arg3[%c1_45, %c0_46, %c0_47] : memref<3x128x128xbf16, #tpu.memory_space<vmem>>, vector<1x128x128xbf16>
    %176 = vector.shape_cast %175 : vector<1x128x128xbf16> to vector<128x128xbf16>
    %cst_48 = arith.constant dense<0.000000e+00> : vector<16x128xf32>
    %177 = tpu.matmul %174, %176, %cst_48 {dimension_numbers = #tpu.dot_dimension_numbers<[1], [0], [0], [1], [0, 0, 1, 1], [], []>} : vector<16x128xbf16>, vector<128x128xbf16>, vector<16x128xf32> -> vector<16x128xf32>
    %178 = vector.broadcast %123 : vector<1x128xf32> to vector<16x128xf32>
    %179 = arith.addf %177, %178 : vector<16x128xf32>
    %180 = arith.addf %118, %179 : vector<16x128xf32>
    %cst_49 = arith.constant dense<0.000000e+00> : vector<16xf32>
    %181 = vector.multi_reduction <add>, %180, %cst_49 [1] : vector<16x128xf32> to vector<16xf32>
    %182 = vector.shape_cast %181 : vector<16xf32> to vector<16x1xf32>
    %cst_50 = arith.constant 1.280000e+02 : f32
    %183 = vector.broadcast %cst_50 : f32 to vector<16x1xf32>
    %184 = arith.divf %182, %183 : vector<16x1xf32>
    %185 = vector.broadcast %184 : vector<16x1xf32> to vector<16x128xf32>
    %186 = arith.subf %180, %185 : vector<16x128xf32>
    %187 = arith.mulf %186, %186 : vector<16x128xf32>
    %cst_51 = arith.constant dense<0.000000e+00> : vector<16xf32>
    %188 = vector.multi_reduction <add>, %187, %cst_51 [1] : vector<16x128xf32> to vector<16xf32>
    %189 = vector.shape_cast %188 : vector<16xf32> to vector<16x1xf32>
    %cst_52 = arith.constant 1.280000e+02 : f32
    %190 = vector.broadcast %cst_52 : f32 to vector<16x1xf32>
    %191 = arith.divf %189, %190 : vector<16x1xf32>
    %cst_53 = arith.constant 9.99999974E-6 : f32
    %192 = vector.broadcast %cst_53 : f32 to vector<16x1xf32>
    %193 = arith.addf %191, %192 : vector<16x1xf32>
    %194 = math.rsqrt %193 : vector<16x1xf32>
    %195 = vector.broadcast %194 : vector<16x1xf32> to vector<16x128xf32>
    %196 = arith.mulf %186, %195 : vector<16x128xf32>
    %197 = vector.broadcast %124 : vector<1x128xf32> to vector<16x128xf32>
    %198 = arith.mulf %196, %197 : vector<16x128xf32>
    %199 = vector.broadcast %125 : vector<1x128xf32> to vector<16x128xf32>
    %200 = arith.addf %198, %199 : vector<16x128xf32>
    %201 = arith.truncf %200 : vector<16x128xf32> to vector<16x128xbf16>
    %c1_54 = arith.constant 1 : index
    %c0_55 = arith.constant 0 : index
    %c0_56 = arith.constant 0 : index
    %202 = vector.load %arg4[%c1_54, %c0_55, %c0_56] : memref<3x128x256xbf16, #tpu.memory_space<vmem>>, vector<1x128x256xbf16>
    %203 = vector.shape_cast %202 : vector<1x128x256xbf16> to vector<128x256xbf16>
    %cst_57 = arith.constant dense<0.000000e+00> : vector<16x256xf32>
    %204 = tpu.matmul %201, %203, %cst_57 {dimension_numbers = #tpu.dot_dimension_numbers<[1], [0], [0], [1], [0, 0, 1, 1], [], []>} : vector<16x128xbf16>, vector<128x256xbf16>, vector<16x256xf32> -> vector<16x256xf32>
    %205 = vector.broadcast %122 : vector<1x256xf32> to vector<16x256xf32>
    %206 = arith.addf %204, %205 : vector<16x256xf32>
    %cst_58 = arith.constant 0.000000e+00 : f32
    %207 = vector.broadcast %cst_58 : f32 to vector<16x256xf32>
    %208 = arith.maximumf %206, %207 : vector<16x256xf32>
    %209 = arith.truncf %208 : vector<16x256xf32> to vector<16x256xbf16>
    %c1_59 = arith.constant 1 : index
    %c0_60 = arith.constant 0 : index
    %c0_61 = arith.constant 0 : index
    %210 = vector.load %arg5[%c1_59, %c0_60, %c0_61] : memref<3x256x128xbf16, #tpu.memory_space<vmem>>, vector<1x256x128xbf16>
    %211 = vector.shape_cast %210 : vector<1x256x128xbf16> to vector<256x128xbf16>
    %cst_62 = arith.constant dense<0.000000e+00> : vector<16x128xf32>
    %212 = tpu.matmul %209, %211, %cst_62 {dimension_numbers = #tpu.dot_dimension_numbers<[1], [0], [0], [1], [0, 0, 1, 1], [], []>} : vector<16x256xbf16>, vector<256x128xbf16>, vector<16x128xf32> -> vector<16x128xf32>
    %213 = vector.broadcast %126 : vector<1x128xf32> to vector<16x128xf32>
    %214 = arith.addf %212, %213 : vector<16x128xf32>
    %215 = arith.addf %200, %214 : vector<16x128xf32>
    %cst_63 = arith.constant dense<0.000000e+00> : vector<16xf32>
    %216 = vector.multi_reduction <add>, %215, %cst_63 [1] : vector<16x128xf32> to vector<16xf32>
    %217 = vector.shape_cast %216 : vector<16xf32> to vector<16x1xf32>
    %cst_64 = arith.constant 1.280000e+02 : f32
    %218 = vector.broadcast %cst_64 : f32 to vector<16x1xf32>
    %219 = arith.divf %217, %218 : vector<16x1xf32>
    %220 = vector.broadcast %219 : vector<16x1xf32> to vector<16x128xf32>
    %221 = arith.subf %215, %220 : vector<16x128xf32>
    %222 = arith.mulf %221, %221 : vector<16x128xf32>
    %cst_65 = arith.constant dense<0.000000e+00> : vector<16xf32>
    %223 = vector.multi_reduction <add>, %222, %cst_65 [1] : vector<16x128xf32> to vector<16xf32>
    %224 = vector.shape_cast %223 : vector<16xf32> to vector<16x1xf32>
    %cst_66 = arith.constant 1.280000e+02 : f32
    %225 = vector.broadcast %cst_66 : f32 to vector<16x1xf32>
    %226 = arith.divf %224, %225 : vector<16x1xf32>
    %cst_67 = arith.constant 9.99999974E-6 : f32
    %227 = vector.broadcast %cst_67 : f32 to vector<16x1xf32>
    %228 = arith.addf %226, %227 : vector<16x1xf32>
    %229 = math.rsqrt %228 : vector<16x1xf32>
    %230 = vector.broadcast %229 : vector<16x1xf32> to vector<16x128xf32>
    %231 = arith.mulf %221, %230 : vector<16x128xf32>
    %232 = vector.broadcast %127 : vector<1x128xf32> to vector<16x128xf32>
    %233 = arith.mulf %231, %232 : vector<16x128xf32>
    %234 = vector.broadcast %128 : vector<1x128xf32> to vector<16x128xf32>
    %235 = arith.addf %233, %234 : vector<16x128xf32>
    %c2 = arith.constant 2 : index
    %c0_68 = arith.constant 0 : index
    %c0_69 = arith.constant 0 : index
    %236 = vector.load %arg6[%c2, %c0_68, %c0_69] : memref<3x8x384xf32, #tpu.memory_space<vmem>>, vector<1x8x384xf32>
    %237 = vector.shape_cast %236 : vector<1x8x384xf32> to vector<8x384xf32>
    %238 = vector.extract_strided_slice %237 {offsets = [0, 0], sizes = [1, 384], strides = [1, 1]} : vector<8x384xf32> to vector<1x384xf32>
    %239 = vector.extract_strided_slice %237 {offsets = [1, 0], sizes = [1, 256], strides = [1, 1]} : vector<8x384xf32> to vector<1x256xf32>
    %240 = vector.extract_strided_slice %237 {offsets = [2, 0], sizes = [1, 128], strides = [1, 1]} : vector<8x384xf32> to vector<1x128xf32>
    %241 = vector.extract_strided_slice %237 {offsets = [3, 0], sizes = [1, 128], strides = [1, 1]} : vector<8x384xf32> to vector<1x128xf32>
    %242 = vector.extract_strided_slice %237 {offsets = [4, 0], sizes = [1, 128], strides = [1, 1]} : vector<8x384xf32> to vector<1x128xf32>
    %243 = vector.extract_strided_slice %237 {offsets = [5, 0], sizes = [1, 128], strides = [1, 1]} : vector<8x384xf32> to vector<1x128xf32>
    %244 = vector.extract_strided_slice %237 {offsets = [6, 0], sizes = [1, 128], strides = [1, 1]} : vector<8x384xf32> to vector<1x128xf32>
    %245 = vector.extract_strided_slice %237 {offsets = [7, 0], sizes = [1, 128], strides = [1, 1]} : vector<8x384xf32> to vector<1x128xf32>
    %246 = arith.truncf %235 : vector<16x128xf32> to vector<16x128xbf16>
    %c2_70 = arith.constant 2 : index
    %c0_71 = arith.constant 0 : index
    %c0_72 = arith.constant 0 : index
    %247 = vector.load %arg2[%c2_70, %c0_71, %c0_72] : memref<3x128x384xbf16, #tpu.memory_space<vmem>>, vector<1x128x384xbf16>
    %248 = vector.shape_cast %247 : vector<1x128x384xbf16> to vector<128x384xbf16>
    %cst_73 = arith.constant dense<0.000000e+00> : vector<16x384xf32>
    %249 = tpu.matmul %246, %248, %cst_73 {dimension_numbers = #tpu.dot_dimension_numbers<[1], [0], [0], [1], [0, 0, 1, 1], [], []>} : vector<16x128xbf16>, vector<128x384xbf16>, vector<16x384xf32> -> vector<16x384xf32>
    %250 = vector.broadcast %238 : vector<1x384xf32> to vector<16x384xf32>
    %251 = arith.addf %249, %250 : vector<16x384xf32>
    %252 = vector.extract_strided_slice %251 {offsets = [0, 0], sizes = [16, 128], strides = [1, 1]} : vector<16x384xf32> to vector<16x128xf32>
    %253 = vector.shape_cast %252 : vector<16x128xf32> to vector<2x8x128xf32>
    %254 = vector.extract_strided_slice %251 {offsets = [0, 128], sizes = [16, 128], strides = [1, 1]} : vector<16x384xf32> to vector<16x128xf32>
    %255 = vector.shape_cast %254 : vector<16x128xf32> to vector<2x8x128xf32>
    %256 = vector.extract_strided_slice %251 {offsets = [0, 256], sizes = [16, 128], strides = [1, 1]} : vector<16x384xf32> to vector<16x128xf32>
    %257 = vector.shape_cast %256 : vector<16x128xf32> to vector<2x8x128xf32>
    %258 = vector.extract_strided_slice %253 {offsets = [0, 0, 0], sizes = [2, 8, 32], strides = [1, 1, 1]} : vector<2x8x128xf32> to vector<2x8x32xf32>
    %259 = vector.extract_strided_slice %253 {offsets = [0, 0, 32], sizes = [2, 8, 32], strides = [1, 1, 1]} : vector<2x8x128xf32> to vector<2x8x32xf32>
    %260 = vector.extract_strided_slice %253 {offsets = [0, 0, 64], sizes = [2, 8, 32], strides = [1, 1, 1]} : vector<2x8x128xf32> to vector<2x8x32xf32>
    %261 = vector.extract_strided_slice %253 {offsets = [0, 0, 96], sizes = [2, 8, 32], strides = [1, 1, 1]} : vector<2x8x128xf32> to vector<2x8x32xf32>
    %262 = tpu.concatenate %258, %259, %260, %261 in 0 : vector<2x8x32xf32>, vector<2x8x32xf32>, vector<2x8x32xf32>, vector<2x8x32xf32> -> vector<8x8x32xf32>
    %263 = vector.extract_strided_slice %255 {offsets = [0, 0, 0], sizes = [2, 8, 32], strides = [1, 1, 1]} : vector<2x8x128xf32> to vector<2x8x32xf32>
    %264 = vector.extract_strided_slice %255 {offsets = [0, 0, 32], sizes = [2, 8, 32], strides = [1, 1, 1]} : vector<2x8x128xf32> to vector<2x8x32xf32>
    %265 = vector.extract_strided_slice %255 {offsets = [0, 0, 64], sizes = [2, 8, 32], strides = [1, 1, 1]} : vector<2x8x128xf32> to vector<2x8x32xf32>
    %266 = vector.extract_strided_slice %255 {offsets = [0, 0, 96], sizes = [2, 8, 32], strides = [1, 1, 1]} : vector<2x8x128xf32> to vector<2x8x32xf32>
    %267 = tpu.concatenate %263, %264, %265, %266 in 0 : vector<2x8x32xf32>, vector<2x8x32xf32>, vector<2x8x32xf32>, vector<2x8x32xf32> -> vector<8x8x32xf32>
    %268 = vector.extract_strided_slice %257 {offsets = [0, 0, 0], sizes = [2, 8, 32], strides = [1, 1, 1]} : vector<2x8x128xf32> to vector<2x8x32xf32>
    %269 = vector.extract_strided_slice %257 {offsets = [0, 0, 32], sizes = [2, 8, 32], strides = [1, 1, 1]} : vector<2x8x128xf32> to vector<2x8x32xf32>
    %270 = vector.extract_strided_slice %257 {offsets = [0, 0, 64], sizes = [2, 8, 32], strides = [1, 1, 1]} : vector<2x8x128xf32> to vector<2x8x32xf32>
    %271 = vector.extract_strided_slice %257 {offsets = [0, 0, 96], sizes = [2, 8, 32], strides = [1, 1, 1]} : vector<2x8x128xf32> to vector<2x8x32xf32>
    %272 = tpu.concatenate %268, %269, %270, %271 in 0 : vector<2x8x32xf32>, vector<2x8x32xf32>, vector<2x8x32xf32>, vector<2x8x32xf32> -> vector<8x8x32xf32>
    "tpu.trace_start"() <{level = 10 : i32, message = "nqd,nkd->nqk"}> : () -> ()
    %cst_74 = arith.constant dense<0.000000e+00> : vector<8x8x8xf32>
    %273 = tpu.matmul %262, %267, %cst_74 {dimension_numbers = #tpu.dot_dimension_numbers<[2], [2], [1], [1], [0, 0, 0, 1, 1, 1], [0], [0]>} : vector<8x8x32xf32>, vector<8x8x32xf32>, vector<8x8x8xf32> -> vector<8x8x8xf32>
    "tpu.trace_stop"() : () -> ()
    %cst_75 = arith.constant dense<0xFF800000> : vector<8x8xf32>
    %274 = vector.multi_reduction <maximumf>, %273, %cst_75 [2] : vector<8x8x8xf32> to vector<8x8xf32>
    %275 = vector.shape_cast %274 : vector<8x8xf32> to vector<8x8x1xf32>
    %276 = vector.broadcast %275 : vector<8x8x1xf32> to vector<8x8x8xf32>
    %277 = arith.subf %273, %276 : vector<8x8x8xf32>
    %278 = math.exp %277 : vector<8x8x8xf32>
    %cst_76 = arith.constant dense<0.000000e+00> : vector<8x8xf32>
    %279 = vector.multi_reduction <add>, %278, %cst_76 [2] : vector<8x8x8xf32> to vector<8x8xf32>
    %280 = vector.shape_cast %279 : vector<8x8xf32> to vector<8x8x1xf32>
    %281 = tpu.reciprocal %280 {approx = true} : vector<8x8x1xf32> -> vector<8x8x1xf32>
    %282 = vector.broadcast %281 : vector<8x8x1xf32> to vector<8x8x8xf32>
    %283 = arith.mulf %278, %282 : vector<8x8x8xf32>
    "tpu.trace_start"() <{level = 10 : i32, message = "nqk,nkd->nqd"}> : () -> ()
    %cst_77 = arith.constant dense<0.000000e+00> : vector<8x8x32xf32>
    %284 = tpu.matmul %283, %272, %cst_77 {dimension_numbers = #tpu.dot_dimension_numbers<[2], [1], [1], [2], [0, 0, 0, 1, 1, 2], [0], [0]>} : vector<8x8x8xf32>, vector<8x8x32xf32>, vector<8x8x32xf32> -> vector<8x8x32xf32>
    "tpu.trace_stop"() : () -> ()
    %285 = vector.extract_strided_slice %284 {offsets = [0, 0, 0], sizes = [2, 8, 32], strides = [1, 1, 1]} : vector<8x8x32xf32> to vector<2x8x32xf32>
    %286 = vector.extract_strided_slice %284 {offsets = [2, 0, 0], sizes = [2, 8, 32], strides = [1, 1, 1]} : vector<8x8x32xf32> to vector<2x8x32xf32>
    %287 = vector.extract_strided_slice %284 {offsets = [4, 0, 0], sizes = [2, 8, 32], strides = [1, 1, 1]} : vector<8x8x32xf32> to vector<2x8x32xf32>
    %288 = vector.extract_strided_slice %284 {offsets = [6, 0, 0], sizes = [2, 8, 32], strides = [1, 1, 1]} : vector<8x8x32xf32> to vector<2x8x32xf32>
    %289 = tpu.concatenate %285, %286, %287, %288 in 2 : vector<2x8x32xf32>, vector<2x8x32xf32>, vector<2x8x32xf32>, vector<2x8x32xf32> -> vector<2x8x128xf32>
    %290 = vector.shape_cast %289 : vector<2x8x128xf32> to vector<16x128xf32>
    %291 = arith.truncf %290 : vector<16x128xf32> to vector<16x128xbf16>
    %c2_78 = arith.constant 2 : index
    %c0_79 = arith.constant 0 : index
    %c0_80 = arith.constant 0 : index
    %292 = vector.load %arg3[%c2_78, %c0_79, %c0_80] : memref<3x128x128xbf16, #tpu.memory_space<vmem>>, vector<1x128x128xbf16>
    %293 = vector.shape_cast %292 : vector<1x128x128xbf16> to vector<128x128xbf16>
    %cst_81 = arith.constant dense<0.000000e+00> : vector<16x128xf32>
    %294 = tpu.matmul %291, %293, %cst_81 {dimension_numbers = #tpu.dot_dimension_numbers<[1], [0], [0], [1], [0, 0, 1, 1], [], []>} : vector<16x128xbf16>, vector<128x128xbf16>, vector<16x128xf32> -> vector<16x128xf32>
    %295 = vector.broadcast %240 : vector<1x128xf32> to vector<16x128xf32>
    %296 = arith.addf %294, %295 : vector<16x128xf32>
    %297 = arith.addf %235, %296 : vector<16x128xf32>
    %cst_82 = arith.constant dense<0.000000e+00> : vector<16xf32>
    %298 = vector.multi_reduction <add>, %297, %cst_82 [1] : vector<16x128xf32> to vector<16xf32>
    %299 = vector.shape_cast %298 : vector<16xf32> to vector<16x1xf32>
    %cst_83 = arith.constant 1.280000e+02 : f32
    %300 = vector.broadcast %cst_83 : f32 to vector<16x1xf32>
    %301 = arith.divf %299, %300 : vector<16x1xf32>
    %302 = vector.broadcast %301 : vector<16x1xf32> to vector<16x128xf32>
    %303 = arith.subf %297, %302 : vector<16x128xf32>
    %304 = arith.mulf %303, %303 : vector<16x128xf32>
    %cst_84 = arith.constant dense<0.000000e+00> : vector<16xf32>
    %305 = vector.multi_reduction <add>, %304, %cst_84 [1] : vector<16x128xf32> to vector<16xf32>
    %306 = vector.shape_cast %305 : vector<16xf32> to vector<16x1xf32>
    %cst_85 = arith.constant 1.280000e+02 : f32
    %307 = vector.broadcast %cst_85 : f32 to vector<16x1xf32>
    %308 = arith.divf %306, %307 : vector<16x1xf32>
    %cst_86 = arith.constant 9.99999974E-6 : f32
    %309 = vector.broadcast %cst_86 : f32 to vector<16x1xf32>
    %310 = arith.addf %308, %309 : vector<16x1xf32>
    %311 = math.rsqrt %310 : vector<16x1xf32>
    %312 = vector.broadcast %311 : vector<16x1xf32> to vector<16x128xf32>
    %313 = arith.mulf %303, %312 : vector<16x128xf32>
    %314 = vector.broadcast %241 : vector<1x128xf32> to vector<16x128xf32>
    %315 = arith.mulf %313, %314 : vector<16x128xf32>
    %316 = vector.broadcast %242 : vector<1x128xf32> to vector<16x128xf32>
    %317 = arith.addf %315, %316 : vector<16x128xf32>
    %318 = arith.truncf %317 : vector<16x128xf32> to vector<16x128xbf16>
    %c2_87 = arith.constant 2 : index
    %c0_88 = arith.constant 0 : index
    %c0_89 = arith.constant 0 : index
    %319 = vector.load %arg4[%c2_87, %c0_88, %c0_89] : memref<3x128x256xbf16, #tpu.memory_space<vmem>>, vector<1x128x256xbf16>
    %320 = vector.shape_cast %319 : vector<1x128x256xbf16> to vector<128x256xbf16>
    %cst_90 = arith.constant dense<0.000000e+00> : vector<16x256xf32>
    %321 = tpu.matmul %318, %320, %cst_90 {dimension_numbers = #tpu.dot_dimension_numbers<[1], [0], [0], [1], [0, 0, 1, 1], [], []>} : vector<16x128xbf16>, vector<128x256xbf16>, vector<16x256xf32> -> vector<16x256xf32>
    %322 = vector.broadcast %239 : vector<1x256xf32> to vector<16x256xf32>
    %323 = arith.addf %321, %322 : vector<16x256xf32>
    %cst_91 = arith.constant 0.000000e+00 : f32
    %324 = vector.broadcast %cst_91 : f32 to vector<16x256xf32>
    %325 = arith.maximumf %323, %324 : vector<16x256xf32>
    %326 = arith.truncf %325 : vector<16x256xf32> to vector<16x256xbf16>
    %c2_92 = arith.constant 2 : index
    %c0_93 = arith.constant 0 : index
    %c0_94 = arith.constant 0 : index
    %327 = vector.load %arg5[%c2_92, %c0_93, %c0_94] : memref<3x256x128xbf16, #tpu.memory_space<vmem>>, vector<1x256x128xbf16>
    %328 = vector.shape_cast %327 : vector<1x256x128xbf16> to vector<256x128xbf16>
    %cst_95 = arith.constant dense<0.000000e+00> : vector<16x128xf32>
    %329 = tpu.matmul %326, %328, %cst_95 {dimension_numbers = #tpu.dot_dimension_numbers<[1], [0], [0], [1], [0, 0, 1, 1], [], []>} : vector<16x256xbf16>, vector<256x128xbf16>, vector<16x128xf32> -> vector<16x128xf32>
    %330 = vector.broadcast %243 : vector<1x128xf32> to vector<16x128xf32>
    %331 = arith.addf %329, %330 : vector<16x128xf32>
    %332 = arith.addf %317, %331 : vector<16x128xf32>
    %cst_96 = arith.constant dense<0.000000e+00> : vector<16xf32>
    %333 = vector.multi_reduction <add>, %332, %cst_96 [1] : vector<16x128xf32> to vector<16xf32>
    %334 = vector.shape_cast %333 : vector<16xf32> to vector<16x1xf32>
    %cst_97 = arith.constant 1.280000e+02 : f32
    %335 = vector.broadcast %cst_97 : f32 to vector<16x1xf32>
    %336 = arith.divf %334, %335 : vector<16x1xf32>
    %337 = vector.broadcast %336 : vector<16x1xf32> to vector<16x128xf32>
    %338 = arith.subf %332, %337 : vector<16x128xf32>
    %339 = arith.mulf %338, %338 : vector<16x128xf32>
    %cst_98 = arith.constant dense<0.000000e+00> : vector<16xf32>
    %340 = vector.multi_reduction <add>, %339, %cst_98 [1] : vector<16x128xf32> to vector<16xf32>
    %341 = vector.shape_cast %340 : vector<16xf32> to vector<16x1xf32>
    %cst_99 = arith.constant 1.280000e+02 : f32
    %342 = vector.broadcast %cst_99 : f32 to vector<16x1xf32>
    %343 = arith.divf %341, %342 : vector<16x1xf32>
    %cst_100 = arith.constant 9.99999974E-6 : f32
    %344 = vector.broadcast %cst_100 : f32 to vector<16x1xf32>
    %345 = arith.addf %343, %344 : vector<16x1xf32>
    %346 = math.rsqrt %345 : vector<16x1xf32>
    %347 = vector.broadcast %346 : vector<16x1xf32> to vector<16x128xf32>
    %348 = arith.mulf %338, %347 : vector<16x128xf32>
    %349 = vector.broadcast %244 : vector<1x128xf32> to vector<16x128xf32>
    %350 = arith.mulf %348, %349 : vector<16x128xf32>
    %351 = vector.broadcast %245 : vector<1x128xf32> to vector<16x128xf32>
    %352 = arith.addf %350, %351 : vector<16x128xf32>
    %353 = vector.shape_cast %352 : vector<16x128xf32> to vector<2x8x128xf32>
    %c0_101 = arith.constant 0 : index
    %c0_102 = arith.constant 0 : index
    %c0_103 = arith.constant 0 : index
    %354 = vector.load %arg7[%c0_101, %c0_102, %c0_103] : memref<2x8x128xf32, #tpu.memory_space<vmem>>, vector<2x8x128xf32>
    tpu.vector_store %arg7[%c0_101, %c0_102, %c0_103], %353 {strides = array<i32>} : memref<2x8x128xf32, #tpu.memory_space<vmem>>, vector<2x8x128xf32>,
    return
  }
  func.func @transform_0(%arg0: i32) -> (i32, i32, i32) {
    %c0_i32 = arith.constant 0 : i32
    %c0_i32_0 = arith.constant 0 : i32
    %c0_i32_1 = arith.constant 0 : i32
    return %arg0, %c0_i32, %c0_i32_0 : i32, i32, i32
  }
  func.func @transform_1(%arg0: i32) -> (i32, i32, i32) {
    %c0_i32 = arith.constant 0 : i32
    %c0_i32_0 = arith.constant 0 : i32
    %c0_i32_1 = arith.constant 0 : i32
    %c0_i32_2 = arith.constant 0 : i32
    return %c0_i32, %c0_i32_0, %c0_i32_1 : i32, i32, i32
  }
  func.func @transform_2(%arg0: i32) -> (i32, i32, i32) {
    %c0_i32 = arith.constant 0 : i32
    %c0_i32_0 = arith.constant 0 : i32
    %c0_i32_1 = arith.constant 0 : i32
    %c0_i32_2 = arith.constant 0 : i32
    return %c0_i32, %c0_i32_0, %c0_i32_1 : i32, i32, i32
  }
  func.func @transform_3(%arg0: i32) -> (i32, i32, i32) {
    %c0_i32 = arith.constant 0 : i32
    %c0_i32_0 = arith.constant 0 : i32
    %c0_i32_1 = arith.constant 0 : i32
    %c0_i32_2 = arith.constant 0 : i32
    return %c0_i32, %c0_i32_0, %c0_i32_1 : i32, i32, i32
  }
  func.func @transform_4(%arg0: i32) -> (i32, i32, i32) {
    %c0_i32 = arith.constant 0 : i32
    %c0_i32_0 = arith.constant 0 : i32
    %c0_i32_1 = arith.constant 0 : i32
    %c0_i32_2 = arith.constant 0 : i32
    return %c0_i32, %c0_i32_0, %c0_i32_1 : i32, i32, i32
  }
  func.func @transform_5(%arg0: i32) -> (i32, i32, i32) {
    %c0_i32 = arith.constant 0 : i32
    %c0_i32_0 = arith.constant 0 : i32
    %c0_i32_1 = arith.constant 0 : i32
    %c0_i32_2 = arith.constant 0 : i32
    return %c0_i32, %c0_i32_0, %c0_i32_1 : i32, i32, i32
  }
  func.func @transform_6(%arg0: i32) -> (i32, i32, i32) {
    %c0_i32 = arith.constant 0 : i32
    %c0_i32_0 = arith.constant 0 : i32
    %c0_i32_1 = arith.constant 0 : i32
    return %arg0, %c0_i32, %c0_i32_0 : i32, i32, i32
  }
}

</mosaic_0001>

<llo_original>
// kernel: tpu_custom_call.1
$region0: #{tpu_custom_call.1}
  #allocation0 [shape = 'u32[]', space=smem, size = 0x4, offset = 0x4, fixed_abs, tag = 'smem constant byte address 0x4 - core index']
  #allocation1 [shape = 'u32[144,128]{1,0:T(1,128)}', space=vmem, size = 0x12000, scoped, tag = 'internal scratch']
  %s0 = inlined_call_operand.hbm [shape: f32[2,8,128], index: 0, kind: input, shape index: {}]
  %s1 = inlined_call_operand.hbm [shape: bf16[3,128,384], index: 1, kind: input, shape index: {}]
  %s2 = inlined_call_operand.hbm [shape: bf16[3,128,128], index: 2, kind: input, shape index: {}]
  %s3 = inlined_call_operand.hbm [shape: bf16[3,128,256], index: 3, kind: input, shape index: {}]
  %s4 = inlined_call_operand.hbm [shape: bf16[3,256,128], index: 4, kind: input, shape index: {}]
  %s5 = inlined_call_operand.hbm [shape: f32[3,8,384], index: 5, kind: input, shape index: {}]
  %s6 = inlined_call_operand.hbm [shape: f32[2,8,128], index: 6, kind: output, shape index: {}]
  %s7 = sld [smem:[#allocation0]]
  $region58: #{tpu_custom_call.1} parent=0
    _
  %s9 = ssub.s32 1, %s7
  %s10 = scalar_select 0, %s9, %s7
  $region1: #{tpu_custom_call.1} parent=0
    #allocation2 [shape = 'u8[8192]{0}', space=vmem, size = 0x2000, scoped, tag = 'input window, operand 0, single buffered']
    #allocation3 [shape = 's32[1]{0}', space=sflag, size = 0x4, scoped, tag = 'scoped memory for tpu_custom_call.1']
    #allocation4 [shape = 's32[1]{0}', space=sflag, size = 0x4, scoped, tag = 'scoped memory for tpu_custom_call.1']
    #allocation5 [shape = 'u8[294912]{0}', space=vmem, size = 0x48000, scoped, tag = 'input window, operand 1, single buffered']
    #allocation6 [shape = 's32[1]{0}', space=sflag, size = 0x4, scoped, tag = 'scoped memory for tpu_custom_call.1']
    #allocation7 [shape = 'u8[98304]{0}', space=vmem, size = 0x18000, scoped, tag = 'input window, operand 2, single buffered']
    #allocation8 [shape = 'u8[196608]{0}', space=vmem, size = 0x30000, scoped, tag = 'input window, operand 3, single buffered']
    #allocation9 [shape = 's32[1]{0}', space=sflag, size = 0x4, scoped, tag = 'scoped memory for tpu_custom_call.1']
    #allocation10 [shape = 'u8[196608]{0}', space=vmem, size = 0x30000, scoped, tag = 'input window, operand 4, single buffered']
    #allocation11 [shape = 'u8[36864]{0}', space=vmem, size = 0x9000, scoped, tag = 'input window, operand 5, single buffered']
    #allocation12 [shape = 's32[1]{0}', space=sflag, size = 0x4, scoped, tag = 'scoped memory for tpu_custom_call.1']
    #allocation13 [shape = 'u8[8192]{0}', space=vmem, size = 0x2000, scoped, tag = 'output window, operand 0, single buffered']
    %11 = vsyncpa [#allocation3], 0
    %12 = vsyncpa [#allocation6], 0
    %13 = vsyncpa [#allocation9], 0
    %14 = vsyncpa [#allocation12], 0
    %15 = vsyncpa [#allocation4], 0
    // Predicated region
    $region2: #{tpu_custom_call.1} parent=1 // pred_check
      _
    $region3: #{tpu_custom_call.1} parent=1 // pred_check_branch
      %17 = sbr.rel (0) target = $region5
    $region4: #{tpu_custom_call.1} parent=1 // pred_region
      %s19 = ssub.s32 256, 256
      %20 = vsyncadd [#allocation3], %s19
      %s21 = sshll.u32 [#allocation2], 4
      %s22 = int_to_ptr.vmem [resolvable:$true] %s21
      %27 = dma.hbm_to_vmem [thread:$0]  %s0, 256, %s22, [#allocation3], 128, 128, 8
    $region5: #{tpu_custom_call.1} parent=1 // pred_fallthru
      _
    // Predicated region
    $region6: #{tpu_custom_call.1} parent=1 // pred_check
      _
    $region7: #{tpu_custom_call.1} parent=1 // pred_check_branch
      %29 = sbr.rel (0) target = $region9
    $region8: #{tpu_custom_call.1} parent=1 // pred_region
      %s31 = ssub.s32 9216, 9216
      %32 = vsyncadd [#allocation6], %s31
      %s33 = sshll.u32 [#allocation5], 4
      %s34 = int_to_ptr.vmem [resolvable:$true] %s33
      %39 = dma.hbm_to_vmem [thread:$0]  %s1, 9216, %s34, [#allocation6], 192, 192, 12
    $region9: #{tpu_custom_call.1} parent=1 // pred_fallthru
      _
    // Predicated region
    $region10: #{tpu_custom_call.1} parent=1 // pred_check
      _
    $region11: #{tpu_custom_call.1} parent=1 // pred_check_branch
      %41 = sbr.rel (0) target = $region13
    $region12: #{tpu_custom_call.1} parent=1 // pred_region
      %s43 = ssub.s32 3072, 3072
      %44 = vsyncadd [#allocation6], %s43
      %s45 = sshll.u32 [#allocation7], 4
      %s46 = int_to_ptr.vmem [resolvable:$true] %s45
      %51 = dma.hbm_to_vmem [thread:$0]  %s2, 3072, %s46, [#allocation6], 64, 64, 4
    $region13: #{tpu_custom_call.1} parent=1 // pred_fallthru
      _
    // Predicated region
    $region14: #{tpu_custom_call.1} parent=1 // pred_check
      _
    $region15: #{tpu_custom_call.1} parent=1 // pred_check_branch
      %53 = sbr.rel (0) target = $region17
    $region16: #{tpu_custom_call.1} parent=1 // pred_region
      %s55 = ssub.s32 6144, 6144
      %56 = vsyncadd [#allocation9], %s55
      %s57 = sshll.u32 [#allocation8], 4
      %s58 = int_to_ptr.vmem [resolvable:$true] %s57
      %63 = dma.hbm_to_vmem [thread:$0]  %s3, 6144, %s58, [#allocation9], 128, 128, 8
    $region17: #{tpu_custom_call.1} parent=1 // pred_fallthru
      _
    // Predicated region
    $region18: #{tpu_custom_call.1} parent=1 // pred_check
      _
    $region19: #{tpu_custom_call.1} parent=1 // pred_check_branch
      %65 = sbr.rel (0) target = $region21
    $region20: #{tpu_custom_call.1} parent=1 // pred_region
      %s67 = ssub.s32 6144, 6144
      %68 = vsyncadd [#allocation9], %s67
      %s69 = sshll.u32 [#allocation10], 4
      %s70 = int_to_ptr.vmem [resolvable:$true] %s69
      %75 = dma.hbm_to_vmem [thread:$0]  %s4, 6144, %s70, [#allocation9], 64, 64, 4
    $region21: #{tpu_custom_call.1} parent=1 // pred_fallthru
      _
    // Predicated region
    $region22: #{tpu_custom_call.1} parent=1 // pred_check
      _
    $region23: #{tpu_custom_call.1} parent=1 // pred_check_branch
      %77 = sbr.rel (0) target = $region25
    $region24: #{tpu_custom_call.1} parent=1 // pred_region
      %s79 = ssub.s32 1152, 1152
      %80 = vsyncadd [#allocation12], %s79
      %s81 = sshll.u32 [#allocation11], 4
      %s82 = int_to_ptr.vmem [resolvable:$true] %s81
      %87 = dma.hbm_to_vmem [thread:$0]  %s5, 1152, %s82, [#allocation12], 384, 384, 24
    $region25: #{tpu_custom_call.1} parent=1 // pred_fallthru
      _
    // Predicated region
    $region26: #{tpu_custom_call.1} parent=1 // pred_check
      _
    $region27: #{tpu_custom_call.1} parent=1 // pred_check_branch
      %89 = sbr.rel (0) target = $region29
    $region28: #{tpu_custom_call.1} parent=1 // pred_region
      %90 = dma.done [#allocation3], 256
    $region29: #{tpu_custom_call.1} parent=1 // pred_fallthru
      _
    // Predicated region
    $region30: #{tpu_custom_call.1} parent=1 // pred_check
      _
    $region31: #{tpu_custom_call.1} parent=1 // pred_check_branch
      %92 = sbr.rel (0) target = $region33
    $region32: #{tpu_custom_call.1} parent=1 // pred_region
      %93 = dma.done [#allocation6], 9216
    $region33: #{tpu_custom_call.1} parent=1 // pred_fallthru
      _
    // Predicated region
    $region34: #{tpu_custom_call.1} parent=1 // pred_check
      _
    $region35: #{tpu_custom_call.1} parent=1 // pred_check_branch
      %95 = sbr.rel (0) target = $region37
    $region36: #{tpu_custom_call.1} parent=1 // pred_region
      %96 = dma.done [#allocation6], 3072
    $region37: #{tpu_custom_call.1} parent=1 // pred_fallthru
      _
    // Predicated region
    $region38: #{tpu_custom_call.1} parent=1 // pred_check
      _
    $region39: #{tpu_custom_call.1} parent=1 // pred_check_branch
      %98 = sbr.rel (0) target = $region41
    $region40: #{tpu_custom_call.1} parent=1 // pred_region
      %99 = dma.done [#allocation9], 6144
    $region41: #{tpu_custom_call.1} parent=1 // pred_fallthru
      _
    // Predicated region
    $region42: #{tpu_custom_call.1} parent=1 // pred_check
      _
    $region43: #{tpu_custom_call.1} parent=1 // pred_check_branch
      %101 = sbr.rel (0) target = $region45
    $region44: #{tpu_custom_call.1} parent=1 // pred_region
      %102 = dma.done [#allocation9], 6144
    $region45: #{tpu_custom_call.1} parent=1 // pred_fallthru
      _
    // Predicated region
    $region46: #{tpu_custom_call.1} parent=1 // pred_check
      _
    $region47: #{tpu_custom_call.1} parent=1 // pred_check_branch
      %104 = sbr.rel (0) target = $region49
    $region48: #{tpu_custom_call.1} parent=1 // pred_region
      %105 = dma.done [#allocation12], 1152
    $region49: #{tpu_custom_call.1} parent=1 // pred_fallthru
      _
    %v107 = vld [vmem:[#allocation2] sm:$0xff]
    %v108 = vld [vmem:[#allocation2 + $0x8] sm:$0xff]
    %v109 = vld [vmem:[#allocation11] sm:$0xff]
    %v110 = vld [vmem:[#allocation11 + $0x8] sm:$0xff]
    %v111 = vld [vmem:[#allocation11 + $0x10] sm:$0xff]
    %v112 = vpack.c.bf16 %v108, %v107
    %v113 = vld [vmem:[#allocation5] sm:$0xff]
    %v114 = vld [vmem:[#allocation5 + $0x8] sm:$0xf]
    %v115 = vld [vmem:[#allocation5 + $0xc] sm:$0xff]
    %v116 = vld [vmem:[#allocation5 + $0x14] sm:$0xf]
    %v117 = vld [vmem:[#allocation5 + $0x18] sm:$0xff]
    %v118 = vld [vmem:[#allocation5 + $0x20] sm:$0xf]
    %v119 = vld [vmem:[#allocation5 + $0x24] sm:$0xff]
    %v120 = vld [vmem:[#allocation5 + $0x2c] sm:$0xf]
    %v121 = vld [vmem:[#allocation5 + $0x30] sm:$0xff]
    %v122 = vld [vmem:[#allocation5 + $0x38] sm:$0xf]
    %v123 = vld [vmem:[#allocation5 + $0x3c] sm:$0xff]
    %v124 = vld [vmem:[#allocation5 + $0x44] sm:$0xf]
    %v125 = vld [vmem:[#allocation5 + $0x48] sm:$0xff]
    %v126 = vld [vmem:[#allocation5 + $0x50] sm:$0xf]
    %v127 = vld [vmem:[#allocation5 + $0x54] sm:$0xff]
    %v128 = vld [vmem:[#allocation5 + $0x5c] sm:$0xf]
    %v129 = vld [vmem:[#allocation5 + $0x60] sm:$0xff]
    %v130 = vld [vmem:[#allocation5 + $0x68] sm:$0xf]
    %v131 = vld [vmem:[#allocation5 + $0x6c] sm:$0xff]
    %v132 = vld [vmem:[#allocation5 + $0x74] sm:$0xf]
    %v133 = vld [vmem:[#allocation5 + $0x78] sm:$0xff]
    %v134 = vld [vmem:[#allocation5 + $0x80] sm:$0xf]
    %v135 = vld [vmem:[#allocation5 + $0x84] sm:$0xff]
    %v136 = vld [vmem:[#allocation5 + $0x8c] sm:$0xf]
    %v137 = vld [vmem:[#allocation5 + $0x90] sm:$0xff]
    %v138 = vld [vmem:[#allocation5 + $0x98] sm:$0xf]
    %v139 = vld [vmem:[#allocation5 + $0x9c] sm:$0xff]
    %v140 = vld [vmem:[#allocation5 + $0xa4] sm:$0xf]
    %v141 = vld [vmem:[#allocation5 + $0xa8] sm:$0xff]
    %v142 = vld [vmem:[#allocation5 + $0xb0] sm:$0xf]
    %v143 = vld [vmem:[#allocation5 + $0xb4] sm:$0xff]
    %v144 = vld [vmem:[#allocation5 + $0xbc] sm:$0xf]
    %v145 = vlaneseq
    %v146 = vshrl.u32 %v145, 7
    %v147 = vsub.s32 0, %v146
    %v148 = vrot.slane %v109, %v147
    %v149 = vlaneseq
    %v150 = vshrl.u32 %v149, 7
    %v151 = vsub.s32 0, %v150
    %v152 = vrot.slane %v110, %v151
    %v153 = vlaneseq
    %v154 = vshrl.u32 %v153, 7
    %v155 = vsub.s32 0, %v154
    %v156 = vrot.slane %v111, %v155
    %v189 = vunpack.c.l.b16 %v113
    %v190 = vunpack.c.h.b16 %v113
    %v191 = vunpack.c.l.b16 %v114
    %v192 = vunpack.c.l.b16 %v115
    %v193 = vunpack.c.h.b16 %v115
    %v194 = vunpack.c.l.b16 %v116
    %v195 = vunpack.c.l.b16 %v117
    %v196 = vunpack.c.h.b16 %v117
    %v197 = vunpack.c.l.b16 %v118
    %v198 = vunpack.c.l.b16 %v119
    %v199 = vunpack.c.h.b16 %v119
    %v200 = vunpack.c.l.b16 %v120
    %v201 = vunpack.c.l.b16 %v121
    %v202 = vunpack.c.h.b16 %v121
    %v203 = vunpack.c.l.b16 %v122
    %v204 = vunpack.c.l.b16 %v123
    %v205 = vunpack.c.h.b16 %v123
    %v206 = vunpack.c.l.b16 %v124
    %v207 = vunpack.c.l.b16 %v125
    %v208 = vunpack.c.h.b16 %v125
    %v209 = vunpack.c.l.b16 %v126
    %v210 = vunpack.c.l.b16 %v127
    %v211 = vunpack.c.h.b16 %v127
    %v212 = vunpack.c.l.b16 %v128
    %v213 = vunpack.c.l.b16 %v129
    %v214 = vunpack.c.h.b16 %v129
    %v215 = vunpack.c.l.b16 %v130
    %v216 = vunpack.c.l.b16 %v131
    %v217 = vunpack.c.h.b16 %v131
    %v218 = vunpack.c.l.b16 %v132
    %v219 = vunpack.c.l.b16 %v133
    %v220 = vunpack.c.h.b16 %v133
    %v221 = vunpack.c.l.b16 %v134
    %v222 = vunpack.c.l.b16 %v135
    %v223 = vunpack.c.h.b16 %v135
    %v224 = vunpack.c.l.b16 %v136
    %v225 = vunpack.c.l.b16 %v137
    %v226 = vunpack.c.h.b16 %v137
    %v227 = vunpack.c.l.b16 %v138
    %v228 = vunpack.c.l.b16 %v139
    %v229 = vunpack.c.h.b16 %v139
    %v230 = vunpack.c.l.b16 %v140
    %v231 = vunpack.c.l.b16 %v141
    %v232 = vunpack.c.h.b16 %v141
    %v233 = vunpack.c.l.b16 %v142
    %v234 = vunpack.c.l.b16 %v143
    %v235 = vunpack.c.h.b16 %v143
    %v236 = vunpack.c.l.b16 %v144
    %v237 = vpack.c.b16 %v192, %v189
    %v238 = vpack.c.b16 %v193, %v190
    %v239 = vpack.c.b16 %v194, %v191
    %v240 = vpack.c.b16 %v198, %v195
    %v241 = vpack.c.b16 %v199, %v196
    %v242 = vpack.c.b16 %v200, %v197
    %v243 = vpack.c.b16 %v204, %v201
    %v244 = vpack.c.b16 %v205, %v202
    %v245 = vpack.c.b16 %v206, %v203
    %v246 = vpack.c.b16 %v210, %v207
    %v247 = vpack.c.b16 %v211, %v208
    %v248 = vpack.c.b16 %v212, %v209
    %v249 = vpack.c.b16 %v216, %v213
    %v250 = vpack.c.b16 %v217, %v214
    %v251 = vpack.c.b16 %v218, %v215
    %v252 = vpack.c.b16 %v222, %v219
    %v253 = vpack.c.b16 %v223, %v220
    %v254 = vpack.c.b16 %v224, %v221
    %v255 = vpack.c.b16 %v228, %v225
    %v256 = vpack.c.b16 %v229, %v226
    %v257 = vpack.c.b16 %v230, %v227
    %v258 = vpack.c.b16 %v234, %v231
    %v259 = vpack.c.b16 %v235, %v232
    %v260 = vpack.c.b16 %v236, %v233
    %285 = vmatprep.subr.bf16.mxu0 %v238
    %286 = vmatpush1.bf16.msra.mxu0 %v237
    %287 = vmatprep.subr.bf16.mxu0 %v241
    %288 = vmatpush1.bf16.msra.mxu0 %v240
    %289 = vmatprep.subr.bf16.mxu0 %v244
    %290 = vmatpush1.bf16.msra.mxu0 %v243
    %291 = vmatprep.subr.bf16.mxu0 %v247
    %292 = vmatpush1.bf16.msra.mxu0 %v246
    %293 = vmatprep.subr.bf16.mxu0 %v250
    %294 = vmatpush1.bf16.msra.mxu0 %v249
    %295 = vmatprep.subr.bf16.mxu0 %v253
    %296 = vmatpush1.bf16.msra.mxu0 %v252
    %297 = vmatprep.subr.bf16.mxu0 %v256
    %298 = vmatpush1.bf16.msra.mxu0 %v255
    %299 = vmatprep.subr.bf16.mxu0 %v259
    %300 = vmatpush1.bf16.msra.mxu0 %v258
    %301 = vmatprep.subr.bf16.mxu0 0
    %302 = vmatpush1.bf16.msra.mxu0 0
    %303 = vmatprep.subr.bf16.mxu0 0
    %304 = vmatpush1.bf16.msra.mxu0 0
    %305 = vmatprep.subr.bf16.mxu0 0
    %306 = vmatpush1.bf16.msra.mxu0 0
    %307 = vmatprep.subr.bf16.mxu0 0
    %308 = vmatpush1.bf16.msra.mxu0 0
    %309 = vmatprep.subr.bf16.mxu0 0
    %310 = vmatpush1.bf16.msra.mxu0 0
    %311 = vmatprep.subr.bf16.mxu0 0
    %312 = vmatpush1.bf16.msra.mxu0 0
    %313 = vmatprep.subr.bf16.mxu0 0
    %314 = vmatpush1.bf16.msra.mxu0 0
    %315 = vmatprep.subr.bf16.mxu0 0
    %316 = vmatpush1.bf16.msra.mxu0 0
    %317 = vmatprep.mubr.bf16.mxu0 0
    %318 = vmatmul.mubr.bf16.gmra.mrb[0].mxu0 %v112
    %v319 = vpop.f32.mrb[0].mxu0
    %v320 = vadd.f32 %v148, %v319
    %v321 = vpop.f32.mrb[0].mxu0
    %v322 = vadd.f32 %v152, %v321
    %v323 = vpop.f32.mrb[0].mxu0
    %v324 = vadd.f32 %v148, %v323
    %v325 = vpop.f32.mrb[0].mxu0
    %v326 = vadd.f32 %v152, %v325
    %327 = vdwg.mxu0
    %328 = vmatprep.subr.bf16.mxu0 0
    %329 = vmatpush1.bf16.msra.mxu0 %v239
    %330 = vmatprep.subr.bf16.mxu0 0
    %331 = vmatpush1.bf16.msra.mxu0 %v242
    %332 = vmatprep.subr.bf16.mxu0 0
    %333 = vmatpush1.bf16.msra.mxu0 %v245
    %334 = vmatprep.subr.bf16.mxu0 0
    %335 = vmatpush1.bf16.msra.mxu0 %v248
    %336 = vmatprep.subr.bf16.mxu0 0
    %337 = vmatpush1.bf16.msra.mxu0 %v251
    %338 = vmatprep.subr.bf16.mxu0 0
    %339 = vmatpush1.bf16.msra.mxu0 %v254
    %340 = vmatprep.subr.bf16.mxu0 0
    %341 = vmatpush1.bf16.msra.mxu0 %v257
    %342 = vmatprep.subr.bf16.mxu0 0
    %343 = vmatpush1.bf16.msra.mxu0 %v260
    %344 = vmatprep.subr.bf16.mxu0 0
    %345 = vmatpush1.bf16.msra.mxu0 0
    %346 = vmatprep.subr.bf16.mxu0 0
    %347 = vmatpush1.bf16.msra.mxu0 0
    %348 = vmatprep.subr.bf16.mxu0 0
    %349 = vmatpush1.bf16.msra.mxu0 0
    %350 = vmatprep.subr.bf16.mxu0 0
    %351 = vmatpush1.bf16.msra.mxu0 0
    %352 = vmatprep.subr.bf16.mxu0 0
    %353 = vmatpush1.bf16.msra.mxu0 0
    %354 = vmatprep.subr.bf16.mxu0 0
    %355 = vmatpush1.bf16.msra.mxu0 0
    %356 = vmatprep.subr.bf16.mxu0 0
    %357 = vmatpush1.bf16.msra.mxu0 0
    %358 = vmatprep.subr.bf16.mxu0 0
    %359 = vmatpush1.bf16.msra.mxu0 0
    %360 = vmatprep.mubr.bf16.mxu0 0
    %361 = vmatmul.mubr.bf16.gmra.mrb[0].mxu0 %v112
    %v362 = vpop.f32.mrb[0].mxu0
    %v363 = vadd.f32 %v156, %v362
    %v364 = vpop.f32.mrb[0].mxu0
    %v365 = vpop.f32.mrb[0].mxu0
    %v366 = vadd.f32 %v156, %v365
    %v367 = vpop.f32.mrb[0].mxu0
    %368 = vdwg.mxu0
    %371 = vrot.lane.b32.xlu0 %v320, 96
    %v372 = vpop.permute.xlu0 %371
    %373 = vrot.lane.b32.xlu0 %v324, 96
    %v374 = vpop.permute.xlu0 %373
    %375 = vrot.lane.b32.xlu0 %v320, 64
    %v376 = vpop.permute.xlu0 %375
    %377 = vrot.lane.b32.xlu0 %v324, 64
    %v378 = vpop.permute.xlu0 %377
    %379 = vrot.lane.b32.xlu0 %v320, 32
    %v380 = vpop.permute.xlu0 %379
    %381 = vrot.lane.b32.xlu0 %v324, 32
    %v382 = vpop.permute.xlu0 %381
    %385 = vrot.lane.b32.xlu0 %v322, 96
    %v386 = vpop.permute.xlu0 %385
    %387 = vrot.lane.b32.xlu0 %v326, 96
    %v388 = vpop.permute.xlu0 %387
    %389 = vrot.lane.b32.xlu0 %v322, 64
    %v390 = vpop.permute.xlu0 %389
    %391 = vrot.lane.b32.xlu0 %v326, 64
    %v392 = vpop.permute.xlu0 %391
    %393 = vrot.lane.b32.xlu0 %v322, 32
    %v394 = vpop.permute.xlu0 %393
    %395 = vrot.lane.b32.xlu0 %v326, 32
    %v396 = vpop.permute.xlu0 %395
    %399 = vrot.lane.b32.xlu0 %v363, 96
    %v400 = vpop.permute.xlu0 %399
    %401 = vrot.lane.b32.xlu0 %v366, 96
    %v402 = vpop.permute.xlu0 %401
    %405 = vrot.lane.b32.xlu0 %v363, 64
    %v406 = vpop.permute.xlu0 %405
    %407 = vrot.lane.b32.xlu0 %v366, 64
    %v408 = vpop.permute.xlu0 %407
    %411 = vrot.lane.b32.xlu0 %v363, 32
    %v412 = vpop.permute.xlu0 %411
    %413 = vrot.lane.b32.xlu0 %v366, 32
    %v414 = vpop.permute.xlu0 %413
    %vm417 = vcmask 261120
    %v418 = vsel %vm417, %v320, 0
    %v420 = vsel %vm417, %v322, 0
    %422 = vmatprep.subr.mxu0 0.0
    %423 = vmatpush1.xpose.msra.mxu0 %v420
    %424 = vmatprep.subr.mxu0 0.0
    %425 = vmatpush1.xpose.msra.mxu0 0.0
    %426 = vmatprep.subr.mxu0 0.0
    %427 = vmatpush1.xpose.msra.mxu0 0.0
    %428 = vmatprep.subr.mxu0 0.0
    %429 = vmatpush1.xpose.msra.mxu0 0.0
    %430 = vmatprep.subr.mxu0 0.0
    %431 = vmatpush1.xpose.msra.mxu0 0.0
    %432 = vmatprep.subr.mxu0 0.0
    %433 = vmatpush1.xpose.msra.mxu0 0.0
    %434 = vmatprep.subr.mxu0 0.0
    %435 = vmatpush1.xpose.msra.mxu0 0.0
    %436 = vmatprep.subr.mxu0 0.0
    %437 = vmatpush1.xpose.msra.mxu0 0.0
    %438 = vmatprep.subr.mxu0 0.0
    %439 = vmatpush1.xpose.msra.mxu0 0.0
    %440 = vmatprep.subr.mxu0 0.0
    %441 = vmatpush1.xpose.msra.mxu0 0.0
    %442 = vmatprep.subr.mxu0 0.0
    %443 = vmatpush1.xpose.msra.mxu0 0.0
    %444 = vmatprep.subr.mxu0 0.0
    %445 = vmatpush1.xpose.msra.mxu0 0.0
    %446 = vmatprep.subr.mxu0 0.0
    %447 = vmatpush1.xpose.msra.mxu0 0.0
    %448 = vmatprep.subr.mxu0 0.0
    %449 = vmatpush1.xpose.msra.mxu0 0.0
    %450 = vmatprep.subr.mxu0 0.0
    %451 = vmatpush1.xpose.msra.mxu0 0.0
    %452 = vmatprep.subr.mxu0 0.0
    %453 = vmatpush1.xpose.msra.mxu0 0.0
    %454 = vmatprep.subr.mxu0 0.0
    %455 = vmatpush1.xpose.msra.mxu0 0.0
    %456 = vmatprep.subr.mxu0 0.0
    %457 = vmatpush1.xpose.msra.mxu0 0.0
    %458 = vmatprep.subr.mxu0 0.0
    %459 = vmatpush1.xpose.msra.mxu0 0.0
    %460 = vmatprep.subr.mxu0 0.0
    %461 = vmatpush1.xpose.msra.mxu0 0.0
    %462 = vmatprep.subr.mxu0 0.0
    %463 = vmatpush1.xpose.msra.mxu0 0.0
    %464 = vmatprep.subr.mxu0 0.0
    %465 = vmatpush1.xpose.msra.mxu0 0.0
    %466 = vmatprep.subr.mxu0 0.0
    %467 = vmatpush1.xpose.msra.mxu0 0.0
    %468 = vmatprep.subr.mxu0 0.0
    %469 = vmatpush1.xpose.msra.mxu0 0.0
    %470 = vmatprep.subr.mxu0 0.0
    %471 = vmatpush1.xpose.msra.mxu0 0.0
    %472 = vmatprep.subr.mxu0 0.0
    %473 = vmatpush1.xpose.msra.mxu0 0.0
    %474 = vmatprep.subr.mxu0 0.0
    %475 = vmatpush1.xpose.msra.mxu0 0.0
    %476 = vmatprep.subr.mxu0 0.0
    %477 = vmatpush1.xpose.msra.mxu0 0.0
    %478 = vmatprep.subr.mxu0 0.0
    %479 = vmatpush1.xpose.msra.mxu0 0.0
    %480 = vmatprep.subr.mxu0 0.0
    %481 = vmatpush1.xpose.msra.mxu0 0.0
    %482 = vmatprep.subr.mxu0 0.0
    %483 = vmatpush1.xpose.msra.mxu0 0.0
    %484 = vmatprep.subr.mxu0 0.0
    %485 = vmatpush1.xpose.msra.mxu0 0.0
    %486 = vmatprep.mubr.f32.mxu0 0.0
    %487 = vmatmul.mubr.f32.gmra.mrb[0].mxu0 %v418
    %v488 = vpop.f32.mrb[0].mxu0
    %v489 = vadd.f32 0.0, %v488
    %v490 = vpop.f32.mrb[0].mxu0
    %491 = vdwg.mxu0
    %v492 = vsel %vm417, %v324, 0
    %v494 = vsel %vm417, %v326, 0
    %496 = vmatprep.subr.mxu0 0.0
    %497 = vmatpush1.xpose.msra.mxu0 %v494
    %498 = vmatprep.subr.mxu0 0.0
    %499 = vmatpush1.xpose.msra.mxu0 0.0
    %500 = vmatprep.subr.mxu0 0.0
    %501 = vmatpush1.xpose.msra.mxu0 0.0
    %502 = vmatprep.subr.mxu0 0.0
    %503 = vmatpush1.xpose.msra.mxu0 0.0
    %504 = vmatprep.subr.mxu0 0.0
    %505 = vmatpush1.xpose.msra.mxu0 0.0
    %506 = vmatprep.subr.mxu0 0.0
    %507 = vmatpush1.xpose.msra.mxu0 0.0
    %508 = vmatprep.subr.mxu0 0.0
    %509 = vmatpush1.xpose.msra.mxu0 0.0
    %510 = vmatprep.subr.mxu0 0.0
    %511 = vmatpush1.xpose.msra.mxu0 0.0
    %512 = vmatprep.subr.mxu0 0.0
    %513 = vmatpush1.xpose.msra.mxu0 0.0
    %514 = vmatprep.subr.mxu0 0.0
    %515 = vmatpush1.xpose.msra.mxu0 0.0
    %516 = vmatprep.subr.mxu0 0.0
    %517 = vmatpush1.xpose.msra.mxu0 0.0
    %518 = vmatprep.subr.mxu0 0.0
    %519 = vmatpush1.xpose.msra.mxu0 0.0
    %520 = vmatprep.subr.mxu0 0.0
    %521 = vmatpush1.xpose.msra.mxu0 0.0
    %522 = vmatprep.subr.mxu0 0.0
    %523 = vmatpush1.xpose.msra.mxu0 0.0
    %524 = vmatprep.subr.mxu0 0.0
    %525 = vmatpush1.xpose.msra.mxu0 0.0
    %526 = vmatprep.subr.mxu0 0.0
    %527 = vmatpush1.xpose.msra.mxu0 0.0
    %528 = vmatprep.subr.mxu0 0.0
    %529 = vmatpush1.xpose.msra.mxu0 0.0
    %530 = vmatprep.subr.mxu0 0.0
    %531 = vmatpush1.xpose.msra.mxu0 0.0
    %532 = vmatprep.subr.mxu0 0.0
    %533 = vmatpush1.xpose.msra.mxu0 0.0
    %534 = vmatprep.subr.mxu0 0.0
    %535 = vmatpush1.xpose.msra.mxu0 0.0
    %536 = vmatprep.subr.mxu0 0.0
    %537 = vmatpush1.xpose.msra.mxu0 0.0
    %538 = vmatprep.subr.mxu0 0.0
    %539 = vmatpush1.xpose.msra.mxu0 0.0
    %540 = vmatprep.subr.mxu0 0.0
    %541 = vmatpush1.xpose.msra.mxu0 0.0
    %542 = vmatprep.subr.mxu0 0.0
    %543 = vmatpush1.xpose.msra.mxu0 0.0
    %544 = vmatprep.subr.mxu0 0.0
    %545 = vmatpush1.xpose.msra.mxu0 0.0
    %546 = vmatprep.subr.mxu0 0.0
    %547 = vmatpush1.xpose.msra.mxu0 0.0
    %548 = vmatprep.subr.mxu0 0.0
    %549 = vmatpush1.xpose.msra.mxu0 0.0
    %550 = vmatprep.subr.mxu0 0.0
    %551 = vmatpush1.xpose.msra.mxu0 0.0
    %552 = vmatprep.subr.mxu0 0.0
    %553 = vmatpush1.xpose.msra.mxu0 0.0
    %554 = vmatprep.subr.mxu0 0.0
    %555 = vmatpush1.xpose.msra.mxu0 0.0
    %556 = vmatprep.subr.mxu0 0.0
    %557 = vmatpush1.xpose.msra.mxu0 0.0
    %558 = vmatprep.subr.mxu0 0.0
    %559 = vmatpush1.xpose.msra.mxu0 0.0
    %560 = vmatprep.mubr.f32.mxu0 0.0
    %561 = vmatmul.mubr.f32.gmra.mrb[0].mxu0 %v492
    %v562 = vpop.f32.mrb[0].mxu0
    %v563 = vadd.f32 0.0, %v562
    %v564 = vpop.f32.mrb[0].mxu0
    %565 = vdwg.mxu0
    %v566 = vsel %vm417, %v372, 0
    %v568 = vsel %vm417, %v386, 0
    %570 = vmatprep.subr.mxu0 0.0
    %571 = vmatpush1.xpose.msra.mxu0 %v568
    %572 = vmatprep.subr.mxu0 0.0
    %573 = vmatpush1.xpose.msra.mxu0 0.0
    %574 = vmatprep.subr.mxu0 0.0
    %575 = vmatpush1.xpose.msra.mxu0 0.0
    %576 = vmatprep.subr.mxu0 0.0
    %577 = vmatpush1.xpose.msra.mxu0 0.0
    %578 = vmatprep.subr.mxu0 0.0
    %579 = vmatpush1.xpose.msra.mxu0 0.0
    %580 = vmatprep.subr.mxu0 0.0
    %581 = vmatpush1.xpose.msra.mxu0 0.0
    %582 = vmatprep.subr.mxu0 0.0
    %583 = vmatpush1.xpose.msra.mxu0 0.0
    %584 = vmatprep.subr.mxu0 0.0
    %585 = vmatpush1.xpose.msra.mxu0 0.0
    %586 = vmatprep.subr.mxu0 0.0
    %587 = vmatpush1.xpose.msra.mxu0 0.0
    %588 = vmatprep.subr.mxu0 0.0
    %589 = vmatpush1.xpose.msra.mxu0 0.0
    %590 = vmatprep.subr.mxu0 0.0
    %591 = vmatpush1.xpose.msra.mxu0 0.0
    %592 = vmatprep.subr.mxu0 0.0
    %593 = vmatpush1.xpose.msra.mxu0 0.0
    %594 = vmatprep.subr.mxu0 0.0
    %595 = vmatpush1.xpose.msra.mxu0 0.0
    %596 = vmatprep.subr.mxu0 0.0
    %597 = vmatpush1.xpose.msra.mxu0 0.0
    %598 = vmatprep.subr.mxu0 0.0
    %599 = vmatpush1.xpose.msra.mxu0 0.0
    %600 = vmatprep.subr.mxu0 0.0
    %601 = vmatpush1.xpose.msra.mxu0 0.0
    %602 = vmatprep.subr.mxu0 0.0
    %603 = vmatpush1.xpose.msra.mxu0 0.0
    %604 = vmatprep.subr.mxu0 0.0
    %605 = vmatpush1.xpose.msra.mxu0 0.0
    %606 = vmatprep.subr.mxu0 0.0
    %607 = vmatpush1.xpose.msra.mxu0 0.0
    %608 = vmatprep.subr.mxu0 0.0
    %609 = vmatpush1.xpose.msra.mxu0 0.0
    %610 = vmatprep.subr.mxu0 0.0
    %611 = vmatpush1.xpose.msra.mxu0 0.0
    %612 = vmatprep.subr.mxu0 0.0
    %613 = vmatpush1.xpose.msra.mxu0 0.0
    %614 = vmatprep.subr.mxu0 0.0
    %615 = vmatpush1.xpose.msra.mxu0 0.0
    %616 = vmatprep.subr.mxu0 0.0
    %617 = vmatpush1.xpose.msra.mxu0 0.0
    %618 = vmatprep.subr.mxu0 0.0
    %619 = vmatpush1.xpose.msra.mxu0 0.0
    %620 = vmatprep.subr.mxu0 0.0
    %621 = vmatpush1.xpose.msra.mxu0 0.0
    %622 = vmatprep.subr.mxu0 0.0
    %623 = vmatpush1.xpose.msra.mxu0 0.0
    %624 = vmatprep.subr.mxu0 0.0
    %625 = vmatpush1.xpose.msra.mxu0 0.0
    %626 = vmatprep.subr.mxu0 0.0
    %627 = vmatpush1.xpose.msra.mxu0 0.0
    %628 = vmatprep.subr.mxu0 0.0
    %629 = vmatpush1.xpose.msra.mxu0 0.0
    %630 = vmatprep.subr.mxu0 0.0
    %631 = vmatpush1.xpose.msra.mxu0 0.0
    %632 = vmatprep.subr.mxu0 0.0
    %633 = vmatpush1.xpose.msra.mxu0 0.0
    %634 = vmatprep.mubr.f32.mxu0 0.0
    %635 = vmatmul.mubr.f32.gmra.mrb[0].mxu0 %v566
    %v636 = vpop.f32.mrb[0].mxu0
    %v637 = vadd.f32 0.0, %v636
    %v638 = vpop.f32.mrb[0].mxu0
    %639 = vdwg.mxu0
    %v640 = vsel %vm417, %v374, 0
    %v642 = vsel %vm417, %v388, 0
    %644 = vmatprep.subr.mxu0 0.0
    %645 = vmatpush1.xpose.msra.mxu0 %v642
    %646 = vmatprep.subr.mxu0 0.0
    %647 = vmatpush1.xpose.msra.mxu0 0.0
    %648 = vmatprep.subr.mxu0 0.0
    %649 = vmatpush1.xpose.msra.mxu0 0.0
    %650 = vmatprep.subr.mxu0 0.0
    %651 = vmatpush1.xpose.msra.mxu0 0.0
    %652 = vmatprep.subr.mxu0 0.0
    %653 = vmatpush1.xpose.msra.mxu0 0.0
    %654 = vmatprep.subr.mxu0 0.0
    %655 = vmatpush1.xpose.msra.mxu0 0.0
    %656 = vmatprep.subr.mxu0 0.0
    %657 = vmatpush1.xpose.msra.mxu0 0.0
    %658 = vmatprep.subr.mxu0 0.0
    %659 = vmatpush1.xpose.msra.mxu0 0.0
    %660 = vmatprep.subr.mxu0 0.0
    %661 = vmatpush1.xpose.msra.mxu0 0.0
    %662 = vmatprep.subr.mxu0 0.0
    %663 = vmatpush1.xpose.msra.mxu0 0.0
    %664 = vmatprep.subr.mxu0 0.0
    %665 = vmatpush1.xpose.msra.mxu0 0.0
    %666 = vmatprep.subr.mxu0 0.0
    %667 = vmatpush1.xpose.msra.mxu0 0.0
    %668 = vmatprep.subr.mxu0 0.0
    %669 = vmatpush1.xpose.msra.mxu0 0.0
    %670 = vmatprep.subr.mxu0 0.0
    %671 = vmatpush1.xpose.msra.mxu0 0.0
    %672 = vmatprep.subr.mxu0 0.0
    %673 = vmatpush1.xpose.msra.mxu0 0.0
    %674 = vmatprep.subr.mxu0 0.0
    %675 = vmatpush1.xpose.msra.mxu0 0.0
    %676 = vmatprep.subr.mxu0 0.0
    %677 = vmatpush1.xpose.msra.mxu0 0.0
    %678 = vmatprep.subr.mxu0 0.0
    %679 = vmatpush1.xpose.msra.mxu0 0.0
    %680 = vmatprep.subr.mxu0 0.0
    %681 = vmatpush1.xpose.msra.mxu0 0.0
    %682 = vmatprep.subr.mxu0 0.0
    %683 = vmatpush1.xpose.msra.mxu0 0.0
    %684 = vmatprep.subr.mxu0 0.0
    %685 = vmatpush1.xpose.msra.mxu0 0.0
    %686 = vmatprep.subr.mxu0 0.0
    %687 = vmatpush1.xpose.msra.mxu0 0.0
    %688 = vmatprep.subr.mxu0 0.0
    %689 = vmatpush1.xpose.msra.mxu0 0.0
    %690 = vmatprep.subr.mxu0 0.0
    %691 = vmatpush1.xpose.msra.mxu0 0.0
    %692 = vmatprep.subr.mxu0 0.0
    %693 = vmatpush1.xpose.msra.mxu0 0.0
    %694 = vmatprep.subr.mxu0 0.0
    %695 = vmatpush1.xpose.msra.mxu0 0.0
    %696 = vmatprep.subr.mxu0 0.0
    %697 = vmatpush1.xpose.msra.mxu0 0.0
    %698 = vmatprep.subr.mxu0 0.0
    %699 = vmatpush1.xpose.msra.mxu0 0.0
    %700 = vmatprep.subr.mxu0 0.0
    %701 = vmatpush1.xpose.msra.mxu0 0.0
    %702 = vmatprep.subr.mxu0 0.0
    %703 = vmatpush1.xpose.msra.mxu0 0.0
    %704 = vmatprep.subr.mxu0 0.0
    %705 = vmatpush1.xpose.msra.mxu0 0.0
    %706 = vmatprep.subr.mxu0 0.0
    %707 = vmatpush1.xpose.msra.mxu0 0.0
    %708 = vmatprep.mubr.f32.mxu0 0.0
    %709 = vmatmul.mubr.f32.gmra.mrb[0].mxu0 %v640
    %v710 = vpop.f32.mrb[0].mxu0
    %v711 = vadd.f32 0.0, %v710
    %v712 = vpop.f32.mrb[0].mxu0
    %713 = vdwg.mxu0
    %v714 = vsel %vm417, %v376, 0
    %v716 = vsel %vm417, %v390, 0
    %718 = vmatprep.subr.mxu0 0.0
    %719 = vmatpush1.xpose.msra.mxu0 %v716
    %720 = vmatprep.subr.mxu0 0.0
    %721 = vmatpush1.xpose.msra.mxu0 0.0
    %722 = vmatprep.subr.mxu0 0.0
    %723 = vmatpush1.xpose.msra.mxu0 0.0
    %724 = vmatprep.subr.mxu0 0.0
    %725 = vmatpush1.xpose.msra.mxu0 0.0
    %726 = vmatprep.subr.mxu0 0.0
    %727 = vmatpush1.xpose.msra.mxu0 0.0
    %728 = vmatprep.subr.mxu0 0.0
    %729 = vmatpush1.xpose.msra.mxu0 0.0
    %730 = vmatprep.subr.mxu0 0.0
    %731 = vmatpush1.xpose.msra.mxu0 0.0
    %732 = vmatprep.subr.mxu0 0.0
    %733 = vmatpush1.xpose.msra.mxu0 0.0
    %734 = vmatprep.subr.mxu0 0.0
    %735 = vmatpush1.xpose.msra.mxu0 0.0
    %736 = vmatprep.subr.mxu0 0.0
    %737 = vmatpush1.xpose.msra.mxu0 0.0
    %738 = vmatprep.subr.mxu0 0.0
    %739 = vmatpush1.xpose.msra.mxu0 0.0
    %740 = vmatprep.subr.mxu0 0.0
    %741 = vmatpush1.xpose.msra.mxu0 0.0
    %742 = vmatprep.subr.mxu0 0.0
    %743 = vmatpush1.xpose.msra.mxu0 0.0
    %744 = vmatprep.subr.mxu0 0.0
    %745 = vmatpush1.xpose.msra.mxu0 0.0
    %746 = vmatprep.subr.mxu0 0.0
    %747 = vmatpush1.xpose.msra.mxu0 0.0
    %748 = vmatprep.subr.mxu0 0.0
    %749 = vmatpush1.xpose.msra.mxu0 0.0
    %750 = vmatprep.subr.mxu0 0.0
    %751 = vmatpush1.xpose.msra.mxu0 0.0
    %752 = vmatprep.subr.mxu0 0.0
    %753 = vmatpush1.xpose.msra.mxu0 0.0
    %754 = vmatprep.subr.mxu0 0.0
    %755 = vmatpush1.xpose.msra.mxu0 0.0
    %756 = vmatprep.subr.mxu0 0.0
    %757 = vmatpush1.xpose.msra.mxu0 0.0
    %758 = vmatprep.subr.mxu0 0.0
    %759 = vmatpush1.xpose.msra.mxu0 0.0
    %760 = vmatprep.subr.mxu0 0.0
    %761 = vmatpush1.xpose.msra.mxu0 0.0
    %762 = vmatprep.subr.mxu0 0.0
    %763 = vmatpush1.xpose.msra.mxu0 0.0
    %764 = vmatprep.subr.mxu0 0.0
    %765 = vmatpush1.xpose.msra.mxu0 0.0
    %766 = vmatprep.subr.mxu0 0.0
    %767 = vmatpush1.xpose.msra.mxu0 0.0
    %768 = vmatprep.subr.mxu0 0.0
    %769 = vmatpush1.xpose.msra.mxu0 0.0
    %770 = vmatprep.subr.mxu0 0.0
    %771 = vmatpush1.xpose.msra.mxu0 0.0
    %772 = vmatprep.subr.mxu0 0.0
    %773 = vmatpush1.xpose.msra.mxu0 0.0
    %774 = vmatprep.subr.mxu0 0.0
    %775 = vmatpush1.xpose.msra.mxu0 0.0
    %776 = vmatprep.subr.mxu0 0.0
    %777 = vmatpush1.xpose.msra.mxu0 0.0
    %778 = vmatprep.subr.mxu0 0.0
    %779 = vmatpush1.xpose.msra.mxu0 0.0
    %780 = vmatprep.subr.mxu0 0.0
    %781 = vmatpush1.xpose.msra.mxu0 0.0
    %782 = vmatprep.mubr.f32.mxu0 0.0
    %783 = vmatmul.mubr.f32.gmra.mrb[0].mxu0 %v714
    %v784 = vpop.f32.mrb[0].mxu0
    %v785 = vadd.f32 0.0, %v784
    %v786 = vpop.f32.mrb[0].mxu0
    %787 = vdwg.mxu0
    %v788 = vsel %vm417, %v378, 0
    %v790 = vsel %vm417, %v392, 0
    %792 = vmatprep.subr.mxu0 0.0
    %793 = vmatpush1.xpose.msra.mxu0 %v790
    %794 = vmatprep.subr.mxu0 0.0
    %795 = vmatpush1.xpose.msra.mxu0 0.0
    %796 = vmatprep.subr.mxu0 0.0
    %797 = vmatpush1.xpose.msra.mxu0 0.0
    %798 = vmatprep.subr.mxu0 0.0
    %799 = vmatpush1.xpose.msra.mxu0 0.0
    %800 = vmatprep.subr.mxu0 0.0
    %801 = vmatpush1.xpose.msra.mxu0 0.0
    %802 = vmatprep.subr.mxu0 0.0
    %803 = vmatpush1.xpose.msra.mxu0 0.0
    %804 = vmatprep.subr.mxu0 0.0
    %805 = vmatpush1.xpose.msra.mxu0 0.0
    %806 = vmatprep.subr.mxu0 0.0
    %807 = vmatpush1.xpose.msra.mxu0 0.0
    %808 = vmatprep.subr.mxu0 0.0
    %809 = vmatpush1.xpose.msra.mxu0 0.0
    %810 = vmatprep.subr.mxu0 0.0
    %811 = vmatpush1.xpose.msra.mxu0 0.0
    %812 = vmatprep.subr.mxu0 0.0
    %813 = vmatpush1.xpose.msra.mxu0 0.0
    %814 = vmatprep.subr.mxu0 0.0
    %815 = vmatpush1.xpose.msra.mxu0 0.0
    %816 = vmatprep.subr.mxu0 0.0
    %817 = vmatpush1.xpose.msra.mxu0 0.0
    %818 = vmatprep.subr.mxu0 0.0
    %819 = vmatpush1.xpose.msra.mxu0 0.0
    %820 = vmatprep.subr.mxu0 0.0
    %821 = vmatpush1.xpose.msra.mxu0 0.0
    %822 = vmatprep.subr.mxu0 0.0
    %823 = vmatpush1.xpose.msra.mxu0 0.0
    %824 = vmatprep.subr.mxu0 0.0
    %825 = vmatpush1.xpose.msra.mxu0 0.0
    %826 = vmatprep.subr.mxu0 0.0
    %827 = vmatpush1.xpose.msra.mxu0 0.0
    %828 = vmatprep.subr.mxu0 0.0
    %829 = vmatpush1.xpose.msra.mxu0 0.0
    %830 = vmatprep.subr.mxu0 0.0
    %831 = vmatpush1.xpose.msra.mxu0 0.0
    %832 = vmatprep.subr.mxu0 0.0
    %833 = vmatpush1.xpose.msra.mxu0 0.0
    %834 = vmatprep.subr.mxu0 0.0
    %835 = vmatpush1.xpose.msra.mxu0 0.0
    %836 = vmatprep.subr.mxu0 0.0
    %837 = vmatpush1.xpose.msra.mxu0 0.0
    %838 = vmatprep.subr.mxu0 0.0
    %839 = vmatpush1.xpose.msra.mxu0 0.0
    %840 = vmatprep.subr.mxu0 0.0
    %841 = vmatpush1.xpose.msra.mxu0 0.0
    %842 = vmatprep.subr.mxu0 0.0
    %843 = vmatpush1.xpose.msra.mxu0 0.0
    %844 = vmatprep.subr.mxu0 0.0
    %845 = vmatpush1.xpose.msra.mxu0 0.0
    %846 = vmatprep.subr.mxu0 0.0
    %847 = vmatpush1.xpose.msra.mxu0 0.0
    %848 = vmatprep.subr.mxu0 0.0
    %849 = vmatpush1.xpose.msra.mxu0 0.0
    %850 = vmatprep.subr.mxu0 0.0
    %851 = vmatpush1.xpose.msra.mxu0 0.0
    %852 = vmatprep.subr.mxu0 0.0
    %853 = vmatpush1.xpose.msra.mxu0 0.0
    %854 = vmatprep.subr.mxu0 0.0
    %855 = vmatpush1.xpose.msra.mxu0 0.0
    %856 = vmatprep.mubr.f32.mxu0 0.0
    %857 = vmatmul.mubr.f32.gmra.mrb[0].mxu0 %v788
    %v858 = vpop.f32.mrb[0].mxu0
    %v859 = vadd.f32 0.0, %v858
    %v860 = vpop.f32.mrb[0].mxu0
    %861 = vdwg.mxu0
    %v862 = vsel %vm417, %v380, 0
    %v864 = vsel %vm417, %v394, 0
    %866 = vmatprep.subr.mxu0 0.0
    %867 = vmatpush1.xpose.msra.mxu0 %v864
    %868 = vmatprep.subr.mxu0 0.0
    %869 = vmatpush1.xpose.msra.mxu0 0.0
    %870 = vmatprep.subr.mxu0 0.0
    %871 = vmatpush1.xpose.msra.mxu0 0.0
    %872 = vmatprep.subr.mxu0 0.0
    %873 = vmatpush1.xpose.msra.mxu0 0.0
    %874 = vmatprep.subr.mxu0 0.0
    %875 = vmatpush1.xpose.msra.mxu0 0.0
    %876 = vmatprep.subr.mxu0 0.0
    %877 = vmatpush1.xpose.msra.mxu0 0.0
    %878 = vmatprep.subr.mxu0 0.0
    %879 = vmatpush1.xpose.msra.mxu0 0.0
    %880 = vmatprep.subr.mxu0 0.0
    %881 = vmatpush1.xpose.msra.mxu0 0.0
    %882 = vmatprep.subr.mxu0 0.0
    %883 = vmatpush1.xpose.msra.mxu0 0.0
    %884 = vmatprep.subr.mxu0 0.0
    %885 = vmatpush1.xpose.msra.mxu0 0.0
    %886 = vmatprep.subr.mxu0 0.0
    %887 = vmatpush1.xpose.msra.mxu0 0.0
    %888 = vmatprep.subr.mxu0 0.0
    %889 = vmatpush1.xpose.msra.mxu0 0.0
    %890 = vmatprep.subr.mxu0 0.0
    %891 = vmatpush1.xpose.msra.mxu0 0.0
    %892 = vmatprep.subr.mxu0 0.0
    %893 = vmatpush1.xpose.msra.mxu0 0.0
    %894 = vmatprep.subr.mxu0 0.0
    %895 = vmatpush1.xpose.msra.mxu0 0.0
    %896 = vmatprep.subr.mxu0 0.0
    %897 = vmatpush1.xpose.msra.mxu0 0.0
    %898 = vmatprep.subr.mxu0 0.0
    %899 = vmatpush1.xpose.msra.mxu0 0.0
    %900 = vmatprep.subr.mxu0 0.0
    %901 = vmatpush1.xpose.msra.mxu0 0.0
    %902 = vmatprep.subr.mxu0 0.0
    %903 = vmatpush1.xpose.msra.mxu0 0.0
    %904 = vmatprep.subr.mxu0 0.0
    %905 = vmatpush1.xpose.msra.mxu0 0.0
    %906 = vmatprep.subr.mxu0 0.0
    %907 = vmatpush1.xpose.msra.mxu0 0.0
    %908 = vmatprep.subr.mxu0 0.0
    %909 = vmatpush1.xpose.msra.mxu0 0.0
    %910 = vmatprep.subr.mxu0 0.0
    %911 = vmatpush1.xpose.msra.mxu0 0.0
    %912 = vmatprep.subr.mxu0 0.0
    %913 = vmatpush1.xpose.msra.mxu0 0.0
    %914 = vmatprep.subr.mxu0 0.0
    %915 = vmatpush1.xpose.msra.mxu0 0.0
    %916 = vmatprep.subr.mxu0 0.0
    %917 = vmatpush1.xpose.msra.mxu0 0.0
    %918 = vmatprep.subr.mxu0 0.0
    %919 = vmatpush1.xpose.msra.mxu0 0.0
    %920 = vmatprep.subr.mxu0 0.0
    %921 = vmatpush1.xpose.msra.mxu0 0.0
    %922 = vmatprep.subr.mxu0 0.0
    %923 = vmatpush1.xpose.msra.mxu0 0.0
    %924 = vmatprep.subr.mxu0 0.0
    %925 = vmatpush1.xpose.msra.mxu0 0.0
    %926 = vmatprep.subr.mxu0 0.0
    %927 = vmatpush1.xpose.msra.mxu0 0.0
    %928 = vmatprep.subr.mxu0 0.0
    %929 = vmatpush1.xpose.msra.mxu0 0.0
    %930 = vmatprep.mubr.f32.mxu0 0.0
    %931 = vmatmul.mubr.f32.gmra.mrb[0].mxu0 %v862
    %v932 = vpop.f32.mrb[0].mxu0
    %v933 = vadd.f32 0.0, %v932
    %v934 = vpop.f32.mrb[0].mxu0
    %935 = vdwg.mxu0
    %v936 = vsel %vm417, %v382, 0
    %v938 = vsel %vm417, %v396, 0
    %940 = vmatprep.subr.mxu0 0.0
    %941 = vmatpush1.xpose.msra.mxu0 %v938
    %942 = vmatprep.subr.mxu0 0.0
    %943 = vmatpush1.xpose.msra.mxu0 0.0
    %944 = vmatprep.subr.mxu0 0.0
    %945 = vmatpush1.xpose.msra.mxu0 0.0
    %946 = vmatprep.subr.mxu0 0.0
    %947 = vmatpush1.xpose.msra.mxu0 0.0
    %948 = vmatprep.subr.mxu0 0.0
    %949 = vmatpush1.xpose.msra.mxu0 0.0
    %950 = vmatprep.subr.mxu0 0.0
    %951 = vmatpush1.xpose.msra.mxu0 0.0
    %952 = vmatprep.subr.mxu0 0.0
    %953 = vmatpush1.xpose.msra.mxu0 0.0
    %954 = vmatprep.subr.mxu0 0.0
    %955 = vmatpush1.xpose.msra.mxu0 0.0
    %956 = vmatprep.subr.mxu0 0.0
    %957 = vmatpush1.xpose.msra.mxu0 0.0
    %958 = vmatprep.subr.mxu0 0.0
    %959 = vmatpush1.xpose.msra.mxu0 0.0
    %960 = vmatprep.subr.mxu0 0.0
    %961 = vmatpush1.xpose.msra.mxu0 0.0
    %962 = vmatprep.subr.mxu0 0.0
    %963 = vmatpush1.xpose.msra.mxu0 0.0
    %964 = vmatprep.subr.mxu0 0.0
    %965 = vmatpush1.xpose.msra.mxu0 0.0
    %966 = vmatprep.subr.mxu0 0.0
    %967 = vmatpush1.xpose.msra.mxu0 0.0
    %968 = vmatprep.subr.mxu0 0.0
    %969 = vmatpush1.xpose.msra.mxu0 0.0
    %970 = vmatprep.subr.mxu0 0.0
    %971 = vmatpush1.xpose.msra.mxu0 0.0
    %972 = vmatprep.subr.mxu0 0.0
    %973 = vmatpush1.xpose.msra.mxu0 0.0
    %974 = vmatprep.subr.mxu0 0.0
    %975 = vmatpush1.xpose.msra.mxu0 0.0
    %976 = vmatprep.subr.mxu0 0.0
    %977 = vmatpush1.xpose.msra.mxu0 0.0
    %978 = vmatprep.subr.mxu0 0.0
    %979 = vmatpush1.xpose.msra.mxu0 0.0
    %980 = vmatprep.subr.mxu0 0.0
    %981 = vmatpush1.xpose.msra.mxu0 0.0
    %982 = vmatprep.subr.mxu0 0.0
    %983 = vmatpush1.xpose.msra.mxu0 0.0
    %984 = vmatprep.subr.mxu0 0.0
    %985 = vmatpush1.xpose.msra.mxu0 0.0
    %986 = vmatprep.subr.mxu0 0.0
    %987 = vmatpush1.xpose.msra.mxu0 0.0
    %988 = vmatprep.subr.mxu0 0.0
    %989 = vmatpush1.xpose.msra.mxu0 0.0
    %990 = vmatprep.subr.mxu0 0.0
    %991 = vmatpush1.xpose.msra.mxu0 0.0
    %992 = vmatprep.subr.mxu0 0.0
    %993 = vmatpush1.xpose.msra.mxu0 0.0
    %994 = vmatprep.subr.mxu0 0.0
    %995 = vmatpush1.xpose.msra.mxu0 0.0
    %996 = vmatprep.subr.mxu0 0.0
    %997 = vmatpush1.xpose.msra.mxu0 0.0
    %998 = vmatprep.subr.mxu0 0.0
    %999 = vmatpush1.xpose.msra.mxu0 0.0
    %1000 = vmatprep.subr.mxu0 0.0
    %1001 = vmatpush1.xpose.msra.mxu0 0.0
    %1002 = vmatprep.subr.mxu0 0.0
    %1003 = vmatpush1.xpose.msra.mxu0 0.0
    %1004 = vmatprep.mubr.f32.mxu0 0.0
    %1005 = vmatmul.mubr.f32.gmra.mrb[0].mxu0 %v936
    %v1006 = vpop.f32.mrb[0].mxu0
    %v1007 = vadd.f32 0.0, %v1006
    %v1008 = vpop.f32.mrb[0].mxu0
    %1009 = vdwg.mxu0
    %vm1010 = vcmask 64512
    %v1011 = vsel %vm1010, %v489, -inf
    %1012 = vmax.xlane.f32.xlu0 %v1011
    %v1013 = vpop.xlane.xlu0 %1012
    %v1014 = vsel %vm1010, %v563, -inf
    %1015 = vmax.xlane.f32.xlu0 %v1014
    %v1016 = vpop.xlane.xlu0 %1015
    %v1017 = vsel %vm1010, %v637, -inf
    %1018 = vmax.xlane.f32.xlu0 %v1017
    %v1019 = vpop.xlane.xlu0 %1018
    %v1020 = vsel %vm1010, %v711, -inf
    %1021 = vmax.xlane.f32.xlu0 %v1020
    %v1022 = vpop.xlane.xlu0 %1021
    %v1023 = vsel %vm1010, %v785, -inf
    %1024 = vmax.xlane.f32.xlu0 %v1023
    %v1025 = vpop.xlane.xlu0 %1024
    %v1026 = vsel %vm1010, %v859, -inf
    %1027 = vmax.xlane.f32.xlu0 %v1026
    %v1028 = vpop.xlane.xlu0 %1027
    %v1029 = vsel %vm1010, %v933, -inf
    %1030 = vmax.xlane.f32.xlu0 %v1029
    %v1031 = vpop.xlane.xlu0 %1030
    %v1032 = vsel %vm1010, %v1007, -inf
    %1033 = vmax.xlane.f32.xlu0 %v1032
    %v1034 = vpop.xlane.xlu0 %1033
    %v1035 = vsub.f32 %v489, %v1013
    %v1036 = vsub.f32 %v563, %v1016
    %v1037 = vsub.f32 %v637, %v1019
    %v1038 = vsub.f32 %v711, %v1022
    %v1039 = vsub.f32 %v785, %v1025
    %v1040 = vsub.f32 %v859, %v1028
    %v1041 = vsub.f32 %v933, %v1031
    %v1042 = vsub.f32 %v1007, %v1034
    %v1043 = vmul.f32 %v1035, 1.442695
    %v1044 = vpow.pop %v1043
    %v1045 = vmul.f32 %v1036, 1.442695
    %v1046 = vpow.pop %v1045
    %v1047 = vmul.f32 %v1037, 1.442695
    %v1048 = vpow.pop %v1047
    %v1049 = vmul.f32 %v1038, 1.442695
    %v1050 = vpow.pop %v1049
    %v1051 = vmul.f32 %v1039, 1.442695
    %v1052 = vpow.pop %v1051
    %v1053 = vmul.f32 %v1040, 1.442695
    %v1054 = vpow.pop %v1053
    %v1055 = vmul.f32 %v1041, 1.442695
    %v1056 = vpow.pop %v1055
    %v1057 = vmul.f32 %v1042, 1.442695
    %v1058 = vpow.pop %v1057
    %v1059 = vsel %vm1010, %v1044, 0.0
    %1060 = vadd.xlane.f32.xlu0 %v1059
    %v1061 = vpop.xlane.xlu0 %1060
    %v1062 = vsel %vm1010, %v1046, 0.0
    %1063 = vadd.xlane.f32.xlu0 %v1062
    %v1064 = vpop.xlane.xlu0 %1063
    %v1065 = vsel %vm1010, %v1048, 0.0
    %1066 = vadd.xlane.f32.xlu0 %v1065
    %v1067 = vpop.xlane.xlu0 %1066
    %v1068 = vsel %vm1010, %v1050, 0.0
    %1069 = vadd.xlane.f32.xlu0 %v1068
    %v1070 = vpop.xlane.xlu0 %1069
    %v1071 = vsel %vm1010, %v1052, 0.0
    %1072 = vadd.xlane.f32.xlu0 %v1071
    %v1073 = vpop.xlane.xlu0 %1072
    %v1074 = vsel %vm1010, %v1054, 0.0
    %1075 = vadd.xlane.f32.xlu0 %v1074
    %v1076 = vpop.xlane.xlu0 %1075
    %v1077 = vsel %vm1010, %v1056, 0.0
    %1078 = vadd.xlane.f32.xlu0 %v1077
    %v1079 = vpop.xlane.xlu0 %1078
    %v1080 = vsel %vm1010, %v1058, 0.0
    %1081 = vadd.xlane.f32.xlu0 %v1080
    %v1082 = vpop.xlane.xlu0 %1081
    %v1083 = vrcp.pop %v1061
    %v1084 = vrcp.pop %v1064
    %v1085 = vrcp.pop %v1067
    %v1086 = vrcp.pop %v1070
    %v1087 = vrcp.pop %v1073
    %v1088 = vrcp.pop %v1076
    %v1089 = vrcp.pop %v1079
    %v1090 = vrcp.pop %v1082
    %v1091 = vmul.f32 %v1044, %v1083
    %v1092 = vmul.f32 %v1046, %v1084
    %v1093 = vmul.f32 %v1048, %v1085
    %v1094 = vmul.f32 %v1050, %v1086
    %v1095 = vmul.f32 %v1052, %v1087
    %v1096 = vmul.f32 %v1054, %v1088
    %v1097 = vmul.f32 %v1056, %v1089
    %v1098 = vmul.f32 %v1058, %v1090
    %v1100 = vsel %vm1010, %v1091, 0
    %1102 = vmatprep.subr.mxu0 0.0
    %1103 = vmatpush1.msra.mxu0 %v363
    %1104 = vmatprep.subr.mxu0 0.0
    %1105 = vmatpush1.msra.mxu0 0.0
    %1106 = vmatprep.subr.mxu0 0.0
    %1107 = vmatpush1.msra.mxu0 0.0
    %1108 = vmatprep.subr.mxu0 0.0
    %1109 = vmatpush1.msra.mxu0 0.0
    %1110 = vmatprep.subr.mxu0 0.0
    %1111 = vmatpush1.msra.mxu0 0.0
    %1112 = vmatprep.subr.mxu0 0.0
    %1113 = vmatpush1.msra.mxu0 0.0
    %1114 = vmatprep.subr.mxu0 0.0
    %1115 = vmatpush1.msra.mxu0 0.0
    %1116 = vmatprep.subr.mxu0 0.0
    %1117 = vmatpush1.msra.mxu0 0.0
    %1118 = vmatprep.subr.mxu0 0.0
    %1119 = vmatpush1.msra.mxu0 0.0
    %1120 = vmatprep.subr.mxu0 0.0
    %1121 = vmatpush1.msra.mxu0 0.0
    %1122 = vmatprep.subr.mxu0 0.0
    %1123 = vmatpush1.msra.mxu0 0.0
    %1124 = vmatprep.subr.mxu0 0.0
    %1125 = vmatpush1.msra.mxu0 0.0
    %1126 = vmatprep.subr.mxu0 0.0
    %1127 = vmatpush1.msra.mxu0 0.0
    %1128 = vmatprep.subr.mxu0 0.0
    %1129 = vmatpush1.msra.mxu0 0.0
    %1130 = vmatprep.subr.mxu0 0.0
    %1131 = vmatpush1.msra.mxu0 0.0
    %1132 = vmatprep.subr.mxu0 0.0
    %1133 = vmatpush1.msra.mxu0 0.0
    %1134 = vmatprep.subr.mxu0 0.0
    %1135 = vmatpush1.msra.mxu0 0.0
    %1136 = vmatprep.subr.mxu0 0.0
    %1137 = vmatpush1.msra.mxu0 0.0
    %1138 = vmatprep.subr.mxu0 0.0
    %1139 = vmatpush1.msra.mxu0 0.0
    %1140 = vmatprep.subr.mxu0 0.0
    %1141 = vmatpush1.msra.mxu0 0.0
    %1142 = vmatprep.subr.mxu0 0.0
    %1143 = vmatpush1.msra.mxu0 0.0
    %1144 = vmatprep.subr.mxu0 0.0
    %1145 = vmatpush1.msra.mxu0 0.0
    %1146 = vmatprep.subr.mxu0 0.0
    %1147 = vmatpush1.msra.mxu0 0.0
    %1148 = vmatprep.subr.mxu0 0.0
    %1149 = vmatpush1.msra.mxu0 0.0
    %1150 = vmatprep.subr.mxu0 0.0
    %1151 = vmatpush1.msra.mxu0 0.0
    %1152 = vmatprep.subr.mxu0 0.0
    %1153 = vmatpush1.msra.mxu0 0.0
    %1154 = vmatprep.subr.mxu0 0.0
    %1155 = vmatpush1.msra.mxu0 0.0
    %1156 = vmatprep.subr.mxu0 0.0
    %1157 = vmatpush1.msra.mxu0 0.0
    %1158 = vmatprep.subr.mxu0 0.0
    %1159 = vmatpush1.msra.mxu0 0.0
    %1160 = vmatprep.subr.mxu0 0.0
    %1161 = vmatpush1.msra.mxu0 0.0
    %1162 = vmatprep.subr.mxu0 0.0
    %1163 = vmatpush1.msra.mxu0 0.0
    %1164 = vmatprep.subr.mxu0 0.0
    %1165 = vmatpush1.msra.mxu0 0.0
    %1166 = vmatprep.mubr.f32.mxu0 0.0
    %1167 = vmatmul.mubr.f32.gmra.mrb[0].mxu0 %v1100
    %v1168 = vpop.f32.mrb[0].mxu0
    %v1169 = vadd.f32 0.0, %v1168
    %v1170 = vpop.f32.mrb[0].mxu0
    %1171 = vdwg.mxu0
    %v1173 = vsel %vm1010, %v1092, 0
    %1175 = vmatprep.subr.mxu0 0.0
    %1176 = vmatpush1.msra.mxu0 %v366
    %1177 = vmatprep.subr.mxu0 0.0
    %1178 = vmatpush1.msra.mxu0 0.0
    %1179 = vmatprep.subr.mxu0 0.0
    %1180 = vmatpush1.msra.mxu0 0.0
    %1181 = vmatprep.subr.mxu0 0.0
    %1182 = vmatpush1.msra.mxu0 0.0
    %1183 = vmatprep.subr.mxu0 0.0
    %1184 = vmatpush1.msra.mxu0 0.0
    %1185 = vmatprep.subr.mxu0 0.0
    %1186 = vmatpush1.msra.mxu0 0.0
    %1187 = vmatprep.subr.mxu0 0.0
    %1188 = vmatpush1.msra.mxu0 0.0
    %1189 = vmatprep.subr.mxu0 0.0
    %1190 = vmatpush1.msra.mxu0 0.0
    %1191 = vmatprep.subr.mxu0 0.0
    %1192 = vmatpush1.msra.mxu0 0.0
    %1193 = vmatprep.subr.mxu0 0.0
    %1194 = vmatpush1.msra.mxu0 0.0
    %1195 = vmatprep.subr.mxu0 0.0
    %1196 = vmatpush1.msra.mxu0 0.0
    %1197 = vmatprep.subr.mxu0 0.0
    %1198 = vmatpush1.msra.mxu0 0.0
    %1199 = vmatprep.subr.mxu0 0.0
    %1200 = vmatpush1.msra.mxu0 0.0
    %1201 = vmatprep.subr.mxu0 0.0
    %1202 = vmatpush1.msra.mxu0 0.0
    %1203 = vmatprep.subr.mxu0 0.0
    %1204 = vmatpush1.msra.mxu0 0.0
    %1205 = vmatprep.subr.mxu0 0.0
    %1206 = vmatpush1.msra.mxu0 0.0
    %1207 = vmatprep.subr.mxu0 0.0
    %1208 = vmatpush1.msra.mxu0 0.0
    %1209 = vmatprep.subr.mxu0 0.0
    %1210 = vmatpush1.msra.mxu0 0.0
    %1211 = vmatprep.subr.mxu0 0.0
    %1212 = vmatpush1.msra.mxu0 0.0
    %1213 = vmatprep.subr.mxu0 0.0
    %1214 = vmatpush1.msra.mxu0 0.0
    %1215 = vmatprep.subr.mxu0 0.0
    %1216 = vmatpush1.msra.mxu0 0.0
    %1217 = vmatprep.subr.mxu0 0.0
    %1218 = vmatpush1.msra.mxu0 0.0
    %1219 = vmatprep.subr.mxu0 0.0
    %1220 = vmatpush1.msra.mxu0 0.0
    %1221 = vmatprep.subr.mxu0 0.0
    %1222 = vmatpush1.msra.mxu0 0.0
    %1223 = vmatprep.subr.mxu0 0.0
    %1224 = vmatpush1.msra.mxu0 0.0
    %1225 = vmatprep.subr.mxu0 0.0
    %1226 = vmatpush1.msra.mxu0 0.0
    %1227 = vmatprep.subr.mxu0 0.0
    %1228 = vmatpush1.msra.mxu0 0.0
    %1229 = vmatprep.subr.mxu0 0.0
    %1230 = vmatpush1.msra.mxu0 0.0
    %1231 = vmatprep.subr.mxu0 0.0
    %1232 = vmatpush1.msra.mxu0 0.0
    %1233 = vmatprep.subr.mxu0 0.0
    %1234 = vmatpush1.msra.mxu0 0.0
    %1235 = vmatprep.subr.mxu0 0.0
    %1236 = vmatpush1.msra.mxu0 0.0
    %1237 = vmatprep.subr.mxu0 0.0
    %1238 = vmatpush1.msra.mxu0 0.0
    %1239 = vmatprep.mubr.f32.mxu0 0.0
    %1240 = vmatmul.mubr.f32.gmra.mrb[0].mxu0 %v1173
    %v1241 = vpop.f32.mrb[0].mxu0
    %v1242 = vadd.f32 0.0, %v1241
    %v1243 = vpop.f32.mrb[0].mxu0
    %1244 = vdwg.mxu0
    %v1246 = vsel %vm1010, %v1093, 0
    %1248 = vmatprep.subr.mxu0 0.0
    %1249 = vmatpush1.msra.mxu0 %v400
    %1250 = vmatprep.subr.mxu0 0.0
    %1251 = vmatpush1.msra.mxu0 0.0
    %1252 = vmatprep.subr.mxu0 0.0
    %1253 = vmatpush1.msra.mxu0 0.0
    %1254 = vmatprep.subr.mxu0 0.0
    %1255 = vmatpush1.msra.mxu0 0.0
    %1256 = vmatprep.subr.mxu0 0.0
    %1257 = vmatpush1.msra.mxu0 0.0
    %1258 = vmatprep.subr.mxu0 0.0
    %1259 = vmatpush1.msra.mxu0 0.0
    %1260 = vmatprep.subr.mxu0 0.0
    %1261 = vmatpush1.msra.mxu0 0.0
    %1262 = vmatprep.subr.mxu0 0.0
    %1263 = vmatpush1.msra.mxu0 0.0
    %1264 = vmatprep.subr.mxu0 0.0
    %1265 = vmatpush1.msra.mxu0 0.0
    %1266 = vmatprep.subr.mxu0 0.0
    %1267 = vmatpush1.msra.mxu0 0.0
    %1268 = vmatprep.subr.mxu0 0.0
    %1269 = vmatpush1.msra.mxu0 0.0
    %1270 = vmatprep.subr.mxu0 0.0
    %1271 = vmatpush1.msra.mxu0 0.0
    %1272 = vmatprep.subr.mxu0 0.0
    %1273 = vmatpush1.msra.mxu0 0.0
    %1274 = vmatprep.subr.mxu0 0.0
    %1275 = vmatpush1.msra.mxu0 0.0
    %1276 = vmatprep.subr.mxu0 0.0
    %1277 = vmatpush1.msra.mxu0 0.0
    %1278 = vmatprep.subr.mxu0 0.0
    %1279 = vmatpush1.msra.mxu0 0.0
    %1280 = vmatprep.subr.mxu0 0.0
    %1281 = vmatpush1.msra.mxu0 0.0
    %1282 = vmatprep.subr.mxu0 0.0
    %1283 = vmatpush1.msra.mxu0 0.0
    %1284 = vmatprep.subr.mxu0 0.0
    %1285 = vmatpush1.msra.mxu0 0.0
    %1286 = vmatprep.subr.mxu0 0.0
    %1287 = vmatpush1.msra.mxu0 0.0
    %1288 = vmatprep.subr.mxu0 0.0
    %1289 = vmatpush1.msra.mxu0 0.0
    %1290 = vmatprep.subr.mxu0 0.0
    %1291 = vmatpush1.msra.mxu0 0.0
    %1292 = vmatprep.subr.mxu0 0.0
    %1293 = vmatpush1.msra.mxu0 0.0
    %1294 = vmatprep.subr.mxu0 0.0
    %1295 = vmatpush1.msra.mxu0 0.0
    %1296 = vmatprep.subr.mxu0 0.0
    %1297 = vmatpush1.msra.mxu0 0.0
    %1298 = vmatprep.subr.mxu0 0.0
    %1299 = vmatpush1.msra.mxu0 0.0
    %1300 = vmatprep.subr.mxu0 0.0
    %1301 = vmatpush1.msra.mxu0 0.0
    %1302 = vmatprep.subr.mxu0 0.0
    %1303 = vmatpush1.msra.mxu0 0.0
    %1304 = vmatprep.subr.mxu0 0.0
    %1305 = vmatpush1.msra.mxu0 0.0
    %1306 = vmatprep.subr.mxu0 0.0
    %1307 = vmatpush1.msra.mxu0 0.0
    %1308 = vmatprep.subr.mxu0 0.0
    %1309 = vmatpush1.msra.mxu0 0.0
    %1310 = vmatprep.subr.mxu0 0.0
    %1311 = vmatpush1.msra.mxu0 0.0
    %1312 = vmatprep.mubr.f32.mxu0 0.0
    %1313 = vmatmul.mubr.f32.gmra.mrb[0].mxu0 %v1246
    %v1314 = vpop.f32.mrb[0].mxu0
    %v1315 = vadd.f32 0.0, %v1314
    %v1316 = vpop.f32.mrb[0].mxu0
    %1317 = vdwg.mxu0
    %v1319 = vsel %vm1010, %v1094, 0
    %1321 = vmatprep.subr.mxu0 0.0
    %1322 = vmatpush1.msra.mxu0 %v402
    %1323 = vmatprep.subr.mxu0 0.0
    %1324 = vmatpush1.msra.mxu0 0.0
    %1325 = vmatprep.subr.mxu0 0.0
    %1326 = vmatpush1.msra.mxu0 0.0
    %1327 = vmatprep.subr.mxu0 0.0
    %1328 = vmatpush1.msra.mxu0 0.0
    %1329 = vmatprep.subr.mxu0 0.0
    %1330 = vmatpush1.msra.mxu0 0.0
    %1331 = vmatprep.subr.mxu0 0.0
    %1332 = vmatpush1.msra.mxu0 0.0
    %1333 = vmatprep.subr.mxu0 0.0
    %1334 = vmatpush1.msra.mxu0 0.0
    %1335 = vmatprep.subr.mxu0 0.0
    %1336 = vmatpush1.msra.mxu0 0.0
    %1337 = vmatprep.subr.mxu0 0.0
    %1338 = vmatpush1.msra.mxu0 0.0
    %1339 = vmatprep.subr.mxu0 0.0
    %1340 = vmatpush1.msra.mxu0 0.0
    %1341 = vmatprep.subr.mxu0 0.0
    %1342 = vmatpush1.msra.mxu0 0.0
    %1343 = vmatprep.subr.mxu0 0.0
    %1344 = vmatpush1.msra.mxu0 0.0
    %1345 = vmatprep.subr.mxu0 0.0
    %1346 = vmatpush1.msra.mxu0 0.0
    %1347 = vmatprep.subr.mxu0 0.0
    %1348 = vmatpush1.msra.mxu0 0.0
    %1349 = vmatprep.subr.mxu0 0.0
    %1350 = vmatpush1.msra.mxu0 0.0
    %1351 = vmatprep.subr.mxu0 0.0
    %1352 = vmatpush1.msra.mxu0 0.0
    %1353 = vmatprep.subr.mxu0 0.0
    %1354 = vmatpush1.msra.mxu0 0.0
    %1355 = vmatprep.subr.mxu0 0.0
    %1356 = vmatpush1.msra.mxu0 0.0
    %1357 = vmatprep.subr.mxu0 0.0
    %1358 = vmatpush1.msra.mxu0 0.0
    %1359 = vmatprep.subr.mxu0 0.0
    %1360 = vmatpush1.msra.mxu0 0.0
    %1361 = vmatprep.subr.mxu0 0.0
    %1362 = vmatpush1.msra.mxu0 0.0
    %1363 = vmatprep.subr.mxu0 0.0
    %1364 = vmatpush1.msra.mxu0 0.0
    %1365 = vmatprep.subr.mxu0 0.0
    %1366 = vmatpush1.msra.mxu0 0.0
    %1367 = vmatprep.subr.mxu0 0.0
    %1368 = vmatpush1.msra.mxu0 0.0
    %1369 = vmatprep.subr.mxu0 0.0
    %1370 = vmatpush1.msra.mxu0 0.0
    %1371 = vmatprep.subr.mxu0 0.0
    %1372 = vmatpush1.msra.mxu0 0.0
    %1373 = vmatprep.subr.mxu0 0.0
    %1374 = vmatpush1.msra.mxu0 0.0
    %1375 = vmatprep.subr.mxu0 0.0
    %1376 = vmatpush1.msra.mxu0 0.0
    %1377 = vmatprep.subr.mxu0 0.0
    %1378 = vmatpush1.msra.mxu0 0.0
    %1379 = vmatprep.subr.mxu0 0.0
    %1380 = vmatpush1.msra.mxu0 0.0
    %1381 = vmatprep.subr.mxu0 0.0
    %1382 = vmatpush1.msra.mxu0 0.0
    %1383 = vmatprep.subr.mxu0 0.0
    %1384 = vmatpush1.msra.mxu0 0.0
    %1385 = vmatprep.mubr.f32.mxu0 0.0
    %1386 = vmatmul.mubr.f32.gmra.mrb[0].mxu0 %v1319
    %v1387 = vpop.f32.mrb[0].mxu0
    %v1388 = vadd.f32 0.0, %v1387
    %v1389 = vpop.f32.mrb[0].mxu0
    %1390 = vdwg.mxu0
    %v1392 = vsel %vm1010, %v1095, 0
    %1394 = vmatprep.subr.mxu0 0.0
    %1395 = vmatpush1.msra.mxu0 %v406
    %1396 = vmatprep.subr.mxu0 0.0
    %1397 = vmatpush1.msra.mxu0 0.0
    %1398 = vmatprep.subr.mxu0 0.0
    %1399 = vmatpush1.msra.mxu0 0.0
    %1400 = vmatprep.subr.mxu0 0.0
    %1401 = vmatpush1.msra.mxu0 0.0
    %1402 = vmatprep.subr.mxu0 0.0
    %1403 = vmatpush1.msra.mxu0 0.0
    %1404 = vmatprep.subr.mxu0 0.0
    %1405 = vmatpush1.msra.mxu0 0.0
    %1406 = vmatprep.subr.mxu0 0.0
    %1407 = vmatpush1.msra.mxu0 0.0
    %1408 = vmatprep.subr.mxu0 0.0
    %1409 = vmatpush1.msra.mxu0 0.0
    %1410 = vmatprep.subr.mxu0 0.0
    %1411 = vmatpush1.msra.mxu0 0.0
    %1412 = vmatprep.subr.mxu0 0.0
    %1413 = vmatpush1.msra.mxu0 0.0
    %1414 = vmatprep.subr.mxu0 0.0
    %1415 = vmatpush1.msra.mxu0 0.0
    %1416 = vmatprep.subr.mxu0 0.0
    %1417 = vmatpush1.msra.mxu0 0.0
    %1418 = vmatprep.subr.mxu0 0.0
    %1419 = vmatpush1.msra.mxu0 0.0
    %1420 = vmatprep.subr.mxu0 0.0
    %1421 = vmatpush1.msra.mxu0 0.0
    %1422 = vmatprep.subr.mxu0 0.0
    %1423 = vmatpush1.msra.mxu0 0.0
    %1424 = vmatprep.subr.mxu0 0.0
    %1425 = vmatpush1.msra.mxu0 0.0
    %1426 = vmatprep.subr.mxu0 0.0
    %1427 = vmatpush1.msra.mxu0 0.0
    %1428 = vmatprep.subr.mxu0 0.0
    %1429 = vmatpush1.msra.mxu0 0.0
    %1430 = vmatprep.subr.mxu0 0.0
    %1431 = vmatpush1.msra.mxu0 0.0
    %1432 = vmatprep.subr.mxu0 0.0
    %1433 = vmatpush1.msra.mxu0 0.0
    %1434 = vmatprep.subr.mxu0 0.0
    %1435 = vmatpush1.msra.mxu0 0.0
    %1436 = vmatprep.subr.mxu0 0.0
    %1437 = vmatpush1.msra.mxu0 0.0
    %1438 = vmatprep.subr.mxu0 0.0
    %1439 = vmatpush1.msra.mxu0 0.0
    %1440 = vmatprep.subr.mxu0 0.0
    %1441 = vmatpush1.msra.mxu0 0.0
    %1442 = vmatprep.subr.mxu0 0.0
    %1443 = vmatpush1.msra.mxu0 0.0
    %1444 = vmatprep.subr.mxu0 0.0
    %1445 = vmatpush1.msra.mxu0 0.0
    %1446 = vmatprep.subr.mxu0 0.0
    %1447 = vmatpush1.msra.mxu0 0.0
    %1448 = vmatprep.subr.mxu0 0.0
    %1449 = vmatpush1.msra.mxu0 0.0
    %1450 = vmatprep.subr.mxu0 0.0
    %1451 = vmatpush1.msra.mxu0 0.0
    %1452 = vmatprep.subr.mxu0 0.0
    %1453 = vmatpush1.msra.mxu0 0.0
    %1454 = vmatprep.subr.mxu0 0.0
    %1455 = vmatpush1.msra.mxu0 0.0
    %1456 = vmatprep.subr.mxu0 0.0
    %1457 = vmatpush1.msra.mxu0 0.0
    %1458 = vmatprep.mubr.f32.mxu0 0.0
    %1459 = vmatmul.mubr.f32.gmra.mrb[0].mxu0 %v1392
    %v1460 = vpop.f32.mrb[0].mxu0
    %v1461 = vadd.f32 0.0, %v1460
    %v1462 = vpop.f32.mrb[0].mxu0
    %1463 = vdwg.mxu0
    %v1465 = vsel %vm1010, %v1096, 0
    %1467 = vmatprep.subr.mxu0 0.0
    %1468 = vmatpush1.msra.mxu0 %v408
    %1469 = vmatprep.subr.mxu0 0.0
    %1470 = vmatpush1.msra.mxu0 0.0
    %1471 = vmatprep.subr.mxu0 0.0
    %1472 = vmatpush1.msra.mxu0 0.0
    %1473 = vmatprep.subr.mxu0 0.0
    %1474 = vmatpush1.msra.mxu0 0.0
    %1475 = vmatprep.subr.mxu0 0.0
    %1476 = vmatpush1.msra.mxu0 0.0
    %1477 = vmatprep.subr.mxu0 0.0
    %1478 = vmatpush1.msra.mxu0 0.0
    %1479 = vmatprep.subr.mxu0 0.0
    %1480 = vmatpush1.msra.mxu0 0.0
    %1481 = vmatprep.subr.mxu0 0.0
    %1482 = vmatpush1.msra.mxu0 0.0
    %1483 = vmatprep.subr.mxu0 0.0
    %1484 = vmatpush1.msra.mxu0 0.0
    %1485 = vmatprep.subr.mxu0 0.0
    %1486 = vmatpush1.msra.mxu0 0.0
    %1487 = vmatprep.subr.mxu0 0.0
    %1488 = vmatpush1.msra.mxu0 0.0
    %1489 = vmatprep.subr.mxu0 0.0
    %1490 = vmatpush1.msra.mxu0 0.0
    %1491 = vmatprep.subr.mxu0 0.0
    %1492 = vmatpush1.msra.mxu0 0.0
    %1493 = vmatprep.subr.mxu0 0.0
    %1494 = vmatpush1.msra.mxu0 0.0
    %1495 = vmatprep.subr.mxu0 0.0
    %1496 = vmatpush1.msra.mxu0 0.0
    %1497 = vmatprep.subr.mxu0 0.0
    %1498 = vmatpush1.msra.mxu0 0.0
    %1499 = vmatprep.subr.mxu0 0.0
    %1500 = vmatpush1.msra.mxu0 0.0
    %1501 = vmatprep.subr.mxu0 0.0
    %1502 = vmatpush1.msra.mxu0 0.0
    %1503 = vmatprep.subr.mxu0 0.0
    %1504 = vmatpush1.msra.mxu0 0.0
    %1505 = vmatprep.subr.mxu0 0.0
    %1506 = vmatpush1.msra.mxu0 0.0
    %1507 = vmatprep.subr.mxu0 0.0
    %1508 = vmatpush1.msra.mxu0 0.0
    %1509 = vmatprep.subr.mxu0 0.0
    %1510 = vmatpush1.msra.mxu0 0.0
    %1511 = vmatprep.subr.mxu0 0.0
    %1512 = vmatpush1.msra.mxu0 0.0
    %1513 = vmatprep.subr.mxu0 0.0
    %1514 = vmatpush1.msra.mxu0 0.0
    %1515 = vmatprep.subr.mxu0 0.0
    %1516 = vmatpush1.msra.mxu0 0.0
    %1517 = vmatprep.subr.mxu0 0.0
    %1518 = vmatpush1.msra.mxu0 0.0
    %1519 = vmatprep.subr.mxu0 0.0
    %1520 = vmatpush1.msra.mxu0 0.0
    %1521 = vmatprep.subr.mxu0 0.0
    %1522 = vmatpush1.msra.mxu0 0.0
    %1523 = vmatprep.subr.mxu0 0.0
    %1524 = vmatpush1.msra.mxu0 0.0
    %1525 = vmatprep.subr.mxu0 0.0
    %1526 = vmatpush1.msra.mxu0 0.0
    %1527 = vmatprep.subr.mxu0 0.0
    %1528 = vmatpush1.msra.mxu0 0.0
    %1529 = vmatprep.subr.mxu0 0.0
    %1530 = vmatpush1.msra.mxu0 0.0
    %1531 = vmatprep.mubr.f32.mxu0 0.0
    %1532 = vmatmul.mubr.f32.gmra.mrb[0].mxu0 %v1465
    %v1533 = vpop.f32.mrb[0].mxu0
    %v1534 = vadd.f32 0.0, %v1533
    %v1535 = vpop.f32.mrb[0].mxu0
    %1536 = vdwg.mxu0
    %v1538 = vsel %vm1010, %v1097, 0
    %1540 = vmatprep.subr.mxu0 0.0
    %1541 = vmatpush1.msra.mxu0 %v412
    %1542 = vmatprep.subr.mxu0 0.0
    %1543 = vmatpush1.msra.mxu0 0.0
    %1544 = vmatprep.subr.mxu0 0.0
    %1545 = vmatpush1.msra.mxu0 0.0
    %1546 = vmatprep.subr.mxu0 0.0
    %1547 = vmatpush1.msra.mxu0 0.0
    %1548 = vmatprep.subr.mxu0 0.0
    %1549 = vmatpush1.msra.mxu0 0.0
    %1550 = vmatprep.subr.mxu0 0.0
    %1551 = vmatpush1.msra.mxu0 0.0
    %1552 = vmatprep.subr.mxu0 0.0
    %1553 = vmatpush1.msra.mxu0 0.0
    %1554 = vmatprep.subr.mxu0 0.0
    %1555 = vmatpush1.msra.mxu0 0.0
    %1556 = vmatprep.subr.mxu0 0.0
    %1557 = vmatpush1.msra.mxu0 0.0
    %1558 = vmatprep.subr.mxu0 0.0
    %1559 = vmatpush1.msra.mxu0 0.0
    %1560 = vmatprep.subr.mxu0 0.0
    %1561 = vmatpush1.msra.mxu0 0.0
    %1562 = vmatprep.subr.mxu0 0.0
    %1563 = vmatpush1.msra.mxu0 0.0
    %1564 = vmatprep.subr.mxu0 0.0
    %1565 = vmatpush1.msra.mxu0 0.0
    %1566 = vmatprep.subr.mxu0 0.0
    %1567 = vmatpush1.msra.mxu0 0.0
    %1568 = vmatprep.subr.mxu0 0.0
    %1569 = vmatpush1.msra.mxu0 0.0
    %1570 = vmatprep.subr.mxu0 0.0
    %1571 = vmatpush1.msra.mxu0 0.0
    %1572 = vmatprep.subr.mxu0 0.0
    %1573 = vmatpush1.msra.mxu0 0.0
    %1574 = vmatprep.subr.mxu0 0.0
    %1575 = vmatpush1.msra.mxu0 0.0
    %1576 = vmatprep.subr.mxu0 0.0
    %1577 = vmatpush1.msra.mxu0 0.0
    %1578 = vmatprep.subr.mxu0 0.0
    %1579 = vmatpush1.msra.mxu0 0.0
    %1580 = vmatprep.subr.mxu0 0.0
    %1581 = vmatpush1.msra.mxu0 0.0
    %1582 = vmatprep.subr.mxu0 0.0
    %1583 = vmatpush1.msra.mxu0 0.0
    %1584 = vmatprep.subr.mxu0 0.0
    %1585 = vmatpush1.msra.mxu0 0.0
    %1586 = vmatprep.subr.mxu0 0.0
    %1587 = vmatpush1.msra.mxu0 0.0
    %1588 = vmatprep.subr.mxu0 0.0
    %1589 = vmatpush1.msra.mxu0 0.0
    %1590 = vmatprep.subr.mxu0 0.0
    %1591 = vmatpush1.msra.mxu0 0.0
    %1592 = vmatprep.subr.mxu0 0.0
    %1593 = vmatpush1.msra.mxu0 0.0
    %1594 = vmatprep.subr.mxu0 0.0
    %1595 = vmatpush1.msra.mxu0 0.0
    %1596 = vmatprep.subr.mxu0 0.0
    %1597 = vmatpush1.msra.mxu0 0.0
    %1598 = vmatprep.subr.mxu0 0.0
    %1599 = vmatpush1.msra.mxu0 0.0
    %1600 = vmatprep.subr.mxu0 0.0
    %1601 = vmatpush1.msra.mxu0 0.0
    %1602 = vmatprep.subr.mxu0 0.0
    %1603 = vmatpush1.msra.mxu0 0.0
    %1604 = vmatprep.mubr.f32.mxu0 0.0
    %1605 = vmatmul.mubr.f32.gmra.mrb[0].mxu0 %v1538
    %v1606 = vpop.f32.mrb[0].mxu0
    %v1607 = vadd.f32 0.0, %v1606
    %v1608 = vpop.f32.mrb[0].mxu0
    %1609 = vdwg.mxu0
    %v1611 = vsel %vm1010, %v1098, 0
    %1613 = vmatprep.subr.mxu0 0.0
    %1614 = vmatpush1.msra.mxu0 %v414
    %1615 = vmatprep.subr.mxu0 0.0
    %1616 = vmatpush1.msra.mxu0 0.0
    %1617 = vmatprep.subr.mxu0 0.0
    %1618 = vmatpush1.msra.mxu0 0.0
    %1619 = vmatprep.subr.mxu0 0.0
    %1620 = vmatpush1.msra.mxu0 0.0
    %1621 = vmatprep.subr.mxu0 0.0
    %1622 = vmatpush1.msra.mxu0 0.0
    %1623 = vmatprep.subr.mxu0 0.0
    %1624 = vmatpush1.msra.mxu0 0.0
    %1625 = vmatprep.subr.mxu0 0.0
    %1626 = vmatpush1.msra.mxu0 0.0
    %1627 = vmatprep.subr.mxu0 0.0
    %1628 = vmatpush1.msra.mxu0 0.0
    %1629 = vmatprep.subr.mxu0 0.0
    %1630 = vmatpush1.msra.mxu0 0.0
    %1631 = vmatprep.subr.mxu0 0.0
    %1632 = vmatpush1.msra.mxu0 0.0
    %1633 = vmatprep.subr.mxu0 0.0
    %1634 = vmatpush1.msra.mxu0 0.0
    %1635 = vmatprep.subr.mxu0 0.0
    %1636 = vmatpush1.msra.mxu0 0.0
    %1637 = vmatprep.subr.mxu0 0.0
    %1638 = vmatpush1.msra.mxu0 0.0
    %1639 = vmatprep.subr.mxu0 0.0
    %1640 = vmatpush1.msra.mxu0 0.0
    %1641 = vmatprep.subr.mxu0 0.0
    %1642 = vmatpush1.msra.mxu0 0.0
    %1643 = vmatprep.subr.mxu0 0.0
    %1644 = vmatpush1.msra.mxu0 0.0
    %1645 = vmatprep.subr.mxu0 0.0
    %1646 = vmatpush1.msra.mxu0 0.0
    %1647 = vmatprep.subr.mxu0 0.0
    %1648 = vmatpush1.msra.mxu0 0.0
    %1649 = vmatprep.subr.mxu0 0.0
    %1650 = vmatpush1.msra.mxu0 0.0
    %1651 = vmatprep.subr.mxu0 0.0
    %1652 = vmatpush1.msra.mxu0 0.0
    %1653 = vmatprep.subr.mxu0 0.0
    %1654 = vmatpush1.msra.mxu0 0.0
    %1655 = vmatprep.subr.mxu0 0.0
    %1656 = vmatpush1.msra.mxu0 0.0
    %1657 = vmatprep.subr.mxu0 0.0
    %1658 = vmatpush1.msra.mxu0 0.0
    %1659 = vmatprep.subr.mxu0 0.0
    %1660 = vmatpush1.msra.mxu0 0.0
    %1661 = vmatprep.subr.mxu0 0.0
    %1662 = vmatpush1.msra.mxu0 0.0
    %1663 = vmatprep.subr.mxu0 0.0
    %1664 = vmatpush1.msra.mxu0 0.0
    %1665 = vmatprep.subr.mxu0 0.0
    %1666 = vmatpush1.msra.mxu0 0.0
    %1667 = vmatprep.subr.mxu0 0.0
    %1668 = vmatpush1.msra.mxu0 0.0
    %1669 = vmatprep.subr.mxu0 0.0
    %1670 = vmatpush1.msra.mxu0 0.0
    %1671 = vmatprep.subr.mxu0 0.0
    %1672 = vmatpush1.msra.mxu0 0.0
    %1673 = vmatprep.subr.mxu0 0.0
    %1674 = vmatpush1.msra.mxu0 0.0
    %1675 = vmatprep.subr.mxu0 0.0
    %1676 = vmatpush1.msra.mxu0 0.0
    %1677 = vmatprep.mubr.f32.mxu0 0.0
    %1678 = vmatmul.mubr.f32.gmra.mrb[0].mxu0 %v1611
    %v1679 = vpop.f32.mrb[0].mxu0
    %v1680 = vadd.f32 0.0, %v1679
    %v1681 = vpop.f32.mrb[0].mxu0
    %1682 = vdwg.mxu0
    %1685 = vrot.lane.b32.xlu0 %v1315, 32
    %v1686 = vpop.permute.xlu0 %1685
    %1687 = vrot.lane.b32.xlu0 %v1388, 32
    %v1688 = vpop.permute.xlu0 %1687
    %1693 = vrot.lane.b32.xlu0 %v1461, 64
    %v1694 = vpop.permute.xlu0 %1693
    %1695 = vrot.lane.b32.xlu0 %v1534, 64
    %v1696 = vpop.permute.xlu0 %1695
    %1701 = vrot.lane.b32.xlu0 %v1607, 96
    %v1702 = vpop.permute.xlu0 %1701
    %1703 = vrot.lane.b32.xlu0 %v1680, 96
    %v1704 = vpop.permute.xlu0 %1703
    %v1707 = vsel %vm417, %v1169, %v1686
    %v1708 = vsel %vm417, %v1242, %v1688
    %vm1709 = vcmask 523264
    %v1710 = vsel %vm1709, %v1707, %v1694
    %v1711 = vsel %vm1709, %v1708, %v1696
    %vm1712 = vcmask 785408
    %v1713 = vsel %vm1712, %v1710, %v1702
    %v1714 = vsel %vm1712, %v1711, %v1704
    %v1715 = vpack.c.bf16 %v1714, %v1713
    %v1716 = vld [vmem:[#allocation7] sm:$0xf]
    %v1717 = vld [vmem:[#allocation7 + $0x4] sm:$0xf]
    %v1718 = vld [vmem:[#allocation7 + $0x8] sm:$0xf]
    %v1719 = vld [vmem:[#allocation7 + $0xc] sm:$0xf]
    %v1720 = vld [vmem:[#allocation7 + $0x10] sm:$0xf]
    %v1721 = vld [vmem:[#allocation7 + $0x14] sm:$0xf]
    %v1722 = vld [vmem:[#allocation7 + $0x18] sm:$0xf]
    %v1723 = vld [vmem:[#allocation7 + $0x1c] sm:$0xf]
    %v1724 = vld [vmem:[#allocation7 + $0x20] sm:$0xf]
    %v1725 = vld [vmem:[#allocation7 + $0x24] sm:$0xf]
    %v1726 = vld [vmem:[#allocation7 + $0x28] sm:$0xf]
    %v1727 = vld [vmem:[#allocation7 + $0x2c] sm:$0xf]
    %v1728 = vld [vmem:[#allocation7 + $0x30] sm:$0xf]
    %v1729 = vld [vmem:[#allocation7 + $0x34] sm:$0xf]
    %v1730 = vld [vmem:[#allocation7 + $0x38] sm:$0xf]
    %v1731 = vld [vmem:[#allocation7 + $0x3c] sm:$0xf]
    %v1732 = vlaneseq
    %v1733 = vshrl.u32 %v1732, 7
    %v1734 = vsub.s32 2, %v1733
    %v1735 = vrot.slane %v109, %v1734
    %v1752 = vunpack.c.l.b16 %v1716
    %v1753 = vunpack.c.l.b16 %v1717
    %v1754 = vunpack.c.l.b16 %v1718
    %v1755 = vunpack.c.l.b16 %v1719
    %v1756 = vunpack.c.l.b16 %v1720
    %v1757 = vunpack.c.l.b16 %v1721
    %v1758 = vunpack.c.l.b16 %v1722
    %v1759 = vunpack.c.l.b16 %v1723
    %v1760 = vunpack.c.l.b16 %v1724
    %v1761 = vunpack.c.l.b16 %v1725
    %v1762 = vunpack.c.l.b16 %v1726
    %v1763 = vunpack.c.l.b16 %v1727
    %v1764 = vunpack.c.l.b16 %v1728
    %v1765 = vunpack.c.l.b16 %v1729
    %v1766 = vunpack.c.l.b16 %v1730
    %v1767 = vunpack.c.l.b16 %v1731
    %v1768 = vpack.c.b16 %v1753, %v1752
    %v1769 = vpack.c.b16 %v1755, %v1754
    %v1770 = vpack.c.b16 %v1757, %v1756
    %v1771 = vpack.c.b16 %v1759, %v1758
    %v1772 = vpack.c.b16 %v1761, %v1760
    %v1773 = vpack.c.b16 %v1763, %v1762
    %v1774 = vpack.c.b16 %v1765, %v1764
    %v1775 = vpack.c.b16 %v1767, %v1766
    %1784 = vmatprep.subr.bf16.mxu0 0
    %1785 = vmatpush1.bf16.msra.mxu0 %v1768
    %1786 = vmatprep.subr.bf16.mxu0 0
    %1787 = vmatpush1.bf16.msra.mxu0 %v1769
    %1788 = vmatprep.subr.bf16.mxu0 0
    %1789 = vmatpush1.bf16.msra.mxu0 %v1770
    %1790 = vmatprep.subr.bf16.mxu0 0
    %1791 = vmatpush1.bf16.msra.mxu0 %v1771
    %1792 = vmatprep.subr.bf16.mxu0 0
    %1793 = vmatpush1.bf16.msra.mxu0 %v1772
    %1794 = vmatprep.subr.bf16.mxu0 0
    %1795 = vmatpush1.bf16.msra.mxu0 %v1773
    %1796 = vmatprep.subr.bf16.mxu0 0
    %1797 = vmatpush1.bf16.msra.mxu0 %v1774
    %1798 = vmatprep.subr.bf16.mxu0 0
    %1799 = vmatpush1.bf16.msra.mxu0 %v1775
    %1800 = vmatprep.subr.bf16.mxu0 0
    %1801 = vmatpush1.bf16.msra.mxu0 0
    %1802 = vmatprep.subr.bf16.mxu0 0
    %1803 = vmatpush1.bf16.msra.mxu0 0
    %1804 = vmatprep.subr.bf16.mxu0 0
    %1805 = vmatpush1.bf16.msra.mxu0 0
    %1806 = vmatprep.subr.bf16.mxu0 0
    %1807 = vmatpush1.bf16.msra.mxu0 0
    %1808 = vmatprep.subr.bf16.mxu0 0
    %1809 = vmatpush1.bf16.msra.mxu0 0
    %1810 = vmatprep.subr.bf16.mxu0 0
    %1811 = vmatpush1.bf16.msra.mxu0 0
    %1812 = vmatprep.subr.bf16.mxu0 0
    %1813 = vmatpush1.bf16.msra.mxu0 0
    %1814 = vmatprep.subr.bf16.mxu0 0
    %1815 = vmatpush1.bf16.msra.mxu0 0
    %1816 = vmatprep.mubr.bf16.mxu0 0
    %1817 = vmatmul.mubr.bf16.gmra.mrb[0].mxu0 %v1715
    %v1818 = vpop.f32.mrb[0].mxu0
    %v1819 = vadd.f32 %v1735, %v1818
    %v1820 = vpop.f32.mrb[0].mxu0
    %v1821 = vpop.f32.mrb[0].mxu0
    %v1822 = vadd.f32 %v1735, %v1821
    %v1823 = vpop.f32.mrb[0].mxu0
    %1824 = vdwg.mxu0
    %v1825 = vadd.f32 %v107, %v1819
    %v1826 = vadd.f32 %v108, %v1822
    %1827 = vadd.xlane.f32.xlu0 %v1825
    %v1828 = vpop.xlane.xlu0 %1827
    %1829 = vadd.xlane.f32.xlu0 %v1826
    %v1830 = vpop.xlane.xlu0 %1829
    %v1831 = vrcp.pop 128.0
    %v1832 = vmul.f32 %v1828, %v1831
    %v1833 = vmul.f32 %v1830, %v1831
    %v1834 = vsub.f32 %v1825, %v1832
    %v1835 = vsub.f32 %v1826, %v1833
    %v1836 = vmul.f32 %v1834, %v1834
    %v1837 = vmul.f32 %v1835, %v1835
    %1838 = vadd.xlane.f32.xlu0 %v1836
    %v1839 = vpop.xlane.xlu0 %1838
    %1840 = vadd.xlane.f32.xlu0 %v1837
    %v1841 = vpop.xlane.xlu0 %1840
    %v1842 = vmul.f32 %v1839, %v1831
    %v1843 = vmul.f32 %v1841, %v1831
    %v1844 = vadd.f32 %v1842, 1e-05
    %v1845 = vadd.f32 %v1843, 1e-05
    %v1846 = vrsqrt.pop %v1844
    %v1847 = vrsqrt.pop %v1845
    %v1848 = vmul.f32 %v1834, %v1846
    %v1849 = vmul.f32 %v1835, %v1847
    %v1850 = vlaneseq
    %v1851 = vshrl.u32 %v1850, 7
    %v1852 = vsub.s32 3, %v1851
    %v1853 = vrot.slane %v109, %v1852
    %v1854 = vmul.f32 %v1848, %v1853
    %v1855 = vmul.f32 %v1849, %v1853
    %v1856 = vlaneseq
    %v1857 = vshrl.u32 %v1856, 7
    %v1858 = vsub.s32 4, %v1857
    %v1859 = vrot.slane %v109, %v1858
    %v1860 = vadd.f32 %v1854, %v1859
    %v1861 = vadd.f32 %v1855, %v1859
    %v1862 = vpack.c.bf16 %v1861, %v1860
    %v1863 = vld [vmem:[#allocation8] sm:$0xff]
    %v1864 = vld [vmem:[#allocation8 + $0x8] sm:$0xff]
    %v1865 = vld [vmem:[#allocation8 + $0x10] sm:$0xff]
    %v1866 = vld [vmem:[#allocation8 + $0x18] sm:$0xff]
    %v1867 = vld [vmem:[#allocation8 + $0x20] sm:$0xff]
    %v1868 = vld [vmem:[#allocation8 + $0x28] sm:$0xff]
    %v1869 = vld [vmem:[#allocation8 + $0x30] sm:$0xff]
    %v1870 = vld [vmem:[#allocation8 + $0x38] sm:$0xff]
    %v1871 = vld [vmem:[#allocation8 + $0x40] sm:$0xff]
    %v1872 = vld [vmem:[#allocation8 + $0x48] sm:$0xff]
    %v1873 = vld [vmem:[#allocation8 + $0x50] sm:$0xff]
    %v1874 = vld [vmem:[#allocation8 + $0x58] sm:$0xff]
    %v1875 = vld [vmem:[#allocation8 + $0x60] sm:$0xff]
    %v1876 = vld [vmem:[#allocation8 + $0x68] sm:$0xff]
    %v1877 = vld [vmem:[#allocation8 + $0x70] sm:$0xff]
    %v1878 = vld [vmem:[#allocation8 + $0x78] sm:$0xff]
    %v1879 = vlaneseq
    %v1880 = vshrl.u32 %v1879, 7
    %v1881 = vsub.s32 1, %v1880
    %v1882 = vrot.slane %v109, %v1881
    %v1883 = vlaneseq
    %v1884 = vshrl.u32 %v1883, 7
    %v1885 = vsub.s32 1, %v1884
    %v1886 = vrot.slane %v110, %v1885
    %v1903 = vunpack.c.l.b16 %v1863
    %v1904 = vunpack.c.h.b16 %v1863
    %v1905 = vunpack.c.l.b16 %v1864
    %v1906 = vunpack.c.h.b16 %v1864
    %v1907 = vunpack.c.l.b16 %v1865
    %v1908 = vunpack.c.h.b16 %v1865
    %v1909 = vunpack.c.l.b16 %v1866
    %v1910 = vunpack.c.h.b16 %v1866
    %v1911 = vunpack.c.l.b16 %v1867
    %v1912 = vunpack.c.h.b16 %v1867
    %v1913 = vunpack.c.l.b16 %v1868
    %v1914 = vunpack.c.h.b16 %v1868
    %v1915 = vunpack.c.l.b16 %v1869
    %v1916 = vunpack.c.h.b16 %v1869
    %v1917 = vunpack.c.l.b16 %v1870
    %v1918 = vunpack.c.h.b16 %v1870
    %v1919 = vunpack.c.l.b16 %v1871
    %v1920 = vunpack.c.h.b16 %v1871
    %v1921 = vunpack.c.l.b16 %v1872
    %v1922 = vunpack.c.h.b16 %v1872
    %v1923 = vunpack.c.l.b16 %v1873
    %v1924 = vunpack.c.h.b16 %v1873
    %v1925 = vunpack.c.l.b16 %v1874
    %v1926 = vunpack.c.h.b16 %v1874
    %v1927 = vunpack.c.l.b16 %v1875
    %v1928 = vunpack.c.h.b16 %v1875
    %v1929 = vunpack.c.l.b16 %v1876
    %v1930 = vunpack.c.h.b16 %v1876
    %v1931 = vunpack.c.l.b16 %v1877
    %v1932 = vunpack.c.h.b16 %v1877
    %v1933 = vunpack.c.l.b16 %v1878
    %v1934 = vunpack.c.h.b16 %v1878
    %v1935 = vpack.c.b16 %v1905, %v1903
    %v1936 = vpack.c.b16 %v1906, %v1904
    %v1937 = vpack.c.b16 %v1909, %v1907
    %v1938 = vpack.c.b16 %v1910, %v1908
    %v1939 = vpack.c.b16 %v1913, %v1911
    %v1940 = vpack.c.b16 %v1914, %v1912
    %v1941 = vpack.c.b16 %v1917, %v1915
    %v1942 = vpack.c.b16 %v1918, %v1916
    %v1943 = vpack.c.b16 %v1921, %v1919
    %v1944 = vpack.c.b16 %v1922, %v1920
    %v1945 = vpack.c.b16 %v1925, %v1923
    %v1946 = vpack.c.b16 %v1926, %v1924
    %v1947 = vpack.c.b16 %v1929, %v1927
    %v1948 = vpack.c.b16 %v1930, %v1928
    %v1949 = vpack.c.b16 %v1933, %v1931
    %v1950 = vpack.c.b16 %v1934, %v1932
    %1967 = vmatprep.subr.bf16.mxu0 %v1936
    %1968 = vmatpush1.bf16.msra.mxu0 %v1935
    %1969 = vmatprep.subr.bf16.mxu0 %v1938
    %1970 = vmatpush1.bf16.msra.mxu0 %v1937
    %1971 = vmatprep.subr.bf16.mxu0 %v1940
    %1972 = vmatpush1.bf16.msra.mxu0 %v1939
    %1973 = vmatprep.subr.bf16.mxu0 %v1942
    %1974 = vmatpush1.bf16.msra.mxu0 %v1941
    %1975 = vmatprep.subr.bf16.mxu0 %v1944
    %1976 = vmatpush1.bf16.msra.mxu0 %v1943
    %1977 = vmatprep.subr.bf16.mxu0 %v1946
    %1978 = vmatpush1.bf16.msra.mxu0 %v1945
    %1979 = vmatprep.subr.bf16.mxu0 %v1948
    %1980 = vmatpush1.bf16.msra.mxu0 %v1947
    %1981 = vmatprep.subr.bf16.mxu0 %v1950
    %1982 = vmatpush1.bf16.msra.mxu0 %v1949
    %1983 = vmatprep.subr.bf16.mxu0 0
    %1984 = vmatpush1.bf16.msra.mxu0 0
    %1985 = vmatprep.subr.bf16.mxu0 0
    %1986 = vmatpush1.bf16.msra.mxu0 0
    %1987 = vmatprep.subr.bf16.mxu0 0
    %1988 = vmatpush1.bf16.msra.mxu0 0
    %1989 = vmatprep.subr.bf16.mxu0 0
    %1990 = vmatpush1.bf16.msra.mxu0 0
    %1991 = vmatprep.subr.bf16.mxu0 0
    %1992 = vmatpush1.bf16.msra.mxu0 0
    %1993 = vmatprep.subr.bf16.mxu0 0
    %1994 = vmatpush1.bf16.msra.mxu0 0
    %1995 = vmatprep.subr.bf16.mxu0 0
    %1996 = vmatpush1.bf16.msra.mxu0 0
    %1997 = vmatprep.subr.bf16.mxu0 0
    %1998 = vmatpush1.bf16.msra.mxu0 0
    %1999 = vmatprep.mubr.bf16.mxu0 0
    %2000 = vmatmul.mubr.bf16.gmra.mrb[0].mxu0 %v1862
    %v2001 = vpop.f32.mrb[0].mxu0
    %v2002 = vadd.f32 %v1882, %v2001
    %v2003 = vpop.f32.mrb[0].mxu0
    %v2004 = vadd.f32 %v1886, %v2003
    %v2005 = vpop.f32.mrb[0].mxu0
    %v2006 = vadd.f32 %v1882, %v2005
    %v2007 = vpop.f32.mrb[0].mxu0
    %v2008 = vadd.f32 %v1886, %v2007
    %2009 = vdwg.mxu0
    %v2010 = vmax.f32 %v2002, 0.0
    %v2011 = vmax.f32 %v2004, 0.0
    %v2012 = vmax.f32 %v2006, 0.0
    %v2013 = vmax.f32 %v2008, 0.0
    %v2014 = vpack.c.bf16 %v2012, %v2010
    %v2015 = vpack.c.bf16 %v2013, %v2011
    %v2016 = vld [vmem:[#allocation10] sm:$0xf]
    %v2017 = vld [vmem:[#allocation10 + $0x4] sm:$0xf]
    %v2018 = vld [vmem:[#allocation10 + $0x8] sm:$0xf]
    %v2019 = vld [vmem:[#allocation10 + $0xc] sm:$0xf]
    %v2020 = vld [vmem:[#allocation10 + $0x10] sm:$0xf]
    %v2021 = vld [vmem:[#allocation10 + $0x14] sm:$0xf]
    %v2022 = vld [vmem:[#allocation10 + $0x18] sm:$0xf]
    %v2023 = vld [vmem:[#allocation10 + $0x1c] sm:$0xf]
    %v2024 = vld [vmem:[#allocation10 + $0x20] sm:$0xf]
    %v2025 = vld [vmem:[#allocation10 + $0x24] sm:$0xf]
    %v2026 = vld [vmem:[#allocation10 + $0x28] sm:$0xf]
    %v2027 = vld [vmem:[#allocation10 + $0x2c] sm:$0xf]
    %v2028 = vld [vmem:[#allocation10 + $0x30] sm:$0xf]
    %v2029 = vld [vmem:[#allocation10 + $0x34] sm:$0xf]
    %v2030 = vld [vmem:[#allocation10 + $0x38] sm:$0xf]
    %v2031 = vld [vmem:[#allocation10 + $0x3c] sm:$0xf]
    %v2032 = vld [vmem:[#allocation10 + $0x40] sm:$0xf]
    %v2033 = vld [vmem:[#allocation10 + $0x44] sm:$0xf]
    %v2034 = vld [vmem:[#allocation10 + $0x48] sm:$0xf]
    %v2035 = vld [vmem:[#allocation10 + $0x4c] sm:$0xf]
    %v2036 = vld [vmem:[#allocation10 + $0x50] sm:$0xf]
    %v2037 = vld [vmem:[#allocation10 + $0x54] sm:$0xf]
    %v2038 = vld [vmem:[#allocation10 + $0x58] sm:$0xf]
    %v2039 = vld [vmem:[#allocation10 + $0x5c] sm:$0xf]
    %v2040 = vld [vmem:[#allocation10 + $0x60] sm:$0xf]
    %v2041 = vld [vmem:[#allocation10 + $0x64] sm:$0xf]
    %v2042 = vld [vmem:[#allocation10 + $0x68] sm:$0xf]
    %v2043 = vld [vmem:[#allocation10 + $0x6c] sm:$0xf]
    %v2044 = vld [vmem:[#allocation10 + $0x70] sm:$0xf]
    %v2045 = vld [vmem:[#allocation10 + $0x74] sm:$0xf]
    %v2046 = vld [vmem:[#allocation10 + $0x78] sm:$0xf]
    %v2047 = vld [vmem:[#allocation10 + $0x7c] sm:$0xf]
    %v2048 = vlaneseq
    %v2049 = vshrl.u32 %v2048, 7
    %v2050 = vsub.s32 5, %v2049
    %v2051 = vrot.slane %v109, %v2050
    %v2084 = vunpack.c.l.b16 %v2016
    %v2085 = vunpack.c.l.b16 %v2017
    %v2086 = vunpack.c.l.b16 %v2018
    %v2087 = vunpack.c.l.b16 %v2019
    %v2088 = vunpack.c.l.b16 %v2020
    %v2089 = vunpack.c.l.b16 %v2021
    %v2090 = vunpack.c.l.b16 %v2022
    %v2091 = vunpack.c.l.b16 %v2023
    %v2092 = vunpack.c.l.b16 %v2024
    %v2093 = vunpack.c.l.b16 %v2025
    %v2094 = vunpack.c.l.b16 %v2026
    %v2095 = vunpack.c.l.b16 %v2027
    %v2096 = vunpack.c.l.b16 %v2028
    %v2097 = vunpack.c.l.b16 %v2029
    %v2098 = vunpack.c.l.b16 %v2030
    %v2099 = vunpack.c.l.b16 %v2031
    %v2100 = vunpack.c.l.b16 %v2032
    %v2101 = vunpack.c.l.b16 %v2033
    %v2102 = vunpack.c.l.b16 %v2034
    %v2103 = vunpack.c.l.b16 %v2035
    %v2104 = vunpack.c.l.b16 %v2036
    %v2105 = vunpack.c.l.b16 %v2037
    %v2106 = vunpack.c.l.b16 %v2038
    %v2107 = vunpack.c.l.b16 %v2039
    %v2108 = vunpack.c.l.b16 %v2040
    %v2109 = vunpack.c.l.b16 %v2041
    %v2110 = vunpack.c.l.b16 %v2042
    %v2111 = vunpack.c.l.b16 %v2043
    %v2112 = vunpack.c.l.b16 %v2044
    %v2113 = vunpack.c.l.b16 %v2045
    %v2114 = vunpack.c.l.b16 %v2046
    %v2115 = vunpack.c.l.b16 %v2047
    %v2116 = vpack.c.b16 %v2085, %v2084
    %v2117 = vpack.c.b16 %v2087, %v2086
    %v2118 = vpack.c.b16 %v2089, %v2088
    %v2119 = vpack.c.b16 %v2091, %v2090
    %v2120 = vpack.c.b16 %v2093, %v2092
    %v2121 = vpack.c.b16 %v2095, %v2094
    %v2122 = vpack.c.b16 %v2097, %v2096
    %v2123 = vpack.c.b16 %v2099, %v2098
    %v2124 = vpack.c.b16 %v2101, %v2100
    %v2125 = vpack.c.b16 %v2103, %v2102
    %v2126 = vpack.c.b16 %v2105, %v2104
    %v2127 = vpack.c.b16 %v2107, %v2106
    %v2128 = vpack.c.b16 %v2109, %v2108
    %v2129 = vpack.c.b16 %v2111, %v2110
    %v2130 = vpack.c.b16 %v2113, %v2112
    %v2131 = vpack.c.b16 %v2115, %v2114
    %2148 = vmatprep.subr.bf16.mxu0 0
    %2149 = vmatpush1.bf16.msra.mxu0 %v2116
    %2150 = vmatprep.subr.bf16.mxu0 0
    %2151 = vmatpush1.bf16.msra.mxu0 %v2117
    %2152 = vmatprep.subr.bf16.mxu0 0
    %2153 = vmatpush1.bf16.msra.mxu0 %v2118
    %2154 = vmatprep.subr.bf16.mxu0 0
    %2155 = vmatpush1.bf16.msra.mxu0 %v2119
    %2156 = vmatprep.subr.bf16.mxu0 0
    %2157 = vmatpush1.bf16.msra.mxu0 %v2120
    %2158 = vmatprep.subr.bf16.mxu0 0
    %2159 = vmatpush1.bf16.msra.mxu0 %v2121
    %2160 = vmatprep.subr.bf16.mxu0 0
    %2161 = vmatpush1.bf16.msra.mxu0 %v2122
    %2162 = vmatprep.subr.bf16.mxu0 0
    %2163 = vmatpush1.bf16.msra.mxu0 %v2123
    %2164 = vmatprep.subr.bf16.mxu0 0
    %2165 = vmatpush1.bf16.msra.mxu0 %v2124
    %2166 = vmatprep.subr.bf16.mxu0 0
    %2167 = vmatpush1.bf16.msra.mxu0 %v2125
    %2168 = vmatprep.subr.bf16.mxu0 0
    %2169 = vmatpush1.bf16.msra.mxu0 %v2126
    %2170 = vmatprep.subr.bf16.mxu0 0
    %2171 = vmatpush1.bf16.msra.mxu0 %v2127
    %2172 = vmatprep.subr.bf16.mxu0 0
    %2173 = vmatpush1.bf16.msra.mxu0 %v2128
    %2174 = vmatprep.subr.bf16.mxu0 0
    %2175 = vmatpush1.bf16.msra.mxu0 %v2129
    %2176 = vmatprep.subr.bf16.mxu0 0
    %2177 = vmatpush1.bf16.msra.mxu0 %v2130
    %2178 = vmatprep.subr.bf16.mxu0 0
    %2179 = vmatpush1.bf16.msra.mxu0 %v2131
    %2180 = vmatprep.mubr.bf16.mxu0 %v2015
    %2181 = vmatmul.mubr.bf16.gmra.mrb[0].mxu0 %v2014
    %v2182 = vpop.f32.mrb[0].mxu0
    %v2183 = vadd.f32 %v2051, %v2182
    %v2184 = vpop.f32.mrb[0].mxu0
    %v2185 = vpop.f32.mrb[0].mxu0
    %v2186 = vadd.f32 %v2051, %v2185
    %v2187 = vpop.f32.mrb[0].mxu0
    %2188 = vdwg.mxu0
    %v2189 = vadd.f32 %v1860, %v2183
    %v2190 = vadd.f32 %v1861, %v2186
    %2191 = vadd.xlane.f32.xlu0 %v2189
    %v2192 = vpop.xlane.xlu0 %2191
    %2193 = vadd.xlane.f32.xlu0 %v2190
    %v2194 = vpop.xlane.xlu0 %2193
    %v2195 = vmul.f32 %v2192, %v1831
    %v2196 = vmul.f32 %v2194, %v1831
    %v2197 = vsub.f32 %v2189, %v2195
    %v2198 = vsub.f32 %v2190, %v2196
    %v2199 = vmul.f32 %v2197, %v2197
    %v2200 = vmul.f32 %v2198, %v2198
    %2201 = vadd.xlane.f32.xlu0 %v2199
    %v2202 = vpop.xlane.xlu0 %2201
    %2203 = vadd.xlane.f32.xlu0 %v2200
    %v2204 = vpop.xlane.xlu0 %2203
    %v2205 = vmul.f32 %v2202, %v1831
    %v2206 = vmul.f32 %v2204, %v1831
    %v2207 = vadd.f32 %v2205, 1e-05
    %v2208 = vadd.f32 %v2206, 1e-05
    %v2209 = vrsqrt.pop %v2207
    %v2210 = vrsqrt.pop %v2208
    %v2211 = vmul.f32 %v2197, %v2209
    %v2212 = vmul.f32 %v2198, %v2210
    %v2213 = vlaneseq
    %v2214 = vshrl.u32 %v2213, 7
    %v2215 = vsub.s32 6, %v2214
    %v2216 = vrot.slane %v109, %v2215
    %v2217 = vmul.f32 %v2211, %v2216
    %v2218 = vmul.f32 %v2212, %v2216
    %v2219 = vlaneseq
    %v2220 = vshrl.u32 %v2219, 7
    %v2221 = vsub.s32 7, %v2220
    %v2222 = vrot.slane %v109, %v2221
    %v2223 = vadd.f32 %v2217, %v2222
    %v2224 = vadd.f32 %v2218, %v2222
    %s2225 = scalar_lea.vmem [#allocation11], 24
    %v2226 = vld [vmem:[%s2225] sm:$0xff]
    %v2227 = vld [vmem:[%s2225 + $0x8] sm:$0xff]
    %v2228 = vld [vmem:[%s2225 + $0x10] sm:$0xff]
    %v2229 = vpack.c.bf16 %v2224, %v2223
    %s2230 = scalar_lea.vmem [#allocation5], 192
    %v2231 = vld [vmem:[%s2230] sm:$0xff]
    %v2232 = vld [vmem:[%s2230 + $0x8] sm:$0xf]
    %v2233 = vld [vmem:[%s2230 + $0xc] sm:$0xff]
    %v2234 = vld [vmem:[%s2230 + $0x14] sm:$0xf]
    %v2235 = vld [vmem:[%s2230 + $0x18] sm:$0xff]
    %v2236 = vld [vmem:[%s2230 + $0x20] sm:$0xf]
    %v2237 = vld [vmem:[%s2230 + $0x24] sm:$0xff]
    %v2238 = vld [vmem:[%s2230 + $0x2c] sm:$0xf]
    %v2239 = vld [vmem:[%s2230 + $0x30] sm:$0xff]
    %v2240 = vld [vmem:[%s2230 + $0x38] sm:$0xf]
    %v2241 = vld [vmem:[%s2230 + $0x3c] sm:$0xff]
    %v2242 = vld [vmem:[%s2230 + $0x44] sm:$0xf]
    %v2243 = vld [vmem:[%s2230 + $0x48] sm:$0xff]
    %v2244 = vld [vmem:[%s2230 + $0x50] sm:$0xf]
    %v2245 = vld [vmem:[%s2230 + $0x54] sm:$0xff]
    %v2246 = vld [vmem:[%s2230 + $0x5c] sm:$0xf]
    %v2247 = vld [vmem:[%s2230 + $0x60] sm:$0xff]
    %v2248 = vld [vmem:[%s2230 + $0x68] sm:$0xf]
    %v2249 = vld [vmem:[%s2230 + $0x6c] sm:$0xff]
    %v2250 = vld [vmem:[%s2230 + $0x74] sm:$0xf]
    %v2251 = vld [vmem:[%s2230 + $0x78] sm:$0xff]
    %v2252 = vld [vmem:[%s2230 + $0x80] sm:$0xf]
    %v2253 = vld [vmem:[%s2230 + $0x84] sm:$0xff]
    %v2254 = vld [vmem:[%s2230 + $0x8c] sm:$0xf]
    %v2255 = vld [vmem:[%s2230 + $0x90] sm:$0xff]
    %v2256 = vld [vmem:[%s2230 + $0x98] sm:$0xf]
    %v2257 = vld [vmem:[%s2230 + $0x9c] sm:$0xff]
    %v2258 = vld [vmem:[%s2230 + $0xa4] sm:$0xf]
    %v2259 = vld [vmem:[%s2230 + $0xa8] sm:$0xff]
    %v2260 = vld [vmem:[%s2230 + $0xb0] sm:$0xf]
    %v2261 = vld [vmem:[%s2230 + $0xb4] sm:$0xff]
    %v2262 = vld [vmem:[%s2230 + $0xbc] sm:$0xf]
    %v2263 = vlaneseq
    %v2264 = vshrl.u32 %v2263, 7
    %v2265 = vsub.s32 0, %v2264
    %v2266 = vrot.slane %v2226, %v2265
    %v2267 = vlaneseq
    %v2268 = vshrl.u32 %v2267, 7
    %v2269 = vsub.s32 0, %v2268
    %v2270 = vrot.slane %v2227, %v2269
    %v2271 = vlaneseq
    %v2272 = vshrl.u32 %v2271, 7
    %v2273 = vsub.s32 0, %v2272
    %v2274 = vrot.slane %v2228, %v2273
    %v2307 = vunpack.c.l.b16 %v2231
    %v2308 = vunpack.c.h.b16 %v2231
    %v2309 = vunpack.c.l.b16 %v2232
    %v2310 = vunpack.c.l.b16 %v2233
    %v2311 = vunpack.c.h.b16 %v2233
    %v2312 = vunpack.c.l.b16 %v2234
    %v2313 = vunpack.c.l.b16 %v2235
    %v2314 = vunpack.c.h.b16 %v2235
    %v2315 = vunpack.c.l.b16 %v2236
    %v2316 = vunpack.c.l.b16 %v2237
    %v2317 = vunpack.c.h.b16 %v2237
    %v2318 = vunpack.c.l.b16 %v2238
    %v2319 = vunpack.c.l.b16 %v2239
    %v2320 = vunpack.c.h.b16 %v2239
    %v2321 = vunpack.c.l.b16 %v2240
    %v2322 = vunpack.c.l.b16 %v2241
    %v2323 = vunpack.c.h.b16 %v2241
    %v2324 = vunpack.c.l.b16 %v2242
    %v2325 = vunpack.c.l.b16 %v2243
    %v2326 = vunpack.c.h.b16 %v2243
    %v2327 = vunpack.c.l.b16 %v2244
    %v2328 = vunpack.c.l.b16 %v2245
    %v2329 = vunpack.c.h.b16 %v2245
    %v2330 = vunpack.c.l.b16 %v2246
    %v2331 = vunpack.c.l.b16 %v2247
    %v2332 = vunpack.c.h.b16 %v2247
    %v2333 = vunpack.c.l.b16 %v2248
    %v2334 = vunpack.c.l.b16 %v2249
    %v2335 = vunpack.c.h.b16 %v2249
    %v2336 = vunpack.c.l.b16 %v2250
    %v2337 = vunpack.c.l.b16 %v2251
    %v2338 = vunpack.c.h.b16 %v2251
    %v2339 = vunpack.c.l.b16 %v2252
    %v2340 = vunpack.c.l.b16 %v2253
    %v2341 = vunpack.c.h.b16 %v2253
    %v2342 = vunpack.c.l.b16 %v2254
    %v2343 = vunpack.c.l.b16 %v2255
    %v2344 = vunpack.c.h.b16 %v2255
    %v2345 = vunpack.c.l.b16 %v2256
    %v2346 = vunpack.c.l.b16 %v2257
    %v2347 = vunpack.c.h.b16 %v2257
    %v2348 = vunpack.c.l.b16 %v2258
    %v2349 = vunpack.c.l.b16 %v2259
    %v2350 = vunpack.c.h.b16 %v2259
    %v2351 = vunpack.c.l.b16 %v2260
    %v2352 = vunpack.c.l.b16 %v2261
    %v2353 = vunpack.c.h.b16 %v2261
    %v2354 = vunpack.c.l.b16 %v2262
    %v2355 = vpack.c.b16 %v2310, %v2307
    %v2356 = vpack.c.b16 %v2311, %v2308
    %v2357 = vpack.c.b16 %v2312, %v2309
    %v2358 = vpack.c.b16 %v2316, %v2313
    %v2359 = vpack.c.b16 %v2317, %v2314
    %v2360 = vpack.c.b16 %v2318, %v2315
    %v2361 = vpack.c.b16 %v2322, %v2319
    %v2362 = vpack.c.b16 %v2323, %v2320
    %v2363 = vpack.c.b16 %v2324, %v2321
    %v2364 = vpack.c.b16 %v2328, %v2325
    %v2365 = vpack.c.b16 %v2329, %v2326
    %v2366 = vpack.c.b16 %v2330, %v2327
    %v2367 = vpack.c.b16 %v2334, %v2331
    %v2368 = vpack.c.b16 %v2335, %v2332
    %v2369 = vpack.c.b16 %v2336, %v2333
    %v2370 = vpack.c.b16 %v2340, %v2337
    %v2371 = vpack.c.b16 %v2341, %v2338
    %v2372 = vpack.c.b16 %v2342, %v2339
    %v2373 = vpack.c.b16 %v2346, %v2343
    %v2374 = vpack.c.b16 %v2347, %v2344
    %v2375 = vpack.c.b16 %v2348, %v2345
    %v2376 = vpack.c.b16 %v2352, %v2349
    %v2377 = vpack.c.b16 %v2353, %v2350
    %v2378 = vpack.c.b16 %v2354, %v2351
    %2403 = vmatprep.subr.bf16.mxu0 %v2356
    %2404 = vmatpush1.bf16.msra.mxu0 %v2355
    %2405 = vmatprep.subr.bf16.mxu0 %v2359
    %2406 = vmatpush1.bf16.msra.mxu0 %v2358
    %2407 = vmatprep.subr.bf16.mxu0 %v2362
    %2408 = vmatpush1.bf16.msra.mxu0 %v2361
    %2409 = vmatprep.subr.bf16.mxu0 %v2365
    %2410 = vmatpush1.bf16.msra.mxu0 %v2364
    %2411 = vmatprep.subr.bf16.mxu0 %v2368
    %2412 = vmatpush1.bf16.msra.mxu0 %v2367
    %2413 = vmatprep.subr.bf16.mxu0 %v2371
    %2414 = vmatpush1.bf16.msra.mxu0 %v2370
    %2415 = vmatprep.subr.bf16.mxu0 %v2374
    %2416 = vmatpush1.bf16.msra.mxu0 %v2373
    %2417 = vmatprep.subr.bf16.mxu0 %v2377
    %2418 = vmatpush1.bf16.msra.mxu0 %v2376
    %2419 = vmatprep.subr.bf16.mxu0 0
    %2420 = vmatpush1.bf16.msra.mxu0 0
    %2421 = vmatprep.subr.bf16.mxu0 0
    %2422 = vmatpush1.bf16.msra.mxu0 0
    %2423 = vmatprep.subr.bf16.mxu0 0
    %2424 = vmatpush1.bf16.msra.mxu0 0
    %2425 = vmatprep.subr.bf16.mxu0 0
    %2426 = vmatpush1.bf16.msra.mxu0 0
    %2427 = vmatprep.subr.bf16.mxu0 0
    %2428 = vmatpush1.bf16.msra.mxu0 0
    %2429 = vmatprep.subr.bf16.mxu0 0
    %2430 = vmatpush1.bf16.msra.mxu0 0
    %2431 = vmatprep.subr.bf16.mxu0 0
    %2432 = vmatpush1.bf16.msra.mxu0 0
    %2433 = vmatprep.subr.bf16.mxu0 0
    %2434 = vmatpush1.bf16.msra.mxu0 0
    %2435 = vmatprep.mubr.bf16.mxu0 0
    %2436 = vmatmul.mubr.bf16.gmra.mrb[0].mxu0 %v2229
    %v2437 = vpop.f32.mrb[0].mxu0
    %v2438 = vadd.f32 %v2266, %v2437
    %v2439 = vpop.f32.mrb[0].mxu0
    %v2440 = vadd.f32 %v2270, %v2439
    %v2441 = vpop.f32.mrb[0].mxu0
    %v2442 = vadd.f32 %v2266, %v2441
    %v2443 = vpop.f32.mrb[0].mxu0
    %v2444 = vadd.f32 %v2270, %v2443
    %2445 = vdwg.mxu0
    %2446 = vmatprep.subr.bf16.mxu0 0
    %2447 = vmatpush1.bf16.msra.mxu0 %v2357
    %2448 = vmatprep.subr.bf16.mxu0 0
    %2449 = vmatpush1.bf16.msra.mxu0 %v2360
    %2450 = vmatprep.subr.bf16.mxu0 0
    %2451 = vmatpush1.bf16.msra.mxu0 %v2363
    %2452 = vmatprep.subr.bf16.mxu0 0
    %2453 = vmatpush1.bf16.msra.mxu0 %v2366
    %2454 = vmatprep.subr.bf16.mxu0 0
    %2455 = vmatpush1.bf16.msra.mxu0 %v2369
    %2456 = vmatprep.subr.bf16.mxu0 0
    %2457 = vmatpush1.bf16.msra.mxu0 %v2372
    %2458 = vmatprep.subr.bf16.mxu0 0
    %2459 = vmatpush1.bf16.msra.mxu0 %v2375
    %2460 = vmatprep.subr.bf16.mxu0 0
    %2461 = vmatpush1.bf16.msra.mxu0 %v2378
    %2462 = vmatprep.subr.bf16.mxu0 0
    %2463 = vmatpush1.bf16.msra.mxu0 0
    %2464 = vmatprep.subr.bf16.mxu0 0
    %2465 = vmatpush1.bf16.msra.mxu0 0
    %2466 = vmatprep.subr.bf16.mxu0 0
    %2467 = vmatpush1.bf16.msra.mxu0 0
    %2468 = vmatprep.subr.bf16.mxu0 0
    %2469 = vmatpush1.bf16.msra.mxu0 0
    %2470 = vmatprep.subr.bf16.mxu0 0
    %2471 = vmatpush1.bf16.msra.mxu0 0
    %2472 = vmatprep.subr.bf16.mxu0 0
    %2473 = vmatpush1.bf16.msra.mxu0 0
    %2474 = vmatprep.subr.bf16.mxu0 0
    %2475 = vmatpush1.bf16.msra.mxu0 0
    %2476 = vmatprep.subr.bf16.mxu0 0
    %2477 = vmatpush1.bf16.msra.mxu0 0
    %2478 = vmatprep.mubr.bf16.mxu0 0
    %2479 = vmatmul.mubr.bf16.gmra.mrb[0].mxu0 %v2229
    %v2480 = vpop.f32.mrb[0].mxu0
    %v2481 = vadd.f32 %v2274, %v2480
    %v2482 = vpop.f32.mrb[0].mxu0
    %v2483 = vpop.f32.mrb[0].mxu0
    %v2484 = vadd.f32 %v2274, %v2483
    %v2485 = vpop.f32.mrb[0].mxu0
    %2486 = vdwg.mxu0
    %2489 = vrot.lane.b32.xlu0 %v2438, 96
    %v2490 = vpop.permute.xlu0 %2489
    %2491 = vrot.lane.b32.xlu0 %v2442, 96
    %v2492 = vpop.permute.xlu0 %2491
    %2493 = vrot.lane.b32.xlu0 %v2438, 64
    %v2494 = vpop.permute.xlu0 %2493
    %2495 = vrot.lane.b32.xlu0 %v2442, 64
    %v2496 = vpop.permute.xlu0 %2495
    %2497 = vrot.lane.b32.xlu0 %v2438, 32
    %v2498 = vpop.permute.xlu0 %2497
    %2499 = vrot.lane.b32.xlu0 %v2442, 32
    %v2500 = vpop.permute.xlu0 %2499
    %2503 = vrot.lane.b32.xlu0 %v2440, 96
    %v2504 = vpop.permute.xlu0 %2503
    %2505 = vrot.lane.b32.xlu0 %v2444, 96
    %v2506 = vpop.permute.xlu0 %2505
    %2507 = vrot.lane.b32.xlu0 %v2440, 64
    %v2508 = vpop.permute.xlu0 %2507
    %2509 = vrot.lane.b32.xlu0 %v2444, 64
    %v2510 = vpop.permute.xlu0 %2509
    %2511 = vrot.lane.b32.xlu0 %v2440, 32
    %v2512 = vpop.permute.xlu0 %2511
    %2513 = vrot.lane.b32.xlu0 %v2444, 32
    %v2514 = vpop.permute.xlu0 %2513
    %2517 = vrot.lane.b32.xlu0 %v2481, 96
    %v2518 = vpop.permute.xlu0 %2517
    %2519 = vrot.lane.b32.xlu0 %v2484, 96
    %v2520 = vpop.permute.xlu0 %2519
    %2523 = vrot.lane.b32.xlu0 %v2481, 64
    %v2524 = vpop.permute.xlu0 %2523
    %2525 = vrot.lane.b32.xlu0 %v2484, 64
    %v2526 = vpop.permute.xlu0 %2525
    %2529 = vrot.lane.b32.xlu0 %v2481, 32
    %v2530 = vpop.permute.xlu0 %2529
    %2531 = vrot.lane.b32.xlu0 %v2484, 32
    %v2532 = vpop.permute.xlu0 %2531
    %v2535 = vsel %vm417, %v2438, 0
    %v2537 = vsel %vm417, %v2440, 0
    %2539 = vmatprep.subr.mxu0 0.0
    %2540 = vmatpush1.xpose.msra.mxu0 %v2537
    %2541 = vmatprep.subr.mxu0 0.0
    %2542 = vmatpush1.xpose.msra.mxu0 0.0
    %2543 = vmatprep.subr.mxu0 0.0
    %2544 = vmatpush1.xpose.msra.mxu0 0.0
    %2545 = vmatprep.subr.mxu0 0.0
    %2546 = vmatpush1.xpose.msra.mxu0 0.0
    %2547 = vmatprep.subr.mxu0 0.0
    %2548 = vmatpush1.xpose.msra.mxu0 0.0
    %2549 = vmatprep.subr.mxu0 0.0
    %2550 = vmatpush1.xpose.msra.mxu0 0.0
    %2551 = vmatprep.subr.mxu0 0.0
    %2552 = vmatpush1.xpose.msra.mxu0 0.0
    %2553 = vmatprep.subr.mxu0 0.0
    %2554 = vmatpush1.xpose.msra.mxu0 0.0
    %2555 = vmatprep.subr.mxu0 0.0
    %2556 = vmatpush1.xpose.msra.mxu0 0.0
    %2557 = vmatprep.subr.mxu0 0.0
    %2558 = vmatpush1.xpose.msra.mxu0 0.0
    %2559 = vmatprep.subr.mxu0 0.0
    %2560 = vmatpush1.xpose.msra.mxu0 0.0
    %2561 = vmatprep.subr.mxu0 0.0
    %2562 = vmatpush1.xpose.msra.mxu0 0.0
    %2563 = vmatprep.subr.mxu0 0.0
    %2564 = vmatpush1.xpose.msra.mxu0 0.0
    %2565 = vmatprep.subr.mxu0 0.0
    %2566 = vmatpush1.xpose.msra.mxu0 0.0
    %2567 = vmatprep.subr.mxu0 0.0
    %2568 = vmatpush1.xpose.msra.mxu0 0.0
    %2569 = vmatprep.subr.mxu0 0.0
    %2570 = vmatpush1.xpose.msra.mxu0 0.0
    %2571 = vmatprep.subr.mxu0 0.0
    %2572 = vmatpush1.xpose.msra.mxu0 0.0
    %2573 = vmatprep.subr.mxu0 0.0
    %2574 = vmatpush1.xpose.msra.mxu0 0.0
    %2575 = vmatprep.subr.mxu0 0.0
    %2576 = vmatpush1.xpose.msra.mxu0 0.0
    %2577 = vmatprep.subr.mxu0 0.0
    %2578 = vmatpush1.xpose.msra.mxu0 0.0
    %2579 = vmatprep.subr.mxu0 0.0
    %2580 = vmatpush1.xpose.msra.mxu0 0.0
    %2581 = vmatprep.subr.mxu0 0.0
    %2582 = vmatpush1.xpose.msra.mxu0 0.0
    %2583 = vmatprep.subr.mxu0 0.0
    %2584 = vmatpush1.xpose.msra.mxu0 0.0
    %2585 = vmatprep.subr.mxu0 0.0
    %2586 = vmatpush1.xpose.msra.mxu0 0.0
    %2587 = vmatprep.subr.mxu0 0.0
    %2588 = vmatpush1.xpose.msra.mxu0 0.0
    %2589 = vmatprep.subr.mxu0 0.0
    %2590 = vmatpush1.xpose.msra.mxu0 0.0
    %2591 = vmatprep.subr.mxu0 0.0
    %2592 = vmatpush1.xpose.msra.mxu0 0.0
    %2593 = vmatprep.subr.mxu0 0.0
    %2594 = vmatpush1.xpose.msra.mxu0 0.0
    %2595 = vmatprep.subr.mxu0 0.0
    %2596 = vmatpush1.xpose.msra.mxu0 0.0
    %2597 = vmatprep.subr.mxu0 0.0
    %2598 = vmatpush1.xpose.msra.mxu0 0.0
    %2599 = vmatprep.subr.mxu0 0.0
    %2600 = vmatpush1.xpose.msra.mxu0 0.0
    %2601 = vmatprep.subr.mxu0 0.0
    %2602 = vmatpush1.xpose.msra.mxu0 0.0
    %2603 = vmatprep.mubr.f32.mxu0 0.0
    %2604 = vmatmul.mubr.f32.gmra.mrb[0].mxu0 %v2535
    %v2605 = vpop.f32.mrb[0].mxu0
    %v2606 = vadd.f32 0.0, %v2605
    %v2607 = vpop.f32.mrb[0].mxu0
    %2608 = vdwg.mxu0
    %v2609 = vsel %vm417, %v2442, 0
    %v2611 = vsel %vm417, %v2444, 0
    %2613 = vmatprep.subr.mxu0 0.0
    %2614 = vmatpush1.xpose.msra.mxu0 %v2611
    %2615 = vmatprep.subr.mxu0 0.0
    %2616 = vmatpush1.xpose.msra.mxu0 0.0
    %2617 = vmatprep.subr.mxu0 0.0
    %2618 = vmatpush1.xpose.msra.mxu0 0.0
    %2619 = vmatprep.subr.mxu0 0.0
    %2620 = vmatpush1.xpose.msra.mxu0 0.0
    %2621 = vmatprep.subr.mxu0 0.0
    %2622 = vmatpush1.xpose.msra.mxu0 0.0
    %2623 = vmatprep.subr.mxu0 0.0
    %2624 = vmatpush1.xpose.msra.mxu0 0.0
    %2625 = vmatprep.subr.mxu0 0.0
    %2626 = vmatpush1.xpose.msra.mxu0 0.0
    %2627 = vmatprep.subr.mxu0 0.0
    %2628 = vmatpush1.xpose.msra.mxu0 0.0
    %2629 = vmatprep.subr.mxu0 0.0
    %2630 = vmatpush1.xpose.msra.mxu0 0.0
    %2631 = vmatprep.subr.mxu0 0.0
    %2632 = vmatpush1.xpose.msra.mxu0 0.0
    %2633 = vmatprep.subr.mxu0 0.0
    %2634 = vmatpush1.xpose.msra.mxu0 0.0
    %2635 = vmatprep.subr.mxu0 0.0
    %2636 = vmatpush1.xpose.msra.mxu0 0.0
    %2637 = vmatprep.subr.mxu0 0.0
    %2638 = vmatpush1.xpose.msra.mxu0 0.0
    %2639 = vmatprep.subr.mxu0 0.0
    %2640 = vmatpush1.xpose.msra.mxu0 0.0
    %2641 = vmatprep.subr.mxu0 0.0
    %2642 = vmatpush1.xpose.msra.mxu0 0.0
    %2643 = vmatprep.subr.mxu0 0.0
    %2644 = vmatpush1.xpose.msra.mxu0 0.0
    %2645 = vmatprep.subr.mxu0 0.0
    %2646 = vmatpush1.xpose.msra.mxu0 0.0
    %2647 = vmatprep.subr.mxu0 0.0
    %2648 = vmatpush1.xpose.msra.mxu0 0.0
    %2649 = vmatprep.subr.mxu0 0.0
    %2650 = vmatpush1.xpose.msra.mxu0 0.0
    %2651 = vmatprep.subr.mxu0 0.0
    %2652 = vmatpush1.xpose.msra.mxu0 0.0
    %2653 = vmatprep.subr.mxu0 0.0
    %2654 = vmatpush1.xpose.msra.mxu0 0.0
    %2655 = vmatprep.subr.mxu0 0.0
    %2656 = vmatpush1.xpose.msra.mxu0 0.0
    %2657 = vmatprep.subr.mxu0 0.0
    %2658 = vmatpush1.xpose.msra.mxu0 0.0
    %2659 = vmatprep.subr.mxu0 0.0
    %2660 = vmatpush1.xpose.msra.mxu0 0.0
    %2661 = vmatprep.subr.mxu0 0.0
    %2662 = vmatpush1.xpose.msra.mxu0 0.0
    %2663 = vmatprep.subr.mxu0 0.0
    %2664 = vmatpush1.xpose.msra.mxu0 0.0
    %2665 = vmatprep.subr.mxu0 0.0
    %2666 = vmatpush1.xpose.msra.mxu0 0.0
    %2667 = vmatprep.subr.mxu0 0.0
    %2668 = vmatpush1.xpose.msra.mxu0 0.0
    %2669 = vmatprep.subr.mxu0 0.0
    %2670 = vmatpush1.xpose.msra.mxu0 0.0
    %2671 = vmatprep.subr.mxu0 0.0
    %2672 = vmatpush1.xpose.msra.mxu0 0.0
    %2673 = vmatprep.subr.mxu0 0.0
    %2674 = vmatpush1.xpose.msra.mxu0 0.0
    %2675 = vmatprep.subr.mxu0 0.0
    %2676 = vmatpush1.xpose.msra.mxu0 0.0
    %2677 = vmatprep.mubr.f32.mxu0 0.0
    %2678 = vmatmul.mubr.f32.gmra.mrb[0].mxu0 %v2609
    %v2679 = vpop.f32.mrb[0].mxu0
    %v2680 = vadd.f32 0.0, %v2679
    %v2681 = vpop.f32.mrb[0].mxu0
    %2682 = vdwg.mxu0
    %v2683 = vsel %vm417, %v2490, 0
    %v2685 = vsel %vm417, %v2504, 0
    %2687 = vmatprep.subr.mxu0 0.0
    %2688 = vmatpush1.xpose.msra.mxu0 %v2685
    %2689 = vmatprep.subr.mxu0 0.0
    %2690 = vmatpush1.xpose.msra.mxu0 0.0
    %2691 = vmatprep.subr.mxu0 0.0
    %2692 = vmatpush1.xpose.msra.mxu0 0.0
    %2693 = vmatprep.subr.mxu0 0.0
    %2694 = vmatpush1.xpose.msra.mxu0 0.0
    %2695 = vmatprep.subr.mxu0 0.0
    %2696 = vmatpush1.xpose.msra.mxu0 0.0
    %2697 = vmatprep.subr.mxu0 0.0
    %2698 = vmatpush1.xpose.msra.mxu0 0.0
    %2699 = vmatprep.subr.mxu0 0.0
    %2700 = vmatpush1.xpose.msra.mxu0 0.0
    %2701 = vmatprep.subr.mxu0 0.0
    %2702 = vmatpush1.xpose.msra.mxu0 0.0
    %2703 = vmatprep.subr.mxu0 0.0
    %2704 = vmatpush1.xpose.msra.mxu0 0.0
    %2705 = vmatprep.subr.mxu0 0.0
    %2706 = vmatpush1.xpose.msra.mxu0 0.0
    %2707 = vmatprep.subr.mxu0 0.0
    %2708 = vmatpush1.xpose.msra.mxu0 0.0
    %2709 = vmatprep.subr.mxu0 0.0
    %2710 = vmatpush1.xpose.msra.mxu0 0.0
    %2711 = vmatprep.subr.mxu0 0.0
    %2712 = vmatpush1.xpose.msra.mxu0 0.0
    %2713 = vmatprep.subr.mxu0 0.0
    %2714 = vmatpush1.xpose.msra.mxu0 0.0
    %2715 = vmatprep.subr.mxu0 0.0
    %2716 = vmatpush1.xpose.msra.mxu0 0.0
    %2717 = vmatprep.subr.mxu0 0.0
    %2718 = vmatpush1.xpose.msra.mxu0 0.0
    %2719 = vmatprep.subr.mxu0 0.0
    %2720 = vmatpush1.xpose.msra.mxu0 0.0
    %2721 = vmatprep.subr.mxu0 0.0
    %2722 = vmatpush1.xpose.msra.mxu0 0.0
    %2723 = vmatprep.subr.mxu0 0.0
    %2724 = vmatpush1.xpose.msra.mxu0 0.0
    %2725 = vmatprep.subr.mxu0 0.0
    %2726 = vmatpush1.xpose.msra.mxu0 0.0
    %2727 = vmatprep.subr.mxu0 0.0
    %2728 = vmatpush1.xpose.msra.mxu0 0.0
    %2729 = vmatprep.subr.mxu0 0.0
    %2730 = vmatpush1.xpose.msra.mxu0 0.0
    %2731 = vmatprep.subr.mxu0 0.0
    %2732 = vmatpush1.xpose.msra.mxu0 0.0
    %2733 = vmatprep.subr.mxu0 0.0
    %2734 = vmatpush1.xpose.msra.mxu0 0.0
    %2735 = vmatprep.subr.mxu0 0.0
    %2736 = vmatpush1.xpose.msra.mxu0 0.0
    %2737 = vmatprep.subr.mxu0 0.0
    %2738 = vmatpush1.xpose.msra.mxu0 0.0
    %2739 = vmatprep.subr.mxu0 0.0
    %2740 = vmatpush1.xpose.msra.mxu0 0.0
    %2741 = vmatprep.subr.mxu0 0.0
    %2742 = vmatpush1.xpose.msra.mxu0 0.0
    %2743 = vmatprep.subr.mxu0 0.0
    %2744 = vmatpush1.xpose.msra.mxu0 0.0
    %2745 = vmatprep.subr.mxu0 0.0
    %2746 = vmatpush1.xpose.msra.mxu0 0.0
    %2747 = vmatprep.subr.mxu0 0.0
    %2748 = vmatpush1.xpose.msra.mxu0 0.0
    %2749 = vmatprep.subr.mxu0 0.0
    %2750 = vmatpush1.xpose.msra.mxu0 0.0
    %2751 = vmatprep.mubr.f32.mxu0 0.0
    %2752 = vmatmul.mubr.f32.gmra.mrb[0].mxu0 %v2683
    %v2753 = vpop.f32.mrb[0].mxu0
    %v2754 = vadd.f32 0.0, %v2753
    %v2755 = vpop.f32.mrb[0].mxu0
    %2756 = vdwg.mxu0
    %v2757 = vsel %vm417, %v2492, 0
    %v2759 = vsel %vm417, %v2506, 0
    %2761 = vmatprep.subr.mxu0 0.0
    %2762 = vmatpush1.xpose.msra.mxu0 %v2759
    %2763 = vmatprep.subr.mxu0 0.0
    %2764 = vmatpush1.xpose.msra.mxu0 0.0
    %2765 = vmatprep.subr.mxu0 0.0
    %2766 = vmatpush1.xpose.msra.mxu0 0.0
    %2767 = vmatprep.subr.mxu0 0.0
    %2768 = vmatpush1.xpose.msra.mxu0 0.0
    %2769 = vmatprep.subr.mxu0 0.0
    %2770 = vmatpush1.xpose.msra.mxu0 0.0
    %2771 = vmatprep.subr.mxu0 0.0
    %2772 = vmatpush1.xpose.msra.mxu0 0.0
    %2773 = vmatprep.subr.mxu0 0.0
    %2774 = vmatpush1.xpose.msra.mxu0 0.0
    %2775 = vmatprep.subr.mxu0 0.0
    %2776 = vmatpush1.xpose.msra.mxu0 0.0
    %2777 = vmatprep.subr.mxu0 0.0
    %2778 = vmatpush1.xpose.msra.mxu0 0.0
    %2779 = vmatprep.subr.mxu0 0.0
    %2780 = vmatpush1.xpose.msra.mxu0 0.0
    %2781 = vmatprep.subr.mxu0 0.0
    %2782 = vmatpush1.xpose.msra.mxu0 0.0
    %2783 = vmatprep.subr.mxu0 0.0
    %2784 = vmatpush1.xpose.msra.mxu0 0.0
    %2785 = vmatprep.subr.mxu0 0.0
    %2786 = vmatpush1.xpose.msra.mxu0 0.0
    %2787 = vmatprep.subr.mxu0 0.0
    %2788 = vmatpush1.xpose.msra.mxu0 0.0
    %2789 = vmatprep.subr.mxu0 0.0
    %2790 = vmatpush1.xpose.msra.mxu0 0.0
    %2791 = vmatprep.subr.mxu0 0.0
    %2792 = vmatpush1.xpose.msra.mxu0 0.0
    %2793 = vmatprep.subr.mxu0 0.0
    %2794 = vmatpush1.xpose.msra.mxu0 0.0
    %2795 = vmatprep.subr.mxu0 0.0
    %2796 = vmatpush1.xpose.msra.mxu0 0.0
    %2797 = vmatprep.subr.mxu0 0.0
    %2798 = vmatpush1.xpose.msra.mxu0 0.0
    %2799 = vmatprep.subr.mxu0 0.0
    %2800 = vmatpush1.xpose.msra.mxu0 0.0
    %2801 = vmatprep.subr.mxu0 0.0
    %2802 = vmatpush1.xpose.msra.mxu0 0.0
    %2803 = vmatprep.subr.mxu0 0.0
    %2804 = vmatpush1.xpose.msra.mxu0 0.0
    %2805 = vmatprep.subr.mxu0 0.0
    %2806 = vmatpush1.xpose.msra.mxu0 0.0
    %2807 = vmatprep.subr.mxu0 0.0
    %2808 = vmatpush1.xpose.msra.mxu0 0.0
    %2809 = vmatprep.subr.mxu0 0.0
    %2810 = vmatpush1.xpose.msra.mxu0 0.0
    %2811 = vmatprep.subr.mxu0 0.0
    %2812 = vmatpush1.xpose.msra.mxu0 0.0
    %2813 = vmatprep.subr.mxu0 0.0
    %2814 = vmatpush1.xpose.msra.mxu0 0.0
    %2815 = vmatprep.subr.mxu0 0.0
    %2816 = vmatpush1.xpose.msra.mxu0 0.0
    %2817 = vmatprep.subr.mxu0 0.0
    %2818 = vmatpush1.xpose.msra.mxu0 0.0
    %2819 = vmatprep.subr.mxu0 0.0
    %2820 = vmatpush1.xpose.msra.mxu0 0.0
    %2821 = vmatprep.subr.mxu0 0.0
    %2822 = vmatpush1.xpose.msra.mxu0 0.0
    %2823 = vmatprep.subr.mxu0 0.0
    %2824 = vmatpush1.xpose.msra.mxu0 0.0
    %2825 = vmatprep.mubr.f32.mxu0 0.0
    %2826 = vmatmul.mubr.f32.gmra.mrb[0].mxu0 %v2757
    %v2827 = vpop.f32.mrb[0].mxu0
    %v2828 = vadd.f32 0.0, %v2827
    %v2829 = vpop.f32.mrb[0].mxu0
    %2830 = vdwg.mxu0
    %v2831 = vsel %vm417, %v2494, 0
    %v2833 = vsel %vm417, %v2508, 0
    %2835 = vmatprep.subr.mxu0 0.0
    %2836 = vmatpush1.xpose.msra.mxu0 %v2833
    %2837 = vmatprep.subr.mxu0 0.0
    %2838 = vmatpush1.xpose.msra.mxu0 0.0
    %2839 = vmatprep.subr.mxu0 0.0
    %2840 = vmatpush1.xpose.msra.mxu0 0.0
    %2841 = vmatprep.subr.mxu0 0.0
    %2842 = vmatpush1.xpose.msra.mxu0 0.0
    %2843 = vmatprep.subr.mxu0 0.0
    %2844 = vmatpush1.xpose.msra.mxu0 0.0
    %2845 = vmatprep.subr.mxu0 0.0
    %2846 = vmatpush1.xpose.msra.mxu0 0.0
    %2847 = vmatprep.subr.mxu0 0.0
    %2848 = vmatpush1.xpose.msra.mxu0 0.0
    %2849 = vmatprep.subr.mxu0 0.0
    %2850 = vmatpush1.xpose.msra.mxu0 0.0
    %2851 = vmatprep.subr.mxu0 0.0
    %2852 = vmatpush1.xpose.msra.mxu0 0.0
    %2853 = vmatprep.subr.mxu0 0.0
    %2854 = vmatpush1.xpose.msra.mxu0 0.0
    %2855 = vmatprep.subr.mxu0 0.0
    %2856 = vmatpush1.xpose.msra.mxu0 0.0
    %2857 = vmatprep.subr.mxu0 0.0
    %2858 = vmatpush1.xpose.msra.mxu0 0.0
    %2859 = vmatprep.subr.mxu0 0.0
    %2860 = vmatpush1.xpose.msra.mxu0 0.0
    %2861 = vmatprep.subr.mxu0 0.0
    %2862 = vmatpush1.xpose.msra.mxu0 0.0
    %2863 = vmatprep.subr.mxu0 0.0
    %2864 = vmatpush1.xpose.msra.mxu0 0.0
    %2865 = vmatprep.subr.mxu0 0.0
    %2866 = vmatpush1.xpose.msra.mxu0 0.0
    %2867 = vmatprep.subr.mxu0 0.0
    %2868 = vmatpush1.xpose.msra.mxu0 0.0
    %2869 = vmatprep.subr.mxu0 0.0
    %2870 = vmatpush1.xpose.msra.mxu0 0.0
    %2871 = vmatprep.subr.mxu0 0.0
    %2872 = vmatpush1.xpose.msra.mxu0 0.0
    %2873 = vmatprep.subr.mxu0 0.0
    %2874 = vmatpush1.xpose.msra.mxu0 0.0
    %2875 = vmatprep.subr.mxu0 0.0
    %2876 = vmatpush1.xpose.msra.mxu0 0.0
    %2877 = vmatprep.subr.mxu0 0.0
    %2878 = vmatpush1.xpose.msra.mxu0 0.0
    %2879 = vmatprep.subr.mxu0 0.0
    %2880 = vmatpush1.xpose.msra.mxu0 0.0
    %2881 = vmatprep.subr.mxu0 0.0
    %2882 = vmatpush1.xpose.msra.mxu0 0.0
    %2883 = vmatprep.subr.mxu0 0.0
    %2884 = vmatpush1.xpose.msra.mxu0 0.0
    %2885 = vmatprep.subr.mxu0 0.0
    %2886 = vmatpush1.xpose.msra.mxu0 0.0
    %2887 = vmatprep.subr.mxu0 0.0
    %2888 = vmatpush1.xpose.msra.mxu0 0.0
    %2889 = vmatprep.subr.mxu0 0.0
    %2890 = vmatpush1.xpose.msra.mxu0 0.0
    %2891 = vmatprep.subr.mxu0 0.0
    %2892 = vmatpush1.xpose.msra.mxu0 0.0
    %2893 = vmatprep.subr.mxu0 0.0
    %2894 = vmatpush1.xpose.msra.mxu0 0.0
    %2895 = vmatprep.subr.mxu0 0.0
    %2896 = vmatpush1.xpose.msra.mxu0 0.0
    %2897 = vmatprep.subr.mxu0 0.0
    %2898 = vmatpush1.xpose.msra.mxu0 0.0
    %2899 = vmatprep.mubr.f32.mxu0 0.0
    %2900 = vmatmul.mubr.f32.gmra.mrb[0].mxu0 %v2831
    %v2901 = vpop.f32.mrb[0].mxu0
    %v2902 = vadd.f32 0.0, %v2901
    %v2903 = vpop.f32.mrb[0].mxu0
    %2904 = vdwg.mxu0
    %v2905 = vsel %vm417, %v2496, 0
    %v2907 = vsel %vm417, %v2510, 0
    %2909 = vmatprep.subr.mxu0 0.0
    %2910 = vmatpush1.xpose.msra.mxu0 %v2907
    %2911 = vmatprep.subr.mxu0 0.0
    %2912 = vmatpush1.xpose.msra.mxu0 0.0
    %2913 = vmatprep.subr.mxu0 0.0
    %2914 = vmatpush1.xpose.msra.mxu0 0.0
    %2915 = vmatprep.subr.mxu0 0.0
    %2916 = vmatpush1.xpose.msra.mxu0 0.0
    %2917 = vmatprep.subr.mxu0 0.0
    %2918 = vmatpush1.xpose.msra.mxu0 0.0
    %2919 = vmatprep.subr.mxu0 0.0
    %2920 = vmatpush1.xpose.msra.mxu0 0.0
    %2921 = vmatprep.subr.mxu0 0.0
    %2922 = vmatpush1.xpose.msra.mxu0 0.0
    %2923 = vmatprep.subr.mxu0 0.0
    %2924 = vmatpush1.xpose.msra.mxu0 0.0
    %2925 = vmatprep.subr.mxu0 0.0
    %2926 = vmatpush1.xpose.msra.mxu0 0.0
    %2927 = vmatprep.subr.mxu0 0.0
    %2928 = vmatpush1.xpose.msra.mxu0 0.0
    %2929 = vmatprep.subr.mxu0 0.0
    %2930 = vmatpush1.xpose.msra.mxu0 0.0
    %2931 = vmatprep.subr.mxu0 0.0
    %2932 = vmatpush1.xpose.msra.mxu0 0.0
    %2933 = vmatprep.subr.mxu0 0.0
    %2934 = vmatpush1.xpose.msra.mxu0 0.0
    %2935 = vmatprep.subr.mxu0 0.0
    %2936 = vmatpush1.xpose.msra.mxu0 0.0
    %2937 = vmatprep.subr.mxu0 0.0
    %2938 = vmatpush1.xpose.msra.mxu0 0.0
    %2939 = vmatprep.subr.mxu0 0.0
    %2940 = vmatpush1.xpose.msra.mxu0 0.0
    %2941 = vmatprep.subr.mxu0 0.0
    %2942 = vmatpush1.xpose.msra.mxu0 0.0
    %2943 = vmatprep.subr.mxu0 0.0
    %2944 = vmatpush1.xpose.msra.mxu0 0.0
    %2945 = vmatprep.subr.mxu0 0.0
    %2946 = vmatpush1.xpose.msra.mxu0 0.0
    %2947 = vmatprep.subr.mxu0 0.0
    %2948 = vmatpush1.xpose.msra.mxu0 0.0
    %2949 = vmatprep.subr.mxu0 0.0
    %2950 = vmatpush1.xpose.msra.mxu0 0.0
    %2951 = vmatprep.subr.mxu0 0.0
    %2952 = vmatpush1.xpose.msra.mxu0 0.0
    %2953 = vmatprep.subr.mxu0 0.0
    %2954 = vmatpush1.xpose.msra.mxu0 0.0
    %2955 = vmatprep.subr.mxu0 0.0
    %2956 = vmatpush1.xpose.msra.mxu0 0.0
    %2957 = vmatprep.subr.mxu0 0.0
    %2958 = vmatpush1.xpose.msra.mxu0 0.0
    %2959 = vmatprep.subr.mxu0 0.0
    %2960 = vmatpush1.xpose.msra.mxu0 0.0
    %2961 = vmatprep.subr.mxu0 0.0
    %2962 = vmatpush1.xpose.msra.mxu0 0.0
    %2963 = vmatprep.subr.mxu0 0.0
    %2964 = vmatpush1.xpose.msra.mxu0 0.0
    %2965 = vmatprep.subr.mxu0 0.0
    %2966 = vmatpush1.xpose.msra.mxu0 0.0
    %2967 = vmatprep.subr.mxu0 0.0
    %2968 = vmatpush1.xpose.msra.mxu0 0.0
    %2969 = vmatprep.subr.mxu0 0.0
    %2970 = vmatpush1.xpose.msra.mxu0 0.0
    %2971 = vmatprep.subr.mxu0 0.0
    %2972 = vmatpush1.xpose.msra.mxu0 0.0
    %2973 = vmatprep.mubr.f32.mxu0 0.0
    %2974 = vmatmul.mubr.f32.gmra.mrb[0].mxu0 %v2905
    %v2975 = vpop.f32.mrb[0].mxu0
    %v2976 = vadd.f32 0.0, %v2975
    %v2977 = vpop.f32.mrb[0].mxu0
    %2978 = vdwg.mxu0
    %v2979 = vsel %vm417, %v2498, 0
    %v2981 = vsel %vm417, %v2512, 0
    %2983 = vmatprep.subr.mxu0 0.0
    %2984 = vmatpush1.xpose.msra.mxu0 %v2981
    %2985 = vmatprep.subr.mxu0 0.0
    %2986 = vmatpush1.xpose.msra.mxu0 0.0
    %2987 = vmatprep.subr.mxu0 0.0
    %2988 = vmatpush1.xpose.msra.mxu0 0.0
    %2989 = vmatprep.subr.mxu0 0.0
    %2990 = vmatpush1.xpose.msra.mxu0 0.0
    %2991 = vmatprep.subr.mxu0 0.0
    %2992 = vmatpush1.xpose.msra.mxu0 0.0
    %2993 = vmatprep.subr.mxu0 0.0
    %2994 = vmatpush1.xpose.msra.mxu0 0.0
    %2995 = vmatprep.subr.mxu0 0.0
    %2996 = vmatpush1.xpose.msra.mxu0 0.0
    %2997 = vmatprep.subr.mxu0 0.0
    %2998 = vmatpush1.xpose.msra.mxu0 0.0
    %2999 = vmatprep.subr.mxu0 0.0
    %3000 = vmatpush1.xpose.msra.mxu0 0.0
    %3001 = vmatprep.subr.mxu0 0.0
    %3002 = vmatpush1.xpose.msra.mxu0 0.0
    %3003 = vmatprep.subr.mxu0 0.0
    %3004 = vmatpush1.xpose.msra.mxu0 0.0
    %3005 = vmatprep.subr.mxu0 0.0
    %3006 = vmatpush1.xpose.msra.mxu0 0.0
    %3007 = vmatprep.subr.mxu0 0.0
    %3008 = vmatpush1.xpose.msra.mxu0 0.0
    %3009 = vmatprep.subr.mxu0 0.0
    %3010 = vmatpush1.xpose.msra.mxu0 0.0
    %3011 = vmatprep.subr.mxu0 0.0
    %3012 = vmatpush1.xpose.msra.mxu0 0.0
    %3013 = vmatprep.subr.mxu0 0.0
    %3014 = vmatpush1.xpose.msra.mxu0 0.0
    %3015 = vmatprep.subr.mxu0 0.0
    %3016 = vmatpush1.xpose.msra.mxu0 0.0
    %3017 = vmatprep.subr.mxu0 0.0
    %3018 = vmatpush1.xpose.msra.mxu0 0.0
    %3019 = vmatprep.subr.mxu0 0.0
    %3020 = vmatpush1.xpose.msra.mxu0 0.0
    %3021 = vmatprep.subr.mxu0 0.0
    %3022 = vmatpush1.xpose.msra.mxu0 0.0
    %3023 = vmatprep.subr.mxu0 0.0
    %3024 = vmatpush1.xpose.msra.mxu0 0.0
    %3025 = vmatprep.subr.mxu0 0.0
    %3026 = vmatpush1.xpose.msra.mxu0 0.0
    %3027 = vmatprep.subr.mxu0 0.0
    %3028 = vmatpush1.xpose.msra.mxu0 0.0
    %3029 = vmatprep.subr.mxu0 0.0
    %3030 = vmatpush1.xpose.msra.mxu0 0.0
    %3031 = vmatprep.subr.mxu0 0.0
    %3032 = vmatpush1.xpose.msra.mxu0 0.0
    %3033 = vmatprep.subr.mxu0 0.0
    %3034 = vmatpush1.xpose.msra.mxu0 0.0
    %3035 = vmatprep.subr.mxu0 0.0
    %3036 = vmatpush1.xpose.msra.mxu0 0.0
    %3037 = vmatprep.subr.mxu0 0.0
    %3038 = vmatpush1.xpose.msra.mxu0 0.0
    %3039 = vmatprep.subr.mxu0 0.0
    %3040 = vmatpush1.xpose.msra.mxu0 0.0
    %3041 = vmatprep.subr.mxu0 0.0
    %3042 = vmatpush1.xpose.msra.mxu0 0.0
    %3043 = vmatprep.subr.mxu0 0.0
    %3044 = vmatpush1.xpose.msra.mxu0 0.0
    %3045 = vmatprep.subr.mxu0 0.0
    %3046 = vmatpush1.xpose.msra.mxu0 0.0
    %3047 = vmatprep.mubr.f32.mxu0 0.0
    %3048 = vmatmul.mubr.f32.gmra.mrb[0].mxu0 %v2979
    %v3049 = vpop.f32.mrb[0].mxu0
    %v3050 = vadd.f32 0.0, %v3049
    %v3051 = vpop.f32.mrb[0].mxu0
    %3052 = vdwg.mxu0
    %v3053 = vsel %vm417, %v2500, 0
    %v3055 = vsel %vm417, %v2514, 0
    %3057 = vmatprep.subr.mxu0 0.0
    %3058 = vmatpush1.xpose.msra.mxu0 %v3055
    %3059 = vmatprep.subr.mxu0 0.0
    %3060 = vmatpush1.xpose.msra.mxu0 0.0
    %3061 = vmatprep.subr.mxu0 0.0
    %3062 = vmatpush1.xpose.msra.mxu0 0.0
    %3063 = vmatprep.subr.mxu0 0.0
    %3064 = vmatpush1.xpose.msra.mxu0 0.0
    %3065 = vmatprep.subr.mxu0 0.0
    %3066 = vmatpush1.xpose.msra.mxu0 0.0
    %3067 = vmatprep.subr.mxu0 0.0
    %3068 = vmatpush1.xpose.msra.mxu0 0.0
    %3069 = vmatprep.subr.mxu0 0.0
    %3070 = vmatpush1.xpose.msra.mxu0 0.0
    %3071 = vmatprep.subr.mxu0 0.0
    %3072 = vmatpush1.xpose.msra.mxu0 0.0
    %3073 = vmatprep.subr.mxu0 0.0
    %3074 = vmatpush1.xpose.msra.mxu0 0.0
    %3075 = vmatprep.subr.mxu0 0.0
    %3076 = vmatpush1.xpose.msra.mxu0 0.0
    %3077 = vmatprep.subr.mxu0 0.0
    %3078 = vmatpush1.xpose.msra.mxu0 0.0
    %3079 = vmatprep.subr.mxu0 0.0
    %3080 = vmatpush1.xpose.msra.mxu0 0.0
    %3081 = vmatprep.subr.mxu0 0.0
    %3082 = vmatpush1.xpose.msra.mxu0 0.0
    %3083 = vmatprep.subr.mxu0 0.0
    %3084 = vmatpush1.xpose.msra.mxu0 0.0
    %3085 = vmatprep.subr.mxu0 0.0
    %3086 = vmatpush1.xpose.msra.mxu0 0.0
    %3087 = vmatprep.subr.mxu0 0.0
    %3088 = vmatpush1.xpose.msra.mxu0 0.0
    %3089 = vmatprep.subr.mxu0 0.0
    %3090 = vmatpush1.xpose.msra.mxu0 0.0
    %3091 = vmatprep.subr.mxu0 0.0
    %3092 = vmatpush1.xpose.msra.mxu0 0.0
    %3093 = vmatprep.subr.mxu0 0.0
    %3094 = vmatpush1.xpose.msra.mxu0 0.0
    %3095 = vmatprep.subr.mxu0 0.0
    %3096 = vmatpush1.xpose.msra.mxu0 0.0
    %3097 = vmatprep.subr.mxu0 0.0
    %3098 = vmatpush1.xpose.msra.mxu0 0.0
    %3099 = vmatprep.subr.mxu0 0.0
    %3100 = vmatpush1.xpose.msra.mxu0 0.0
    %3101 = vmatprep.subr.mxu0 0.0
    %3102 = vmatpush1.xpose.msra.mxu0 0.0
    %3103 = vmatprep.subr.mxu0 0.0
    %3104 = vmatpush1.xpose.msra.mxu0 0.0
    %3105 = vmatprep.subr.mxu0 0.0
    %3106 = vmatpush1.xpose.msra.mxu0 0.0
    %3107 = vmatprep.subr.mxu0 0.0
    %3108 = vmatpush1.xpose.msra.mxu0 0.0
    %3109 = vmatprep.subr.mxu0 0.0
    %3110 = vmatpush1.xpose.msra.mxu0 0.0
    %3111 = vmatprep.subr.mxu0 0.0
    %3112 = vmatpush1.xpose.msra.mxu0 0.0
    %3113 = vmatprep.subr.mxu0 0.0
    %3114 = vmatpush1.xpose.msra.mxu0 0.0
    %3115 = vmatprep.subr.mxu0 0.0
    %3116 = vmatpush1.xpose.msra.mxu0 0.0
    %3117 = vmatprep.subr.mxu0 0.0
    %3118 = vmatpush1.xpose.msra.mxu0 0.0
    %3119 = vmatprep.subr.mxu0 0.0
    %3120 = vmatpush1.xpose.msra.mxu0 0.0
    %3121 = vmatprep.mubr.f32.mxu0 0.0
    %3122 = vmatmul.mubr.f32.gmra.mrb[0].mxu0 %v3053
    %v3123 = vpop.f32.mrb[0].mxu0
    %v3124 = vadd.f32 0.0, %v3123
    %v3125 = vpop.f32.mrb[0].mxu0
    %3126 = vdwg.mxu0
    %v3127 = vsel %vm1010, %v2606, -inf
    %3128 = vmax.xlane.f32.xlu0 %v3127
    %v3129 = vpop.xlane.xlu0 %3128
    %v3130 = vsel %vm1010, %v2680, -inf
    %3131 = vmax.xlane.f32.xlu0 %v3130
    %v3132 = vpop.xlane.xlu0 %3131
    %v3133 = vsel %vm1010, %v2754, -inf
    %3134 = vmax.xlane.f32.xlu0 %v3133
    %v3135 = vpop.xlane.xlu0 %3134
    %v3136 = vsel %vm1010, %v2828, -inf
    %3137 = vmax.xlane.f32.xlu0 %v3136
    %v3138 = vpop.xlane.xlu0 %3137
    %v3139 = vsel %vm1010, %v2902, -inf
    %3140 = vmax.xlane.f32.xlu0 %v3139
    %v3141 = vpop.xlane.xlu0 %3140
    %v3142 = vsel %vm1010, %v2976, -inf
    %3143 = vmax.xlane.f32.xlu0 %v3142
    %v3144 = vpop.xlane.xlu0 %3143
    %v3145 = vsel %vm1010, %v3050, -inf
    %3146 = vmax.xlane.f32.xlu0 %v3145
    %v3147 = vpop.xlane.xlu0 %3146
    %v3148 = vsel %vm1010, %v3124, -inf
    %3149 = vmax.xlane.f32.xlu0 %v3148
    %v3150 = vpop.xlane.xlu0 %3149
    %v3151 = vsub.f32 %v2606, %v3129
    %v3152 = vsub.f32 %v2680, %v3132
    %v3153 = vsub.f32 %v2754, %v3135
    %v3154 = vsub.f32 %v2828, %v3138
    %v3155 = vsub.f32 %v2902, %v3141
    %v3156 = vsub.f32 %v2976, %v3144
    %v3157 = vsub.f32 %v3050, %v3147
    %v3158 = vsub.f32 %v3124, %v3150
    %v3159 = vmul.f32 %v3151, 1.442695
    %v3160 = vpow.pop %v3159
    %v3161 = vmul.f32 %v3152, 1.442695
    %v3162 = vpow.pop %v3161
    %v3163 = vmul.f32 %v3153, 1.442695
    %v3164 = vpow.pop %v3163
    %v3165 = vmul.f32 %v3154, 1.442695
    %v3166 = vpow.pop %v3165
    %v3167 = vmul.f32 %v3155, 1.442695
    %v3168 = vpow.pop %v3167
    %v3169 = vmul.f32 %v3156, 1.442695
    %v3170 = vpow.pop %v3169
    %v3171 = vmul.f32 %v3157, 1.442695
    %v3172 = vpow.pop %v3171
    %v3173 = vmul.f32 %v3158, 1.442695
    %v3174 = vpow.pop %v3173
    %v3175 = vsel %vm1010, %v3160, 0.0
    %3176 = vadd.xlane.f32.xlu0 %v3175
    %v3177 = vpop.xlane.xlu0 %3176
    %v3178 = vsel %vm1010, %v3162, 0.0
    %3179 = vadd.xlane.f32.xlu0 %v3178
    %v3180 = vpop.xlane.xlu0 %3179
    %v3181 = vsel %vm1010, %v3164, 0.0
    %3182 = vadd.xlane.f32.xlu0 %v3181
    %v3183 = vpop.xlane.xlu0 %3182
    %v3184 = vsel %vm1010, %v3166, 0.0
    %3185 = vadd.xlane.f32.xlu0 %v3184
    %v3186 = vpop.xlane.xlu0 %3185
    %v3187 = vsel %vm1010, %v3168, 0.0
    %3188 = vadd.xlane.f32.xlu0 %v3187
    %v3189 = vpop.xlane.xlu0 %3188
    %v3190 = vsel %vm1010, %v3170, 0.0
    %3191 = vadd.xlane.f32.xlu0 %v3190
    %v3192 = vpop.xlane.xlu0 %3191
    %v3193 = vsel %vm1010, %v3172, 0.0
    %3194 = vadd.xlane.f32.xlu0 %v3193
    %v3195 = vpop.xlane.xlu0 %3194
    %v3196 = vsel %vm1010, %v3174, 0.0
    %3197 = vadd.xlane.f32.xlu0 %v3196
    %v3198 = vpop.xlane.xlu0 %3197
    %v3199 = vrcp.pop %v3177
    %v3200 = vrcp.pop %v3180
    %v3201 = vrcp.pop %v3183
    %v3202 = vrcp.pop %v3186
    %v3203 = vrcp.pop %v3189
    %v3204 = vrcp.pop %v3192
    %v3205 = vrcp.pop %v3195
    %v3206 = vrcp.pop %v3198
    %v3207 = vmul.f32 %v3160, %v3199
    %v3208 = vmul.f32 %v3162, %v3200
    %v3209 = vmul.f32 %v3164, %v3201
    %v3210 = vmul.f32 %v3166, %v3202
    %v3211 = vmul.f32 %v3168, %v3203
    %v3212 = vmul.f32 %v3170, %v3204
    %v3213 = vmul.f32 %v3172, %v3205
    %v3214 = vmul.f32 %v3174, %v3206
    %v3216 = vsel %vm1010, %v3207, 0
    %3218 = vmatprep.subr.mxu0 0.0
    %3219 = vmatpush1.msra.mxu0 %v2481
    %3220 = vmatprep.subr.mxu0 0.0
    %3221 = vmatpush1.msra.mxu0 0.0
    %3222 = vmatprep.subr.mxu0 0.0
    %3223 = vmatpush1.msra.mxu0 0.0
    %3224 = vmatprep.subr.mxu0 0.0
    %3225 = vmatpush1.msra.mxu0 0.0
    %3226 = vmatprep.subr.mxu0 0.0
    %3227 = vmatpush1.msra.mxu0 0.0
    %3228 = vmatprep.subr.mxu0 0.0
    %3229 = vmatpush1.msra.mxu0 0.0
    %3230 = vmatprep.subr.mxu0 0.0
    %3231 = vmatpush1.msra.mxu0 0.0
    %3232 = vmatprep.subr.mxu0 0.0
    %3233 = vmatpush1.msra.mxu0 0.0
    %3234 = vmatprep.subr.mxu0 0.0
    %3235 = vmatpush1.msra.mxu0 0.0
    %3236 = vmatprep.subr.mxu0 0.0
    %3237 = vmatpush1.msra.mxu0 0.0
    %3238 = vmatprep.subr.mxu0 0.0
    %3239 = vmatpush1.msra.mxu0 0.0
    %3240 = vmatprep.subr.mxu0 0.0
    %3241 = vmatpush1.msra.mxu0 0.0
    %3242 = vmatprep.subr.mxu0 0.0
    %3243 = vmatpush1.msra.mxu0 0.0
    %3244 = vmatprep.subr.mxu0 0.0
    %3245 = vmatpush1.msra.mxu0 0.0
    %3246 = vmatprep.subr.mxu0 0.0
    %3247 = vmatpush1.msra.mxu0 0.0
    %3248 = vmatprep.subr.mxu0 0.0
    %3249 = vmatpush1.msra.mxu0 0.0
    %3250 = vmatprep.subr.mxu0 0.0
    %3251 = vmatpush1.msra.mxu0 0.0
    %3252 = vmatprep.subr.mxu0 0.0
    %3253 = vmatpush1.msra.mxu0 0.0
    %3254 = vmatprep.subr.mxu0 0.0
    %3255 = vmatpush1.msra.mxu0 0.0
    %3256 = vmatprep.subr.mxu0 0.0
    %3257 = vmatpush1.msra.mxu0 0.0
    %3258 = vmatprep.subr.mxu0 0.0
    %3259 = vmatpush1.msra.mxu0 0.0
    %3260 = vmatprep.subr.mxu0 0.0
    %3261 = vmatpush1.msra.mxu0 0.0
    %3262 = vmatprep.subr.mxu0 0.0
    %3263 = vmatpush1.msra.mxu0 0.0
    %3264 = vmatprep.subr.mxu0 0.0
    %3265 = vmatpush1.msra.mxu0 0.0
    %3266 = vmatprep.subr.mxu0 0.0
    %3267 = vmatpush1.msra.mxu0 0.0
    %3268 = vmatprep.subr.mxu0 0.0
    %3269 = vmatpush1.msra.mxu0 0.0
    %3270 = vmatprep.subr.mxu0 0.0
    %3271 = vmatpush1.msra.mxu0 0.0
    %3272 = vmatprep.subr.mxu0 0.0
    %3273 = vmatpush1.msra.mxu0 0.0
    %3274 = vmatprep.subr.mxu0 0.0
    %3275 = vmatpush1.msra.mxu0 0.0
    %3276 = vmatprep.subr.mxu0 0.0
    %3277 = vmatpush1.msra.mxu0 0.0
    %3278 = vmatprep.subr.mxu0 0.0
    %3279 = vmatpush1.msra.mxu0 0.0
    %3280 = vmatprep.subr.mxu0 0.0
    %3281 = vmatpush1.msra.mxu0 0.0
    %3282 = vmatprep.mubr.f32.mxu0 0.0
    %3283 = vmatmul.mubr.f32.gmra.mrb[0].mxu0 %v3216
    %v3284 = vpop.f32.mrb[0].mxu0
    %v3285 = vadd.f32 0.0, %v3284
    %v3286 = vpop.f32.mrb[0].mxu0
    %3287 = vdwg.mxu0
    %v3289 = vsel %vm1010, %v3208, 0
    %3291 = vmatprep.subr.mxu0 0.0
    %3292 = vmatpush1.msra.mxu0 %v2484
    %3293 = vmatprep.subr.mxu0 0.0
    %3294 = vmatpush1.msra.mxu0 0.0
    %3295 = vmatprep.subr.mxu0 0.0
    %3296 = vmatpush1.msra.mxu0 0.0
    %3297 = vmatprep.subr.mxu0 0.0
    %3298 = vmatpush1.msra.mxu0 0.0
    %3299 = vmatprep.subr.mxu0 0.0
    %3300 = vmatpush1.msra.mxu0 0.0
    %3301 = vmatprep.subr.mxu0 0.0
    %3302 = vmatpush1.msra.mxu0 0.0
    %3303 = vmatprep.subr.mxu0 0.0
    %3304 = vmatpush1.msra.mxu0 0.0
    %3305 = vmatprep.subr.mxu0 0.0
    %3306 = vmatpush1.msra.mxu0 0.0
    %3307 = vmatprep.subr.mxu0 0.0
    %3308 = vmatpush1.msra.mxu0 0.0
    %3309 = vmatprep.subr.mxu0 0.0
    %3310 = vmatpush1.msra.mxu0 0.0
    %3311 = vmatprep.subr.mxu0 0.0
    %3312 = vmatpush1.msra.mxu0 0.0
    %3313 = vmatprep.subr.mxu0 0.0
    %3314 = vmatpush1.msra.mxu0 0.0
    %3315 = vmatprep.subr.mxu0 0.0
    %3316 = vmatpush1.msra.mxu0 0.0
    %3317 = vmatprep.subr.mxu0 0.0
    %3318 = vmatpush1.msra.mxu0 0.0
    %3319 = vmatprep.subr.mxu0 0.0
    %3320 = vmatpush1.msra.mxu0 0.0
    %3321 = vmatprep.subr.mxu0 0.0
    %3322 = vmatpush1.msra.mxu0 0.0
    %3323 = vmatprep.subr.mxu0 0.0
    %3324 = vmatpush1.msra.mxu0 0.0
    %3325 = vmatprep.subr.mxu0 0.0
    %3326 = vmatpush1.msra.mxu0 0.0
    %3327 = vmatprep.subr.mxu0 0.0
    %3328 = vmatpush1.msra.mxu0 0.0
    %3329 = vmatprep.subr.mxu0 0.0
    %3330 = vmatpush1.msra.mxu0 0.0
    %3331 = vmatprep.subr.mxu0 0.0
    %3332 = vmatpush1.msra.mxu0 0.0
    %3333 = vmatprep.subr.mxu0 0.0
    %3334 = vmatpush1.msra.mxu0 0.0
    %3335 = vmatprep.subr.mxu0 0.0
    %3336 = vmatpush1.msra.mxu0 0.0
    %3337 = vmatprep.subr.mxu0 0.0
    %3338 = vmatpush1.msra.mxu0 0.0
    %3339 = vmatprep.subr.mxu0 0.0
    %3340 = vmatpush1.msra.mxu0 0.0
    %3341 = vmatprep.subr.mxu0 0.0
    %3342 = vmatpush1.msra.mxu0 0.0
    %3343 = vmatprep.subr.mxu0 0.0
    %3344 = vmatpush1.msra.mxu0 0.0
    %3345 = vmatprep.subr.mxu0 0.0
    %3346 = vmatpush1.msra.mxu0 0.0
    %3347 = vmatprep.subr.mxu0 0.0
    %3348 = vmatpush1.msra.mxu0 0.0
    %3349 = vmatprep.subr.mxu0 0.0
    %3350 = vmatpush1.msra.mxu0 0.0
    %3351 = vmatprep.subr.mxu0 0.0
    %3352 = vmatpush1.msra.mxu0 0.0
    %3353 = vmatprep.subr.mxu0 0.0
    %3354 = vmatpush1.msra.mxu0 0.0
    %3355 = vmatprep.mubr.f32.mxu0 0.0
    %3356 = vmatmul.mubr.f32.gmra.mrb[0].mxu0 %v3289
    %v3357 = vpop.f32.mrb[0].mxu0
    %v3358 = vadd.f32 0.0, %v3357
    %v3359 = vpop.f32.mrb[0].mxu0
    %3360 = vdwg.mxu0
    %v3362 = vsel %vm1010, %v3209, 0
    %3364 = vmatprep.subr.mxu0 0.0
    %3365 = vmatpush1.msra.mxu0 %v2518
    %3366 = vmatprep.subr.mxu0 0.0
    %3367 = vmatpush1.msra.mxu0 0.0
    %3368 = vmatprep.subr.mxu0 0.0
    %3369 = vmatpush1.msra.mxu0 0.0
    %3370 = vmatprep.subr.mxu0 0.0
    %3371 = vmatpush1.msra.mxu0 0.0
    %3372 = vmatprep.subr.mxu0 0.0
    %3373 = vmatpush1.msra.mxu0 0.0
    %3374 = vmatprep.subr.mxu0 0.0
    %3375 = vmatpush1.msra.mxu0 0.0
    %3376 = vmatprep.subr.mxu0 0.0
    %3377 = vmatpush1.msra.mxu0 0.0
    %3378 = vmatprep.subr.mxu0 0.0
    %3379 = vmatpush1.msra.mxu0 0.0
    %3380 = vmatprep.subr.mxu0 0.0
    %3381 = vmatpush1.msra.mxu0 0.0
    %3382 = vmatprep.subr.mxu0 0.0
    %3383 = vmatpush1.msra.mxu0 0.0
    %3384 = vmatprep.subr.mxu0 0.0
    %3385 = vmatpush1.msra.mxu0 0.0
    %3386 = vmatprep.subr.mxu0 0.0
    %3387 = vmatpush1.msra.mxu0 0.0
    %3388 = vmatprep.subr.mxu0 0.0
    %3389 = vmatpush1.msra.mxu0 0.0
    %3390 = vmatprep.subr.mxu0 0.0
    %3391 = vmatpush1.msra.mxu0 0.0
    %3392 = vmatprep.subr.mxu0 0.0
    %3393 = vmatpush1.msra.mxu0 0.0
    %3394 = vmatprep.subr.mxu0 0.0
    %3395 = vmatpush1.msra.mxu0 0.0
    %3396 = vmatprep.subr.mxu0 0.0
    %3397 = vmatpush1.msra.mxu0 0.0
    %3398 = vmatprep.subr.mxu0 0.0
    %3399 = vmatpush1.msra.mxu0 0.0
    %3400 = vmatprep.subr.mxu0 0.0
    %3401 = vmatpush1.msra.mxu0 0.0
    %3402 = vmatprep.subr.mxu0 0.0
    %3403 = vmatpush1.msra.mxu0 0.0
    %3404 = vmatprep.subr.mxu0 0.0
    %3405 = vmatpush1.msra.mxu0 0.0
    %3406 = vmatprep.subr.mxu0 0.0
    %3407 = vmatpush1.msra.mxu0 0.0
    %3408 = vmatprep.subr.mxu0 0.0
    %3409 = vmatpush1.msra.mxu0 0.0
    %3410 = vmatprep.subr.mxu0 0.0
    %3411 = vmatpush1.msra.mxu0 0.0
    %3412 = vmatprep.subr.mxu0 0.0
    %3413 = vmatpush1.msra.mxu0 0.0
    %3414 = vmatprep.subr.mxu0 0.0
    %3415 = vmatpush1.msra.mxu0 0.0
    %3416 = vmatprep.subr.mxu0 0.0
    %3417 = vmatpush1.msra.mxu0 0.0
    %3418 = vmatprep.subr.mxu0 0.0
    %3419 = vmatpush1.msra.mxu0 0.0
    %3420 = vmatprep.subr.mxu0 0.0
    %3421 = vmatpush1.msra.mxu0 0.0
    %3422 = vmatprep.subr.mxu0 0.0
    %3423 = vmatpush1.msra.mxu0 0.0
    %3424 = vmatprep.subr.mxu0 0.0
    %3425 = vmatpush1.msra.mxu0 0.0
    %3426 = vmatprep.subr.mxu0 0.0
    %3427 = vmatpush1.msra.mxu0 0.0
    %3428 = vmatprep.mubr.f32.mxu0 0.0
    %3429 = vmatmul.mubr.f32.gmra.mrb[0].mxu0 %v3362
    %v3430 = vpop.f32.mrb[0].mxu0
    %v3431 = vadd.f32 0.0, %v3430
    %v3432 = vpop.f32.mrb[0].mxu0
    %3433 = vdwg.mxu0
    %v3435 = vsel %vm1010, %v3210, 0
    %3437 = vmatprep.subr.mxu0 0.0
    %3438 = vmatpush1.msra.mxu0 %v2520
    %3439 = vmatprep.subr.mxu0 0.0
    %3440 = vmatpush1.msra.mxu0 0.0
    %3441 = vmatprep.subr.mxu0 0.0
    %3442 = vmatpush1.msra.mxu0 0.0
    %3443 = vmatprep.subr.mxu0 0.0
    %3444 = vmatpush1.msra.mxu0 0.0
    %3445 = vmatprep.subr.mxu0 0.0
    %3446 = vmatpush1.msra.mxu0 0.0
    %3447 = vmatprep.subr.mxu0 0.0
    %3448 = vmatpush1.msra.mxu0 0.0
    %3449 = vmatprep.subr.mxu0 0.0
    %3450 = vmatpush1.msra.mxu0 0.0
    %3451 = vmatprep.subr.mxu0 0.0
    %3452 = vmatpush1.msra.mxu0 0.0
    %3453 = vmatprep.subr.mxu0 0.0
    %3454 = vmatpush1.msra.mxu0 0.0
    %3455 = vmatprep.subr.mxu0 0.0
    %3456 = vmatpush1.msra.mxu0 0.0
    %3457 = vmatprep.subr.mxu0 0.0
    %3458 = vmatpush1.msra.mxu0 0.0
    %3459 = vmatprep.subr.mxu0 0.0
    %3460 = vmatpush1.msra.mxu0 0.0
    %3461 = vmatprep.subr.mxu0 0.0
    %3462 = vmatpush1.msra.mxu0 0.0
    %3463 = vmatprep.subr.mxu0 0.0
    %3464 = vmatpush1.msra.mxu0 0.0
    %3465 = vmatprep.subr.mxu0 0.0
    %3466 = vmatpush1.msra.mxu0 0.0
    %3467 = vmatprep.subr.mxu0 0.0
    %3468 = vmatpush1.msra.mxu0 0.0
    %3469 = vmatprep.subr.mxu0 0.0
    %3470 = vmatpush1.msra.mxu0 0.0
    %3471 = vmatprep.subr.mxu0 0.0
    %3472 = vmatpush1.msra.mxu0 0.0
    %3473 = vmatprep.subr.mxu0 0.0
    %3474 = vmatpush1.msra.mxu0 0.0
    %3475 = vmatprep.subr.mxu0 0.0
    %3476 = vmatpush1.msra.mxu0 0.0
    %3477 = vmatprep.subr.mxu0 0.0
    %3478 = vmatpush1.msra.mxu0 0.0
    %3479 = vmatprep.subr.mxu0 0.0
    %3480 = vmatpush1.msra.mxu0 0.0
    %3481 = vmatprep.subr.mxu0 0.0
    %3482 = vmatpush1.msra.mxu0 0.0
    %3483 = vmatprep.subr.mxu0 0.0
    %3484 = vmatpush1.msra.mxu0 0.0
    %3485 = vmatprep.subr.mxu0 0.0
    %3486 = vmatpush1.msra.mxu0 0.0
    %3487 = vmatprep.subr.mxu0 0.0
    %3488 = vmatpush1.msra.mxu0 0.0
    %3489 = vmatprep.subr.mxu0 0.0
    %3490 = vmatpush1.msra.mxu0 0.0
    %3491 = vmatprep.subr.mxu0 0.0
    %3492 = vmatpush1.msra.mxu0 0.0
    %3493 = vmatprep.subr.mxu0 0.0
    %3494 = vmatpush1.msra.mxu0 0.0
    %3495 = vmatprep.subr.mxu0 0.0
    %3496 = vmatpush1.msra.mxu0 0.0
    %3497 = vmatprep.subr.mxu0 0.0
    %3498 = vmatpush1.msra.mxu0 0.0
    %3499 = vmatprep.subr.mxu0 0.0
    %3500 = vmatpush1.msra.mxu0 0.0
    %3501 = vmatprep.mubr.f32.mxu0 0.0
    %3502 = vmatmul.mubr.f32.gmra.mrb[0].mxu0 %v3435
    %v3503 = vpop.f32.mrb[0].mxu0
    %v3504 = vadd.f32 0.0, %v3503
    %v3505 = vpop.f32.mrb[0].mxu0
    %3506 = vdwg.mxu0
    %v3508 = vsel %vm1010, %v3211, 0
    %3510 = vmatprep.subr.mxu0 0.0
    %3511 = vmatpush1.msra.mxu0 %v2524
    %3512 = vmatprep.subr.mxu0 0.0
    %3513 = vmatpush1.msra.mxu0 0.0
    %3514 = vmatprep.subr.mxu0 0.0
    %3515 = vmatpush1.msra.mxu0 0.0
    %3516 = vmatprep.subr.mxu0 0.0
    %3517 = vmatpush1.msra.mxu0 0.0
    %3518 = vmatprep.subr.mxu0 0.0
    %3519 = vmatpush1.msra.mxu0 0.0
    %3520 = vmatprep.subr.mxu0 0.0
    %3521 = vmatpush1.msra.mxu0 0.0
    %3522 = vmatprep.subr.mxu0 0.0
    %3523 = vmatpush1.msra.mxu0 0.0
    %3524 = vmatprep.subr.mxu0 0.0
    %3525 = vmatpush1.msra.mxu0 0.0
    %3526 = vmatprep.subr.mxu0 0.0
    %3527 = vmatpush1.msra.mxu0 0.0
    %3528 = vmatprep.subr.mxu0 0.0
    %3529 = vmatpush1.msra.mxu0 0.0
    %3530 = vmatprep.subr.mxu0 0.0
    %3531 = vmatpush1.msra.mxu0 0.0
    %3532 = vmatprep.subr.mxu0 0.0
    %3533 = vmatpush1.msra.mxu0 0.0
    %3534 = vmatprep.subr.mxu0 0.0
    %3535 = vmatpush1.msra.mxu0 0.0
    %3536 = vmatprep.subr.mxu0 0.0
    %3537 = vmatpush1.msra.mxu0 0.0
    %3538 = vmatprep.subr.mxu0 0.0
    %3539 = vmatpush1.msra.mxu0 0.0
    %3540 = vmatprep.subr.mxu0 0.0
    %3541 = vmatpush1.msra.mxu0 0.0
    %3542 = vmatprep.subr.mxu0 0.0
    %3543 = vmatpush1.msra.mxu0 0.0
    %3544 = vmatprep.subr.mxu0 0.0
    %3545 = vmatpush1.msra.mxu0 0.0
    %3546 = vmatprep.subr.mxu0 0.0
    %3547 = vmatpush1.msra.mxu0 0.0
    %3548 = vmatprep.subr.mxu0 0.0
    %3549 = vmatpush1.msra.mxu0 0.0
    %3550 = vmatprep.subr.mxu0 0.0
    %3551 = vmatpush1.msra.mxu0 0.0
    %3552 = vmatprep.subr.mxu0 0.0
    %3553 = vmatpush1.msra.mxu0 0.0
    %3554 = vmatprep.subr.mxu0 0.0
    %3555 = vmatpush1.msra.mxu0 0.0
    %3556 = vmatprep.subr.mxu0 0.0
    %3557 = vmatpush1.msra.mxu0 0.0
    %3558 = vmatprep.subr.mxu0 0.0
    %3559 = vmatpush1.msra.mxu0 0.0
    %3560 = vmatprep.subr.mxu0 0.0
    %3561 = vmatpush1.msra.mxu0 0.0
    %3562 = vmatprep.subr.mxu0 0.0
    %3563 = vmatpush1.msra.mxu0 0.0
    %3564 = vmatprep.subr.mxu0 0.0
    %3565 = vmatpush1.msra.mxu0 0.0
    %3566 = vmatprep.subr.mxu0 0.0
    %3567 = vmatpush1.msra.mxu0 0.0
    %3568 = vmatprep.subr.mxu0 0.0
    %3569 = vmatpush1.msra.mxu0 0.0
    %3570 = vmatprep.subr.mxu0 0.0
    %3571 = vmatpush1.msra.mxu0 0.0
    %3572 = vmatprep.subr.mxu0 0.0
    %3573 = vmatpush1.msra.mxu0 0.0
    %3574 = vmatprep.mubr.f32.mxu0 0.0
    %3575 = vmatmul.mubr.f32.gmra.mrb[0].mxu0 %v3508
    %v3576 = vpop.f32.mrb[0].mxu0
    %v3577 = vadd.f32 0.0, %v3576
    %v3578 = vpop.f32.mrb[0].mxu0
    %3579 = vdwg.mxu0
    %v3581 = vsel %vm1010, %v3212, 0
    %3583 = vmatprep.subr.mxu0 0.0
    %3584 = vmatpush1.msra.mxu0 %v2526
    %3585 = vmatprep.subr.mxu0 0.0
    %3586 = vmatpush1.msra.mxu0 0.0
    %3587 = vmatprep.subr.mxu0 0.0
    %3588 = vmatpush1.msra.mxu0 0.0
    %3589 = vmatprep.subr.mxu0 0.0
    %3590 = vmatpush1.msra.mxu0 0.0
    %3591 = vmatprep.subr.mxu0 0.0
    %3592 = vmatpush1.msra.mxu0 0.0
    %3593 = vmatprep.subr.mxu0 0.0
    %3594 = vmatpush1.msra.mxu0 0.0
    %3595 = vmatprep.subr.mxu0 0.0
    %3596 = vmatpush1.msra.mxu0 0.0
    %3597 = vmatprep.subr.mxu0 0.0
    %3598 = vmatpush1.msra.mxu0 0.0
    %3599 = vmatprep.subr.mxu0 0.0
    %3600 = vmatpush1.msra.mxu0 0.0
    %3601 = vmatprep.subr.mxu0 0.0
    %3602 = vmatpush1.msra.mxu0 0.0
    %3603 = vmatprep.subr.mxu0 0.0
    %3604 = vmatpush1.msra.mxu0 0.0
    %3605 = vmatprep.subr.mxu0 0.0
    %3606 = vmatpush1.msra.mxu0 0.0
    %3607 = vmatprep.subr.mxu0 0.0
    %3608 = vmatpush1.msra.mxu0 0.0
    %3609 = vmatprep.subr.mxu0 0.0
    %3610 = vmatpush1.msra.mxu0 0.0
    %3611 = vmatprep.subr.mxu0 0.0
    %3612 = vmatpush1.msra.mxu0 0.0
    %3613 = vmatprep.subr.mxu0 0.0
    %3614 = vmatpush1.msra.mxu0 0.0
    %3615 = vmatprep.subr.mxu0 0.0
    %3616 = vmatpush1.msra.mxu0 0.0
    %3617 = vmatprep.subr.mxu0 0.0
    %3618 = vmatpush1.msra.mxu0 0.0
    %3619 = vmatprep.subr.mxu0 0.0
    %3620 = vmatpush1.msra.mxu0 0.0
    %3621 = vmatprep.subr.mxu0 0.0
    %3622 = vmatpush1.msra.mxu0 0.0
    %3623 = vmatprep.subr.mxu0 0.0
    %3624 = vmatpush1.msra.mxu0 0.0
    %3625 = vmatprep.subr.mxu0 0.0
    %3626 = vmatpush1.msra.mxu0 0.0
    %3627 = vmatprep.subr.mxu0 0.0
    %3628 = vmatpush1.msra.mxu0 0.0
    %3629 = vmatprep.subr.mxu0 0.0
    %3630 = vmatpush1.msra.mxu0 0.0
    %3631 = vmatprep.subr.mxu0 0.0
    %3632 = vmatpush1.msra.mxu0 0.0
    %3633 = vmatprep.subr.mxu0 0.0
    %3634 = vmatpush1.msra.mxu0 0.0
    %3635 = vmatprep.subr.mxu0 0.0
    %3636 = vmatpush1.msra.mxu0 0.0
    %3637 = vmatprep.subr.mxu0 0.0
    %3638 = vmatpush1.msra.mxu0 0.0
    %3639 = vmatprep.subr.mxu0 0.0
    %3640 = vmatpush1.msra.mxu0 0.0
    %3641 = vmatprep.subr.mxu0 0.0
    %3642 = vmatpush1.msra.mxu0 0.0
    %3643 = vmatprep.subr.mxu0 0.0
    %3644 = vmatpush1.msra.mxu0 0.0
    %3645 = vmatprep.subr.mxu0 0.0
    %3646 = vmatpush1.msra.mxu0 0.0
    %3647 = vmatprep.mubr.f32.mxu0 0.0
    %3648 = vmatmul.mubr.f32.gmra.mrb[0].mxu0 %v3581
    %v3649 = vpop.f32.mrb[0].mxu0
    %v3650 = vadd.f32 0.0, %v3649
    %v3651 = vpop.f32.mrb[0].mxu0
    %3652 = vdwg.mxu0
    %v3654 = vsel %vm1010, %v3213, 0
    %3656 = vmatprep.subr.mxu0 0.0
    %3657 = vmatpush1.msra.mxu0 %v2530
    %3658 = vmatprep.subr.mxu0 0.0
    %3659 = vmatpush1.msra.mxu0 0.0
    %3660 = vmatprep.subr.mxu0 0.0
    %3661 = vmatpush1.msra.mxu0 0.0
    %3662 = vmatprep.subr.mxu0 0.0
    %3663 = vmatpush1.msra.mxu0 0.0
    %3664 = vmatprep.subr.mxu0 0.0
    %3665 = vmatpush1.msra.mxu0 0.0
    %3666 = vmatprep.subr.mxu0 0.0
    %3667 = vmatpush1.msra.mxu0 0.0
    %3668 = vmatprep.subr.mxu0 0.0
    %3669 = vmatpush1.msra.mxu0 0.0
    %3670 = vmatprep.subr.mxu0 0.0
    %3671 = vmatpush1.msra.mxu0 0.0
    %3672 = vmatprep.subr.mxu0 0.0
    %3673 = vmatpush1.msra.mxu0 0.0
    %3674 = vmatprep.subr.mxu0 0.0
    %3675 = vmatpush1.msra.mxu0 0.0
    %3676 = vmatprep.subr.mxu0 0.0
    %3677 = vmatpush1.msra.mxu0 0.0
    %3678 = vmatprep.subr.mxu0 0.0
    %3679 = vmatpush1.msra.mxu0 0.0
    %3680 = vmatprep.subr.mxu0 0.0
    %3681 = vmatpush1.msra.mxu0 0.0
    %3682 = vmatprep.subr.mxu0 0.0
    %3683 = vmatpush1.msra.mxu0 0.0
    %3684 = vmatprep.subr.mxu0 0.0
    %3685 = vmatpush1.msra.mxu0 0.0
    %3686 = vmatprep.subr.mxu0 0.0
    %3687 = vmatpush1.msra.mxu0 0.0
    %3688 = vmatprep.subr.mxu0 0.0
    %3689 = vmatpush1.msra.mxu0 0.0
    %3690 = vmatprep.subr.mxu0 0.0
    %3691 = vmatpush1.msra.mxu0 0.0
    %3692 = vmatprep.subr.mxu0 0.0
    %3693 = vmatpush1.msra.mxu0 0.0
    %3694 = vmatprep.subr.mxu0 0.0
    %3695 = vmatpush1.msra.mxu0 0.0
    %3696 = vmatprep.subr.mxu0 0.0
    %3697 = vmatpush1.msra.mxu0 0.0
    %3698 = vmatprep.subr.mxu0 0.0
    %3699 = vmatpush1.msra.mxu0 0.0
    %3700 = vmatprep.subr.mxu0 0.0
    %3701 = vmatpush1.msra.mxu0 0.0
    %3702 = vmatprep.subr.mxu0 0.0
    %3703 = vmatpush1.msra.mxu0 0.0
    %3704 = vmatprep.subr.mxu0 0.0
    %3705 = vmatpush1.msra.mxu0 0.0
    %3706 = vmatprep.subr.mxu0 0.0
    %3707 = vmatpush1.msra.mxu0 0.0
    %3708 = vmatprep.subr.mxu0 0.0
    %3709 = vmatpush1.msra.mxu0 0.0
    %3710 = vmatprep.subr.mxu0 0.0
    %3711 = vmatpush1.msra.mxu0 0.0
    %3712 = vmatprep.subr.mxu0 0.0
    %3713 = vmatpush1.msra.mxu0 0.0
    %3714 = vmatprep.subr.mxu0 0.0
    %3715 = vmatpush1.msra.mxu0 0.0
    %3716 = vmatprep.subr.mxu0 0.0
    %3717 = vmatpush1.msra.mxu0 0.0
    %3718 = vmatprep.subr.mxu0 0.0
    %3719 = vmatpush1.msra.mxu0 0.0
    %3720 = vmatprep.mubr.f32.mxu0 0.0
    %3721 = vmatmul.mubr.f32.gmra.mrb[0].mxu0 %v3654
    %v3722 = vpop.f32.mrb[0].mxu0
    %v3723 = vadd.f32 0.0, %v3722
    %v3724 = vpop.f32.mrb[0].mxu0
    %3725 = vdwg.mxu0
    %v3727 = vsel %vm1010, %v3214, 0
    %3729 = vmatprep.subr.mxu0 0.0
    %3730 = vmatpush1.msra.mxu0 %v2532
    %3731 = vmatprep.subr.mxu0 0.0
    %3732 = vmatpush1.msra.mxu0 0.0
    %3733 = vmatprep.subr.mxu0 0.0
    %3734 = vmatpush1.msra.mxu0 0.0
    %3735 = vmatprep.subr.mxu0 0.0
    %3736 = vmatpush1.msra.mxu0 0.0
    %3737 = vmatprep.subr.mxu0 0.0
    %3738 = vmatpush1.msra.mxu0 0.0
    %3739 = vmatprep.subr.mxu0 0.0
    %3740 = vmatpush1.msra.mxu0 0.0
    %3741 = vmatprep.subr.mxu0 0.0
    %3742 = vmatpush1.msra.mxu0 0.0
    %3743 = vmatprep.subr.mxu0 0.0
    %3744 = vmatpush1.msra.mxu0 0.0
    %3745 = vmatprep.subr.mxu0 0.0
    %3746 = vmatpush1.msra.mxu0 0.0
    %3747 = vmatprep.subr.mxu0 0.0
    %3748 = vmatpush1.msra.mxu0 0.0
    %3749 = vmatprep.subr.mxu0 0.0
    %3750 = vmatpush1.msra.mxu0 0.0
    %3751 = vmatprep.subr.mxu0 0.0
    %3752 = vmatpush1.msra.mxu0 0.0
    %3753 = vmatprep.subr.mxu0 0.0
    %3754 = vmatpush1.msra.mxu0 0.0
    %3755 = vmatprep.subr.mxu0 0.0
    %3756 = vmatpush1.msra.mxu0 0.0
    %3757 = vmatprep.subr.mxu0 0.0
    %3758 = vmatpush1.msra.mxu0 0.0
    %3759 = vmatprep.subr.mxu0 0.0
    %3760 = vmatpush1.msra.mxu0 0.0
    %3761 = vmatprep.subr.mxu0 0.0
    %3762 = vmatpush1.msra.mxu0 0.0
    %3763 = vmatprep.subr.mxu0 0.0
    %3764 = vmatpush1.msra.mxu0 0.0
    %3765 = vmatprep.subr.mxu0 0.0
    %3766 = vmatpush1.msra.mxu0 0.0
    %3767 = vmatprep.subr.mxu0 0.0
    %3768 = vmatpush1.msra.mxu0 0.0
    %3769 = vmatprep.subr.mxu0 0.0
    %3770 = vmatpush1.msra.mxu0 0.0
    %3771 = vmatprep.subr.mxu0 0.0
    %3772 = vmatpush1.msra.mxu0 0.0
    %3773 = vmatprep.subr.mxu0 0.0
    %3774 = vmatpush1.msra.mxu0 0.0
    %3775 = vmatprep.subr.mxu0 0.0
    %3776 = vmatpush1.msra.mxu0 0.0
    %3777 = vmatprep.subr.mxu0 0.0
    %3778 = vmatpush1.msra.mxu0 0.0
    %3779 = vmatprep.subr.mxu0 0.0
    %3780 = vmatpush1.msra.mxu0 0.0
    %3781 = vmatprep.subr.mxu0 0.0
    %3782 = vmatpush1.msra.mxu0 0.0
    %3783 = vmatprep.subr.mxu0 0.0
    %3784 = vmatpush1.msra.mxu0 0.0
    %3785 = vmatprep.subr.mxu0 0.0
    %3786 = vmatpush1.msra.mxu0 0.0
    %3787 = vmatprep.subr.mxu0 0.0
    %3788 = vmatpush1.msra.mxu0 0.0
    %3789 = vmatprep.subr.mxu0 0.0
    %3790 = vmatpush1.msra.mxu0 0.0
    %3791 = vmatprep.subr.mxu0 0.0
    %3792 = vmatpush1.msra.mxu0 0.0
    %3793 = vmatprep.mubr.f32.mxu0 0.0
    %3794 = vmatmul.mubr.f32.gmra.mrb[0].mxu0 %v3727
    %v3795 = vpop.f32.mrb[0].mxu0
    %v3796 = vadd.f32 0.0, %v3795
    %v3797 = vpop.f32.mrb[0].mxu0
    %3798 = vdwg.mxu0
    %3801 = vrot.lane.b32.xlu0 %v3431, 32
    %v3802 = vpop.permute.xlu0 %3801
    %3803 = vrot.lane.b32.xlu0 %v3504, 32
    %v3804 = vpop.permute.xlu0 %3803
    %3809 = vrot.lane.b32.xlu0 %v3577, 64
    %v3810 = vpop.permute.xlu0 %3809
    %3811 = vrot.lane.b32.xlu0 %v3650, 64
    %v3812 = vpop.permute.xlu0 %3811
    %3817 = vrot.lane.b32.xlu0 %v3723, 96
    %v3818 = vpop.permute.xlu0 %3817
    %3819 = vrot.lane.b32.xlu0 %v3796, 96
    %v3820 = vpop.permute.xlu0 %3819
    %v3823 = vsel %vm417, %v3285, %v3802
    %v3824 = vsel %vm417, %v3358, %v3804
    %v3825 = vsel %vm1709, %v3823, %v3810
    %v3826 = vsel %vm1709, %v3824, %v3812
    %v3827 = vsel %vm1712, %v3825, %v3818
    %v3828 = vsel %vm1712, %v3826, %v3820
    %v3829 = vpack.c.bf16 %v3828, %v3827
    %s3830 = scalar_lea.vmem [#allocation7], 64
    %v3831 = vld [vmem:[%s3830] sm:$0xf]
    %v3832 = vld [vmem:[%s3830 + $0x4] sm:$0xf]
    %v3833 = vld [vmem:[%s3830 + $0x8] sm:$0xf]
    %v3834 = vld [vmem:[%s3830 + $0xc] sm:$0xf]
    %v3835 = vld [vmem:[%s3830 + $0x10] sm:$0xf]
    %v3836 = vld [vmem:[%s3830 + $0x14] sm:$0xf]
    %v3837 = vld [vmem:[%s3830 + $0x18] sm:$0xf]
    %v3838 = vld [vmem:[%s3830 + $0x1c] sm:$0xf]
    %v3839 = vld [vmem:[%s3830 + $0x20] sm:$0xf]
    %v3840 = vld [vmem:[%s3830 + $0x24] sm:$0xf]
    %v3841 = vld [vmem:[%s3830 + $0x28] sm:$0xf]
    %v3842 = vld [vmem:[%s3830 + $0x2c] sm:$0xf]
    %v3843 = vld [vmem:[%s3830 + $0x30] sm:$0xf]
    %v3844 = vld [vmem:[%s3830 + $0x34] sm:$0xf]
    %v3845 = vld [vmem:[%s3830 + $0x38] sm:$0xf]
    %v3846 = vld [vmem:[%s3830 + $0x3c] sm:$0xf]
    %v3847 = vlaneseq
    %v3848 = vshrl.u32 %v3847, 7
    %v3849 = vsub.s32 2, %v3848
    %v3850 = vrot.slane %v2226, %v3849
    %v3867 = vunpack.c.l.b16 %v3831
    %v3868 = vunpack.c.l.b16 %v3832
    %v3869 = vunpack.c.l.b16 %v3833
    %v3870 = vunpack.c.l.b16 %v3834
    %v3871 = vunpack.c.l.b16 %v3835
    %v3872 = vunpack.c.l.b16 %v3836
    %v3873 = vunpack.c.l.b16 %v3837
    %v3874 = vunpack.c.l.b16 %v3838
    %v3875 = vunpack.c.l.b16 %v3839
    %v3876 = vunpack.c.l.b16 %v3840
    %v3877 = vunpack.c.l.b16 %v3841
    %v3878 = vunpack.c.l.b16 %v3842
    %v3879 = vunpack.c.l.b16 %v3843
    %v3880 = vunpack.c.l.b16 %v3844
    %v3881 = vunpack.c.l.b16 %v3845
    %v3882 = vunpack.c.l.b16 %v3846
    %v3883 = vpack.c.b16 %v3868, %v3867
    %v3884 = vpack.c.b16 %v3870, %v3869
    %v3885 = vpack.c.b16 %v3872, %v3871
    %v3886 = vpack.c.b16 %v3874, %v3873
    %v3887 = vpack.c.b16 %v3876, %v3875
    %v3888 = vpack.c.b16 %v3878, %v3877
    %v3889 = vpack.c.b16 %v3880, %v3879
    %v3890 = vpack.c.b16 %v3882, %v3881
    %3899 = vmatprep.subr.bf16.mxu0 0
    %3900 = vmatpush1.bf16.msra.mxu0 %v3883
    %3901 = vmatprep.subr.bf16.mxu0 0
    %3902 = vmatpush1.bf16.msra.mxu0 %v3884
    %3903 = vmatprep.subr.bf16.mxu0 0
    %3904 = vmatpush1.bf16.msra.mxu0 %v3885
    %3905 = vmatprep.subr.bf16.mxu0 0
    %3906 = vmatpush1.bf16.msra.mxu0 %v3886
    %3907 = vmatprep.subr.bf16.mxu0 0
    %3908 = vmatpush1.bf16.msra.mxu0 %v3887
    %3909 = vmatprep.subr.bf16.mxu0 0
    %3910 = vmatpush1.bf16.msra.mxu0 %v3888
    %3911 = vmatprep.subr.bf16.mxu0 0
    %3912 = vmatpush1.bf16.msra.mxu0 %v3889
    %3913 = vmatprep.subr.bf16.mxu0 0
    %3914 = vmatpush1.bf16.msra.mxu0 %v3890
    %3915 = vmatprep.subr.bf16.mxu0 0
    %3916 = vmatpush1.bf16.msra.mxu0 0
    %3917 = vmatprep.subr.bf16.mxu0 0
    %3918 = vmatpush1.bf16.msra.mxu0 0
    %3919 = vmatprep.subr.bf16.mxu0 0
    %3920 = vmatpush1.bf16.msra.mxu0 0
    %3921 = vmatprep.subr.bf16.mxu0 0
    %3922 = vmatpush1.bf16.msra.mxu0 0
    %3923 = vmatprep.subr.bf16.mxu0 0
    %3924 = vmatpush1.bf16.msra.mxu0 0
    %3925 = vmatprep.subr.bf16.mxu0 0
    %3926 = vmatpush1.bf16.msra.mxu0 0
    %3927 = vmatprep.subr.bf16.mxu0 0
    %3928 = vmatpush1.bf16.msra.mxu0 0
    %3929 = vmatprep.subr.bf16.mxu0 0
    %3930 = vmatpush1.bf16.msra.mxu0 0
    %3931 = vmatprep.mubr.bf16.mxu0 0
    %3932 = vmatmul.mubr.bf16.gmra.mrb[0].mxu0 %v3829
    %v3933 = vpop.f32.mrb[0].mxu0
    %v3934 = vadd.f32 %v3850, %v3933
    %v3935 = vpop.f32.mrb[0].mxu0
    %v3936 = vpop.f32.mrb[0].mxu0
    %v3937 = vadd.f32 %v3850, %v3936
    %v3938 = vpop.f32.mrb[0].mxu0
    %3939 = vdwg.mxu0
    %v3940 = vadd.f32 %v2223, %v3934
    %v3941 = vadd.f32 %v2224, %v3937
    %3942 = vadd.xlane.f32.xlu0 %v3940
    %v3943 = vpop.xlane.xlu0 %3942
    %3944 = vadd.xlane.f32.xlu0 %v3941
    %v3945 = vpop.xlane.xlu0 %3944
    %v3946 = vmul.f32 %v3943, %v1831
    %v3947 = vmul.f32 %v3945, %v1831
    %v3948 = vsub.f32 %v3940, %v3946
    %v3949 = vsub.f32 %v3941, %v3947
    %v3950 = vmul.f32 %v3948, %v3948
    %v3951 = vmul.f32 %v3949, %v3949
    %3952 = vadd.xlane.f32.xlu0 %v3950
    %v3953 = vpop.xlane.xlu0 %3952
    %3954 = vadd.xlane.f32.xlu0 %v3951
    %v3955 = vpop.xlane.xlu0 %3954
    %v3956 = vmul.f32 %v3953, %v1831
    %v3957 = vmul.f32 %v3955, %v1831
    %v3958 = vadd.f32 %v3956, 1e-05
    %v3959 = vadd.f32 %v3957, 1e-05
    %v3960 = vrsqrt.pop %v3958
    %v3961 = vrsqrt.pop %v3959
    %v3962 = vmul.f32 %v3948, %v3960
    %v3963 = vmul.f32 %v3949, %v3961
    %v3964 = vlaneseq
    %v3965 = vshrl.u32 %v3964, 7
    %v3966 = vsub.s32 3, %v3965
    %v3967 = vrot.slane %v2226, %v3966
    %v3968 = vmul.f32 %v3962, %v3967
    %v3969 = vmul.f32 %v3963, %v3967
    %v3970 = vlaneseq
    %v3971 = vshrl.u32 %v3970, 7
    %v3972 = vsub.s32 4, %v3971
    %v3973 = vrot.slane %v2226, %v3972
    %v3974 = vadd.f32 %v3968, %v3973
    %v3975 = vadd.f32 %v3969, %v3973
    %v3976 = vpack.c.bf16 %v3975, %v3974
    %s3977 = scalar_lea.vmem [#allocation8], 128
    %v3978 = vld [vmem:[%s3977] sm:$0xff]
    %v3979 = vld [vmem:[%s3977 + $0x8] sm:$0xff]
    %v3980 = vld [vmem:[%s3977 + $0x10] sm:$0xff]
    %v3981 = vld [vmem:[%s3977 + $0x18] sm:$0xff]
    %v3982 = vld [vmem:[%s3977 + $0x20] sm:$0xff]
    %v3983 = vld [vmem:[%s3977 + $0x28] sm:$0xff]
    %v3984 = vld [vmem:[%s3977 + $0x30] sm:$0xff]
    %v3985 = vld [vmem:[%s3977 + $0x38] sm:$0xff]
    %v3986 = vld [vmem:[%s3977 + $0x40] sm:$0xff]
    %v3987 = vld [vmem:[%s3977 + $0x48] sm:$0xff]
    %v3988 = vld [vmem:[%s3977 + $0x50] sm:$0xff]
    %v3989 = vld [vmem:[%s3977 + $0x58] sm:$0xff]
    %v3990 = vld [vmem:[%s3977 + $0x60] sm:$0xff]
    %v3991 = vld [vmem:[%s3977 + $0x68] sm:$0xff]
    %v3992 = vld [vmem:[%s3977 + $0x70] sm:$0xff]
    %v3993 = vld [vmem:[%s3977 + $0x78] sm:$0xff]
    %v3994 = vlaneseq
    %v3995 = vshrl.u32 %v3994, 7
    %v3996 = vsub.s32 1, %v3995
    %v3997 = vrot.slane %v2226, %v3996
    %v3998 = vlaneseq
    %v3999 = vshrl.u32 %v3998, 7
    %v4000 = vsub.s32 1, %v3999
    %v4001 = vrot.slane %v2227, %v4000
    %v4018 = vunpack.c.l.b16 %v3978
    %v4019 = vunpack.c.h.b16 %v3978
    %v4020 = vunpack.c.l.b16 %v3979
    %v4021 = vunpack.c.h.b16 %v3979
    %v4022 = vunpack.c.l.b16 %v3980
    %v4023 = vunpack.c.h.b16 %v3980
    %v4024 = vunpack.c.l.b16 %v3981
    %v4025 = vunpack.c.h.b16 %v3981
    %v4026 = vunpack.c.l.b16 %v3982
    %v4027 = vunpack.c.h.b16 %v3982
    %v4028 = vunpack.c.l.b16 %v3983
    %v4029 = vunpack.c.h.b16 %v3983
    %v4030 = vunpack.c.l.b16 %v3984
    %v4031 = vunpack.c.h.b16 %v3984
    %v4032 = vunpack.c.l.b16 %v3985
    %v4033 = vunpack.c.h.b16 %v3985
    %v4034 = vunpack.c.l.b16 %v3986
    %v4035 = vunpack.c.h.b16 %v3986
    %v4036 = vunpack.c.l.b16 %v3987
    %v4037 = vunpack.c.h.b16 %v3987
    %v4038 = vunpack.c.l.b16 %v3988
    %v4039 = vunpack.c.h.b16 %v3988
    %v4040 = vunpack.c.l.b16 %v3989
    %v4041 = vunpack.c.h.b16 %v3989
    %v4042 = vunpack.c.l.b16 %v3990
    %v4043 = vunpack.c.h.b16 %v3990
    %v4044 = vunpack.c.l.b16 %v3991
    %v4045 = vunpack.c.h.b16 %v3991
    %v4046 = vunpack.c.l.b16 %v3992
    %v4047 = vunpack.c.h.b16 %v3992
    %v4048 = vunpack.c.l.b16 %v3993
    %v4049 = vunpack.c.h.b16 %v3993
    %v4050 = vpack.c.b16 %v4020, %v4018
    %v4051 = vpack.c.b16 %v4021, %v4019
    %v4052 = vpack.c.b16 %v4024, %v4022
    %v4053 = vpack.c.b16 %v4025, %v4023
    %v4054 = vpack.c.b16 %v4028, %v4026
    %v4055 = vpack.c.b16 %v4029, %v4027
    %v4056 = vpack.c.b16 %v4032, %v4030
    %v4057 = vpack.c.b16 %v4033, %v4031
    %v4058 = vpack.c.b16 %v4036, %v4034
    %v4059 = vpack.c.b16 %v4037, %v4035
    %v4060 = vpack.c.b16 %v4040, %v4038
    %v4061 = vpack.c.b16 %v4041, %v4039
    %v4062 = vpack.c.b16 %v4044, %v4042
    %v4063 = vpack.c.b16 %v4045, %v4043
    %v4064 = vpack.c.b16 %v4048, %v4046
    %v4065 = vpack.c.b16 %v4049, %v4047
    %4082 = vmatprep.subr.bf16.mxu0 %v4051
    %4083 = vmatpush1.bf16.msra.mxu0 %v4050
    %4084 = vmatprep.subr.bf16.mxu0 %v4053
    %4085 = vmatpush1.bf16.msra.mxu0 %v4052
    %4086 = vmatprep.subr.bf16.mxu0 %v4055
    %4087 = vmatpush1.bf16.msra.mxu0 %v4054
    %4088 = vmatprep.subr.bf16.mxu0 %v4057
    %4089 = vmatpush1.bf16.msra.mxu0 %v4056
    %4090 = vmatprep.subr.bf16.mxu0 %v4059
    %4091 = vmatpush1.bf16.msra.mxu0 %v4058
    %4092 = vmatprep.subr.bf16.mxu0 %v4061
    %4093 = vmatpush1.bf16.msra.mxu0 %v4060
    %4094 = vmatprep.subr.bf16.mxu0 %v4063
    %4095 = vmatpush1.bf16.msra.mxu0 %v4062
    %4096 = vmatprep.subr.bf16.mxu0 %v4065
    %4097 = vmatpush1.bf16.msra.mxu0 %v4064
    %4098 = vmatprep.subr.bf16.mxu0 0
    %4099 = vmatpush1.bf16.msra.mxu0 0
    %4100 = vmatprep.subr.bf16.mxu0 0
    %4101 = vmatpush1.bf16.msra.mxu0 0
    %4102 = vmatprep.subr.bf16.mxu0 0
    %4103 = vmatpush1.bf16.msra.mxu0 0
    %4104 = vmatprep.subr.bf16.mxu0 0
    %4105 = vmatpush1.bf16.msra.mxu0 0
    %4106 = vmatprep.subr.bf16.mxu0 0
    %4107 = vmatpush1.bf16.msra.mxu0 0
    %4108 = vmatprep.subr.bf16.mxu0 0
    %4109 = vmatpush1.bf16.msra.mxu0 0
    %4110 = vmatprep.subr.bf16.mxu0 0
    %4111 = vmatpush1.bf16.msra.mxu0 0
    %4112 = vmatprep.subr.bf16.mxu0 0
    %4113 = vmatpush1.bf16.msra.mxu0 0
    %4114 = vmatprep.mubr.bf16.mxu0 0
    %4115 = vmatmul.mubr.bf16.gmra.mrb[0].mxu0 %v3976
    %v4116 = vpop.f32.mrb[0].mxu0
    %v4117 = vadd.f32 %v3997, %v4116
    %v4118 = vpop.f32.mrb[0].mxu0
    %v4119 = vadd.f32 %v4001, %v4118
    %v4120 = vpop.f32.mrb[0].mxu0
    %v4121 = vadd.f32 %v3997, %v4120
    %v4122 = vpop.f32.mrb[0].mxu0
    %v4123 = vadd.f32 %v4001, %v4122
    %4124 = vdwg.mxu0
    %v4125 = vmax.f32 %v4117, 0.0
    %v4126 = vmax.f32 %v4119, 0.0
    %v4127 = vmax.f32 %v4121, 0.0
    %v4128 = vmax.f32 %v4123, 0.0
    %v4129 = vpack.c.bf16 %v4127, %v4125
    %v4130 = vpack.c.bf16 %v4128, %v4126
    %s4131 = scalar_lea.vmem [#allocation10], 128
    %v4132 = vld [vmem:[%s4131] sm:$0xf]
    %v4133 = vld [vmem:[%s4131 + $0x4] sm:$0xf]
    %v4134 = vld [vmem:[%s4131 + $0x8] sm:$0xf]
    %v4135 = vld [vmem:[%s4131 + $0xc] sm:$0xf]
    %v4136 = vld [vmem:[%s4131 + $0x10] sm:$0xf]
    %v4137 = vld [vmem:[%s4131 + $0x14] sm:$0xf]
    %v4138 = vld [vmem:[%s4131 + $0x18] sm:$0xf]
    %v4139 = vld [vmem:[%s4131 + $0x1c] sm:$0xf]
    %v4140 = vld [vmem:[%s4131 + $0x20] sm:$0xf]
    %v4141 = vld [vmem:[%s4131 + $0x24] sm:$0xf]
    %v4142 = vld [vmem:[%s4131 + $0x28] sm:$0xf]
    %v4143 = vld [vmem:[%s4131 + $0x2c] sm:$0xf]
    %v4144 = vld [vmem:[%s4131 + $0x30] sm:$0xf]
    %v4145 = vld [vmem:[%s4131 + $0x34] sm:$0xf]
    %v4146 = vld [vmem:[%s4131 + $0x38] sm:$0xf]
    %v4147 = vld [vmem:[%s4131 + $0x3c] sm:$0xf]
    %v4148 = vld [vmem:[%s4131 + $0x40] sm:$0xf]
    %v4149 = vld [vmem:[%s4131 + $0x44] sm:$0xf]
    %v4150 = vld [vmem:[%s4131 + $0x48] sm:$0xf]
    %v4151 = vld [vmem:[%s4131 + $0x4c] sm:$0xf]
    %v4152 = vld [vmem:[%s4131 + $0x50] sm:$0xf]
    %v4153 = vld [vmem:[%s4131 + $0x54] sm:$0xf]
    %v4154 = vld [vmem:[%s4131 + $0x58] sm:$0xf]
    %v4155 = vld [vmem:[%s4131 + $0x5c] sm:$0xf]
    %v4156 = vld [vmem:[%s4131 + $0x60] sm:$0xf]
    %v4157 = vld [vmem:[%s4131 + $0x64] sm:$0xf]
    %v4158 = vld [vmem:[%s4131 + $0x68] sm:$0xf]
    %v4159 = vld [vmem:[%s4131 + $0x6c] sm:$0xf]
    %v4160 = vld [vmem:[%s4131 + $0x70] sm:$0xf]
    %v4161 = vld [vmem:[%s4131 + $0x74] sm:$0xf]
    %v4162 = vld [vmem:[%s4131 + $0x78] sm:$0xf]
    %v4163 = vld [vmem:[%s4131 + $0x7c] sm:$0xf]
    %v4164 = vlaneseq
    %v4165 = vshrl.u32 %v4164, 7
    %v4166 = vsub.s32 5, %v4165
    %v4167 = vrot.slane %v2226, %v4166
    %v4200 = vunpack.c.l.b16 %v4132
    %v4201 = vunpack.c.l.b16 %v4133
    %v4202 = vunpack.c.l.b16 %v4134
    %v4203 = vunpack.c.l.b16 %v4135
    %v4204 = vunpack.c.l.b16 %v4136
    %v4205 = vunpack.c.l.b16 %v4137
    %v4206 = vunpack.c.l.b16 %v4138
    %v4207 = vunpack.c.l.b16 %v4139
    %v4208 = vunpack.c.l.b16 %v4140
    %v4209 = vunpack.c.l.b16 %v4141
    %v4210 = vunpack.c.l.b16 %v4142
    %v4211 = vunpack.c.l.b16 %v4143
    %v4212 = vunpack.c.l.b16 %v4144
    %v4213 = vunpack.c.l.b16 %v4145
    %v4214 = vunpack.c.l.b16 %v4146
    %v4215 = vunpack.c.l.b16 %v4147
    %v4216 = vunpack.c.l.b16 %v4148
    %v4217 = vunpack.c.l.b16 %v4149
    %v4218 = vunpack.c.l.b16 %v4150
    %v4219 = vunpack.c.l.b16 %v4151
    %v4220 = vunpack.c.l.b16 %v4152
    %v4221 = vunpack.c.l.b16 %v4153
    %v4222 = vunpack.c.l.b16 %v4154
    %v4223 = vunpack.c.l.b16 %v4155
    %v4224 = vunpack.c.l.b16 %v4156
    %v4225 = vunpack.c.l.b16 %v4157
    %v4226 = vunpack.c.l.b16 %v4158
    %v4227 = vunpack.c.l.b16 %v4159
    %v4228 = vunpack.c.l.b16 %v4160
    %v4229 = vunpack.c.l.b16 %v4161
    %v4230 = vunpack.c.l.b16 %v4162
    %v4231 = vunpack.c.l.b16 %v4163
    %v4232 = vpack.c.b16 %v4201, %v4200
    %v4233 = vpack.c.b16 %v4203, %v4202
    %v4234 = vpack.c.b16 %v4205, %v4204
    %v4235 = vpack.c.b16 %v4207, %v4206
    %v4236 = vpack.c.b16 %v4209, %v4208
    %v4237 = vpack.c.b16 %v4211, %v4210
    %v4238 = vpack.c.b16 %v4213, %v4212
    %v4239 = vpack.c.b16 %v4215, %v4214
    %v4240 = vpack.c.b16 %v4217, %v4216
    %v4241 = vpack.c.b16 %v4219, %v4218
    %v4242 = vpack.c.b16 %v4221, %v4220
    %v4243 = vpack.c.b16 %v4223, %v4222
    %v4244 = vpack.c.b16 %v4225, %v4224
    %v4245 = vpack.c.b16 %v4227, %v4226
    %v4246 = vpack.c.b16 %v4229, %v4228
    %v4247 = vpack.c.b16 %v4231, %v4230
    %4264 = vmatprep.subr.bf16.mxu0 0
    %4265 = vmatpush1.bf16.msra.mxu0 %v4232
    %4266 = vmatprep.subr.bf16.mxu0 0
    %4267 = vmatpush1.bf16.msra.mxu0 %v4233
    %4268 = vmatprep.subr.bf16.mxu0 0
    %4269 = vmatpush1.bf16.msra.mxu0 %v4234
    %4270 = vmatprep.subr.bf16.mxu0 0
    %4271 = vmatpush1.bf16.msra.mxu0 %v4235
    %4272 = vmatprep.subr.bf16.mxu0 0
    %4273 = vmatpush1.bf16.msra.mxu0 %v4236
    %4274 = vmatprep.subr.bf16.mxu0 0
    %4275 = vmatpush1.bf16.msra.mxu0 %v4237
    %4276 = vmatprep.subr.bf16.mxu0 0
    %4277 = vmatpush1.bf16.msra.mxu0 %v4238
    %4278 = vmatprep.subr.bf16.mxu0 0
    %4279 = vmatpush1.bf16.msra.mxu0 %v4239
    %4280 = vmatprep.subr.bf16.mxu0 0
    %4281 = vmatpush1.bf16.msra.mxu0 %v4240
    %4282 = vmatprep.subr.bf16.mxu0 0
    %4283 = vmatpush1.bf16.msra.mxu0 %v4241
    %4284 = vmatprep.subr.bf16.mxu0 0
    %4285 = vmatpush1.bf16.msra.mxu0 %v4242
    %4286 = vmatprep.subr.bf16.mxu0 0
    %4287 = vmatpush1.bf16.msra.mxu0 %v4243
    %4288 = vmatprep.subr.bf16.mxu0 0
    %4289 = vmatpush1.bf16.msra.mxu0 %v4244
    %4290 = vmatprep.subr.bf16.mxu0 0
    %4291 = vmatpush1.bf16.msra.mxu0 %v4245
    %4292 = vmatprep.subr.bf16.mxu0 0
    %4293 = vmatpush1.bf16.msra.mxu0 %v4246
    %4294 = vmatprep.subr.bf16.mxu0 0
    %4295 = vmatpush1.bf16.msra.mxu0 %v4247
    %4296 = vmatprep.mubr.bf16.mxu0 %v4130
    %4297 = vmatmul.mubr.bf16.gmra.mrb[0].mxu0 %v4129
    %v4298 = vpop.f32.mrb[0].mxu0
    %v4299 = vadd.f32 %v4167, %v4298
    %v4300 = vpop.f32.mrb[0].mxu0
    %v4301 = vpop.f32.mrb[0].mxu0
    %v4302 = vadd.f32 %v4167, %v4301
    %v4303 = vpop.f32.mrb[0].mxu0
    %4304 = vdwg.mxu0
    %v4305 = vadd.f32 %v3974, %v4299
    %v4306 = vadd.f32 %v3975, %v4302
    %4307 = vadd.xlane.f32.xlu0 %v4305
    %v4308 = vpop.xlane.xlu0 %4307
    %4309 = vadd.xlane.f32.xlu0 %v4306
    %v4310 = vpop.xlane.xlu0 %4309
    %v4311 = vmul.f32 %v4308, %v1831
    %v4312 = vmul.f32 %v4310, %v1831
    %v4313 = vsub.f32 %v4305, %v4311
    %v4314 = vsub.f32 %v4306, %v4312
    %v4315 = vmul.f32 %v4313, %v4313
    %v4316 = vmul.f32 %v4314, %v4314
    %4317 = vadd.xlane.f32.xlu0 %v4315
    %v4318 = vpop.xlane.xlu0 %4317
    %4319 = vadd.xlane.f32.xlu0 %v4316
    %v4320 = vpop.xlane.xlu0 %4319
    %v4321 = vmul.f32 %v4318, %v1831
    %v4322 = vmul.f32 %v4320, %v1831
    %v4323 = vadd.f32 %v4321, 1e-05
    %v4324 = vadd.f32 %v4322, 1e-05
    %v4325 = vrsqrt.pop %v4323
    %v4326 = vrsqrt.pop %v4324
    %v4327 = vmul.f32 %v4313, %v4325
    %v4328 = vmul.f32 %v4314, %v4326
    %v4329 = vlaneseq
    %v4330 = vshrl.u32 %v4329, 7
    %v4331 = vsub.s32 6, %v4330
    %v4332 = vrot.slane %v2226, %v4331
    %v4333 = vmul.f32 %v4327, %v4332
    %v4334 = vmul.f32 %v4328, %v4332
    %v4335 = vlaneseq
    %v4336 = vshrl.u32 %v4335, 7
    %v4337 = vsub.s32 7, %v4336
    %v4338 = vrot.slane %v2226, %v4337
    %v4339 = vadd.f32 %v4333, %v4338
    %v4340 = vadd.f32 %v4334, %v4338
    %s4341 = scalar_lea.vmem [#allocation11], 48
    %v4342 = vld [vmem:[%s4341] sm:$0xff]
    %v4343 = vld [vmem:[%s4341 + $0x8] sm:$0xff]
    %v4344 = vld [vmem:[%s4341 + $0x10] sm:$0xff]
    %v4345 = vpack.c.bf16 %v4340, %v4339
    %s4346 = scalar_lea.vmem [#allocation5], 384
    %v4347 = vld [vmem:[%s4346] sm:$0xff]
    %v4348 = vld [vmem:[%s4346 + $0x8] sm:$0xf]
    %v4349 = vld [vmem:[%s4346 + $0xc] sm:$0xff]
    %v4350 = vld [vmem:[%s4346 + $0x14] sm:$0xf]
    %v4351 = vld [vmem:[%s4346 + $0x18] sm:$0xff]
    %v4352 = vld [vmem:[%s4346 + $0x20] sm:$0xf]
    %v4353 = vld [vmem:[%s4346 + $0x24] sm:$0xff]
    %v4354 = vld [vmem:[%s4346 + $0x2c] sm:$0xf]
    %v4355 = vld [vmem:[%s4346 + $0x30] sm:$0xff]
    %v4356 = vld [vmem:[%s4346 + $0x38] sm:$0xf]
    %v4357 = vld [vmem:[%s4346 + $0x3c] sm:$0xff]
    %v4358 = vld [vmem:[%s4346 + $0x44] sm:$0xf]
    %v4359 = vld [vmem:[%s4346 + $0x48] sm:$0xff]
    %v4360 = vld [vmem:[%s4346 + $0x50] sm:$0xf]
    %v4361 = vld [vmem:[%s4346 + $0x54] sm:$0xff]
    %v4362 = vld [vmem:[%s4346 + $0x5c] sm:$0xf]
    %v4363 = vld [vmem:[%s4346 + $0x60] sm:$0xff]
    %v4364 = vld [vmem:[%s4346 + $0x68] sm:$0xf]
    %v4365 = vld [vmem:[%s4346 + $0x6c] sm:$0xff]
    %v4366 = vld [vmem:[%s4346 + $0x74] sm:$0xf]
    %v4367 = vld [vmem:[%s4346 + $0x78] sm:$0xff]
    %v4368 = vld [vmem:[%s4346 + $0x80] sm:$0xf]
    %v4369 = vld [vmem:[%s4346 + $0x84] sm:$0xff]
    %v4370 = vld [vmem:[%s4346 + $0x8c] sm:$0xf]
    %v4371 = vld [vmem:[%s4346 + $0x90] sm:$0xff]
    %v4372 = vld [vmem:[%s4346 + $0x98] sm:$0xf]
    %v4373 = vld [vmem:[%s4346 + $0x9c] sm:$0xff]
    %v4374 = vld [vmem:[%s4346 + $0xa4] sm:$0xf]
    %v4375 = vld [vmem:[%s4346 + $0xa8] sm:$0xff]
    %v4376 = vld [vmem:[%s4346 + $0xb0] sm:$0xf]
    %v4377 = vld [vmem:[%s4346 + $0xb4] sm:$0xff]
    %v4378 = vld [vmem:[%s4346 + $0xbc] sm:$0xf]
    %v4379 = vlaneseq
    %v4380 = vshrl.u32 %v4379, 7
    %v4381 = vsub.s32 0, %v4380
    %v4382 = vrot.slane %v4342, %v4381
    %v4383 = vlaneseq
    %v4384 = vshrl.u32 %v4383, 7
    %v4385 = vsub.s32 0, %v4384
    %v4386 = vrot.slane %v4343, %v4385
    %v4387 = vlaneseq
    %v4388 = vshrl.u32 %v4387, 7
    %v4389 = vsub.s32 0, %v4388
    %v4390 = vrot.slane %v4344, %v4389
    %v4423 = vunpack.c.l.b16 %v4347
    %v4424 = vunpack.c.h.b16 %v4347
    %v4425 = vunpack.c.l.b16 %v4348
    %v4426 = vunpack.c.l.b16 %v4349
    %v4427 = vunpack.c.h.b16 %v4349
    %v4428 = vunpack.c.l.b16 %v4350
    %v4429 = vunpack.c.l.b16 %v4351
    %v4430 = vunpack.c.h.b16 %v4351
    %v4431 = vunpack.c.l.b16 %v4352
    %v4432 = vunpack.c.l.b16 %v4353
    %v4433 = vunpack.c.h.b16 %v4353
    %v4434 = vunpack.c.l.b16 %v4354
    %v4435 = vunpack.c.l.b16 %v4355
    %v4436 = vunpack.c.h.b16 %v4355
    %v4437 = vunpack.c.l.b16 %v4356
    %v4438 = vunpack.c.l.b16 %v4357
    %v4439 = vunpack.c.h.b16 %v4357
    %v4440 = vunpack.c.l.b16 %v4358
    %v4441 = vunpack.c.l.b16 %v4359
    %v4442 = vunpack.c.h.b16 %v4359
    %v4443 = vunpack.c.l.b16 %v4360
    %v4444 = vunpack.c.l.b16 %v4361
    %v4445 = vunpack.c.h.b16 %v4361
    %v4446 = vunpack.c.l.b16 %v4362
    %v4447 = vunpack.c.l.b16 %v4363
    %v4448 = vunpack.c.h.b16 %v4363
    %v4449 = vunpack.c.l.b16 %v4364
    %v4450 = vunpack.c.l.b16 %v4365
    %v4451 = vunpack.c.h.b16 %v4365
    %v4452 = vunpack.c.l.b16 %v4366
    %v4453 = vunpack.c.l.b16 %v4367
    %v4454 = vunpack.c.h.b16 %v4367
    %v4455 = vunpack.c.l.b16 %v4368
    %v4456 = vunpack.c.l.b16 %v4369
    %v4457 = vunpack.c.h.b16 %v4369
    %v4458 = vunpack.c.l.b16 %v4370
    %v4459 = vunpack.c.l.b16 %v4371
    %v4460 = vunpack.c.h.b16 %v4371
    %v4461 = vunpack.c.l.b16 %v4372
    %v4462 = vunpack.c.l.b16 %v4373
    %v4463 = vunpack.c.h.b16 %v4373
    %v4464 = vunpack.c.l.b16 %v4374
    %v4465 = vunpack.c.l.b16 %v4375
    %v4466 = vunpack.c.h.b16 %v4375
    %v4467 = vunpack.c.l.b16 %v4376
    %v4468 = vunpack.c.l.b16 %v4377
    %v4469 = vunpack.c.h.b16 %v4377
    %v4470 = vunpack.c.l.b16 %v4378
    %v4471 = vpack.c.b16 %v4426, %v4423
    %v4472 = vpack.c.b16 %v4427, %v4424
    %v4473 = vpack.c.b16 %v4428, %v4425
    %v4474 = vpack.c.b16 %v4432, %v4429
    %v4475 = vpack.c.b16 %v4433, %v4430
    %v4476 = vpack.c.b16 %v4434, %v4431
    %v4477 = vpack.c.b16 %v4438, %v4435
    %v4478 = vpack.c.b16 %v4439, %v4436
    %v4479 = vpack.c.b16 %v4440, %v4437
    %v4480 = vpack.c.b16 %v4444, %v4441
    %v4481 = vpack.c.b16 %v4445, %v4442
    %v4482 = vpack.c.b16 %v4446, %v4443
    %v4483 = vpack.c.b16 %v4450, %v4447
    %v4484 = vpack.c.b16 %v4451, %v4448
    %v4485 = vpack.c.b16 %v4452, %v4449
    %v4486 = vpack.c.b16 %v4456, %v4453
    %v4487 = vpack.c.b16 %v4457, %v4454
    %v4488 = vpack.c.b16 %v4458, %v4455
    %v4489 = vpack.c.b16 %v4462, %v4459
    %v4490 = vpack.c.b16 %v4463, %v4460
    %v4491 = vpack.c.b16 %v4464, %v4461
    %v4492 = vpack.c.b16 %v4468, %v4465
    %v4493 = vpack.c.b16 %v4469, %v4466
    %v4494 = vpack.c.b16 %v4470, %v4467
    %4519 = vmatprep.subr.bf16.mxu0 %v4472
    %4520 = vmatpush1.bf16.msra.mxu0 %v4471
    %4521 = vmatprep.subr.bf16.mxu0 %v4475
    %4522 = vmatpush1.bf16.msra.mxu0 %v4474
    %4523 = vmatprep.subr.bf16.mxu0 %v4478
    %4524 = vmatpush1.bf16.msra.mxu0 %v4477
    %4525 = vmatprep.subr.bf16.mxu0 %v4481
    %4526 = vmatpush1.bf16.msra.mxu0 %v4480
    %4527 = vmatprep.subr.bf16.mxu0 %v4484
    %4528 = vmatpush1.bf16.msra.mxu0 %v4483
    %4529 = vmatprep.subr.bf16.mxu0 %v4487
    %4530 = vmatpush1.bf16.msra.mxu0 %v4486
    %4531 = vmatprep.subr.bf16.mxu0 %v4490
    %4532 = vmatpush1.bf16.msra.mxu0 %v4489
    %4533 = vmatprep.subr.bf16.mxu0 %v4493
    %4534 = vmatpush1.bf16.msra.mxu0 %v4492
    %4535 = vmatprep.subr.bf16.mxu0 0
    %4536 = vmatpush1.bf16.msra.mxu0 0
    %4537 = vmatprep.subr.bf16.mxu0 0
    %4538 = vmatpush1.bf16.msra.mxu0 0
    %4539 = vmatprep.subr.bf16.mxu0 0
    %4540 = vmatpush1.bf16.msra.mxu0 0
    %4541 = vmatprep.subr.bf16.mxu0 0
    %4542 = vmatpush1.bf16.msra.mxu0 0
    %4543 = vmatprep.subr.bf16.mxu0 0
    %4544 = vmatpush1.bf16.msra.mxu0 0
    %4545 = vmatprep.subr.bf16.mxu0 0
    %4546 = vmatpush1.bf16.msra.mxu0 0
    %4547 = vmatprep.subr.bf16.mxu0 0
    %4548 = vmatpush1.bf16.msra.mxu0 0
    %4549 = vmatprep.subr.bf16.mxu0 0
    %4550 = vmatpush1.bf16.msra.mxu0 0
    %4551 = vmatprep.mubr.bf16.mxu0 0
    %4552 = vmatmul.mubr.bf16.gmra.mrb[0].mxu0 %v4345
    %v4553 = vpop.f32.mrb[0].mxu0
    %v4554 = vadd.f32 %v4382, %v4553
    %v4555 = vpop.f32.mrb[0].mxu0
    %v4556 = vadd.f32 %v4386, %v4555
    %v4557 = vpop.f32.mrb[0].mxu0
    %v4558 = vadd.f32 %v4382, %v4557
    %v4559 = vpop.f32.mrb[0].mxu0
    %v4560 = vadd.f32 %v4386, %v4559
    %4561 = vdwg.mxu0
    %4562 = vmatprep.subr.bf16.mxu0 0
    %4563 = vmatpush1.bf16.msra.mxu0 %v4473
    %4564 = vmatprep.subr.bf16.mxu0 0
    %4565 = vmatpush1.bf16.msra.mxu0 %v4476
    %4566 = vmatprep.subr.bf16.mxu0 0
    %4567 = vmatpush1.bf16.msra.mxu0 %v4479
    %4568 = vmatprep.subr.bf16.mxu0 0
    %4569 = vmatpush1.bf16.msra.mxu0 %v4482
    %4570 = vmatprep.subr.bf16.mxu0 0
    %4571 = vmatpush1.bf16.msra.mxu0 %v4485
    %4572 = vmatprep.subr.bf16.mxu0 0
    %4573 = vmatpush1.bf16.msra.mxu0 %v4488
    %4574 = vmatprep.subr.bf16.mxu0 0
    %4575 = vmatpush1.bf16.msra.mxu0 %v4491
    %4576 = vmatprep.subr.bf16.mxu0 0
    %4577 = vmatpush1.bf16.msra.mxu0 %v4494
    %4578 = vmatprep.subr.bf16.mxu0 0
    %4579 = vmatpush1.bf16.msra.mxu0 0
    %4580 = vmatprep.subr.bf16.mxu0 0
    %4581 = vmatpush1.bf16.msra.mxu0 0
    %4582 = vmatprep.subr.bf16.mxu0 0
    %4583 = vmatpush1.bf16.msra.mxu0 0
    %4584 = vmatprep.subr.bf16.mxu0 0
    %4585 = vmatpush1.bf16.msra.mxu0 0
    %4586 = vmatprep.subr.bf16.mxu0 0
    %4587 = vmatpush1.bf16.msra.mxu0 0
    %4588 = vmatprep.subr.bf16.mxu0 0
    %4589 = vmatpush1.bf16.msra.mxu0 0
    %4590 = vmatprep.subr.bf16.mxu0 0
    %4591 = vmatpush1.bf16.msra.mxu0 0
    %4592 = vmatprep.subr.bf16.mxu0 0
    %4593 = vmatpush1.bf16.msra.mxu0 0
    %4594 = vmatprep.mubr.bf16.mxu0 0
    %4595 = vmatmul.mubr.bf16.gmra.mrb[0].mxu0 %v4345
    %v4596 = vpop.f32.mrb[0].mxu0
    %v4597 = vadd.f32 %v4390, %v4596
    %v4598 = vpop.f32.mrb[0].mxu0
    %v4599 = vpop.f32.mrb[0].mxu0
    %v4600 = vadd.f32 %v4390, %v4599
    %v4601 = vpop.f32.mrb[0].mxu0
    %4602 = vdwg.mxu0
    %4605 = vrot.lane.b32.xlu0 %v4554, 96
    %v4606 = vpop.permute.xlu0 %4605
    %4607 = vrot.lane.b32.xlu0 %v4558, 96
    %v4608 = vpop.permute.xlu0 %4607
    %4609 = vrot.lane.b32.xlu0 %v4554, 64
    %v4610 = vpop.permute.xlu0 %4609
    %4611 = vrot.lane.b32.xlu0 %v4558, 64
    %v4612 = vpop.permute.xlu0 %4611
    %4613 = vrot.lane.b32.xlu0 %v4554, 32
    %v4614 = vpop.permute.xlu0 %4613
    %4615 = vrot.lane.b32.xlu0 %v4558, 32
    %v4616 = vpop.permute.xlu0 %4615
    %4619 = vrot.lane.b32.xlu0 %v4556, 96
    %v4620 = vpop.permute.xlu0 %4619
    %4621 = vrot.lane.b32.xlu0 %v4560, 96
    %v4622 = vpop.permute.xlu0 %4621
    %4623 = vrot.lane.b32.xlu0 %v4556, 64
    %v4624 = vpop.permute.xlu0 %4623
    %4625 = vrot.lane.b32.xlu0 %v4560, 64
    %v4626 = vpop.permute.xlu0 %4625
    %4627 = vrot.lane.b32.xlu0 %v4556, 32
    %v4628 = vpop.permute.xlu0 %4627
    %4629 = vrot.lane.b32.xlu0 %v4560, 32
    %v4630 = vpop.permute.xlu0 %4629
    %4633 = vrot.lane.b32.xlu0 %v4597, 96
    %v4634 = vpop.permute.xlu0 %4633
    %4635 = vrot.lane.b32.xlu0 %v4600, 96
    %v4636 = vpop.permute.xlu0 %4635
    %4639 = vrot.lane.b32.xlu0 %v4597, 64
    %v4640 = vpop.permute.xlu0 %4639
    %4641 = vrot.lane.b32.xlu0 %v4600, 64
    %v4642 = vpop.permute.xlu0 %4641
    %4645 = vrot.lane.b32.xlu0 %v4597, 32
    %v4646 = vpop.permute.xlu0 %4645
    %4647 = vrot.lane.b32.xlu0 %v4600, 32
    %v4648 = vpop.permute.xlu0 %4647
    %v4651 = vsel %vm417, %v4554, 0
    %v4653 = vsel %vm417, %v4556, 0
    %4655 = vmatprep.subr.mxu0 0.0
    %4656 = vmatpush1.xpose.msra.mxu0 %v4653
    %4657 = vmatprep.subr.mxu0 0.0
    %4658 = vmatpush1.xpose.msra.mxu0 0.0
    %4659 = vmatprep.subr.mxu0 0.0
    %4660 = vmatpush1.xpose.msra.mxu0 0.0
    %4661 = vmatprep.subr.mxu0 0.0
    %4662 = vmatpush1.xpose.msra.mxu0 0.0
    %4663 = vmatprep.subr.mxu0 0.0
    %4664 = vmatpush1.xpose.msra.mxu0 0.0
    %4665 = vmatprep.subr.mxu0 0.0
    %4666 = vmatpush1.xpose.msra.mxu0 0.0
    %4667 = vmatprep.subr.mxu0 0.0
    %4668 = vmatpush1.xpose.msra.mxu0 0.0
    %4669 = vmatprep.subr.mxu0 0.0
    %4670 = vmatpush1.xpose.msra.mxu0 0.0
    %4671 = vmatprep.subr.mxu0 0.0
    %4672 = vmatpush1.xpose.msra.mxu0 0.0
    %4673 = vmatprep.subr.mxu0 0.0
    %4674 = vmatpush1.xpose.msra.mxu0 0.0
    %4675 = vmatprep.subr.mxu0 0.0
    %4676 = vmatpush1.xpose.msra.mxu0 0.0
    %4677 = vmatprep.subr.mxu0 0.0
    %4678 = vmatpush1.xpose.msra.mxu0 0.0
    %4679 = vmatprep.subr.mxu0 0.0
    %4680 = vmatpush1.xpose.msra.mxu0 0.0
    %4681 = vmatprep.subr.mxu0 0.0
    %4682 = vmatpush1.xpose.msra.mxu0 0.0
    %4683 = vmatprep.subr.mxu0 0.0
    %4684 = vmatpush1.xpose.msra.mxu0 0.0
    %4685 = vmatprep.subr.mxu0 0.0
    %4686 = vmatpush1.xpose.msra.mxu0 0.0
    %4687 = vmatprep.subr.mxu0 0.0
    %4688 = vmatpush1.xpose.msra.mxu0 0.0
    %4689 = vmatprep.subr.mxu0 0.0
    %4690 = vmatpush1.xpose.msra.mxu0 0.0
    %4691 = vmatprep.subr.mxu0 0.0
    %4692 = vmatpush1.xpose.msra.mxu0 0.0
    %4693 = vmatprep.subr.mxu0 0.0
    %4694 = vmatpush1.xpose.msra.mxu0 0.0
    %4695 = vmatprep.subr.mxu0 0.0
    %4696 = vmatpush1.xpose.msra.mxu0 0.0
    %4697 = vmatprep.subr.mxu0 0.0
    %4698 = vmatpush1.xpose.msra.mxu0 0.0
    %4699 = vmatprep.subr.mxu0 0.0
    %4700 = vmatpush1.xpose.msra.mxu0 0.0
    %4701 = vmatprep.subr.mxu0 0.0
    %4702 = vmatpush1.xpose.msra.mxu0 0.0
    %4703 = vmatprep.subr.mxu0 0.0
    %4704 = vmatpush1.xpose.msra.mxu0 0.0
    %4705 = vmatprep.subr.mxu0 0.0
    %4706 = vmatpush1.xpose.msra.mxu0 0.0
    %4707 = vmatprep.subr.mxu0 0.0
    %4708 = vmatpush1.xpose.msra.mxu0 0.0
    %4709 = vmatprep.subr.mxu0 0.0
    %4710 = vmatpush1.xpose.msra.mxu0 0.0
    %4711 = vmatprep.subr.mxu0 0.0
    %4712 = vmatpush1.xpose.msra.mxu0 0.0
    %4713 = vmatprep.subr.mxu0 0.0
    %4714 = vmatpush1.xpose.msra.mxu0 0.0
    %4715 = vmatprep.subr.mxu0 0.0
    %4716 = vmatpush1.xpose.msra.mxu0 0.0
    %4717 = vmatprep.subr.mxu0 0.0
    %4718 = vmatpush1.xpose.msra.mxu0 0.0
    %4719 = vmatprep.mubr.f32.mxu0 0.0
    %4720 = vmatmul.mubr.f32.gmra.mrb[0].mxu0 %v4651
    %v4721 = vpop.f32.mrb[0].mxu0
    %v4722 = vadd.f32 0.0, %v4721
    %v4723 = vpop.f32.mrb[0].mxu0
    %4724 = vdwg.mxu0
    %v4725 = vsel %vm417, %v4558, 0
    %v4727 = vsel %vm417, %v4560, 0
    %4729 = vmatprep.subr.mxu0 0.0
    %4730 = vmatpush1.xpose.msra.mxu0 %v4727
    %4731 = vmatprep.subr.mxu0 0.0
    %4732 = vmatpush1.xpose.msra.mxu0 0.0
    %4733 = vmatprep.subr.mxu0 0.0
    %4734 = vmatpush1.xpose.msra.mxu0 0.0
    %4735 = vmatprep.subr.mxu0 0.0
    %4736 = vmatpush1.xpose.msra.mxu0 0.0
    %4737 = vmatprep.subr.mxu0 0.0
    %4738 = vmatpush1.xpose.msra.mxu0 0.0
    %4739 = vmatprep.subr.mxu0 0.0
    %4740 = vmatpush1.xpose.msra.mxu0 0.0
    %4741 = vmatprep.subr.mxu0 0.0
    %4742 = vmatpush1.xpose.msra.mxu0 0.0
    %4743 = vmatprep.subr.mxu0 0.0
    %4744 = vmatpush1.xpose.msra.mxu0 0.0
    %4745 = vmatprep.subr.mxu0 0.0
    %4746 = vmatpush1.xpose.msra.mxu0 0.0
    %4747 = vmatprep.subr.mxu0 0.0
    %4748 = vmatpush1.xpose.msra.mxu0 0.0
    %4749 = vmatprep.subr.mxu0 0.0
    %4750 = vmatpush1.xpose.msra.mxu0 0.0
    %4751 = vmatprep.subr.mxu0 0.0
    %4752 = vmatpush1.xpose.msra.mxu0 0.0
    %4753 = vmatprep.subr.mxu0 0.0
    %4754 = vmatpush1.xpose.msra.mxu0 0.0
    %4755 = vmatprep.subr.mxu0 0.0
    %4756 = vmatpush1.xpose.msra.mxu0 0.0
    %4757 = vmatprep.subr.mxu0 0.0
    %4758 = vmatpush1.xpose.msra.mxu0 0.0
    %4759 = vmatprep.subr.mxu0 0.0
    %4760 = vmatpush1.xpose.msra.mxu0 0.0
    %4761 = vmatprep.subr.mxu0 0.0
    %4762 = vmatpush1.xpose.msra.mxu0 0.0
    %4763 = vmatprep.subr.mxu0 0.0
    %4764 = vmatpush1.xpose.msra.mxu0 0.0
    %4765 = vmatprep.subr.mxu0 0.0
    %4766 = vmatpush1.xpose.msra.mxu0 0.0
    %4767 = vmatprep.subr.mxu0 0.0
    %4768 = vmatpush1.xpose.msra.mxu0 0.0
    %4769 = vmatprep.subr.mxu0 0.0
    %4770 = vmatpush1.xpose.msra.mxu0 0.0
    %4771 = vmatprep.subr.mxu0 0.0
    %4772 = vmatpush1.xpose.msra.mxu0 0.0
    %4773 = vmatprep.subr.mxu0 0.0
    %4774 = vmatpush1.xpose.msra.mxu0 0.0
    %4775 = vmatprep.subr.mxu0 0.0
    %4776 = vmatpush1.xpose.msra.mxu0 0.0
    %4777 = vmatprep.subr.mxu0 0.0
    %4778 = vmatpush1.xpose.msra.mxu0 0.0
    %4779 = vmatprep.subr.mxu0 0.0
    %4780 = vmatpush1.xpose.msra.mxu0 0.0
    %4781 = vmatprep.subr.mxu0 0.0
    %4782 = vmatpush1.xpose.msra.mxu0 0.0
    %4783 = vmatprep.subr.mxu0 0.0
    %4784 = vmatpush1.xpose.msra.mxu0 0.0
    %4785 = vmatprep.subr.mxu0 0.0
    %4786 = vmatpush1.xpose.msra.mxu0 0.0
    %4787 = vmatprep.subr.mxu0 0.0
    %4788 = vmatpush1.xpose.msra.mxu0 0.0
    %4789 = vmatprep.subr.mxu0 0.0
    %4790 = vmatpush1.xpose.msra.mxu0 0.0
    %4791 = vmatprep.subr.mxu0 0.0
    %4792 = vmatpush1.xpose.msra.mxu0 0.0
    %4793 = vmatprep.mubr.f32.mxu0 0.0
    %4794 = vmatmul.mubr.f32.gmra.mrb[0].mxu0 %v4725
    %v4795 = vpop.f32.mrb[0].mxu0
    %v4796 = vadd.f32 0.0, %v4795
    %v4797 = vpop.f32.mrb[0].mxu0
    %4798 = vdwg.mxu0
    %v4799 = vsel %vm417, %v4606, 0
    %v4801 = vsel %vm417, %v4620, 0
    %4803 = vmatprep.subr.mxu0 0.0
    %4804 = vmatpush1.xpose.msra.mxu0 %v4801
    %4805 = vmatprep.subr.mxu0 0.0
    %4806 = vmatpush1.xpose.msra.mxu0 0.0
    %4807 = vmatprep.subr.mxu0 0.0
    %4808 = vmatpush1.xpose.msra.mxu0 0.0
    %4809 = vmatprep.subr.mxu0 0.0
    %4810 = vmatpush1.xpose.msra.mxu0 0.0
    %4811 = vmatprep.subr.mxu0 0.0
    %4812 = vmatpush1.xpose.msra.mxu0 0.0
    %4813 = vmatprep.subr.mxu0 0.0
    %4814 = vmatpush1.xpose.msra.mxu0 0.0
    %4815 = vmatprep.subr.mxu0 0.0
    %4816 = vmatpush1.xpose.msra.mxu0 0.0
    %4817 = vmatprep.subr.mxu0 0.0
    %4818 = vmatpush1.xpose.msra.mxu0 0.0
    %4819 = vmatprep.subr.mxu0 0.0
    %4820 = vmatpush1.xpose.msra.mxu0 0.0
    %4821 = vmatprep.subr.mxu0 0.0
    %4822 = vmatpush1.xpose.msra.mxu0 0.0
    %4823 = vmatprep.subr.mxu0 0.0
    %4824 = vmatpush1.xpose.msra.mxu0 0.0
    %4825 = vmatprep.subr.mxu0 0.0
    %4826 = vmatpush1.xpose.msra.mxu0 0.0
    %4827 = vmatprep.subr.mxu0 0.0
    %4828 = vmatpush1.xpose.msra.mxu0 0.0
    %4829 = vmatprep.subr.mxu0 0.0
    %4830 = vmatpush1.xpose.msra.mxu0 0.0
    %4831 = vmatprep.subr.mxu0 0.0
    %4832 = vmatpush1.xpose.msra.mxu0 0.0
    %4833 = vmatprep.subr.mxu0 0.0
    %4834 = vmatpush1.xpose.msra.mxu0 0.0
    %4835 = vmatprep.subr.mxu0 0.0
    %4836 = vmatpush1.xpose.msra.mxu0 0.0
    %4837 = vmatprep.subr.mxu0 0.0
    %4838 = vmatpush1.xpose.msra.mxu0 0.0
    %4839 = vmatprep.subr.mxu0 0.0
    %4840 = vmatpush1.xpose.msra.mxu0 0.0
    %4841 = vmatprep.subr.mxu0 0.0
    %4842 = vmatpush1.xpose.msra.mxu0 0.0
    %4843 = vmatprep.subr.mxu0 0.0
    %4844 = vmatpush1.xpose.msra.mxu0 0.0
    %4845 = vmatprep.subr.mxu0 0.0
    %4846 = vmatpush1.xpose.msra.mxu0 0.0
    %4847 = vmatprep.subr.mxu0 0.0
    %4848 = vmatpush1.xpose.msra.mxu0 0.0
    %4849 = vmatprep.subr.mxu0 0.0
    %4850 = vmatpush1.xpose.msra.mxu0 0.0
    %4851 = vmatprep.subr.mxu0 0.0
    %4852 = vmatpush1.xpose.msra.mxu0 0.0
    %4853 = vmatprep.subr.mxu0 0.0
    %4854 = vmatpush1.xpose.msra.mxu0 0.0
    %4855 = vmatprep.subr.mxu0 0.0
    %4856 = vmatpush1.xpose.msra.mxu0 0.0
    %4857 = vmatprep.subr.mxu0 0.0
    %4858 = vmatpush1.xpose.msra.mxu0 0.0
    %4859 = vmatprep.subr.mxu0 0.0
    %4860 = vmatpush1.xpose.msra.mxu0 0.0
    %4861 = vmatprep.subr.mxu0 0.0
    %4862 = vmatpush1.xpose.msra.mxu0 0.0
    %4863 = vmatprep.subr.mxu0 0.0
    %4864 = vmatpush1.xpose.msra.mxu0 0.0
    %4865 = vmatprep.subr.mxu0 0.0
    %4866 = vmatpush1.xpose.msra.mxu0 0.0
    %4867 = vmatprep.mubr.f32.mxu0 0.0
    %4868 = vmatmul.mubr.f32.gmra.mrb[0].mxu0 %v4799
    %v4869 = vpop.f32.mrb[0].mxu0
    %v4870 = vadd.f32 0.0, %v4869
    %v4871 = vpop.f32.mrb[0].mxu0
    %4872 = vdwg.mxu0
    %v4873 = vsel %vm417, %v4608, 0
    %v4875 = vsel %vm417, %v4622, 0
    %4877 = vmatprep.subr.mxu0 0.0
    %4878 = vmatpush1.xpose.msra.mxu0 %v4875
    %4879 = vmatprep.subr.mxu0 0.0
    %4880 = vmatpush1.xpose.msra.mxu0 0.0
    %4881 = vmatprep.subr.mxu0 0.0
    %4882 = vmatpush1.xpose.msra.mxu0 0.0
    %4883 = vmatprep.subr.mxu0 0.0
    %4884 = vmatpush1.xpose.msra.mxu0 0.0
    %4885 = vmatprep.subr.mxu0 0.0
    %4886 = vmatpush1.xpose.msra.mxu0 0.0
    %4887 = vmatprep.subr.mxu0 0.0
    %4888 = vmatpush1.xpose.msra.mxu0 0.0
    %4889 = vmatprep.subr.mxu0 0.0
    %4890 = vmatpush1.xpose.msra.mxu0 0.0
    %4891 = vmatprep.subr.mxu0 0.0
    %4892 = vmatpush1.xpose.msra.mxu0 0.0
    %4893 = vmatprep.subr.mxu0 0.0
    %4894 = vmatpush1.xpose.msra.mxu0 0.0
    %4895 = vmatprep.subr.mxu0 0.0
    %4896 = vmatpush1.xpose.msra.mxu0 0.0
    %4897 = vmatprep.subr.mxu0 0.0
    %4898 = vmatpush1.xpose.msra.mxu0 0.0
    %4899 = vmatprep.subr.mxu0 0.0
    %4900 = vmatpush1.xpose.msra.mxu0 0.0
    %4901 = vmatprep.subr.mxu0 0.0
    %4902 = vmatpush1.xpose.msra.mxu0 0.0
    %4903 = vmatprep.subr.mxu0 0.0
    %4904 = vmatpush1.xpose.msra.mxu0 0.0
    %4905 = vmatprep.subr.mxu0 0.0
    %4906 = vmatpush1.xpose.msra.mxu0 0.0
    %4907 = vmatprep.subr.mxu0 0.0
    %4908 = vmatpush1.xpose.msra.mxu0 0.0
    %4909 = vmatprep.subr.mxu0 0.0
    %4910 = vmatpush1.xpose.msra.mxu0 0.0
    %4911 = vmatprep.subr.mxu0 0.0
    %4912 = vmatpush1.xpose.msra.mxu0 0.0
    %4913 = vmatprep.subr.mxu0 0.0
    %4914 = vmatpush1.xpose.msra.mxu0 0.0
    %4915 = vmatprep.subr.mxu0 0.0
    %4916 = vmatpush1.xpose.msra.mxu0 0.0
    %4917 = vmatprep.subr.mxu0 0.0
    %4918 = vmatpush1.xpose.msra.mxu0 0.0
    %4919 = vmatprep.subr.mxu0 0.0
    %4920 = vmatpush1.xpose.msra.mxu0 0.0
    %4921 = vmatprep.subr.mxu0 0.0
    %4922 = vmatpush1.xpose.msra.mxu0 0.0
    %4923 = vmatprep.subr.mxu0 0.0
    %4924 = vmatpush1.xpose.msra.mxu0 0.0
    %4925 = vmatprep.subr.mxu0 0.0
    %4926 = vmatpush1.xpose.msra.mxu0 0.0
    %4927 = vmatprep.subr.mxu0 0.0
    %4928 = vmatpush1.xpose.msra.mxu0 0.0
    %4929 = vmatprep.subr.mxu0 0.0
    %4930 = vmatpush1.xpose.msra.mxu0 0.0
    %4931 = vmatprep.subr.mxu0 0.0
    %4932 = vmatpush1.xpose.msra.mxu0 0.0
    %4933 = vmatprep.subr.mxu0 0.0
    %4934 = vmatpush1.xpose.msra.mxu0 0.0
    %4935 = vmatprep.subr.mxu0 0.0
    %4936 = vmatpush1.xpose.msra.mxu0 0.0
    %4937 = vmatprep.subr.mxu0 0.0
    %4938 = vmatpush1.xpose.msra.mxu0 0.0
    %4939 = vmatprep.subr.mxu0 0.0
    %4940 = vmatpush1.xpose.msra.mxu0 0.0
    %4941 = vmatprep.mubr.f32.mxu0 0.0
    %4942 = vmatmul.mubr.f32.gmra.mrb[0].mxu0 %v4873
    %v4943 = vpop.f32.mrb[0].mxu0
    %v4944 = vadd.f32 0.0, %v4943
    %v4945 = vpop.f32.mrb[0].mxu0
    %4946 = vdwg.mxu0
    %v4947 = vsel %vm417, %v4610, 0
    %v4949 = vsel %vm417, %v4624, 0
    %4951 = vmatprep.subr.mxu0 0.0
    %4952 = vmatpush1.xpose.msra.mxu0 %v4949
    %4953 = vmatprep.subr.mxu0 0.0
    %4954 = vmatpush1.xpose.msra.mxu0 0.0
    %4955 = vmatprep.subr.mxu0 0.0
    %4956 = vmatpush1.xpose.msra.mxu0 0.0
    %4957 = vmatprep.subr.mxu0 0.0
    %4958 = vmatpush1.xpose.msra.mxu0 0.0
    %4959 = vmatprep.subr.mxu0 0.0
    %4960 = vmatpush1.xpose.msra.mxu0 0.0
    %4961 = vmatprep.subr.mxu0 0.0
    %4962 = vmatpush1.xpose.msra.mxu0 0.0
    %4963 = vmatprep.subr.mxu0 0.0
    %4964 = vmatpush1.xpose.msra.mxu0 0.0
    %4965 = vmatprep.subr.mxu0 0.0
    %4966 = vmatpush1.xpose.msra.mxu0 0.0
    %4967 = vmatprep.subr.mxu0 0.0
    %4968 = vmatpush1.xpose.msra.mxu0 0.0
    %4969 = vmatprep.subr.mxu0 0.0
    %4970 = vmatpush1.xpose.msra.mxu0 0.0
    %4971 = vmatprep.subr.mxu0 0.0
    %4972 = vmatpush1.xpose.msra.mxu0 0.0
    %4973 = vmatprep.subr.mxu0 0.0
    %4974 = vmatpush1.xpose.msra.mxu0 0.0
    %4975 = vmatprep.subr.mxu0 0.0
    %4976 = vmatpush1.xpose.msra.mxu0 0.0
    %4977 = vmatprep.subr.mxu0 0.0
    %4978 = vmatpush1.xpose.msra.mxu0 0.0
    %4979 = vmatprep.subr.mxu0 0.0
    %4980 = vmatpush1.xpose.msra.mxu0 0.0
    %4981 = vmatprep.subr.mxu0 0.0
    %4982 = vmatpush1.xpose.msra.mxu0 0.0
    %4983 = vmatprep.subr.mxu0 0.0
    %4984 = vmatpush1.xpose.msra.mxu0 0.0
    %4985 = vmatprep.subr.mxu0 0.0
    %4986 = vmatpush1.xpose.msra.mxu0 0.0
    %4987 = vmatprep.subr.mxu0 0.0
    %4988 = vmatpush1.xpose.msra.mxu0 0.0
    %4989 = vmatprep.subr.mxu0 0.0
    %4990 = vmatpush1.xpose.msra.mxu0 0.0
    %4991 = vmatprep.subr.mxu0 0.0
    %4992 = vmatpush1.xpose.msra.mxu0 0.0
    %4993 = vmatprep.subr.mxu0 0.0
    %4994 = vmatpush1.xpose.msra.mxu0 0.0
    %4995 = vmatprep.subr.mxu0 0.0
    %4996 = vmatpush1.xpose.msra.mxu0 0.0
    %4997 = vmatprep.subr.mxu0 0.0
    %4998 = vmatpush1.xpose.msra.mxu0 0.0
    %4999 = vmatprep.subr.mxu0 0.0
    %5000 = vmatpush1.xpose.msra.mxu0 0.0
    %5001 = vmatprep.subr.mxu0 0.0
    %5002 = vmatpush1.xpose.msra.mxu0 0.0
    %5003 = vmatprep.subr.mxu0 0.0
    %5004 = vmatpush1.xpose.msra.mxu0 0.0
    %5005 = vmatprep.subr.mxu0 0.0
    %5006 = vmatpush1.xpose.msra.mxu0 0.0
    %5007 = vmatprep.subr.mxu0 0.0
    %5008 = vmatpush1.xpose.msra.mxu0 0.0
    %5009 = vmatprep.subr.mxu0 0.0
    %5010 = vmatpush1.xpose.msra.mxu0 0.0
    %5011 = vmatprep.subr.mxu0 0.0
    %5012 = vmatpush1.xpose.msra.mxu0 0.0
    %5013 = vmatprep.subr.mxu0 0.0
    %5014 = vmatpush1.xpose.msra.mxu0 0.0
    %5015 = vmatprep.mubr.f32.mxu0 0.0
    %5016 = vmatmul.mubr.f32.gmra.mrb[0].mxu0 %v4947
    %v5017 = vpop.f32.mrb[0].mxu0
    %v5018 = vadd.f32 0.0, %v5017
    %v5019 = vpop.f32.mrb[0].mxu0
    %5020 = vdwg.mxu0
    %v5021 = vsel %vm417, %v4612, 0
    %v5023 = vsel %vm417, %v4626, 0
    %5025 = vmatprep.subr.mxu0 0.0
    %5026 = vmatpush1.xpose.msra.mxu0 %v5023
    %5027 = vmatprep.subr.mxu0 0.0
    %5028 = vmatpush1.xpose.msra.mxu0 0.0
    %5029 = vmatprep.subr.mxu0 0.0
    %5030 = vmatpush1.xpose.msra.mxu0 0.0
    %5031 = vmatprep.subr.mxu0 0.0
    %5032 = vmatpush1.xpose.msra.mxu0 0.0
    %5033 = vmatprep.subr.mxu0 0.0
    %5034 = vmatpush1.xpose.msra.mxu0 0.0
    %5035 = vmatprep.subr.mxu0 0.0
    %5036 = vmatpush1.xpose.msra.mxu0 0.0
    %5037 = vmatprep.subr.mxu0 0.0
    %5038 = vmatpush1.xpose.msra.mxu0 0.0
    %5039 = vmatprep.subr.mxu0 0.0
    %5040 = vmatpush1.xpose.msra.mxu0 0.0
    %5041 = vmatprep.subr.mxu0 0.0
    %5042 = vmatpush1.xpose.msra.mxu0 0.0
    %5043 = vmatprep.subr.mxu0 0.0
    %5044 = vmatpush1.xpose.msra.mxu0 0.0
    %5045 = vmatprep.subr.mxu0 0.0
    %5046 = vmatpush1.xpose.msra.mxu0 0.0
    %5047 = vmatprep.subr.mxu0 0.0
    %5048 = vmatpush1.xpose.msra.mxu0 0.0
    %5049 = vmatprep.subr.mxu0 0.0
    %5050 = vmatpush1.xpose.msra.mxu0 0.0
    %5051 = vmatprep.subr.mxu0 0.0
    %5052 = vmatpush1.xpose.msra.mxu0 0.0
    %5053 = vmatprep.subr.mxu0 0.0
    %5054 = vmatpush1.xpose.msra.mxu0 0.0
    %5055 = vmatprep.subr.mxu0 0.0
    %5056 = vmatpush1.xpose.msra.mxu0 0.0
    %5057 = vmatprep.subr.mxu0 0.0
    %5058 = vmatpush1.xpose.msra.mxu0 0.0
    %5059 = vmatprep.subr.mxu0 0.0
    %5060 = vmatpush1.xpose.msra.mxu0 0.0
    %5061 = vmatprep.subr.mxu0 0.0
    %5062 = vmatpush1.xpose.msra.mxu0 0.0
    %5063 = vmatprep.subr.mxu0 0.0
    %5064 = vmatpush1.xpose.msra.mxu0 0.0
    %5065 = vmatprep.subr.mxu0 0.0
    %5066 = vmatpush1.xpose.msra.mxu0 0.0
    %5067 = vmatprep.subr.mxu0 0.0
    %5068 = vmatpush1.xpose.msra.mxu0 0.0
    %5069 = vmatprep.subr.mxu0 0.0
    %5070 = vmatpush1.xpose.msra.mxu0 0.0
    %5071 = vmatprep.subr.mxu0 0.0
    %5072 = vmatpush1.xpose.msra.mxu0 0.0
    %5073 = vmatprep.subr.mxu0 0.0
    %5074 = vmatpush1.xpose.msra.mxu0 0.0
    %5075 = vmatprep.subr.mxu0 0.0
    %5076 = vmatpush1.xpose.msra.mxu0 0.0
    %5077 = vmatprep.subr.mxu0 0.0
    %5078 = vmatpush1.xpose.msra.mxu0 0.0
    %5079 = vmatprep.subr.mxu0 0.0
    %5080 = vmatpush1.xpose.msra.mxu0 0.0
    %5081 = vmatprep.subr.mxu0 0.0
    %5082 = vmatpush1.xpose.msra.mxu0 0.0
    %5083 = vmatprep.subr.mxu0 0.0
    %5084 = vmatpush1.xpose.msra.mxu0 0.0
    %5085 = vmatprep.subr.mxu0 0.0
    %5086 = vmatpush1.xpose.msra.mxu0 0.0
    %5087 = vmatprep.subr.mxu0 0.0
    %5088 = vmatpush1.xpose.msra.mxu0 0.0
    %5089 = vmatprep.mubr.f32.mxu0 0.0
    %5090 = vmatmul.mubr.f32.gmra.mrb[0].mxu0 %v5021
    %v5091 = vpop.f32.mrb[0].mxu0
    %v5092 = vadd.f32 0.0, %v5091
    %v5093 = vpop.f32.mrb[0].mxu0
    %5094 = vdwg.mxu0
    %v5095 = vsel %vm417, %v4614, 0
    %v5097 = vsel %vm417, %v4628, 0
    %5099 = vmatprep.subr.mxu0 0.0
    %5100 = vmatpush1.xpose.msra.mxu0 %v5097
    %5101 = vmatprep.subr.mxu0 0.0
    %5102 = vmatpush1.xpose.msra.mxu0 0.0
    %5103 = vmatprep.subr.mxu0 0.0
    %5104 = vmatpush1.xpose.msra.mxu0 0.0
    %5105 = vmatprep.subr.mxu0 0.0
    %5106 = vmatpush1.xpose.msra.mxu0 0.0
    %5107 = vmatprep.subr.mxu0 0.0
    %5108 = vmatpush1.xpose.msra.mxu0 0.0
    %5109 = vmatprep.subr.mxu0 0.0
    %5110 = vmatpush1.xpose.msra.mxu0 0.0
    %5111 = vmatprep.subr.mxu0 0.0
    %5112 = vmatpush1.xpose.msra.mxu0 0.0
    %5113 = vmatprep.subr.mxu0 0.0
    %5114 = vmatpush1.xpose.msra.mxu0 0.0
    %5115 = vmatprep.subr.mxu0 0.0
    %5116 = vmatpush1.xpose.msra.mxu0 0.0
    %5117 = vmatprep.subr.mxu0 0.0
    %5118 = vmatpush1.xpose.msra.mxu0 0.0
    %5119 = vmatprep.subr.mxu0 0.0
    %5120 = vmatpush1.xpose.msra.mxu0 0.0
    %5121 = vmatprep.subr.mxu0 0.0
    %5122 = vmatpush1.xpose.msra.mxu0 0.0
    %5123 = vmatprep.subr.mxu0 0.0
    %5124 = vmatpush1.xpose.msra.mxu0 0.0
    %5125 = vmatprep.subr.mxu0 0.0
    %5126 = vmatpush1.xpose.msra.mxu0 0.0
    %5127 = vmatprep.subr.mxu0 0.0
    %5128 = vmatpush1.xpose.msra.mxu0 0.0
    %5129 = vmatprep.subr.mxu0 0.0
    %5130 = vmatpush1.xpose.msra.mxu0 0.0
    %5131 = vmatprep.subr.mxu0 0.0
    %5132 = vmatpush1.xpose.msra.mxu0 0.0
    %5133 = vmatprep.subr.mxu0 0.0
    %5134 = vmatpush1.xpose.msra.mxu0 0.0
    %5135 = vmatprep.subr.mxu0 0.0
    %5136 = vmatpush1.xpose.msra.mxu0 0.0
    %5137 = vmatprep.subr.mxu0 0.0
    %5138 = vmatpush1.xpose.msra.mxu0 0.0
    %5139 = vmatprep.subr.mxu0 0.0
    %5140 = vmatpush1.xpose.msra.mxu0 0.0
    %5141 = vmatprep.subr.mxu0 0.0
    %5142 = vmatpush1.xpose.msra.mxu0 0.0
    %5143 = vmatprep.subr.mxu0 0.0
    %5144 = vmatpush1.xpose.msra.mxu0 0.0
    %5145 = vmatprep.subr.mxu0 0.0
    %5146 = vmatpush1.xpose.msra.mxu0 0.0
    %5147 = vmatprep.subr.mxu0 0.0
    %5148 = vmatpush1.xpose.msra.mxu0 0.0
    %5149 = vmatprep.subr.mxu0 0.0
    %5150 = vmatpush1.xpose.msra.mxu0 0.0
    %5151 = vmatprep.subr.mxu0 0.0
    %5152 = vmatpush1.xpose.msra.mxu0 0.0
    %5153 = vmatprep.subr.mxu0 0.0
    %5154 = vmatpush1.xpose.msra.mxu0 0.0
    %5155 = vmatprep.subr.mxu0 0.0
    %5156 = vmatpush1.xpose.msra.mxu0 0.0
    %5157 = vmatprep.subr.mxu0 0.0
    %5158 = vmatpush1.xpose.msra.mxu0 0.0
    %5159 = vmatprep.subr.mxu0 0.0
    %5160 = vmatpush1.xpose.msra.mxu0 0.0
    %5161 = vmatprep.subr.mxu0 0.0
    %5162 = vmatpush1.xpose.msra.mxu0 0.0
    %5163 = vmatprep.mubr.f32.mxu0 0.0
    %5164 = vmatmul.mubr.f32.gmra.mrb[0].mxu0 %v5095
    %v5165 = vpop.f32.mrb[0].mxu0
    %v5166 = vadd.f32 0.0, %v5165
    %v5167 = vpop.f32.mrb[0].mxu0
    %5168 = vdwg.mxu0
    %v5169 = vsel %vm417, %v4616, 0
    %v5171 = vsel %vm417, %v4630, 0
    %5173 = vmatprep.subr.mxu0 0.0
    %5174 = vmatpush1.xpose.msra.mxu0 %v5171
    %5175 = vmatprep.subr.mxu0 0.0
    %5176 = vmatpush1.xpose.msra.mxu0 0.0
    %5177 = vmatprep.subr.mxu0 0.0
    %5178 = vmatpush1.xpose.msra.mxu0 0.0
    %5179 = vmatprep.subr.mxu0 0.0
    %5180 = vmatpush1.xpose.msra.mxu0 0.0
    %5181 = vmatprep.subr.mxu0 0.0
    %5182 = vmatpush1.xpose.msra.mxu0 0.0
    %5183 = vmatprep.subr.mxu0 0.0
    %5184 = vmatpush1.xpose.msra.mxu0 0.0
    %5185 = vmatprep.subr.mxu0 0.0
    %5186 = vmatpush1.xpose.msra.mxu0 0.0
    %5187 = vmatprep.subr.mxu0 0.0
    %5188 = vmatpush1.xpose.msra.mxu0 0.0
    %5189 = vmatprep.subr.mxu0 0.0
    %5190 = vmatpush1.xpose.msra.mxu0 0.0
    %5191 = vmatprep.subr.mxu0 0.0
    %5192 = vmatpush1.xpose.msra.mxu0 0.0
    %5193 = vmatprep.subr.mxu0 0.0
    %5194 = vmatpush1.xpose.msra.mxu0 0.0
    %5195 = vmatprep.subr.mxu0 0.0
    %5196 = vmatpush1.xpose.msra.mxu0 0.0
    %5197 = vmatprep.subr.mxu0 0.0
    %5198 = vmatpush1.xpose.msra.mxu0 0.0
    %5199 = vmatprep.subr.mxu0 0.0
    %5200 = vmatpush1.xpose.msra.mxu0 0.0
    %5201 = vmatprep.subr.mxu0 0.0
    %5202 = vmatpush1.xpose.msra.mxu0 0.0
    %5203 = vmatprep.subr.mxu0 0.0
    %5204 = vmatpush1.xpose.msra.mxu0 0.0
    %5205 = vmatprep.subr.mxu0 0.0
    %5206 = vmatpush1.xpose.msra.mxu0 0.0
    %5207 = vmatprep.subr.mxu0 0.0
    %5208 = vmatpush1.xpose.msra.mxu0 0.0
    %5209 = vmatprep.subr.mxu0 0.0
    %5210 = vmatpush1.xpose.msra.mxu0 0.0
    %5211 = vmatprep.subr.mxu0 0.0
    %5212 = vmatpush1.xpose.msra.mxu0 0.0
    %5213 = vmatprep.subr.mxu0 0.0
    %5214 = vmatpush1.xpose.msra.mxu0 0.0
    %5215 = vmatprep.subr.mxu0 0.0
    %5216 = vmatpush1.xpose.msra.mxu0 0.0
    %5217 = vmatprep.subr.mxu0 0.0
    %5218 = vmatpush1.xpose.msra.mxu0 0.0
    %5219 = vmatprep.subr.mxu0 0.0
    %5220 = vmatpush1.xpose.msra.mxu0 0.0
    %5221 = vmatprep.subr.mxu0 0.0
    %5222 = vmatpush1.xpose.msra.mxu0 0.0
    %5223 = vmatprep.subr.mxu0 0.0
    %5224 = vmatpush1.xpose.msra.mxu0 0.0
    %5225 = vmatprep.subr.mxu0 0.0
    %5226 = vmatpush1.xpose.msra.mxu0 0.0
    %5227 = vmatprep.subr.mxu0 0.0
    %5228 = vmatpush1.xpose.msra.mxu0 0.0
    %5229 = vmatprep.subr.mxu0 0.0
    %5230 = vmatpush1.xpose.msra.mxu0 0.0
    %5231 = vmatprep.subr.mxu0 0.0
    %5232 = vmatpush1.xpose.msra.mxu0 0.0
    %5233 = vmatprep.subr.mxu0 0.0
    %5234 = vmatpush1.xpose.msra.mxu0 0.0
    %5235 = vmatprep.subr.mxu0 0.0
    %5236 = vmatpush1.xpose.msra.mxu0 0.0
    %5237 = vmatprep.mubr.f32.mxu0 0.0
    %5238 = vmatmul.mubr.f32.gmra.mrb[0].mxu0 %v5169
    %v5239 = vpop.f32.mrb[0].mxu0
    %v5240 = vadd.f32 0.0, %v5239
    %v5241 = vpop.f32.mrb[0].mxu0
    %5242 = vdwg.mxu0
    %v5243 = vsel %vm1010, %v4722, -inf
    %5244 = vmax.xlane.f32.xlu0 %v5243
    %v5245 = vpop.xlane.xlu0 %5244
    %v5246 = vsel %vm1010, %v4796, -inf
    %5247 = vmax.xlane.f32.xlu0 %v5246
    %v5248 = vpop.xlane.xlu0 %5247
    %v5249 = vsel %vm1010, %v4870, -inf
    %5250 = vmax.xlane.f32.xlu0 %v5249
    %v5251 = vpop.xlane.xlu0 %5250
    %v5252 = vsel %vm1010, %v4944, -inf
    %5253 = vmax.xlane.f32.xlu0 %v5252
    %v5254 = vpop.xlane.xlu0 %5253
    %v5255 = vsel %vm1010, %v5018, -inf
    %5256 = vmax.xlane.f32.xlu0 %v5255
    %v5257 = vpop.xlane.xlu0 %5256
    %v5258 = vsel %vm1010, %v5092, -inf
    %5259 = vmax.xlane.f32.xlu0 %v5258
    %v5260 = vpop.xlane.xlu0 %5259
    %v5261 = vsel %vm1010, %v5166, -inf
    %5262 = vmax.xlane.f32.xlu0 %v5261
    %v5263 = vpop.xlane.xlu0 %5262
    %v5264 = vsel %vm1010, %v5240, -inf
    %5265 = vmax.xlane.f32.xlu0 %v5264
    %v5266 = vpop.xlane.xlu0 %5265
    %v5267 = vsub.f32 %v4722, %v5245
    %v5268 = vsub.f32 %v4796, %v5248
    %v5269 = vsub.f32 %v4870, %v5251
    %v5270 = vsub.f32 %v4944, %v5254
    %v5271 = vsub.f32 %v5018, %v5257
    %v5272 = vsub.f32 %v5092, %v5260
    %v5273 = vsub.f32 %v5166, %v5263
    %v5274 = vsub.f32 %v5240, %v5266
    %v5275 = vmul.f32 %v5267, 1.442695
    %v5276 = vpow.pop %v5275
    %v5277 = vmul.f32 %v5268, 1.442695
    %v5278 = vpow.pop %v5277
    %v5279 = vmul.f32 %v5269, 1.442695
    %v5280 = vpow.pop %v5279
    %v5281 = vmul.f32 %v5270, 1.442695
    %v5282 = vpow.pop %v5281
    %v5283 = vmul.f32 %v5271, 1.442695
    %v5284 = vpow.pop %v5283
    %v5285 = vmul.f32 %v5272, 1.442695
    %v5286 = vpow.pop %v5285
    %v5287 = vmul.f32 %v5273, 1.442695
    %v5288 = vpow.pop %v5287
    %v5289 = vmul.f32 %v5274, 1.442695
    %v5290 = vpow.pop %v5289
    %v5291 = vsel %vm1010, %v5276, 0.0
    %5292 = vadd.xlane.f32.xlu0 %v5291
    %v5293 = vpop.xlane.xlu0 %5292
    %v5294 = vsel %vm1010, %v5278, 0.0
    %5295 = vadd.xlane.f32.xlu0 %v5294
    %v5296 = vpop.xlane.xlu0 %5295
    %v5297 = vsel %vm1010, %v5280, 0.0
    %5298 = vadd.xlane.f32.xlu0 %v5297
    %v5299 = vpop.xlane.xlu0 %5298
    %v5300 = vsel %vm1010, %v5282, 0.0
    %5301 = vadd.xlane.f32.xlu0 %v5300
    %v5302 = vpop.xlane.xlu0 %5301
    %v5303 = vsel %vm1010, %v5284, 0.0
    %5304 = vadd.xlane.f32.xlu0 %v5303
    %v5305 = vpop.xlane.xlu0 %5304
    %v5306 = vsel %vm1010, %v5286, 0.0
    %5307 = vadd.xlane.f32.xlu0 %v5306
    %v5308 = vpop.xlane.xlu0 %5307
    %v5309 = vsel %vm1010, %v5288, 0.0
    %5310 = vadd.xlane.f32.xlu0 %v5309
    %v5311 = vpop.xlane.xlu0 %5310
    %v5312 = vsel %vm1010, %v5290, 0.0
    %5313 = vadd.xlane.f32.xlu0 %v5312
    %v5314 = vpop.xlane.xlu0 %5313
    %v5315 = vrcp.pop %v5293
    %v5316 = vrcp.pop %v5296
    %v5317 = vrcp.pop %v5299
    %v5318 = vrcp.pop %v5302
    %v5319 = vrcp.pop %v5305
    %v5320 = vrcp.pop %v5308
    %v5321 = vrcp.pop %v5311
    %v5322 = vrcp.pop %v5314
    %v5323 = vmul.f32 %v5276, %v5315
    %v5324 = vmul.f32 %v5278, %v5316
    %v5325 = vmul.f32 %v5280, %v5317
    %v5326 = vmul.f32 %v5282, %v5318
    %v5327 = vmul.f32 %v5284, %v5319
    %v5328 = vmul.f32 %v5286, %v5320
    %v5329 = vmul.f32 %v5288, %v5321
    %v5330 = vmul.f32 %v5290, %v5322
    %v5332 = vsel %vm1010, %v5323, 0
    %5334 = vmatprep.subr.mxu0 0.0
    %5335 = vmatpush1.msra.mxu0 %v4597
    %5336 = vmatprep.subr.mxu0 0.0
    %5337 = vmatpush1.msra.mxu0 0.0
    %5338 = vmatprep.subr.mxu0 0.0
    %5339 = vmatpush1.msra.mxu0 0.0
    %5340 = vmatprep.subr.mxu0 0.0
    %5341 = vmatpush1.msra.mxu0 0.0
    %5342 = vmatprep.subr.mxu0 0.0
    %5343 = vmatpush1.msra.mxu0 0.0
    %5344 = vmatprep.subr.mxu0 0.0
    %5345 = vmatpush1.msra.mxu0 0.0
    %5346 = vmatprep.subr.mxu0 0.0
    %5347 = vmatpush1.msra.mxu0 0.0
    %5348 = vmatprep.subr.mxu0 0.0
    %5349 = vmatpush1.msra.mxu0 0.0
    %5350 = vmatprep.subr.mxu0 0.0
    %5351 = vmatpush1.msra.mxu0 0.0
    %5352 = vmatprep.subr.mxu0 0.0
    %5353 = vmatpush1.msra.mxu0 0.0
    %5354 = vmatprep.subr.mxu0 0.0
    %5355 = vmatpush1.msra.mxu0 0.0
    %5356 = vmatprep.subr.mxu0 0.0
    %5357 = vmatpush1.msra.mxu0 0.0
    %5358 = vmatprep.subr.mxu0 0.0
    %5359 = vmatpush1.msra.mxu0 0.0
    %5360 = vmatprep.subr.mxu0 0.0
    %5361 = vmatpush1.msra.mxu0 0.0
    %5362 = vmatprep.subr.mxu0 0.0
    %5363 = vmatpush1.msra.mxu0 0.0
    %5364 = vmatprep.subr.mxu0 0.0
    %5365 = vmatpush1.msra.mxu0 0.0
    %5366 = vmatprep.subr.mxu0 0.0
    %5367 = vmatpush1.msra.mxu0 0.0
    %5368 = vmatprep.subr.mxu0 0.0
    %5369 = vmatpush1.msra.mxu0 0.0
    %5370 = vmatprep.subr.mxu0 0.0
    %5371 = vmatpush1.msra.mxu0 0.0
    %5372 = vmatprep.subr.mxu0 0.0
    %5373 = vmatpush1.msra.mxu0 0.0
    %5374 = vmatprep.subr.mxu0 0.0
    %5375 = vmatpush1.msra.mxu0 0.0
    %5376 = vmatprep.subr.mxu0 0.0
    %5377 = vmatpush1.msra.mxu0 0.0
    %5378 = vmatprep.subr.mxu0 0.0
    %5379 = vmatpush1.msra.mxu0 0.0
    %5380 = vmatprep.subr.mxu0 0.0
    %5381 = vmatpush1.msra.mxu0 0.0
    %5382 = vmatprep.subr.mxu0 0.0
    %5383 = vmatpush1.msra.mxu0 0.0
    %5384 = vmatprep.subr.mxu0 0.0
    %5385 = vmatpush1.msra.mxu0 0.0
    %5386 = vmatprep.subr.mxu0 0.0
    %5387 = vmatpush1.msra.mxu0 0.0
    %5388 = vmatprep.subr.mxu0 0.0
    %5389 = vmatpush1.msra.mxu0 0.0
    %5390 = vmatprep.subr.mxu0 0.0
    %5391 = vmatpush1.msra.mxu0 0.0
    %5392 = vmatprep.subr.mxu0 0.0
    %5393 = vmatpush1.msra.mxu0 0.0
    %5394 = vmatprep.subr.mxu0 0.0
    %5395 = vmatpush1.msra.mxu0 0.0
    %5396 = vmatprep.subr.mxu0 0.0
    %5397 = vmatpush1.msra.mxu0 0.0
    %5398 = vmatprep.mubr.f32.mxu0 0.0
    %5399 = vmatmul.mubr.f32.gmra.mrb[0].mxu0 %v5332
    %v5400 = vpop.f32.mrb[0].mxu0
    %v5401 = vadd.f32 0.0, %v5400
    %v5402 = vpop.f32.mrb[0].mxu0
    %5403 = vdwg.mxu0
    %v5405 = vsel %vm1010, %v5324, 0
    %5407 = vmatprep.subr.mxu0 0.0
    %5408 = vmatpush1.msra.mxu0 %v4600
    %5409 = vmatprep.subr.mxu0 0.0
    %5410 = vmatpush1.msra.mxu0 0.0
    %5411 = vmatprep.subr.mxu0 0.0
    %5412 = vmatpush1.msra.mxu0 0.0
    %5413 = vmatprep.subr.mxu0 0.0
    %5414 = vmatpush1.msra.mxu0 0.0
    %5415 = vmatprep.subr.mxu0 0.0
    %5416 = vmatpush1.msra.mxu0 0.0
    %5417 = vmatprep.subr.mxu0 0.0
    %5418 = vmatpush1.msra.mxu0 0.0
    %5419 = vmatprep.subr.mxu0 0.0
    %5420 = vmatpush1.msra.mxu0 0.0
    %5421 = vmatprep.subr.mxu0 0.0
    %5422 = vmatpush1.msra.mxu0 0.0
    %5423 = vmatprep.subr.mxu0 0.0
    %5424 = vmatpush1.msra.mxu0 0.0
    %5425 = vmatprep.subr.mxu0 0.0
    %5426 = vmatpush1.msra.mxu0 0.0
    %5427 = vmatprep.subr.mxu0 0.0
    %5428 = vmatpush1.msra.mxu0 0.0
    %5429 = vmatprep.subr.mxu0 0.0
    %5430 = vmatpush1.msra.mxu0 0.0
    %5431 = vmatprep.subr.mxu0 0.0
    %5432 = vmatpush1.msra.mxu0 0.0
    %5433 = vmatprep.subr.mxu0 0.0
    %5434 = vmatpush1.msra.mxu0 0.0
    %5435 = vmatprep.subr.mxu0 0.0
    %5436 = vmatpush1.msra.mxu0 0.0
    %5437 = vmatprep.subr.mxu0 0.0
    %5438 = vmatpush1.msra.mxu0 0.0
    %5439 = vmatprep.subr.mxu0 0.0
    %5440 = vmatpush1.msra.mxu0 0.0
    %5441 = vmatprep.subr.mxu0 0.0
    %5442 = vmatpush1.msra.mxu0 0.0
    %5443 = vmatprep.subr.mxu0 0.0
    %5444 = vmatpush1.msra.mxu0 0.0
    %5445 = vmatprep.subr.mxu0 0.0
    %5446 = vmatpush1.msra.mxu0 0.0
    %5447 = vmatprep.subr.mxu0 0.0
    %5448 = vmatpush1.msra.mxu0 0.0
    %5449 = vmatprep.subr.mxu0 0.0
    %5450 = vmatpush1.msra.mxu0 0.0
    %5451 = vmatprep.subr.mxu0 0.0
    %5452 = vmatpush1.msra.mxu0 0.0
    %5453 = vmatprep.subr.mxu0 0.0
    %5454 = vmatpush1.msra.mxu0 0.0
    %5455 = vmatprep.subr.mxu0 0.0
    %5456 = vmatpush1.msra.mxu0 0.0
    %5457 = vmatprep.subr.mxu0 0.0
    %5458 = vmatpush1.msra.mxu0 0.0
    %5459 = vmatprep.subr.mxu0 0.0
    %5460 = vmatpush1.msra.mxu0 0.0
    %5461 = vmatprep.subr.mxu0 0.0
    %5462 = vmatpush1.msra.mxu0 0.0
    %5463 = vmatprep.subr.mxu0 0.0
    %5464 = vmatpush1.msra.mxu0 0.0
    %5465 = vmatprep.subr.mxu0 0.0
    %5466 = vmatpush1.msra.mxu0 0.0
    %5467 = vmatprep.subr.mxu0 0.0
    %5468 = vmatpush1.msra.mxu0 0.0
    %5469 = vmatprep.subr.mxu0 0.0
    %5470 = vmatpush1.msra.mxu0 0.0
    %5471 = vmatprep.mubr.f32.mxu0 0.0
    %5472 = vmatmul.mubr.f32.gmra.mrb[0].mxu0 %v5405
    %v5473 = vpop.f32.mrb[0].mxu0
    %v5474 = vadd.f32 0.0, %v5473
    %v5475 = vpop.f32.mrb[0].mxu0
    %5476 = vdwg.mxu0
    %v5478 = vsel %vm1010, %v5325, 0
    %5480 = vmatprep.subr.mxu0 0.0
    %5481 = vmatpush1.msra.mxu0 %v4634
    %5482 = vmatprep.subr.mxu0 0.0
    %5483 = vmatpush1.msra.mxu0 0.0
    %5484 = vmatprep.subr.mxu0 0.0
    %5485 = vmatpush1.msra.mxu0 0.0
    %5486 = vmatprep.subr.mxu0 0.0
    %5487 = vmatpush1.msra.mxu0 0.0
    %5488 = vmatprep.subr.mxu0 0.0
    %5489 = vmatpush1.msra.mxu0 0.0
    %5490 = vmatprep.subr.mxu0 0.0
    %5491 = vmatpush1.msra.mxu0 0.0
    %5492 = vmatprep.subr.mxu0 0.0
    %5493 = vmatpush1.msra.mxu0 0.0
    %5494 = vmatprep.subr.mxu0 0.0
    %5495 = vmatpush1.msra.mxu0 0.0
    %5496 = vmatprep.subr.mxu0 0.0
    %5497 = vmatpush1.msra.mxu0 0.0
    %5498 = vmatprep.subr.mxu0 0.0
    %5499 = vmatpush1.msra.mxu0 0.0
    %5500 = vmatprep.subr.mxu0 0.0
    %5501 = vmatpush1.msra.mxu0 0.0
    %5502 = vmatprep.subr.mxu0 0.0
    %5503 = vmatpush1.msra.mxu0 0.0
    %5504 = vmatprep.subr.mxu0 0.0
    %5505 = vmatpush1.msra.mxu0 0.0
    %5506 = vmatprep.subr.mxu0 0.0
    %5507 = vmatpush1.msra.mxu0 0.0
    %5508 = vmatprep.subr.mxu0 0.0
    %5509 = vmatpush1.msra.mxu0 0.0
    %5510 = vmatprep.subr.mxu0 0.0
    %5511 = vmatpush1.msra.mxu0 0.0
    %5512 = vmatprep.subr.mxu0 0.0
    %5513 = vmatpush1.msra.mxu0 0.0
    %5514 = vmatprep.subr.mxu0 0.0
    %5515 = vmatpush1.msra.mxu0 0.0
    %5516 = vmatprep.subr.mxu0 0.0
    %5517 = vmatpush1.msra.mxu0 0.0
    %5518 = vmatprep.subr.mxu0 0.0
    %5519 = vmatpush1.msra.mxu0 0.0
    %5520 = vmatprep.subr.mxu0 0.0
    %5521 = vmatpush1.msra.mxu0 0.0
    %5522 = vmatprep.subr.mxu0 0.0
    %5523 = vmatpush1.msra.mxu0 0.0
    %5524 = vmatprep.subr.mxu0 0.0
    %5525 = vmatpush1.msra.mxu0 0.0
    %5526 = vmatprep.subr.mxu0 0.0
    %5527 = vmatpush1.msra.mxu0 0.0
    %5528 = vmatprep.subr.mxu0 0.0
    %5529 = vmatpush1.msra.mxu0 0.0
    %5530 = vmatprep.subr.mxu0 0.0
    %5531 = vmatpush1.msra.mxu0 0.0
    %5532 = vmatprep.subr.mxu0 0.0
    %5533 = vmatpush1.msra.mxu0 0.0
    %5534 = vmatprep.subr.mxu0 0.0
    %5535 = vmatpush1.msra.mxu0 0.0
    %5536 = vmatprep.subr.mxu0 0.0
    %5537 = vmatpush1.msra.mxu0 0.0
    %5538 = vmatprep.subr.mxu0 0.0
    %5539 = vmatpush1.msra.mxu0 0.0
    %5540 = vmatprep.subr.mxu0 0.0
    %5541 = vmatpush1.msra.mxu0 0.0
    %5542 = vmatprep.subr.mxu0 0.0
    %5543 = vmatpush1.msra.mxu0 0.0
    %5544 = vmatprep.mubr.f32.mxu0 0.0
    %5545 = vmatmul.mubr.f32.gmra.mrb[0].mxu0 %v5478
    %v5546 = vpop.f32.mrb[0].mxu0
    %v5547 = vadd.f32 0.0, %v5546
    %v5548 = vpop.f32.mrb[0].mxu0
    %5549 = vdwg.mxu0
    %v5551 = vsel %vm1010, %v5326, 0
    %5553 = vmatprep.subr.mxu0 0.0
    %5554 = vmatpush1.msra.mxu0 %v4636
    %5555 = vmatprep.subr.mxu0 0.0
    %5556 = vmatpush1.msra.mxu0 0.0
    %5557 = vmatprep.subr.mxu0 0.0
    %5558 = vmatpush1.msra.mxu0 0.0
    %5559 = vmatprep.subr.mxu0 0.0
    %5560 = vmatpush1.msra.mxu0 0.0
    %5561 = vmatprep.subr.mxu0 0.0
    %5562 = vmatpush1.msra.mxu0 0.0
    %5563 = vmatprep.subr.mxu0 0.0
    %5564 = vmatpush1.msra.mxu0 0.0
    %5565 = vmatprep.subr.mxu0 0.0
    %5566 = vmatpush1.msra.mxu0 0.0
    %5567 = vmatprep.subr.mxu0 0.0
    %5568 = vmatpush1.msra.mxu0 0.0
    %5569 = vmatprep.subr.mxu0 0.0
    %5570 = vmatpush1.msra.mxu0 0.0
    %5571 = vmatprep.subr.mxu0 0.0
    %5572 = vmatpush1.msra.mxu0 0.0
    %5573 = vmatprep.subr.mxu0 0.0
    %5574 = vmatpush1.msra.mxu0 0.0
    %5575 = vmatprep.subr.mxu0 0.0
    %5576 = vmatpush1.msra.mxu0 0.0
    %5577 = vmatprep.subr.mxu0 0.0
    %5578 = vmatpush1.msra.mxu0 0.0
    %5579 = vmatprep.subr.mxu0 0.0
    %5580 = vmatpush1.msra.mxu0 0.0
    %5581 = vmatprep.subr.mxu0 0.0
    %5582 = vmatpush1.msra.mxu0 0.0
    %5583 = vmatprep.subr.mxu0 0.0
    %5584 = vmatpush1.msra.mxu0 0.0
    %5585 = vmatprep.subr.mxu0 0.0
    %5586 = vmatpush1.msra.mxu0 0.0
    %5587 = vmatprep.subr.mxu0 0.0
    %5588 = vmatpush1.msra.mxu0 0.0
    %5589 = vmatprep.subr.mxu0 0.0
    %5590 = vmatpush1.msra.mxu0 0.0
    %5591 = vmatprep.subr.mxu0 0.0
    %5592 = vmatpush1.msra.mxu0 0.0
    %5593 = vmatprep.subr.mxu0 0.0
    %5594 = vmatpush1.msra.mxu0 0.0
    %5595 = vmatprep.subr.mxu0 0.0
    %5596 = vmatpush1.msra.mxu0 0.0
    %5597 = vmatprep.subr.mxu0 0.0
    %5598 = vmatpush1.msra.mxu0 0.0
    %5599 = vmatprep.subr.mxu0 0.0
    %5600 = vmatpush1.msra.mxu0 0.0
    %5601 = vmatprep.subr.mxu0 0.0
    %5602 = vmatpush1.msra.mxu0 0.0
    %5603 = vmatprep.subr.mxu0 0.0
    %5604 = vmatpush1.msra.mxu0 0.0
    %5605 = vmatprep.subr.mxu0 0.0
    %5606 = vmatpush1.msra.mxu0 0.0
    %5607 = vmatprep.subr.mxu0 0.0
    %5608 = vmatpush1.msra.mxu0 0.0
    %5609 = vmatprep.subr.mxu0 0.0
    %5610 = vmatpush1.msra.mxu0 0.0
    %5611 = vmatprep.subr.mxu0 0.0
    %5612 = vmatpush1.msra.mxu0 0.0
    %5613 = vmatprep.subr.mxu0 0.0
    %5614 = vmatpush1.msra.mxu0 0.0
    %5615 = vmatprep.subr.mxu0 0.0
    %5616 = vmatpush1.msra.mxu0 0.0
    %5617 = vmatprep.mubr.f32.mxu0 0.0
    %5618 = vmatmul.mubr.f32.gmra.mrb[0].mxu0 %v5551
    %v5619 = vpop.f32.mrb[0].mxu0
    %v5620 = vadd.f32 0.0, %v5619
    %v5621 = vpop.f32.mrb[0].mxu0
    %5622 = vdwg.mxu0
    %v5624 = vsel %vm1010, %v5327, 0
    %5626 = vmatprep.subr.mxu0 0.0
    %5627 = vmatpush1.msra.mxu0 %v4640
    %5628 = vmatprep.subr.mxu0 0.0
    %5629 = vmatpush1.msra.mxu0 0.0
    %5630 = vmatprep.subr.mxu0 0.0
    %5631 = vmatpush1.msra.mxu0 0.0
    %5632 = vmatprep.subr.mxu0 0.0
    %5633 = vmatpush1.msra.mxu0 0.0
    %5634 = vmatprep.subr.mxu0 0.0
    %5635 = vmatpush1.msra.mxu0 0.0
    %5636 = vmatprep.subr.mxu0 0.0
    %5637 = vmatpush1.msra.mxu0 0.0
    %5638 = vmatprep.subr.mxu0 0.0
    %5639 = vmatpush1.msra.mxu0 0.0
    %5640 = vmatprep.subr.mxu0 0.0
    %5641 = vmatpush1.msra.mxu0 0.0
    %5642 = vmatprep.subr.mxu0 0.0
    %5643 = vmatpush1.msra.mxu0 0.0
    %5644 = vmatprep.subr.mxu0 0.0
    %5645 = vmatpush1.msra.mxu0 0.0
    %5646 = vmatprep.subr.mxu0 0.0
    %5647 = vmatpush1.msra.mxu0 0.0
    %5648 = vmatprep.subr.mxu0 0.0
    %5649 = vmatpush1.msra.mxu0 0.0
    %5650 = vmatprep.subr.mxu0 0.0
    %5651 = vmatpush1.msra.mxu0 0.0
    %5652 = vmatprep.subr.mxu0 0.0
    %5653 = vmatpush1.msra.mxu0 0.0
    %5654 = vmatprep.subr.mxu0 0.0
    %5655 = vmatpush1.msra.mxu0 0.0
    %5656 = vmatprep.subr.mxu0 0.0
    %5657 = vmatpush1.msra.mxu0 0.0
    %5658 = vmatprep.subr.mxu0 0.0
    %5659 = vmatpush1.msra.mxu0 0.0
    %5660 = vmatprep.subr.mxu0 0.0
    %5661 = vmatpush1.msra.mxu0 0.0
    %5662 = vmatprep.subr.mxu0 0.0
    %5663 = vmatpush1.msra.mxu0 0.0
    %5664 = vmatprep.subr.mxu0 0.0
    %5665 = vmatpush1.msra.mxu0 0.0
    %5666 = vmatprep.subr.mxu0 0.0
    %5667 = vmatpush1.msra.mxu0 0.0
    %5668 = vmatprep.subr.mxu0 0.0
    %5669 = vmatpush1.msra.mxu0 0.0
    %5670 = vmatprep.subr.mxu0 0.0
    %5671 = vmatpush1.msra.mxu0 0.0
    %5672 = vmatprep.subr.mxu0 0.0
    %5673 = vmatpush1.msra.mxu0 0.0
    %5674 = vmatprep.subr.mxu0 0.0
    %5675 = vmatpush1.msra.mxu0 0.0
    %5676 = vmatprep.subr.mxu0 0.0
    %5677 = vmatpush1.msra.mxu0 0.0
    %5678 = vmatprep.subr.mxu0 0.0
    %5679 = vmatpush1.msra.mxu0 0.0
    %5680 = vmatprep.subr.mxu0 0.0
    %5681 = vmatpush1.msra.mxu0 0.0
    %5682 = vmatprep.subr.mxu0 0.0
    %5683 = vmatpush1.msra.mxu0 0.0
    %5684 = vmatprep.subr.mxu0 0.0
    %5685 = vmatpush1.msra.mxu0 0.0
    %5686 = vmatprep.subr.mxu0 0.0
    %5687 = vmatpush1.msra.mxu0 0.0
    %5688 = vmatprep.subr.mxu0 0.0
    %5689 = vmatpush1.msra.mxu0 0.0
    %5690 = vmatprep.mubr.f32.mxu0 0.0
    %5691 = vmatmul.mubr.f32.gmra.mrb[0].mxu0 %v5624
    %v5692 = vpop.f32.mrb[0].mxu0
    %v5693 = vadd.f32 0.0, %v5692
    %v5694 = vpop.f32.mrb[0].mxu0
    %5695 = vdwg.mxu0
    %v5697 = vsel %vm1010, %v5328, 0
    %5699 = vmatprep.subr.mxu0 0.0
    %5700 = vmatpush1.msra.mxu0 %v4642
    %5701 = vmatprep.subr.mxu0 0.0
    %5702 = vmatpush1.msra.mxu0 0.0
    %5703 = vmatprep.subr.mxu0 0.0
    %5704 = vmatpush1.msra.mxu0 0.0
    %5705 = vmatprep.subr.mxu0 0.0
    %5706 = vmatpush1.msra.mxu0 0.0
    %5707 = vmatprep.subr.mxu0 0.0
    %5708 = vmatpush1.msra.mxu0 0.0
    %5709 = vmatprep.subr.mxu0 0.0
    %5710 = vmatpush1.msra.mxu0 0.0
    %5711 = vmatprep.subr.mxu0 0.0
    %5712 = vmatpush1.msra.mxu0 0.0
    %5713 = vmatprep.subr.mxu0 0.0
    %5714 = vmatpush1.msra.mxu0 0.0
    %5715 = vmatprep.subr.mxu0 0.0
    %5716 = vmatpush1.msra.mxu0 0.0
    %5717 = vmatprep.subr.mxu0 0.0
    %5718 = vmatpush1.msra.mxu0 0.0
    %5719 = vmatprep.subr.mxu0 0.0
    %5720 = vmatpush1.msra.mxu0 0.0
    %5721 = vmatprep.subr.mxu0 0.0
    %5722 = vmatpush1.msra.mxu0 0.0
    %5723 = vmatprep.subr.mxu0 0.0
    %5724 = vmatpush1.msra.mxu0 0.0
    %5725 = vmatprep.subr.mxu0 0.0
    %5726 = vmatpush1.msra.mxu0 0.0
    %5727 = vmatprep.subr.mxu0 0.0
    %5728 = vmatpush1.msra.mxu0 0.0
    %5729 = vmatprep.subr.mxu0 0.0
    %5730 = vmatpush1.msra.mxu0 0.0
    %5731 = vmatprep.subr.mxu0 0.0
    %5732 = vmatpush1.msra.mxu0 0.0
    %5733 = vmatprep.subr.mxu0 0.0
    %5734 = vmatpush1.msra.mxu0 0.0
    %5735 = vmatprep.subr.mxu0 0.0
    %5736 = vmatpush1.msra.mxu0 0.0
    %5737 = vmatprep.subr.mxu0 0.0
    %5738 = vmatpush1.msra.mxu0 0.0
    %5739 = vmatprep.subr.mxu0 0.0
    %5740 = vmatpush1.msra.mxu0 0.0
    %5741 = vmatprep.subr.mxu0 0.0
    %5742 = vmatpush1.msra.mxu0 0.0
    %5743 = vmatprep.subr.mxu0 0.0
    %5744 = vmatpush1.msra.mxu0 0.0
    %5745 = vmatprep.subr.mxu0 0.0
    %5746 = vmatpush1.msra.mxu0 0.0
    %5747 = vmatprep.subr.mxu0 0.0
    %5748 = vmatpush1.msra.mxu0 0.0
    %5749 = vmatprep.subr.mxu0 0.0
    %5750 = vmatpush1.msra.mxu0 0.0
    %5751 = vmatprep.subr.mxu0 0.0
    %5752 = vmatpush1.msra.mxu0 0.0
    %5753 = vmatprep.subr.mxu0 0.0
    %5754 = vmatpush1.msra.mxu0 0.0
    %5755 = vmatprep.subr.mxu0 0.0
    %5756 = vmatpush1.msra.mxu0 0.0
    %5757 = vmatprep.subr.mxu0 0.0
    %5758 = vmatpush1.msra.mxu0 0.0
    %5759 = vmatprep.subr.mxu0 0.0
    %5760 = vmatpush1.msra.mxu0 0.0
    %5761 = vmatprep.subr.mxu0 0.0
    %5762 = vmatpush1.msra.mxu0 0.0
    %5763 = vmatprep.mubr.f32.mxu0 0.0
    %5764 = vmatmul.mubr.f32.gmra.mrb[0].mxu0 %v5697
    %v5765 = vpop.f32.mrb[0].mxu0
    %v5766 = vadd.f32 0.0, %v5765
    %v5767 = vpop.f32.mrb[0].mxu0
    %5768 = vdwg.mxu0
    %v5770 = vsel %vm1010, %v5329, 0
    %5772 = vmatprep.subr.mxu0 0.0
    %5773 = vmatpush1.msra.mxu0 %v4646
    %5774 = vmatprep.subr.mxu0 0.0
    %5775 = vmatpush1.msra.mxu0 0.0
    %5776 = vmatprep.subr.mxu0 0.0
    %5777 = vmatpush1.msra.mxu0 0.0
    %5778 = vmatprep.subr.mxu0 0.0
    %5779 = vmatpush1.msra.mxu0 0.0
    %5780 = vmatprep.subr.mxu0 0.0
    %5781 = vmatpush1.msra.mxu0 0.0
    %5782 = vmatprep.subr.mxu0 0.0
    %5783 = vmatpush1.msra.mxu0 0.0
    %5784 = vmatprep.subr.mxu0 0.0
    %5785 = vmatpush1.msra.mxu0 0.0
    %5786 = vmatprep.subr.mxu0 0.0
    %5787 = vmatpush1.msra.mxu0 0.0
    %5788 = vmatprep.subr.mxu0 0.0
    %5789 = vmatpush1.msra.mxu0 0.0
    %5790 = vmatprep.subr.mxu0 0.0
    %5791 = vmatpush1.msra.mxu0 0.0
    %5792 = vmatprep.subr.mxu0 0.0
    %5793 = vmatpush1.msra.mxu0 0.0
    %5794 = vmatprep.subr.mxu0 0.0
    %5795 = vmatpush1.msra.mxu0 0.0
    %5796 = vmatprep.subr.mxu0 0.0
    %5797 = vmatpush1.msra.mxu0 0.0
    %5798 = vmatprep.subr.mxu0 0.0
    %5799 = vmatpush1.msra.mxu0 0.0
    %5800 = vmatprep.subr.mxu0 0.0
    %5801 = vmatpush1.msra.mxu0 0.0
    %5802 = vmatprep.subr.mxu0 0.0
    %5803 = vmatpush1.msra.mxu0 0.0
    %5804 = vmatprep.subr.mxu0 0.0
    %5805 = vmatpush1.msra.mxu0 0.0
    %5806 = vmatprep.subr.mxu0 0.0
    %5807 = vmatpush1.msra.mxu0 0.0
    %5808 = vmatprep.subr.mxu0 0.0
    %5809 = vmatpush1.msra.mxu0 0.0
    %5810 = vmatprep.subr.mxu0 0.0
    %5811 = vmatpush1.msra.mxu0 0.0
    %5812 = vmatprep.subr.mxu0 0.0
    %5813 = vmatpush1.msra.mxu0 0.0
    %5814 = vmatprep.subr.mxu0 0.0
    %5815 = vmatpush1.msra.mxu0 0.0
    %5816 = vmatprep.subr.mxu0 0.0
    %5817 = vmatpush1.msra.mxu0 0.0
    %5818 = vmatprep.subr.mxu0 0.0
    %5819 = vmatpush1.msra.mxu0 0.0
    %5820 = vmatprep.subr.mxu0 0.0
    %5821 = vmatpush1.msra.mxu0 0.0
    %5822 = vmatprep.subr.mxu0 0.0
    %5823 = vmatpush1.msra.mxu0 0.0
    %5824 = vmatprep.subr.mxu0 0.0
    %5825 = vmatpush1.msra.mxu0 0.0
    %5826 = vmatprep.subr.mxu0 0.0
    %5827 = vmatpush1.msra.mxu0 0.0
    %5828 = vmatprep.subr.mxu0 0.0
    %5829 = vmatpush1.msra.mxu0 0.0
    %5830 = vmatprep.subr.mxu0 0.0
    %5831 = vmatpush1.msra.mxu0 0.0
    %5832 = vmatprep.subr.mxu0 0.0
    %5833 = vmatpush1.msra.mxu0 0.0
    %5834 = vmatprep.subr.mxu0 0.0
    %5835 = vmatpush1.msra.mxu0 0.0
    %5836 = vmatprep.mubr.f32.mxu0 0.0
    %5837 = vmatmul.mubr.f32.gmra.mrb[0].mxu0 %v5770
    %v5838 = vpop.f32.mrb[0].mxu0
    %v5839 = vadd.f32 0.0, %v5838
    %v5840 = vpop.f32.mrb[0].mxu0
    %5841 = vdwg.mxu0
    %v5843 = vsel %vm1010, %v5330, 0
    %5845 = vmatprep.subr.mxu0 0.0
    %5846 = vmatpush1.msra.mxu0 %v4648
    %5847 = vmatprep.subr.mxu0 0.0
    %5848 = vmatpush1.msra.mxu0 0.0
    %5849 = vmatprep.subr.mxu0 0.0
    %5850 = vmatpush1.msra.mxu0 0.0
    %5851 = vmatprep.subr.mxu0 0.0
    %5852 = vmatpush1.msra.mxu0 0.0
    %5853 = vmatprep.subr.mxu0 0.0
    %5854 = vmatpush1.msra.mxu0 0.0
    %5855 = vmatprep.subr.mxu0 0.0
    %5856 = vmatpush1.msra.mxu0 0.0
    %5857 = vmatprep.subr.mxu0 0.0
    %5858 = vmatpush1.msra.mxu0 0.0
    %5859 = vmatprep.subr.mxu0 0.0
    %5860 = vmatpush1.msra.mxu0 0.0
    %5861 = vmatprep.subr.mxu0 0.0
    %5862 = vmatpush1.msra.mxu0 0.0
    %5863 = vmatprep.subr.mxu0 0.0
    %5864 = vmatpush1.msra.mxu0 0.0
    %5865 = vmatprep.subr.mxu0 0.0
    %5866 = vmatpush1.msra.mxu0 0.0
    %5867 = vmatprep.subr.mxu0 0.0
    %5868 = vmatpush1.msra.mxu0 0.0
    %5869 = vmatprep.subr.mxu0 0.0
    %5870 = vmatpush1.msra.mxu0 0.0
    %5871 = vmatprep.subr.mxu0 0.0
    %5872 = vmatpush1.msra.mxu0 0.0
    %5873 = vmatprep.subr.mxu0 0.0
    %5874 = vmatpush1.msra.mxu0 0.0
    %5875 = vmatprep.subr.mxu0 0.0
    %5876 = vmatpush1.msra.mxu0 0.0
    %5877 = vmatprep.subr.mxu0 0.0
    %5878 = vmatpush1.msra.mxu0 0.0
    %5879 = vmatprep.subr.mxu0 0.0
    %5880 = vmatpush1.msra.mxu0 0.0
    %5881 = vmatprep.subr.mxu0 0.0
    %5882 = vmatpush1.msra.mxu0 0.0
    %5883 = vmatprep.subr.mxu0 0.0
    %5884 = vmatpush1.msra.mxu0 0.0
    %5885 = vmatprep.subr.mxu0 0.0
    %5886 = vmatpush1.msra.mxu0 0.0
    %5887 = vmatprep.subr.mxu0 0.0
    %5888 = vmatpush1.msra.mxu0 0.0
    %5889 = vmatprep.subr.mxu0 0.0
    %5890 = vmatpush1.msra.mxu0 0.0
    %5891 = vmatprep.subr.mxu0 0.0
    %5892 = vmatpush1.msra.mxu0 0.0
    %5893 = vmatprep.subr.mxu0 0.0
    %5894 = vmatpush1.msra.mxu0 0.0
    %5895 = vmatprep.subr.mxu0 0.0
    %5896 = vmatpush1.msra.mxu0 0.0
    %5897 = vmatprep.subr.mxu0 0.0
    %5898 = vmatpush1.msra.mxu0 0.0
    %5899 = vmatprep.subr.mxu0 0.0
    %5900 = vmatpush1.msra.mxu0 0.0
    %5901 = vmatprep.subr.mxu0 0.0
    %5902 = vmatpush1.msra.mxu0 0.0
    %5903 = vmatprep.subr.mxu0 0.0
    %5904 = vmatpush1.msra.mxu0 0.0
    %5905 = vmatprep.subr.mxu0 0.0
    %5906 = vmatpush1.msra.mxu0 0.0
    %5907 = vmatprep.subr.mxu0 0.0
    %5908 = vmatpush1.msra.mxu0 0.0
    %5909 = vmatprep.mubr.f32.mxu0 0.0
    %5910 = vmatmul.mubr.f32.gmra.mrb[0].mxu0 %v5843
    %v5911 = vpop.f32.mrb[0].mxu0
    %v5912 = vadd.f32 0.0, %v5911
    %v5913 = vpop.f32.mrb[0].mxu0
    %5914 = vdwg.mxu0
    %5917 = vrot.lane.b32.xlu0 %v5547, 32
    %v5918 = vpop.permute.xlu0 %5917
    %5919 = vrot.lane.b32.xlu0 %v5620, 32
    %v5920 = vpop.permute.xlu0 %5919
    %5925 = vrot.lane.b32.xlu0 %v5693, 64
    %v5926 = vpop.permute.xlu0 %5925
    %5927 = vrot.lane.b32.xlu0 %v5766, 64
    %v5928 = vpop.permute.xlu0 %5927
    %5933 = vrot.lane.b32.xlu0 %v5839, 96
    %v5934 = vpop.permute.xlu0 %5933
    %5935 = vrot.lane.b32.xlu0 %v5912, 96
    %v5936 = vpop.permute.xlu0 %5935
    %v5939 = vsel %vm417, %v5401, %v5918
    %v5940 = vsel %vm417, %v5474, %v5920
    %v5941 = vsel %vm1709, %v5939, %v5926
    %v5942 = vsel %vm1709, %v5940, %v5928
    %v5943 = vsel %vm1712, %v5941, %v5934
    %v5944 = vsel %vm1712, %v5942, %v5936
    %v5945 = vpack.c.bf16 %v5944, %v5943
    %s5946 = scalar_lea.vmem [#allocation7], 128
    %v5947 = vld [vmem:[%s5946] sm:$0xf]
    %v5948 = vld [vmem:[%s5946 + $0x4] sm:$0xf]
    %v5949 = vld [vmem:[%s5946 + $0x8] sm:$0xf]
    %v5950 = vld [vmem:[%s5946 + $0xc] sm:$0xf]
    %v5951 = vld [vmem:[%s5946 + $0x10] sm:$0xf]
    %v5952 = vld [vmem:[%s5946 + $0x14] sm:$0xf]
    %v5953 = vld [vmem:[%s5946 + $0x18] sm:$0xf]
    %v5954 = vld [vmem:[%s5946 + $0x1c] sm:$0xf]
    %v5955 = vld [vmem:[%s5946 + $0x20] sm:$0xf]
    %v5956 = vld [vmem:[%s5946 + $0x24] sm:$0xf]
    %v5957 = vld [vmem:[%s5946 + $0x28] sm:$0xf]
    %v5958 = vld [vmem:[%s5946 + $0x2c] sm:$0xf]
    %v5959 = vld [vmem:[%s5946 + $0x30] sm:$0xf]
    %v5960 = vld [vmem:[%s5946 + $0x34] sm:$0xf]
    %v5961 = vld [vmem:[%s5946 + $0x38] sm:$0xf]
    %v5962 = vld [vmem:[%s5946 + $0x3c] sm:$0xf]
    %v5963 = vlaneseq
    %v5964 = vshrl.u32 %v5963, 7
    %v5965 = vsub.s32 2, %v5964
    %v5966 = vrot.slane %v4342, %v5965
    %v5983 = vunpack.c.l.b16 %v5947
    %v5984 = vunpack.c.l.b16 %v5948
    %v5985 = vunpack.c.l.b16 %v5949
    %v5986 = vunpack.c.l.b16 %v5950
    %v5987 = vunpack.c.l.b16 %v5951
    %v5988 = vunpack.c.l.b16 %v5952
    %v5989 = vunpack.c.l.b16 %v5953
    %v5990 = vunpack.c.l.b16 %v5954
    %v5991 = vunpack.c.l.b16 %v5955
    %v5992 = vunpack.c.l.b16 %v5956
    %v5993 = vunpack.c.l.b16 %v5957
    %v5994 = vunpack.c.l.b16 %v5958
    %v5995 = vunpack.c.l.b16 %v5959
    %v5996 = vunpack.c.l.b16 %v5960
    %v5997 = vunpack.c.l.b16 %v5961
    %v5998 = vunpack.c.l.b16 %v5962
    %v5999 = vpack.c.b16 %v5984, %v5983
    %v6000 = vpack.c.b16 %v5986, %v5985
    %v6001 = vpack.c.b16 %v5988, %v5987
    %v6002 = vpack.c.b16 %v5990, %v5989
    %v6003 = vpack.c.b16 %v5992, %v5991
    %v6004 = vpack.c.b16 %v5994, %v5993
    %v6005 = vpack.c.b16 %v5996, %v5995
    %v6006 = vpack.c.b16 %v5998, %v5997
    %6015 = vmatprep.subr.bf16.mxu0 0
    %6016 = vmatpush1.bf16.msra.mxu0 %v5999
    %6017 = vmatprep.subr.bf16.mxu0 0
    %6018 = vmatpush1.bf16.msra.mxu0 %v6000
    %6019 = vmatprep.subr.bf16.mxu0 0
    %6020 = vmatpush1.bf16.msra.mxu0 %v6001
    %6021 = vmatprep.subr.bf16.mxu0 0
    %6022 = vmatpush1.bf16.msra.mxu0 %v6002
    %6023 = vmatprep.subr.bf16.mxu0 0
    %6024 = vmatpush1.bf16.msra.mxu0 %v6003
    %6025 = vmatprep.subr.bf16.mxu0 0
    %6026 = vmatpush1.bf16.msra.mxu0 %v6004
    %6027 = vmatprep.subr.bf16.mxu0 0
    %6028 = vmatpush1.bf16.msra.mxu0 %v6005
    %6029 = vmatprep.subr.bf16.mxu0 0
    %6030 = vmatpush1.bf16.msra.mxu0 %v6006
    %6031 = vmatprep.subr.bf16.mxu0 0
    %6032 = vmatpush1.bf16.msra.mxu0 0
    %6033 = vmatprep.subr.bf16.mxu0 0
    %6034 = vmatpush1.bf16.msra.mxu0 0
    %6035 = vmatprep.subr.bf16.mxu0 0
    %6036 = vmatpush1.bf16.msra.mxu0 0
    %6037 = vmatprep.subr.bf16.mxu0 0
    %6038 = vmatpush1.bf16.msra.mxu0 0
    %6039 = vmatprep.subr.bf16.mxu0 0
    %6040 = vmatpush1.bf16.msra.mxu0 0
    %6041 = vmatprep.subr.bf16.mxu0 0
    %6042 = vmatpush1.bf16.msra.mxu0 0
    %6043 = vmatprep.subr.bf16.mxu0 0
    %6044 = vmatpush1.bf16.msra.mxu0 0
    %6045 = vmatprep.subr.bf16.mxu0 0
    %6046 = vmatpush1.bf16.msra.mxu0 0
    %6047 = vmatprep.mubr.bf16.mxu0 0
    %6048 = vmatmul.mubr.bf16.gmra.mrb[0].mxu0 %v5945
    %v6049 = vpop.f32.mrb[0].mxu0
    %v6050 = vadd.f32 %v5966, %v6049
    %v6051 = vpop.f32.mrb[0].mxu0
    %v6052 = vpop.f32.mrb[0].mxu0
    %v6053 = vadd.f32 %v5966, %v6052
    %v6054 = vpop.f32.mrb[0].mxu0
    %6055 = vdwg.mxu0
    %v6056 = vadd.f32 %v4339, %v6050
    %v6057 = vadd.f32 %v4340, %v6053
    %6058 = vadd.xlane.f32.xlu0 %v6056
    %v6059 = vpop.xlane.xlu0 %6058
    %6060 = vadd.xlane.f32.xlu0 %v6057
    %v6061 = vpop.xlane.xlu0 %6060
    %v6062 = vmul.f32 %v6059, %v1831
    %v6063 = vmul.f32 %v6061, %v1831
    %v6064 = vsub.f32 %v6056, %v6062
    %v6065 = vsub.f32 %v6057, %v6063
    %v6066 = vmul.f32 %v6064, %v6064
    %v6067 = vmul.f32 %v6065, %v6065
    %6068 = vadd.xlane.f32.xlu0 %v6066
    %v6069 = vpop.xlane.xlu0 %6068
    %6070 = vadd.xlane.f32.xlu0 %v6067
    %v6071 = vpop.xlane.xlu0 %6070
    %v6072 = vmul.f32 %v6069, %v1831
    %v6073 = vmul.f32 %v6071, %v1831
    %v6074 = vadd.f32 %v6072, 1e-05
    %v6075 = vadd.f32 %v6073, 1e-05
    %v6076 = vrsqrt.pop %v6074
    %v6077 = vrsqrt.pop %v6075
    %v6078 = vmul.f32 %v6064, %v6076
    %v6079 = vmul.f32 %v6065, %v6077
    %v6080 = vlaneseq
    %v6081 = vshrl.u32 %v6080, 7
    %v6082 = vsub.s32 3, %v6081
    %v6083 = vrot.slane %v4342, %v6082
    %v6084 = vmul.f32 %v6078, %v6083
    %v6085 = vmul.f32 %v6079, %v6083
    %v6086 = vlaneseq
    %v6087 = vshrl.u32 %v6086, 7
    %v6088 = vsub.s32 4, %v6087
    %v6089 = vrot.slane %v4342, %v6088
    %v6090 = vadd.f32 %v6084, %v6089
    %v6091 = vadd.f32 %v6085, %v6089
    %v6092 = vpack.c.bf16 %v6091, %v6090
    %s6093 = scalar_lea.vmem [#allocation8], 256
    %v6094 = vld [vmem:[%s6093] sm:$0xff]
    %v6095 = vld [vmem:[%s6093 + $0x8] sm:$0xff]
    %v6096 = vld [vmem:[%s6093 + $0x10] sm:$0xff]
    %v6097 = vld [vmem:[%s6093 + $0x18] sm:$0xff]
    %v6098 = vld [vmem:[%s6093 + $0x20] sm:$0xff]
    %v6099 = vld [vmem:[%s6093 + $0x28] sm:$0xff]
    %v6100 = vld [vmem:[%s6093 + $0x30] sm:$0xff]
    %v6101 = vld [vmem:[%s6093 + $0x38] sm:$0xff]
    %v6102 = vld [vmem:[%s6093 + $0x40] sm:$0xff]
    %v6103 = vld [vmem:[%s6093 + $0x48] sm:$0xff]
    %v6104 = vld [vmem:[%s6093 + $0x50] sm:$0xff]
    %v6105 = vld [vmem:[%s6093 + $0x58] sm:$0xff]
    %v6106 = vld [vmem:[%s6093 + $0x60] sm:$0xff]
    %v6107 = vld [vmem:[%s6093 + $0x68] sm:$0xff]
    %v6108 = vld [vmem:[%s6093 + $0x70] sm:$0xff]
    %v6109 = vld [vmem:[%s6093 + $0x78] sm:$0xff]
    %v6110 = vlaneseq
    %v6111 = vshrl.u32 %v6110, 7
    %v6112 = vsub.s32 1, %v6111
    %v6113 = vrot.slane %v4342, %v6112
    %v6114 = vlaneseq
    %v6115 = vshrl.u32 %v6114, 7
    %v6116 = vsub.s32 1, %v6115
    %v6117 = vrot.slane %v4343, %v6116
    %v6134 = vunpack.c.l.b16 %v6094
    %v6135 = vunpack.c.h.b16 %v6094
    %v6136 = vunpack.c.l.b16 %v6095
    %v6137 = vunpack.c.h.b16 %v6095
    %v6138 = vunpack.c.l.b16 %v6096
    %v6139 = vunpack.c.h.b16 %v6096
    %v6140 = vunpack.c.l.b16 %v6097
    %v6141 = vunpack.c.h.b16 %v6097
    %v6142 = vunpack.c.l.b16 %v6098
    %v6143 = vunpack.c.h.b16 %v6098
    %v6144 = vunpack.c.l.b16 %v6099
    %v6145 = vunpack.c.h.b16 %v6099
    %v6146 = vunpack.c.l.b16 %v6100
    %v6147 = vunpack.c.h.b16 %v6100
    %v6148 = vunpack.c.l.b16 %v6101
    %v6149 = vunpack.c.h.b16 %v6101
    %v6150 = vunpack.c.l.b16 %v6102
    %v6151 = vunpack.c.h.b16 %v6102
    %v6152 = vunpack.c.l.b16 %v6103
    %v6153 = vunpack.c.h.b16 %v6103
    %v6154 = vunpack.c.l.b16 %v6104
    %v6155 = vunpack.c.h.b16 %v6104
    %v6156 = vunpack.c.l.b16 %v6105
    %v6157 = vunpack.c.h.b16 %v6105
    %v6158 = vunpack.c.l.b16 %v6106
    %v6159 = vunpack.c.h.b16 %v6106
    %v6160 = vunpack.c.l.b16 %v6107
    %v6161 = vunpack.c.h.b16 %v6107
    %v6162 = vunpack.c.l.b16 %v6108
    %v6163 = vunpack.c.h.b16 %v6108
    %v6164 = vunpack.c.l.b16 %v6109
    %v6165 = vunpack.c.h.b16 %v6109
    %v6166 = vpack.c.b16 %v6136, %v6134
    %v6167 = vpack.c.b16 %v6137, %v6135
    %v6168 = vpack.c.b16 %v6140, %v6138
    %v6169 = vpack.c.b16 %v6141, %v6139
    %v6170 = vpack.c.b16 %v6144, %v6142
    %v6171 = vpack.c.b16 %v6145, %v6143
    %v6172 = vpack.c.b16 %v6148, %v6146
    %v6173 = vpack.c.b16 %v6149, %v6147
    %v6174 = vpack.c.b16 %v6152, %v6150
    %v6175 = vpack.c.b16 %v6153, %v6151
    %v6176 = vpack.c.b16 %v6156, %v6154
    %v6177 = vpack.c.b16 %v6157, %v6155
    %v6178 = vpack.c.b16 %v6160, %v6158
    %v6179 = vpack.c.b16 %v6161, %v6159
    %v6180 = vpack.c.b16 %v6164, %v6162
    %v6181 = vpack.c.b16 %v6165, %v6163
    %6198 = vmatprep.subr.bf16.mxu0 %v6167
    %6199 = vmatpush1.bf16.msra.mxu0 %v6166
    %6200 = vmatprep.subr.bf16.mxu0 %v6169
    %6201 = vmatpush1.bf16.msra.mxu0 %v6168
    %6202 = vmatprep.subr.bf16.mxu0 %v6171
    %6203 = vmatpush1.bf16.msra.mxu0 %v6170
    %6204 = vmatprep.subr.bf16.mxu0 %v6173
    %6205 = vmatpush1.bf16.msra.mxu0 %v6172
    %6206 = vmatprep.subr.bf16.mxu0 %v6175
    %6207 = vmatpush1.bf16.msra.mxu0 %v6174
    %6208 = vmatprep.subr.bf16.mxu0 %v6177
    %6209 = vmatpush1.bf16.msra.mxu0 %v6176
    %6210 = vmatprep.subr.bf16.mxu0 %v6179
    %6211 = vmatpush1.bf16.msra.mxu0 %v6178
    %6212 = vmatprep.subr.bf16.mxu0 %v6181
    %6213 = vmatpush1.bf16.msra.mxu0 %v6180
    %6214 = vmatprep.subr.bf16.mxu0 0
    %6215 = vmatpush1.bf16.msra.mxu0 0
    %6216 = vmatprep.subr.bf16.mxu0 0
    %6217 = vmatpush1.bf16.msra.mxu0 0
    %6218 = vmatprep.subr.bf16.mxu0 0
    %6219 = vmatpush1.bf16.msra.mxu0 0
    %6220 = vmatprep.subr.bf16.mxu0 0
    %6221 = vmatpush1.bf16.msra.mxu0 0
    %6222 = vmatprep.subr.bf16.mxu0 0
    %6223 = vmatpush1.bf16.msra.mxu0 0
    %6224 = vmatprep.subr.bf16.mxu0 0
    %6225 = vmatpush1.bf16.msra.mxu0 0
    %6226 = vmatprep.subr.bf16.mxu0 0
    %6227 = vmatpush1.bf16.msra.mxu0 0
    %6228 = vmatprep.subr.bf16.mxu0 0
    %6229 = vmatpush1.bf16.msra.mxu0 0
    %6230 = vmatprep.mubr.bf16.mxu0 0
    %6231 = vmatmul.mubr.bf16.gmra.mrb[0].mxu0 %v6092
    %v6232 = vpop.f32.mrb[0].mxu0
    %v6233 = vadd.f32 %v6113, %v6232
    %v6234 = vpop.f32.mrb[0].mxu0
    %v6235 = vadd.f32 %v6117, %v6234
    %v6236 = vpop.f32.mrb[0].mxu0
    %v6237 = vadd.f32 %v6113, %v6236
    %v6238 = vpop.f32.mrb[0].mxu0
    %v6239 = vadd.f32 %v6117, %v6238
    %6240 = vdwg.mxu0
    %v6241 = vmax.f32 %v6233, 0.0
    %v6242 = vmax.f32 %v6235, 0.0
    %v6243 = vmax.f32 %v6237, 0.0
    %v6244 = vmax.f32 %v6239, 0.0
    %v6245 = vpack.c.bf16 %v6243, %v6241
    %v6246 = vpack.c.bf16 %v6244, %v6242
    %s6247 = scalar_lea.vmem [#allocation10], 256
    %v6248 = vld [vmem:[%s6247] sm:$0xf]
    %v6249 = vld [vmem:[%s6247 + $0x4] sm:$0xf]
    %v6250 = vld [vmem:[%s6247 + $0x8] sm:$0xf]
    %v6251 = vld [vmem:[%s6247 + $0xc] sm:$0xf]
    %v6252 = vld [vmem:[%s6247 + $0x10] sm:$0xf]
    %v6253 = vld [vmem:[%s6247 + $0x14] sm:$0xf]
    %v6254 = vld [vmem:[%s6247 + $0x18] sm:$0xf]
    %v6255 = vld [vmem:[%s6247 + $0x1c] sm:$0xf]
    %v6256 = vld [vmem:[%s6247 + $0x20] sm:$0xf]
    %v6257 = vld [vmem:[%s6247 + $0x24] sm:$0xf]
    %v6258 = vld [vmem:[%s6247 + $0x28] sm:$0xf]
    %v6259 = vld [vmem:[%s6247 + $0x2c] sm:$0xf]
    %v6260 = vld [vmem:[%s6247 + $0x30] sm:$0xf]
    %v6261 = vld [vmem:[%s6247 + $0x34] sm:$0xf]
    %v6262 = vld [vmem:[%s6247 + $0x38] sm:$0xf]
    %v6263 = vld [vmem:[%s6247 + $0x3c] sm:$0xf]
    %v6264 = vld [vmem:[%s6247 + $0x40] sm:$0xf]
    %v6265 = vld [vmem:[%s6247 + $0x44] sm:$0xf]
    %v6266 = vld [vmem:[%s6247 + $0x48] sm:$0xf]
    %v6267 = vld [vmem:[%s6247 + $0x4c] sm:$0xf]
    %v6268 = vld [vmem:[%s6247 + $0x50] sm:$0xf]
    %v6269 = vld [vmem:[%s6247 + $0x54] sm:$0xf]
    %v6270 = vld [vmem:[%s6247 + $0x58] sm:$0xf]
    %v6271 = vld [vmem:[%s6247 + $0x5c] sm:$0xf]
    %v6272 = vld [vmem:[%s6247 + $0x60] sm:$0xf]
    %v6273 = vld [vmem:[%s6247 + $0x64] sm:$0xf]
    %v6274 = vld [vmem:[%s6247 + $0x68] sm:$0xf]
    %v6275 = vld [vmem:[%s6247 + $0x6c] sm:$0xf]
    %v6276 = vld [vmem:[%s6247 + $0x70] sm:$0xf]
    %v6277 = vld [vmem:[%s6247 + $0x74] sm:$0xf]
    %v6278 = vld [vmem:[%s6247 + $0x78] sm:$0xf]
    %v6279 = vld [vmem:[%s6247 + $0x7c] sm:$0xf]
    %v6280 = vlaneseq
    %v6281 = vshrl.u32 %v6280, 7
    %v6282 = vsub.s32 5, %v6281
    %v6283 = vrot.slane %v4342, %v6282
    %v6316 = vunpack.c.l.b16 %v6248
    %v6317 = vunpack.c.l.b16 %v6249
    %v6318 = vunpack.c.l.b16 %v6250
    %v6319 = vunpack.c.l.b16 %v6251
    %v6320 = vunpack.c.l.b16 %v6252
    %v6321 = vunpack.c.l.b16 %v6253
    %v6322 = vunpack.c.l.b16 %v6254
    %v6323 = vunpack.c.l.b16 %v6255
    %v6324 = vunpack.c.l.b16 %v6256
    %v6325 = vunpack.c.l.b16 %v6257
    %v6326 = vunpack.c.l.b16 %v6258
    %v6327 = vunpack.c.l.b16 %v6259
    %v6328 = vunpack.c.l.b16 %v6260
    %v6329 = vunpack.c.l.b16 %v6261
    %v6330 = vunpack.c.l.b16 %v6262
    %v6331 = vunpack.c.l.b16 %v6263
    %v6332 = vunpack.c.l.b16 %v6264
    %v6333 = vunpack.c.l.b16 %v6265
    %v6334 = vunpack.c.l.b16 %v6266
    %v6335 = vunpack.c.l.b16 %v6267
    %v6336 = vunpack.c.l.b16 %v6268
    %v6337 = vunpack.c.l.b16 %v6269
    %v6338 = vunpack.c.l.b16 %v6270
    %v6339 = vunpack.c.l.b16 %v6271
    %v6340 = vunpack.c.l.b16 %v6272
    %v6341 = vunpack.c.l.b16 %v6273
    %v6342 = vunpack.c.l.b16 %v6274
    %v6343 = vunpack.c.l.b16 %v6275
    %v6344 = vunpack.c.l.b16 %v6276
    %v6345 = vunpack.c.l.b16 %v6277
    %v6346 = vunpack.c.l.b16 %v6278
    %v6347 = vunpack.c.l.b16 %v6279
    %v6348 = vpack.c.b16 %v6317, %v6316
    %v6349 = vpack.c.b16 %v6319, %v6318
    %v6350 = vpack.c.b16 %v6321, %v6320
    %v6351 = vpack.c.b16 %v6323, %v6322
    %v6352 = vpack.c.b16 %v6325, %v6324
    %v6353 = vpack.c.b16 %v6327, %v6326
    %v6354 = vpack.c.b16 %v6329, %v6328
    %v6355 = vpack.c.b16 %v6331, %v6330
    %v6356 = vpack.c.b16 %v6333, %v6332
    %v6357 = vpack.c.b16 %v6335, %v6334
    %v6358 = vpack.c.b16 %v6337, %v6336
    %v6359 = vpack.c.b16 %v6339, %v6338
    %v6360 = vpack.c.b16 %v6341, %v6340
    %v6361 = vpack.c.b16 %v6343, %v6342
    %v6362 = vpack.c.b16 %v6345, %v6344
    %v6363 = vpack.c.b16 %v6347, %v6346
    %6380 = vmatprep.subr.bf16.mxu0 0
    %6381 = vmatpush1.bf16.msra.mxu0 %v6348
    %6382 = vmatprep.subr.bf16.mxu0 0
    %6383 = vmatpush1.bf16.msra.mxu0 %v6349
    %6384 = vmatprep.subr.bf16.mxu0 0
    %6385 = vmatpush1.bf16.msra.mxu0 %v6350
    %6386 = vmatprep.subr.bf16.mxu0 0
    %6387 = vmatpush1.bf16.msra.mxu0 %v6351
    %6388 = vmatprep.subr.bf16.mxu0 0
    %6389 = vmatpush1.bf16.msra.mxu0 %v6352
    %6390 = vmatprep.subr.bf16.mxu0 0
    %6391 = vmatpush1.bf16.msra.mxu0 %v6353
    %6392 = vmatprep.subr.bf16.mxu0 0
    %6393 = vmatpush1.bf16.msra.mxu0 %v6354
    %6394 = vmatprep.subr.bf16.mxu0 0
    %6395 = vmatpush1.bf16.msra.mxu0 %v6355
    %6396 = vmatprep.subr.bf16.mxu0 0
    %6397 = vmatpush1.bf16.msra.mxu0 %v6356
    %6398 = vmatprep.subr.bf16.mxu0 0
    %6399 = vmatpush1.bf16.msra.mxu0 %v6357
    %6400 = vmatprep.subr.bf16.mxu0 0
    %6401 = vmatpush1.bf16.msra.mxu0 %v6358
    %6402 = vmatprep.subr.bf16.mxu0 0
    %6403 = vmatpush1.bf16.msra.mxu0 %v6359
    %6404 = vmatprep.subr.bf16.mxu0 0
    %6405 = vmatpush1.bf16.msra.mxu0 %v6360
    %6406 = vmatprep.subr.bf16.mxu0 0
    %6407 = vmatpush1.bf16.msra.mxu0 %v6361
    %6408 = vmatprep.subr.bf16.mxu0 0
    %6409 = vmatpush1.bf16.msra.mxu0 %v6362
    %6410 = vmatprep.subr.bf16.mxu0 0
    %6411 = vmatpush1.bf16.msra.mxu0 %v6363
    %6412 = vmatprep.mubr.bf16.mxu0 %v6246
    %6413 = vmatmul.mubr.bf16.gmra.mrb[0].mxu0 %v6245
    %v6414 = vpop.f32.mrb[0].mxu0
    %v6415 = vadd.f32 %v6283, %v6414
    %v6416 = vpop.f32.mrb[0].mxu0
    %v6417 = vpop.f32.mrb[0].mxu0
    %v6418 = vadd.f32 %v6283, %v6417
    %v6419 = vpop.f32.mrb[0].mxu0
    %6420 = vdwg.mxu0
    %v6421 = vadd.f32 %v6090, %v6415
    %v6422 = vadd.f32 %v6091, %v6418
    %6423 = vadd.xlane.f32.xlu0 %v6421
    %v6424 = vpop.xlane.xlu0 %6423
    %6425 = vadd.xlane.f32.xlu0 %v6422
    %v6426 = vpop.xlane.xlu0 %6425
    %v6427 = vmul.f32 %v6424, %v1831
    %v6428 = vmul.f32 %v6426, %v1831
    %v6429 = vsub.f32 %v6421, %v6427
    %v6430 = vsub.f32 %v6422, %v6428
    %v6431 = vmul.f32 %v6429, %v6429
    %v6432 = vmul.f32 %v6430, %v6430
    %6433 = vadd.xlane.f32.xlu0 %v6431
    %v6434 = vpop.xlane.xlu0 %6433
    %6435 = vadd.xlane.f32.xlu0 %v6432
    %v6436 = vpop.xlane.xlu0 %6435
    %v6437 = vmul.f32 %v6434, %v1831
    %v6438 = vmul.f32 %v6436, %v1831
    %v6439 = vadd.f32 %v6437, 1e-05
    %v6440 = vadd.f32 %v6438, 1e-05
    %v6441 = vrsqrt.pop %v6439
    %v6442 = vrsqrt.pop %v6440
    %v6443 = vmul.f32 %v6429, %v6441
    %v6444 = vmul.f32 %v6430, %v6442
    %v6445 = vlaneseq
    %v6446 = vshrl.u32 %v6445, 7
    %v6447 = vsub.s32 6, %v6446
    %v6448 = vrot.slane %v4342, %v6447
    %v6449 = vmul.f32 %v6443, %v6448
    %v6450 = vmul.f32 %v6444, %v6448
    %v6451 = vlaneseq
    %v6452 = vshrl.u32 %v6451, 7
    %v6453 = vsub.s32 7, %v6452
    %v6454 = vrot.slane %v4342, %v6453
    %v6455 = vadd.f32 %v6449, %v6454
    %v6456 = vadd.f32 %v6450, %v6454
    %6457 = vst [vmem:[#allocation13] sm:$0xff] %v6455
    %6458 = vst [vmem:[#allocation13 + $0x8] sm:$0xff] %v6456
    // Predicated region
    $region50: #{tpu_custom_call.1} parent=1 // pred_check
      _
    $region51: #{tpu_custom_call.1} parent=1 // pred_check_branch
      %6460 = sbr.rel (0) target = $region53
    $region52: #{tpu_custom_call.1} parent=1 // pred_region
      %s6462 = ssub.s32 256, 256
      %6463 = vsyncadd [#allocation4], %s6462
      %s6464 = sshll.u32 [#allocation13], 4
      %s6465 = int_to_ptr.vmem [resolvable:$true] %s6464
      %6470 = dma.vmem_to_hbm [thread:$0]  %s6465, 256, %s6, [#allocation4], 128, 128, 8
    $region53: #{tpu_custom_call.1} parent=1 // pred_fallthru
      _
    // Predicated region
    $region54: #{tpu_custom_call.1} parent=1 // pred_check
      _
    $region55: #{tpu_custom_call.1} parent=1 // pred_check_branch
      %6472 = sbr.rel (0) target = $region57
    $region56: #{tpu_custom_call.1} parent=1 // pred_region
      %6473 = dma.done [#allocation4], 256
    $region57: #{tpu_custom_call.1} parent=1 // pred_fallthru
      _
    %6474 = vsyncpa [#allocation3], 1
    %6475 = vsyncpa [#allocation6], 1
    %6476 = vsyncpa [#allocation9], 1
    %6477 = vsyncpa [#allocation12], 1
    %6478 = vsyncpa [#allocation4], 1

</llo_original>
